<compile_context>
chip_gen: v7x
topology: tpu7x:2x2x1
jax: 0.10.0
libtpu: 0.0.40
codegen_flags: <defaults>
</compile_context>

<pallas_src>
import functools
import math

import jax
import jax.numpy as jnp
from jax import lax
from jax.experimental import pallas as pl
from jax.experimental.pallas import tpu as pltpu


# ------------------------------ kernel helpers ------------------------------ #

def _zero_border(pin, p, c):
    """Zero only the pad border of a parity-split padded activation buffer.

    pin[rp, cp, rs, cs, :] == padded_act[2*rs + rp, 2*cs + cp, :], padded
    spatial = 2p x 2p.  The interior is fully overwritten by _store_parity.
    """
    zrow = jnp.zeros((p, c), jnp.bfloat16)
    zcol = jnp.zeros((p, 1, c), jnp.bfloat16)
    for q in (0, 1):
        pin[0, q, 0, :, :] = zrow             # padded row 0
        pin[1, q, p - 1, :, :] = zrow         # padded row 2p-1
        pin[q, 0, :, 0:1, :] = zcol           # padded col 0
        pin[q, 1, :, p - 1:p, :] = zcol       # padded col 2p-1


def _store_parity(act, pout, h, w, c):
    """Scatter a dense (h*w, c) (or (h, w, c)) activation into the next layer's
    parity-split padded input with 4 bulk rectangular stores.

    Pixel (y, x) lands at padded (1+y, 1+x):
      y = 2i+yk -> (rp, rs) = (1, i) if yk==0 else (0, i+1); same for columns.
    """
    h2, w2 = h // 2, w // 2
    a = act.reshape(h2, 2, w2, 2, c)
    for yk in (0, 1):
        rp, r0 = (1, 0) if yk == 0 else (0, 1)
        for xk in (0, 1):
            cp, c0 = (1, 0) if xk == 0 else (0, 1)
            pout[rp, cp, r0:r0 + h2, c0:c0 + w2, :] = a[:, yk, :, xk, :]


def _conv_layer(pin, w_ref, b_ref, s_in, c):
    """Conv2d(k=3, s=2, p=1) + LeakyReLU(0.01) as 9 accumulated tap-GEMMs.

    pin   : ref (2, 2, P, P, c) bf16 parity-split padded input, P = s_in//2 + 1
    w_ref : ref (9, c, c) bf16   (taps in (ky, kx) order, (cin, cout) layout)
    b_ref : ref (1, c)   f32
    returns (h_out*w_out, c) bf16 with h_out = w_out = s_in // 2.
    """
    h = w = s_in // 2
    m = h * w
    acc = jnp.zeros((m, c), jnp.float32)
    for ky in range(3):
        for kx in range(3):
            # output (oy, ox), tap (ky, kx) reads padded[2*oy+ky, 2*ox+kx]:
            # parity (ky%2, kx%2), indices (oy + ky//2, ox + kx//2) -> one
            # contiguous rectangular ref load for the whole layer.
            tap = pin[ky % 2, kx % 2,
                      ky // 2: ky // 2 + h,
                      kx // 2: kx // 2 + w, :]                 # (h, w, c) bf16
            acc = acc + jnp.dot(tap.reshape(m, c), w_ref[ky * 3 + kx],
                                preferred_element_type=jnp.float32)
    acc = acc + b_ref[...]
    acc = jnp.where(acc >= 0.0, acc, acc * 0.01)               # LeakyReLU(0.01)
    return acc.astype(jnp.bfloat16)


def _branch2_kernel(x_ref, w1, w2, w3, w4, b1, b2, b3, b4, wl, bl,
                    out_ref, p1, p2, p3, p4, *, c):
    # Layer-1 input: pad + parity-split the raw NHWC block entirely in VMEM.
    _zero_border(p1, 9, c)
    _store_parity(x_ref[0], p1, 16, 16, c)

    a1 = _conv_layer(p1, w1, b1, 16, c)          # 16x16 -> 8x8   (M = 64)
    _zero_border(p2, 5, c)
    _store_parity(a1, p2, 8, 8, c)

    a2 = _conv_layer(p2, w2, b2, 8, c)           # 8x8  -> 4x4    (M = 16)
    _zero_border(p3, 3, c)
    _store_parity(a2, p3, 4, 4, c)

    a3 = _conv_layer(p3, w3, b3, 4, c)           # 4x4  -> 2x2    (M = 4)
    _zero_border(p4, 2, c)
    _store_parity(a3, p4, 2, 2, c)

    a4 = _conv_layer(p4, w4, b4, 2, c)           # 2x2  -> 1x1    (M = 1)

    # EqualLinear: x.view(-1, out_c) @ (W / sqrt(in_dim)) + b  (scale pre-folded)
    out = jnp.dot(a4, wl[...], preferred_element_type=jnp.float32) + bl[...]
    out_ref[0] = out.astype(out_ref.dtype)


# --------------------------------- wrappers --------------------------------- #

def init_branch2_params(key, in_c, out_c, num_pools):
    params = {"convs": []}
    cin = in_c
    for _ in range(num_pools):
        key, k1, k2 = jax.random.split(key, 3)
        w = jax.random.normal(k1, (3, 3, cin, out_c), jnp.float32) * 0.03
        b = jax.random.normal(k2, (out_c,), jnp.float32) * 0.01
        params["convs"].append((w, b))
        cin = out_c
    key, k1, k2 = jax.random.split(key, 3)
    # EqualLinear stored as (in, out) with x @ W; runtime scale 1/sqrt(in), lr_mul=1.
    # TODO(synk): transpose when loading real pSp checkpoints ((out, in) in PyTorch).
    params["linear_w"] = jax.random.normal(k1, (out_c, out_c), jnp.float32)
    params["linear_b"] = jax.random.normal(k2, (out_c,), jnp.float32) * 0.01
    return params


def prepare_branch2_params(params):
    """One-time conversion to kernel-ready bf16 operands (outside the forward)."""
    conv_w, conv_b = [], []
    for (w, b) in params["convs"]:
        cin, cout = w.shape[2], w.shape[3]
        conv_w.append(w.reshape(9, cin, cout).astype(jnp.bfloat16))   # (ky,kx) taps
        conv_b.append(b.reshape(1, cout).astype(jnp.float32))
    in_dim = params["linear_w"].shape[0]
    lin_w = (params["linear_w"] * (1.0 / math.sqrt(in_dim))).astype(jnp.bfloat16)
    lin_b = params["linear_b"].reshape(1, -1).astype(jnp.float32)
    return {"conv_w": conv_w, "conv_b": conv_b, "lin_w": lin_w, "lin_b": lin_b}


@jax.jit
def branch2_forward(c3_nhwc, prep):
    """GradualStyleBlock forward (Branch2 discards w0; we return it so the
    fused computation can be observed / blocked on)."""
    Nb, H, W, C = c3_nhwc.shape
    assert H == 16 and W == 16, "this fused kernel is specialized to spatial=16"

    xb = c3_nhwc.astype(jnp.bfloat16)
    w1, w2, w3, w4 = prep["conv_w"]
    b1, b2, b3, b4 = prep["conv_b"]
    wl, bl = prep["lin_w"], prep["lin_b"]

    kernel = functools.partial(_branch2_kernel, c=C)
    out = pl.pallas_call(
        kernel,
        out_shape=jax.ShapeDtypeStruct((Nb, 1, C), jnp.float32),
        grid=(Nb,),                                  # one batch element per step
        in_specs=[
            pl.BlockSpec((1, H, W, C), lambda i: (i, 0, 0, 0)),   # raw NHWC slice
            pl.BlockSpec((9, C, C), lambda i: (0, 0, 0)),         # conv weights
            pl.BlockSpec((9, C, C), lambda i: (0, 0, 0)),
            pl.BlockSpec((9, C, C), lambda i: (0, 0, 0)),
            pl.BlockSpec((9, C, C), lambda i: (0, 0, 0)),
            pl.BlockSpec((1, C), lambda i: (0, 0)),               # conv biases
            pl.BlockSpec((1, C), lambda i: (0, 0)),
            pl.BlockSpec((1, C), lambda i: (0, 0)),
            pl.BlockSpec((1, C), lambda i: (0, 0)),
            pl.BlockSpec((C, C), lambda i: (0, 0)),               # EqualLinear W
            pl.BlockSpec((1, C), lambda i: (0, 0)),               # EqualLinear b
        ],
        out_specs=pl.BlockSpec((1, 1, C), lambda i: (i, 0, 0)),
        scratch_shapes=[
            pltpu.VMEM((2, 2, 9, 9, C), jnp.bfloat16),   # layer-1 padded 18x18
            pltpu.VMEM((2, 2, 5, 5, C), jnp.bfloat16),   # layer-2 padded 10x10
            pltpu.VMEM((2, 2, 3, 3, C), jnp.bfloat16),   # layer-3 padded 6x6
            pltpu.VMEM((2, 2, 2, 2, C), jnp.bfloat16),   # layer-4 padded 4x4
        ],
        compiler_params=pltpu.CompilerParams(
            dimension_semantics=("parallel",)),          # v7x: one batch elem / TC
    )(xb, w1, w2, w3, w4, b1, b2, b3, b4, wl, bl)
    return out.reshape(Nb, C)


# -------------------------------- references -------------------------------- #

def _leaky(x):
    return jnp.where(x >= 0.0, x, 0.01 * x)


def branch2_reference_f32(c3_nhwc, params):
    h = c3_nhwc
    for w, b in params["convs"]:
        h = lax.conv_general_dilated(
            h, w, window_strides=(2, 2), padding=((1, 1), (1, 1)),
            dimension_numbers=("NHWC", "HWIO", "NHWC"),
            precision=lax.Precision.HIGHEST)
        h = _leaky(h + b.reshape(1, 1, 1, -1))
    h = h.reshape(h.shape[0], -1)
    in_dim = params["linear_w"].shape[0]
    w_eff = params["linear_w"] * (1.0 / math.sqrt(in_dim))
    return jnp.dot(h, w_eff, precision=lax.Precision.HIGHEST) + params["linear_b"]


def branch2_reference_bf16_matched(c3_nhwc, params):
    """Same math as the kernel: bf16-rounded operands/activations, f32 accumulate."""
    rt = lambda a: a.astype(jnp.bfloat16).astype(jnp.float32)
    h = rt(c3_nhwc)
    for w, b in params["convs"]:
        h = lax.conv_general_dilated(
            h, rt(w), window_strides=(2, 2), padding=((1, 1), (1, 1)),
            dimension_numbers=("NHWC", "HWIO", "NHWC"),
            precision=lax.Precision.HIGHEST)
        h = rt(_leaky(h + b.reshape(1, 1, 1, -1)))
    h = h.reshape(h.shape[0], -1)
    in_dim = params["linear_w"].shape[0]
    w_eff = rt(params["linear_w"] * (1.0 / math.sqrt(in_dim)))
    return jnp.dot(h, w_eff, precision=lax.Precision.HIGHEST) + params["linear_b"]


# ----------------------------------- main ------------------------------------ #

if __name__ == "__main__":
    key = jax.random.PRNGKey(0)
    N = 2          # batch
    C = 128        # channels (module uses 512; reduced, lane-aligned demo)
    SPATIAL = 16
    NUM_POOLS = int(math.log2(SPATIAL))  # 4

    kp, kx = jax.random.split(key)
    params = init_branch2_params(kp, C, C, NUM_POOLS)
    prep = prepare_branch2_params(params)

    # PyTorch input is NCHW; convert to the kernel's NHWC layout.
    c3_nchw = jax.random.normal(kx, (N, C, SPATIAL, SPATIAL), jnp.float32)
    c3 = jnp.transpose(c3_nchw, (0, 2, 3, 1))

    w0 = jax.block_until_ready(branch2_forward(c3, prep))
    assert w0.shape == (N, C), w0.shape

    ref_m = branch2_reference_bf16_matched(c3, params)
    ref_f = branch2_reference_f32(c3, params)
    assert jnp.allclose(w0, ref_m, rtol=1e-2, atol=1e-2), \
        float(jnp.max(jnp.abs(w0 - ref_m)))
    assert jnp.allclose(w0, ref_f, rtol=5e-2, atol=5e-2), \
        float(jnp.max(jnp.abs(w0 - ref_f)))

    # TODO(synk): Branch2.forward itself returns None (w0 is discarded); we
    # return w0 so the fused computation is observable.
    print("KERNEL_OK")
</pallas_src>

<mosaic_0001>
module attributes {stable_mosaic.version = 11 : i64} {
  func.func @_branch2_kernel(%arg0: i32, %arg1: memref<1x16x16x128xbf16, #tpu.memory_space<vmem>>, %arg2: memref<9x128x128xbf16, #tpu.memory_space<vmem>>, %arg3: memref<9x128x128xbf16, #tpu.memory_space<vmem>>, %arg4: memref<9x128x128xbf16, #tpu.memory_space<vmem>>, %arg5: memref<9x128x128xbf16, #tpu.memory_space<vmem>>, %arg6: memref<1x128xf32, #tpu.memory_space<vmem>>, %arg7: memref<1x128xf32, #tpu.memory_space<vmem>>, %arg8: memref<1x128xf32, #tpu.memory_space<vmem>>, %arg9: memref<1x128xf32, #tpu.memory_space<vmem>>, %arg10: memref<128x128xbf16, #tpu.memory_space<vmem>>, %arg11: memref<1x128xf32, #tpu.memory_space<vmem>>, %arg12: memref<1x1x128xf32, #tpu.memory_space<vmem>>, %arg13: memref<2x2x9x9x128xbf16, #tpu.memory_space<vmem>>, %arg14: memref<2x2x5x5x128xbf16, #tpu.memory_space<vmem>>, %arg15: memref<2x2x3x3x128xbf16, #tpu.memory_space<vmem>>, %arg16: memref<2x2x2x2x128xbf16, #tpu.memory_space<vmem>>) attributes {dimension_semantics = [#tpu.dimension_semantics<parallel>], iteration_bounds = array<i64: 2>, scalar_prefetch = 0 : i64, scratch_operands = 4 : i64, tpu.core_type = #tpu.core_type<tc>, window_params = [{transform_indices = @transform_0, window_bounds = array<i64: 1, 16, 16, 128>}, {pipeline_mode = #tpu.pipeline_mode<synchronous>, transform_indices = @transform_1, window_bounds = array<i64: 9, 128, 128>}, {pipeline_mode = #tpu.pipeline_mode<synchronous>, transform_indices = @transform_2, window_bounds = array<i64: 9, 128, 128>}, {pipeline_mode = #tpu.pipeline_mode<synchronous>, transform_indices = @transform_3, window_bounds = array<i64: 9, 128, 128>}, {pipeline_mode = #tpu.pipeline_mode<synchronous>, transform_indices = @transform_4, window_bounds = array<i64: 9, 128, 128>}, {pipeline_mode = #tpu.pipeline_mode<synchronous>, transform_indices = @transform_5, window_bounds = array<i64: 1, 128>}, {pipeline_mode = #tpu.pipeline_mode<synchronous>, transform_indices = @transform_6, window_bounds = array<i64: 1, 128>}, {pipeline_mode = #tpu.pipeline_mode<synchronous>, transform_indices = @transform_7, window_bounds = array<i64: 1, 128>}, {pipeline_mode = #tpu.pipeline_mode<synchronous>, transform_indices = @transform_8, window_bounds = array<i64: 1, 128>}, {pipeline_mode = #tpu.pipeline_mode<synchronous>, transform_indices = @transform_9, window_bounds = array<i64: 128, 128>}, {pipeline_mode = #tpu.pipeline_mode<synchronous>, transform_indices = @transform_10, window_bounds = array<i64: 1, 128>}, {transform_indices = @transform_11, window_bounds = array<i64: 1, 1, 128>}]} {
    %cst = arith.constant 0.000000e+00 : bf16
    %0 = vector.broadcast %cst : bf16 to vector<9x128xbf16>
    %cst_0 = arith.constant 0.000000e+00 : bf16
    %1 = vector.broadcast %cst_0 : bf16 to vector<9x1x128xbf16>
    %c0 = arith.constant 0 : index
    %c0_1 = arith.constant 0 : index
    %c0_2 = arith.constant 0 : index
    %c0_3 = arith.constant 0 : index
    %c0_4 = arith.constant 0 : index
    %2 = vector.load %arg13[%c0, %c0_1, %c0_2, %c0_3, %c0_4] : memref<2x2x9x9x128xbf16, #tpu.memory_space<vmem>>, vector<1x1x1x9x128xbf16>
    %3 = vector.shape_cast %2 : vector<1x1x1x9x128xbf16> to vector<9x128xbf16>
    %4 = vector.shape_cast %0 : vector<9x128xbf16> to vector<1x1x1x9x128xbf16>
    tpu.vector_store %arg13[%c0, %c0_1, %c0_2, %c0_3, %c0_4], %4 {strides = array<i32>} : memref<2x2x9x9x128xbf16, #tpu.memory_space<vmem>>, vector<1x1x1x9x128xbf16>,
    %c1 = arith.constant 1 : index
    %c0_5 = arith.constant 0 : index
    %c8 = arith.constant 8 : index
    %c0_6 = arith.constant 0 : index
    %c0_7 = arith.constant 0 : index
    %5 = vector.load %arg13[%c1, %c0_5, %c8, %c0_6, %c0_7] : memref<2x2x9x9x128xbf16, #tpu.memory_space<vmem>>, vector<1x1x1x9x128xbf16>
    %6 = vector.shape_cast %5 : vector<1x1x1x9x128xbf16> to vector<9x128xbf16>
    %7 = vector.shape_cast %0 : vector<9x128xbf16> to vector<1x1x1x9x128xbf16>
    tpu.vector_store %arg13[%c1, %c0_5, %c8, %c0_6, %c0_7], %7 {strides = array<i32>} : memref<2x2x9x9x128xbf16, #tpu.memory_space<vmem>>, vector<1x1x1x9x128xbf16>,
    %c0_8 = arith.constant 0 : index
    %c0_9 = arith.constant 0 : index
    %c0_10 = arith.constant 0 : index
    %c0_11 = arith.constant 0 : index
    %c0_12 = arith.constant 0 : index
    %8 = vector.load %arg13[%c0_8, %c0_9, %c0_10, %c0_11, %c0_12] : memref<2x2x9x9x128xbf16, #tpu.memory_space<vmem>>, vector<1x1x9x1x128xbf16>
    %9 = vector.shape_cast %8 : vector<1x1x9x1x128xbf16> to vector<9x1x128xbf16>
    %10 = vector.shape_cast %1 : vector<9x1x128xbf16> to vector<1x1x9x1x128xbf16>
    tpu.vector_store %arg13[%c0_8, %c0_9, %c0_10, %c0_11, %c0_12], %10 {strides = array<i32>} : memref<2x2x9x9x128xbf16, #tpu.memory_space<vmem>>, vector<1x1x9x1x128xbf16>,
    %c0_13 = arith.constant 0 : index
    %c1_14 = arith.constant 1 : index
    %c0_15 = arith.constant 0 : index
    %c8_16 = arith.constant 8 : index
    %c0_17 = arith.constant 0 : index
    %11 = vector.load %arg13[%c0_13, %c1_14, %c0_15, %c8_16, %c0_17] : memref<2x2x9x9x128xbf16, #tpu.memory_space<vmem>>, vector<1x1x9x1x128xbf16>
    %12 = vector.shape_cast %11 : vector<1x1x9x1x128xbf16> to vector<9x1x128xbf16>
    %13 = vector.shape_cast %1 : vector<9x1x128xbf16> to vector<1x1x9x1x128xbf16>
    tpu.vector_store %arg13[%c0_13, %c1_14, %c0_15, %c8_16, %c0_17], %13 {strides = array<i32>} : memref<2x2x9x9x128xbf16, #tpu.memory_space<vmem>>, vector<1x1x9x1x128xbf16>,
    %c0_18 = arith.constant 0 : index
    %c1_19 = arith.constant 1 : index
    %c0_20 = arith.constant 0 : index
    %c0_21 = arith.constant 0 : index
    %c0_22 = arith.constant 0 : index
    %14 = vector.load %arg13[%c0_18, %c1_19, %c0_20, %c0_21, %c0_22] : memref<2x2x9x9x128xbf16, #tpu.memory_space<vmem>>, vector<1x1x1x9x128xbf16>
    %15 = vector.shape_cast %14 : vector<1x1x1x9x128xbf16> to vector<9x128xbf16>
    %16 = vector.shape_cast %0 : vector<9x128xbf16> to vector<1x1x1x9x128xbf16>
    tpu.vector_store %arg13[%c0_18, %c1_19, %c0_20, %c0_21, %c0_22], %16 {strides = array<i32>} : memref<2x2x9x9x128xbf16, #tpu.memory_space<vmem>>, vector<1x1x1x9x128xbf16>,
    %c1_23 = arith.constant 1 : index
    %c1_24 = arith.constant 1 : index
    %c8_25 = arith.constant 8 : index
    %c0_26 = arith.constant 0 : index
    %c0_27 = arith.constant 0 : index
    %17 = vector.load %arg13[%c1_23, %c1_24, %c8_25, %c0_26, %c0_27] : memref<2x2x9x9x128xbf16, #tpu.memory_space<vmem>>, vector<1x1x1x9x128xbf16>
    %18 = vector.shape_cast %17 : vector<1x1x1x9x128xbf16> to vector<9x128xbf16>
    %19 = vector.shape_cast %0 : vector<9x128xbf16> to vector<1x1x1x9x128xbf16>
    tpu.vector_store %arg13[%c1_23, %c1_24, %c8_25, %c0_26, %c0_27], %19 {strides = array<i32>} : memref<2x2x9x9x128xbf16, #tpu.memory_space<vmem>>, vector<1x1x1x9x128xbf16>,
    %c1_28 = arith.constant 1 : index
    %c0_29 = arith.constant 0 : index
    %c0_30 = arith.constant 0 : index
    %c0_31 = arith.constant 0 : index
    %c0_32 = arith.constant 0 : index
    %20 = vector.load %arg13[%c1_28, %c0_29, %c0_30, %c0_31, %c0_32] : memref<2x2x9x9x128xbf16, #tpu.memory_space<vmem>>, vector<1x1x9x1x128xbf16>
    %21 = vector.shape_cast %20 : vector<1x1x9x1x128xbf16> to vector<9x1x128xbf16>
    %22 = vector.shape_cast %1 : vector<9x1x128xbf16> to vector<1x1x9x1x128xbf16>
    tpu.vector_store %arg13[%c1_28, %c0_29, %c0_30, %c0_31, %c0_32], %22 {strides = array<i32>} : memref<2x2x9x9x128xbf16, #tpu.memory_space<vmem>>, vector<1x1x9x1x128xbf16>,
    %c1_33 = arith.constant 1 : index
    %c1_34 = arith.constant 1 : index
    %c0_35 = arith.constant 0 : index
    %c8_36 = arith.constant 8 : index
    %c0_37 = arith.constant 0 : index
    %23 = vector.load %arg13[%c1_33, %c1_34, %c0_35, %c8_36, %c0_37] : memref<2x2x9x9x128xbf16, #tpu.memory_space<vmem>>, vector<1x1x9x1x128xbf16>
    %24 = vector.shape_cast %23 : vector<1x1x9x1x128xbf16> to vector<9x1x128xbf16>
    %25 = vector.shape_cast %1 : vector<9x1x128xbf16> to vector<1x1x9x1x128xbf16>
    tpu.vector_store %arg13[%c1_33, %c1_34, %c0_35, %c8_36, %c0_37], %25 {strides = array<i32>} : memref<2x2x9x9x128xbf16, #tpu.memory_space<vmem>>, vector<1x1x9x1x128xbf16>,
    %c0_38 = arith.constant 0 : index
    %c0_39 = arith.constant 0 : index
    %c0_40 = arith.constant 0 : index
    %c0_41 = arith.constant 0 : index
    %26 = vector.load %arg1[%c0_38, %c0_39, %c0_40, %c0_41] : memref<1x16x16x128xbf16, #tpu.memory_space<vmem>>, vector<1x16x16x128xbf16>
    %27 = vector.shape_cast %26 : vector<1x16x16x128xbf16> to vector<16x16x128xbf16>
    %28 = vector.shape_cast %27 : vector<16x16x128xbf16> to vector<8x2x8x2x128xbf16>
    %29 = vector.extract_strided_slice %28 {offsets = [0, 0, 0, 0, 0], sizes = [8, 1, 8, 1, 128], strides = [1, 1, 1, 1, 1]} : vector<8x2x8x2x128xbf16> to vector<8x1x8x1x128xbf16>
    %30 = vector.shape_cast %29 : vector<8x1x8x1x128xbf16> to vector<8x8x128xbf16>
    %c1_42 = arith.constant 1 : index
    %c1_43 = arith.constant 1 : index
    %c0_44 = arith.constant 0 : index
    %c0_45 = arith.constant 0 : index
    %c0_46 = arith.constant 0 : index
    %31 = vector.load %arg13[%c1_42, %c1_43, %c0_44, %c0_45, %c0_46] : memref<2x2x9x9x128xbf16, #tpu.memory_space<vmem>>, vector<1x1x8x8x128xbf16>
    %32 = vector.shape_cast %31 : vector<1x1x8x8x128xbf16> to vector<8x8x128xbf16>
    %33 = vector.shape_cast %30 : vector<8x8x128xbf16> to vector<1x1x8x8x128xbf16>
    tpu.vector_store %arg13[%c1_42, %c1_43, %c0_44, %c0_45, %c0_46], %33 {strides = array<i32>} : memref<2x2x9x9x128xbf16, #tpu.memory_space<vmem>>, vector<1x1x8x8x128xbf16>,
    %34 = vector.extract_strided_slice %28 {offsets = [0, 0, 0, 1, 0], sizes = [8, 1, 8, 1, 128], strides = [1, 1, 1, 1, 1]} : vector<8x2x8x2x128xbf16> to vector<8x1x8x1x128xbf16>
    %35 = vector.shape_cast %34 : vector<8x1x8x1x128xbf16> to vector<8x8x128xbf16>
    %c1_47 = arith.constant 1 : index
    %c0_48 = arith.constant 0 : index
    %c0_49 = arith.constant 0 : index
    %c1_50 = arith.constant 1 : index
    %c0_51 = arith.constant 0 : index
    %36 = vector.load %arg13[%c1_47, %c0_48, %c0_49, %c1_50, %c0_51] : memref<2x2x9x9x128xbf16, #tpu.memory_space<vmem>>, vector<1x1x8x8x128xbf16>
    %37 = vector.shape_cast %36 : vector<1x1x8x8x128xbf16> to vector<8x8x128xbf16>
    %38 = vector.shape_cast %35 : vector<8x8x128xbf16> to vector<1x1x8x8x128xbf16>
    tpu.vector_store %arg13[%c1_47, %c0_48, %c0_49, %c1_50, %c0_51], %38 {strides = array<i32>} : memref<2x2x9x9x128xbf16, #tpu.memory_space<vmem>>, vector<1x1x8x8x128xbf16>,
    %39 = vector.extract_strided_slice %28 {offsets = [0, 1, 0, 0, 0], sizes = [8, 1, 8, 1, 128], strides = [1, 1, 1, 1, 1]} : vector<8x2x8x2x128xbf16> to vector<8x1x8x1x128xbf16>
    %40 = vector.shape_cast %39 : vector<8x1x8x1x128xbf16> to vector<8x8x128xbf16>
    %c0_52 = arith.constant 0 : index
    %c1_53 = arith.constant 1 : index
    %c1_54 = arith.constant 1 : index
    %c0_55 = arith.constant 0 : index
    %c0_56 = arith.constant 0 : index
    %41 = vector.load %arg13[%c0_52, %c1_53, %c1_54, %c0_55, %c0_56] : memref<2x2x9x9x128xbf16, #tpu.memory_space<vmem>>, vector<1x1x8x8x128xbf16>
    %42 = vector.shape_cast %41 : vector<1x1x8x8x128xbf16> to vector<8x8x128xbf16>
    %43 = vector.shape_cast %40 : vector<8x8x128xbf16> to vector<1x1x8x8x128xbf16>
    tpu.vector_store %arg13[%c0_52, %c1_53, %c1_54, %c0_55, %c0_56], %43 {strides = array<i32>} : memref<2x2x9x9x128xbf16, #tpu.memory_space<vmem>>, vector<1x1x8x8x128xbf16>,
    %44 = vector.extract_strided_slice %28 {offsets = [0, 1, 0, 1, 0], sizes = [8, 1, 8, 1, 128], strides = [1, 1, 1, 1, 1]} : vector<8x2x8x2x128xbf16> to vector<8x1x8x1x128xbf16>
    %45 = vector.shape_cast %44 : vector<8x1x8x1x128xbf16> to vector<8x8x128xbf16>
    %c0_57 = arith.constant 0 : index
    %c0_58 = arith.constant 0 : index
    %c1_59 = arith.constant 1 : index
    %c1_60 = arith.constant 1 : index
    %c0_61 = arith.constant 0 : index
    %46 = vector.load %arg13[%c0_57, %c0_58, %c1_59, %c1_60, %c0_61] : memref<2x2x9x9x128xbf16, #tpu.memory_space<vmem>>, vector<1x1x8x8x128xbf16>
    %47 = vector.shape_cast %46 : vector<1x1x8x8x128xbf16> to vector<8x8x128xbf16>
    %48 = vector.shape_cast %45 : vector<8x8x128xbf16> to vector<1x1x8x8x128xbf16>
    tpu.vector_store %arg13[%c0_57, %c0_58, %c1_59, %c1_60, %c0_61], %48 {strides = array<i32>} : memref<2x2x9x9x128xbf16, #tpu.memory_space<vmem>>, vector<1x1x8x8x128xbf16>,
    %cst_62 = arith.constant 0.000000e+00 : f32
    %49 = vector.broadcast %cst_62 : f32 to vector<64x128xf32>
    %c0_63 = arith.constant 0 : index
    %c0_64 = arith.constant 0 : index
    %c0_65 = arith.constant 0 : index
    %c0_66 = arith.constant 0 : index
    %c0_67 = arith.constant 0 : index
    %50 = vector.load %arg13[%c0_63, %c0_64, %c0_65, %c0_66, %c0_67] : memref<2x2x9x9x128xbf16, #tpu.memory_space<vmem>>, vector<1x1x8x8x128xbf16>
    %51 = vector.shape_cast %50 : vector<1x1x8x8x128xbf16> to vector<8x8x128xbf16>
    %52 = vector.shape_cast %51 : vector<8x8x128xbf16> to vector<64x128xbf16>
    %c0_68 = arith.constant 0 : index
    %c0_69 = arith.constant 0 : index
    %c0_70 = arith.constant 0 : index
    %53 = vector.load %arg2[%c0_68, %c0_69, %c0_70] : memref<9x128x128xbf16, #tpu.memory_space<vmem>>, vector<1x128x128xbf16>
    %54 = vector.shape_cast %53 : vector<1x128x128xbf16> to vector<128x128xbf16>
    %cst_71 = arith.constant dense<0.000000e+00> : vector<64x128xf32>
    %55 = tpu.matmul %52, %54, %cst_71 {dimension_numbers = #tpu.dot_dimension_numbers<[1], [0], [0], [1], [0, 0, 1, 1], [], []>} : vector<64x128xbf16>, vector<128x128xbf16>, vector<64x128xf32> -> vector<64x128xf32>
    %56 = arith.addf %49, %55 : vector<64x128xf32>
    %c0_72 = arith.constant 0 : index
    %c1_73 = arith.constant 1 : index
    %c0_74 = arith.constant 0 : index
    %c0_75 = arith.constant 0 : index
    %c0_76 = arith.constant 0 : index
    %57 = vector.load %arg13[%c0_72, %c1_73, %c0_74, %c0_75, %c0_76] : memref<2x2x9x9x128xbf16, #tpu.memory_space<vmem>>, vector<1x1x8x8x128xbf16>
    %58 = vector.shape_cast %57 : vector<1x1x8x8x128xbf16> to vector<8x8x128xbf16>
    %59 = vector.shape_cast %58 : vector<8x8x128xbf16> to vector<64x128xbf16>
    %c1_77 = arith.constant 1 : index
    %c0_78 = arith.constant 0 : index
    %c0_79 = arith.constant 0 : index
    %60 = vector.load %arg2[%c1_77, %c0_78, %c0_79] : memref<9x128x128xbf16, #tpu.memory_space<vmem>>, vector<1x128x128xbf16>
    %61 = vector.shape_cast %60 : vector<1x128x128xbf16> to vector<128x128xbf16>
    %cst_80 = arith.constant dense<0.000000e+00> : vector<64x128xf32>
    %62 = tpu.matmul %59, %61, %cst_80 {dimension_numbers = #tpu.dot_dimension_numbers<[1], [0], [0], [1], [0, 0, 1, 1], [], []>} : vector<64x128xbf16>, vector<128x128xbf16>, vector<64x128xf32> -> vector<64x128xf32>
    %63 = arith.addf %56, %62 : vector<64x128xf32>
    %c0_81 = arith.constant 0 : index
    %c0_82 = arith.constant 0 : index
    %c0_83 = arith.constant 0 : index
    %c1_84 = arith.constant 1 : index
    %c0_85 = arith.constant 0 : index
    %64 = vector.load %arg13[%c0_81, %c0_82, %c0_83, %c1_84, %c0_85] : memref<2x2x9x9x128xbf16, #tpu.memory_space<vmem>>, vector<1x1x8x8x128xbf16>
    %65 = vector.shape_cast %64 : vector<1x1x8x8x128xbf16> to vector<8x8x128xbf16>
    %66 = vector.shape_cast %65 : vector<8x8x128xbf16> to vector<64x128xbf16>
    %c2 = arith.constant 2 : index
    %c0_86 = arith.constant 0 : index
    %c0_87 = arith.constant 0 : index
    %67 = vector.load %arg2[%c2, %c0_86, %c0_87] : memref<9x128x128xbf16, #tpu.memory_space<vmem>>, vector<1x128x128xbf16>
    %68 = vector.shape_cast %67 : vector<1x128x128xbf16> to vector<128x128xbf16>
    %cst_88 = arith.constant dense<0.000000e+00> : vector<64x128xf32>
    %69 = tpu.matmul %66, %68, %cst_88 {dimension_numbers = #tpu.dot_dimension_numbers<[1], [0], [0], [1], [0, 0, 1, 1], [], []>} : vector<64x128xbf16>, vector<128x128xbf16>, vector<64x128xf32> -> vector<64x128xf32>
    %70 = arith.addf %63, %69 : vector<64x128xf32>
    %c1_89 = arith.constant 1 : index
    %c0_90 = arith.constant 0 : index
    %c0_91 = arith.constant 0 : index
    %c0_92 = arith.constant 0 : index
    %c0_93 = arith.constant 0 : index
    %71 = vector.load %arg13[%c1_89, %c0_90, %c0_91, %c0_92, %c0_93] : memref<2x2x9x9x128xbf16, #tpu.memory_space<vmem>>, vector<1x1x8x8x128xbf16>
    %72 = vector.shape_cast %71 : vector<1x1x8x8x128xbf16> to vector<8x8x128xbf16>
    %73 = vector.shape_cast %72 : vector<8x8x128xbf16> to vector<64x128xbf16>
    %c3 = arith.constant 3 : index
    %c0_94 = arith.constant 0 : index
    %c0_95 = arith.constant 0 : index
    %74 = vector.load %arg2[%c3, %c0_94, %c0_95] : memref<9x128x128xbf16, #tpu.memory_space<vmem>>, vector<1x128x128xbf16>
    %75 = vector.shape_cast %74 : vector<1x128x128xbf16> to vector<128x128xbf16>
    %cst_96 = arith.constant dense<0.000000e+00> : vector<64x128xf32>
    %76 = tpu.matmul %73, %75, %cst_96 {dimension_numbers = #tpu.dot_dimension_numbers<[1], [0], [0], [1], [0, 0, 1, 1], [], []>} : vector<64x128xbf16>, vector<128x128xbf16>, vector<64x128xf32> -> vector<64x128xf32>
    %77 = arith.addf %70, %76 : vector<64x128xf32>
    %c1_97 = arith.constant 1 : index
    %c1_98 = arith.constant 1 : index
    %c0_99 = arith.constant 0 : index
    %c0_100 = arith.constant 0 : index
    %c0_101 = arith.constant 0 : index
    %78 = vector.load %arg13[%c1_97, %c1_98, %c0_99, %c0_100, %c0_101] : memref<2x2x9x9x128xbf16, #tpu.memory_space<vmem>>, vector<1x1x8x8x128xbf16>
    %79 = vector.shape_cast %78 : vector<1x1x8x8x128xbf16> to vector<8x8x128xbf16>
    %80 = vector.shape_cast %79 : vector<8x8x128xbf16> to vector<64x128xbf16>
    %c4 = arith.constant 4 : index
    %c0_102 = arith.constant 0 : index
    %c0_103 = arith.constant 0 : index
    %81 = vector.load %arg2[%c4, %c0_102, %c0_103] : memref<9x128x128xbf16, #tpu.memory_space<vmem>>, vector<1x128x128xbf16>
    %82 = vector.shape_cast %81 : vector<1x128x128xbf16> to vector<128x128xbf16>
    %cst_104 = arith.constant dense<0.000000e+00> : vector<64x128xf32>
    %83 = tpu.matmul %80, %82, %cst_104 {dimension_numbers = #tpu.dot_dimension_numbers<[1], [0], [0], [1], [0, 0, 1, 1], [], []>} : vector<64x128xbf16>, vector<128x128xbf16>, vector<64x128xf32> -> vector<64x128xf32>
    %84 = arith.addf %77, %83 : vector<64x128xf32>
    %c1_105 = arith.constant 1 : index
    %c0_106 = arith.constant 0 : index
    %c0_107 = arith.constant 0 : index
    %c1_108 = arith.constant 1 : index
    %c0_109 = arith.constant 0 : index
    %85 = vector.load %arg13[%c1_105, %c0_106, %c0_107, %c1_108, %c0_109] : memref<2x2x9x9x128xbf16, #tpu.memory_space<vmem>>, vector<1x1x8x8x128xbf16>
    %86 = vector.shape_cast %85 : vector<1x1x8x8x128xbf16> to vector<8x8x128xbf16>
    %87 = vector.shape_cast %86 : vector<8x8x128xbf16> to vector<64x128xbf16>
    %c5 = arith.constant 5 : index
    %c0_110 = arith.constant 0 : index
    %c0_111 = arith.constant 0 : index
    %88 = vector.load %arg2[%c5, %c0_110, %c0_111] : memref<9x128x128xbf16, #tpu.memory_space<vmem>>, vector<1x128x128xbf16>
    %89 = vector.shape_cast %88 : vector<1x128x128xbf16> to vector<128x128xbf16>
    %cst_112 = arith.constant dense<0.000000e+00> : vector<64x128xf32>
    %90 = tpu.matmul %87, %89, %cst_112 {dimension_numbers = #tpu.dot_dimension_numbers<[1], [0], [0], [1], [0, 0, 1, 1], [], []>} : vector<64x128xbf16>, vector<128x128xbf16>, vector<64x128xf32> -> vector<64x128xf32>
    %91 = arith.addf %84, %90 : vector<64x128xf32>
    %c0_113 = arith.constant 0 : index
    %c0_114 = arith.constant 0 : index
    %c1_115 = arith.constant 1 : index
    %c0_116 = arith.constant 0 : index
    %c0_117 = arith.constant 0 : index
    %92 = vector.load %arg13[%c0_113, %c0_114, %c1_115, %c0_116, %c0_117] : memref<2x2x9x9x128xbf16, #tpu.memory_space<vmem>>, vector<1x1x8x8x128xbf16>
    %93 = vector.shape_cast %92 : vector<1x1x8x8x128xbf16> to vector<8x8x128xbf16>
    %94 = vector.shape_cast %93 : vector<8x8x128xbf16> to vector<64x128xbf16>
    %c6 = arith.constant 6 : index
    %c0_118 = arith.constant 0 : index
    %c0_119 = arith.constant 0 : index
    %95 = vector.load %arg2[%c6, %c0_118, %c0_119] : memref<9x128x128xbf16, #tpu.memory_space<vmem>>, vector<1x128x128xbf16>
    %96 = vector.shape_cast %95 : vector<1x128x128xbf16> to vector<128x128xbf16>
    %cst_120 = arith.constant dense<0.000000e+00> : vector<64x128xf32>
    %97 = tpu.matmul %94, %96, %cst_120 {dimension_numbers = #tpu.dot_dimension_numbers<[1], [0], [0], [1], [0, 0, 1, 1], [], []>} : vector<64x128xbf16>, vector<128x128xbf16>, vector<64x128xf32> -> vector<64x128xf32>
    %98 = arith.addf %91, %97 : vector<64x128xf32>
    %c0_121 = arith.constant 0 : index
    %c1_122 = arith.constant 1 : index
    %c1_123 = arith.constant 1 : index
    %c0_124 = arith.constant 0 : index
    %c0_125 = arith.constant 0 : index
    %99 = vector.load %arg13[%c0_121, %c1_122, %c1_123, %c0_124, %c0_125] : memref<2x2x9x9x128xbf16, #tpu.memory_space<vmem>>, vector<1x1x8x8x128xbf16>
    %100 = vector.shape_cast %99 : vector<1x1x8x8x128xbf16> to vector<8x8x128xbf16>
    %101 = vector.shape_cast %100 : vector<8x8x128xbf16> to vector<64x128xbf16>
    %c7 = arith.constant 7 : index
    %c0_126 = arith.constant 0 : index
    %c0_127 = arith.constant 0 : index
    %102 = vector.load %arg2[%c7, %c0_126, %c0_127] : memref<9x128x128xbf16, #tpu.memory_space<vmem>>, vector<1x128x128xbf16>
    %103 = vector.shape_cast %102 : vector<1x128x128xbf16> to vector<128x128xbf16>
    %cst_128 = arith.constant dense<0.000000e+00> : vector<64x128xf32>
    %104 = tpu.matmul %101, %103, %cst_128 {dimension_numbers = #tpu.dot_dimension_numbers<[1], [0], [0], [1], [0, 0, 1, 1], [], []>} : vector<64x128xbf16>, vector<128x128xbf16>, vector<64x128xf32> -> vector<64x128xf32>
    %105 = arith.addf %98, %104 : vector<64x128xf32>
    %c0_129 = arith.constant 0 : index
    %c0_130 = arith.constant 0 : index
    %c1_131 = arith.constant 1 : index
    %c1_132 = arith.constant 1 : index
    %c0_133 = arith.constant 0 : index
    %106 = vector.load %arg13[%c0_129, %c0_130, %c1_131, %c1_132, %c0_133] : memref<2x2x9x9x128xbf16, #tpu.memory_space<vmem>>, vector<1x1x8x8x128xbf16>
    %107 = vector.shape_cast %106 : vector<1x1x8x8x128xbf16> to vector<8x8x128xbf16>
    %108 = vector.shape_cast %107 : vector<8x8x128xbf16> to vector<64x128xbf16>
    %c8_134 = arith.constant 8 : index
    %c0_135 = arith.constant 0 : index
    %c0_136 = arith.constant 0 : index
    %109 = vector.load %arg2[%c8_134, %c0_135, %c0_136] : memref<9x128x128xbf16, #tpu.memory_space<vmem>>, vector<1x128x128xbf16>
    %110 = vector.shape_cast %109 : vector<1x128x128xbf16> to vector<128x128xbf16>
    %cst_137 = arith.constant dense<0.000000e+00> : vector<64x128xf32>
    %111 = tpu.matmul %108, %110, %cst_137 {dimension_numbers = #tpu.dot_dimension_numbers<[1], [0], [0], [1], [0, 0, 1, 1], [], []>} : vector<64x128xbf16>, vector<128x128xbf16>, vector<64x128xf32> -> vector<64x128xf32>
    %112 = arith.addf %105, %111 : vector<64x128xf32>
    %c0_138 = arith.constant 0 : index
    %c0_139 = arith.constant 0 : index
    %113 = vector.load %arg6[%c0_138, %c0_139] : memref<1x128xf32, #tpu.memory_space<vmem>>, vector<1x128xf32>
    %114 = vector.broadcast %113 : vector<1x128xf32> to vector<64x128xf32>
    %115 = arith.addf %112, %114 : vector<64x128xf32>
    %cst_140 = arith.constant 0.000000e+00 : f32
    %116 = vector.broadcast %cst_140 : f32 to vector<64x128xf32>
    %117 = arith.cmpf oge, %115, %116 : vector<64x128xf32>
    %cst_141 = arith.constant 0.00999999977 : f32
    %118 = vector.broadcast %cst_141 : f32 to vector<64x128xf32>
    %119 = arith.mulf %115, %118 : vector<64x128xf32>
    %120 = arith.select %117, %115, %119 : vector<64x128xi1>, vector<64x128xf32>
    %121 = arith.truncf %120 : vector<64x128xf32> to vector<64x128xbf16>
    %cst_142 = arith.constant 0.000000e+00 : bf16
    %122 = vector.broadcast %cst_142 : bf16 to vector<5x128xbf16>
    %cst_143 = arith.constant 0.000000e+00 : bf16
    %123 = vector.broadcast %cst_143 : bf16 to vector<5x1x128xbf16>
    %c0_144 = arith.constant 0 : index
    %c0_145 = arith.constant 0 : index
    %c0_146 = arith.constant 0 : index
    %c0_147 = arith.constant 0 : index
    %c0_148 = arith.constant 0 : index
    %124 = vector.load %arg14[%c0_144, %c0_145, %c0_146, %c0_147, %c0_148] : memref<2x2x5x5x128xbf16, #tpu.memory_space<vmem>>, vector<1x1x1x5x128xbf16>
    %125 = vector.shape_cast %124 : vector<1x1x1x5x128xbf16> to vector<5x128xbf16>
    %126 = vector.shape_cast %122 : vector<5x128xbf16> to vector<1x1x1x5x128xbf16>
    tpu.vector_store %arg14[%c0_144, %c0_145, %c0_146, %c0_147, %c0_148], %126 {strides = array<i32>} : memref<2x2x5x5x128xbf16, #tpu.memory_space<vmem>>, vector<1x1x1x5x128xbf16>,
    %c1_149 = arith.constant 1 : index
    %c0_150 = arith.constant 0 : index
    %c4_151 = arith.constant 4 : index
    %c0_152 = arith.constant 0 : index
    %c0_153 = arith.constant 0 : index
    %127 = vector.load %arg14[%c1_149, %c0_150, %c4_151, %c0_152, %c0_153] : memref<2x2x5x5x128xbf16, #tpu.memory_space<vmem>>, vector<1x1x1x5x128xbf16>
    %128 = vector.shape_cast %127 : vector<1x1x1x5x128xbf16> to vector<5x128xbf16>
    %129 = vector.shape_cast %122 : vector<5x128xbf16> to vector<1x1x1x5x128xbf16>
    tpu.vector_store %arg14[%c1_149, %c0_150, %c4_151, %c0_152, %c0_153], %129 {strides = array<i32>} : memref<2x2x5x5x128xbf16, #tpu.memory_space<vmem>>, vector<1x1x1x5x128xbf16>,
    %c0_154 = arith.constant 0 : index
    %c0_155 = arith.constant 0 : index
    %c0_156 = arith.constant 0 : index
    %c0_157 = arith.constant 0 : index
    %c0_158 = arith.constant 0 : index
    %130 = vector.load %arg14[%c0_154, %c0_155, %c0_156, %c0_157, %c0_158] : memref<2x2x5x5x128xbf16, #tpu.memory_space<vmem>>, vector<1x1x5x1x128xbf16>
    %131 = vector.shape_cast %130 : vector<1x1x5x1x128xbf16> to vector<5x1x128xbf16>
    %132 = vector.shape_cast %123 : vector<5x1x128xbf16> to vector<1x1x5x1x128xbf16>
    tpu.vector_store %arg14[%c0_154, %c0_155, %c0_156, %c0_157, %c0_158], %132 {strides = array<i32>} : memref<2x2x5x5x128xbf16, #tpu.memory_space<vmem>>, vector<1x1x5x1x128xbf16>,
    %c0_159 = arith.constant 0 : index
    %c1_160 = arith.constant 1 : index
    %c0_161 = arith.constant 0 : index
    %c4_162 = arith.constant 4 : index
    %c0_163 = arith.constant 0 : index
    %133 = vector.load %arg14[%c0_159, %c1_160, %c0_161, %c4_162, %c0_163] : memref<2x2x5x5x128xbf16, #tpu.memory_space<vmem>>, vector<1x1x5x1x128xbf16>
    %134 = vector.shape_cast %133 : vector<1x1x5x1x128xbf16> to vector<5x1x128xbf16>
    %135 = vector.shape_cast %123 : vector<5x1x128xbf16> to vector<1x1x5x1x128xbf16>
    tpu.vector_store %arg14[%c0_159, %c1_160, %c0_161, %c4_162, %c0_163], %135 {strides = array<i32>} : memref<2x2x5x5x128xbf16, #tpu.memory_space<vmem>>, vector<1x1x5x1x128xbf16>,
    %c0_164 = arith.constant 0 : index
    %c1_165 = arith.constant 1 : index
    %c0_166 = arith.constant 0 : index
    %c0_167 = arith.constant 0 : index
    %c0_168 = arith.constant 0 : index
    %136 = vector.load %arg14[%c0_164, %c1_165, %c0_166, %c0_167, %c0_168] : memref<2x2x5x5x128xbf16, #tpu.memory_space<vmem>>, vector<1x1x1x5x128xbf16>
    %137 = vector.shape_cast %136 : vector<1x1x1x5x128xbf16> to vector<5x128xbf16>
    %138 = vector.shape_cast %122 : vector<5x128xbf16> to vector<1x1x1x5x128xbf16>
    tpu.vector_store %arg14[%c0_164, %c1_165, %c0_166, %c0_167, %c0_168], %138 {strides = array<i32>} : memref<2x2x5x5x128xbf16, #tpu.memory_space<vmem>>, vector<1x1x1x5x128xbf16>,
    %c1_169 = arith.constant 1 : index
    %c1_170 = arith.constant 1 : index
    %c4_171 = arith.constant 4 : index
    %c0_172 = arith.constant 0 : index
    %c0_173 = arith.constant 0 : index
    %139 = vector.load %arg14[%c1_169, %c1_170, %c4_171, %c0_172, %c0_173] : memref<2x2x5x5x128xbf16, #tpu.memory_space<vmem>>, vector<1x1x1x5x128xbf16>
    %140 = vector.shape_cast %139 : vector<1x1x1x5x128xbf16> to vector<5x128xbf16>
    %141 = vector.shape_cast %122 : vector<5x128xbf16> to vector<1x1x1x5x128xbf16>
    tpu.vector_store %arg14[%c1_169, %c1_170, %c4_171, %c0_172, %c0_173], %141 {strides = array<i32>} : memref<2x2x5x5x128xbf16, #tpu.memory_space<vmem>>, vector<1x1x1x5x128xbf16>,
    %c1_174 = arith.constant 1 : index
    %c0_175 = arith.constant 0 : index
    %c0_176 = arith.constant 0 : index
    %c0_177 = arith.constant 0 : index
    %c0_178 = arith.constant 0 : index
    %142 = vector.load %arg14[%c1_174, %c0_175, %c0_176, %c0_177, %c0_178] : memref<2x2x5x5x128xbf16, #tpu.memory_space<vmem>>, vector<1x1x5x1x128xbf16>
    %143 = vector.shape_cast %142 : vector<1x1x5x1x128xbf16> to vector<5x1x128xbf16>
    %144 = vector.shape_cast %123 : vector<5x1x128xbf16> to vector<1x1x5x1x128xbf16>
    tpu.vector_store %arg14[%c1_174, %c0_175, %c0_176, %c0_177, %c0_178], %144 {strides = array<i32>} : memref<2x2x5x5x128xbf16, #tpu.memory_space<vmem>>, vector<1x1x5x1x128xbf16>,
    %c1_179 = arith.constant 1 : index
    %c1_180 = arith.constant 1 : index
    %c0_181 = arith.constant 0 : index
    %c4_182 = arith.constant 4 : index
    %c0_183 = arith.constant 0 : index
    %145 = vector.load %arg14[%c1_179, %c1_180, %c0_181, %c4_182, %c0_183] : memref<2x2x5x5x128xbf16, #tpu.memory_space<vmem>>, vector<1x1x5x1x128xbf16>
    %146 = vector.shape_cast %145 : vector<1x1x5x1x128xbf16> to vector<5x1x128xbf16>
    %147 = vector.shape_cast %123 : vector<5x1x128xbf16> to vector<1x1x5x1x128xbf16>
    tpu.vector_store %arg14[%c1_179, %c1_180, %c0_181, %c4_182, %c0_183], %147 {strides = array<i32>} : memref<2x2x5x5x128xbf16, #tpu.memory_space<vmem>>, vector<1x1x5x1x128xbf16>,
    %148 = vector.shape_cast %121 : vector<64x128xbf16> to vector<4x2x4x2x128xbf16>
    %149 = vector.extract_strided_slice %148 {offsets = [0, 0, 0, 0, 0], sizes = [4, 1, 4, 1, 128], strides = [1, 1, 1, 1, 1]} : vector<4x2x4x2x128xbf16> to vector<4x1x4x1x128xbf16>
    %150 = vector.shape_cast %149 : vector<4x1x4x1x128xbf16> to vector<4x4x128xbf16>
    %c1_184 = arith.constant 1 : index
    %c1_185 = arith.constant 1 : index
    %c0_186 = arith.constant 0 : index
    %c0_187 = arith.constant 0 : index
    %c0_188 = arith.constant 0 : index
    %151 = vector.load %arg14[%c1_184, %c1_185, %c0_186, %c0_187, %c0_188] : memref<2x2x5x5x128xbf16, #tpu.memory_space<vmem>>, vector<1x1x4x4x128xbf16>
    %152 = vector.shape_cast %151 : vector<1x1x4x4x128xbf16> to vector<4x4x128xbf16>
    %153 = vector.shape_cast %150 : vector<4x4x128xbf16> to vector<1x1x4x4x128xbf16>
    tpu.vector_store %arg14[%c1_184, %c1_185, %c0_186, %c0_187, %c0_188], %153 {strides = array<i32>} : memref<2x2x5x5x128xbf16, #tpu.memory_space<vmem>>, vector<1x1x4x4x128xbf16>,
    %154 = vector.extract_strided_slice %148 {offsets = [0, 0, 0, 1, 0], sizes = [4, 1, 4, 1, 128], strides = [1, 1, 1, 1, 1]} : vector<4x2x4x2x128xbf16> to vector<4x1x4x1x128xbf16>
    %155 = vector.shape_cast %154 : vector<4x1x4x1x128xbf16> to vector<4x4x128xbf16>
    %c1_189 = arith.constant 1 : index
    %c0_190 = arith.constant 0 : index
    %c0_191 = arith.constant 0 : index
    %c1_192 = arith.constant 1 : index
    %c0_193 = arith.constant 0 : index
    %156 = vector.load %arg14[%c1_189, %c0_190, %c0_191, %c1_192, %c0_193] : memref<2x2x5x5x128xbf16, #tpu.memory_space<vmem>>, vector<1x1x4x4x128xbf16>
    %157 = vector.shape_cast %156 : vector<1x1x4x4x128xbf16> to vector<4x4x128xbf16>
    %158 = vector.shape_cast %155 : vector<4x4x128xbf16> to vector<1x1x4x4x128xbf16>
    tpu.vector_store %arg14[%c1_189, %c0_190, %c0_191, %c1_192, %c0_193], %158 {strides = array<i32>} : memref<2x2x5x5x128xbf16, #tpu.memory_space<vmem>>, vector<1x1x4x4x128xbf16>,
    %159 = vector.extract_strided_slice %148 {offsets = [0, 1, 0, 0, 0], sizes = [4, 1, 4, 1, 128], strides = [1, 1, 1, 1, 1]} : vector<4x2x4x2x128xbf16> to vector<4x1x4x1x128xbf16>
    %160 = vector.shape_cast %159 : vector<4x1x4x1x128xbf16> to vector<4x4x128xbf16>
    %c0_194 = arith.constant 0 : index
    %c1_195 = arith.constant 1 : index
    %c1_196 = arith.constant 1 : index
    %c0_197 = arith.constant 0 : index
    %c0_198 = arith.constant 0 : index
    %161 = vector.load %arg14[%c0_194, %c1_195, %c1_196, %c0_197, %c0_198] : memref<2x2x5x5x128xbf16, #tpu.memory_space<vmem>>, vector<1x1x4x4x128xbf16>
    %162 = vector.shape_cast %161 : vector<1x1x4x4x128xbf16> to vector<4x4x128xbf16>
    %163 = vector.shape_cast %160 : vector<4x4x128xbf16> to vector<1x1x4x4x128xbf16>
    tpu.vector_store %arg14[%c0_194, %c1_195, %c1_196, %c0_197, %c0_198], %163 {strides = array<i32>} : memref<2x2x5x5x128xbf16, #tpu.memory_space<vmem>>, vector<1x1x4x4x128xbf16>,
    %164 = vector.extract_strided_slice %148 {offsets = [0, 1, 0, 1, 0], sizes = [4, 1, 4, 1, 128], strides = [1, 1, 1, 1, 1]} : vector<4x2x4x2x128xbf16> to vector<4x1x4x1x128xbf16>
    %165 = vector.shape_cast %164 : vector<4x1x4x1x128xbf16> to vector<4x4x128xbf16>
    %c0_199 = arith.constant 0 : index
    %c0_200 = arith.constant 0 : index
    %c1_201 = arith.constant 1 : index
    %c1_202 = arith.constant 1 : index
    %c0_203 = arith.constant 0 : index
    %166 = vector.load %arg14[%c0_199, %c0_200, %c1_201, %c1_202, %c0_203] : memref<2x2x5x5x128xbf16, #tpu.memory_space<vmem>>, vector<1x1x4x4x128xbf16>
    %167 = vector.shape_cast %166 : vector<1x1x4x4x128xbf16> to vector<4x4x128xbf16>
    %168 = vector.shape_cast %165 : vector<4x4x128xbf16> to vector<1x1x4x4x128xbf16>
    tpu.vector_store %arg14[%c0_199, %c0_200, %c1_201, %c1_202, %c0_203], %168 {strides = array<i32>} : memref<2x2x5x5x128xbf16, #tpu.memory_space<vmem>>, vector<1x1x4x4x128xbf16>,
    %cst_204 = arith.constant 0.000000e+00 : f32
    %169 = vector.broadcast %cst_204 : f32 to vector<16x128xf32>
    %c0_205 = arith.constant 0 : index
    %c0_206 = arith.constant 0 : index
    %c0_207 = arith.constant 0 : index
    %c0_208 = arith.constant 0 : index
    %c0_209 = arith.constant 0 : index
    %170 = vector.load %arg14[%c0_205, %c0_206, %c0_207, %c0_208, %c0_209] : memref<2x2x5x5x128xbf16, #tpu.memory_space<vmem>>, vector<1x1x4x4x128xbf16>
    %171 = vector.shape_cast %170 : vector<1x1x4x4x128xbf16> to vector<4x4x128xbf16>
    %172 = vector.shape_cast %171 : vector<4x4x128xbf16> to vector<16x128xbf16>
    %c0_210 = arith.constant 0 : index
    %c0_211 = arith.constant 0 : index
    %c0_212 = arith.constant 0 : index
    %173 = vector.load %arg3[%c0_210, %c0_211, %c0_212] : memref<9x128x128xbf16, #tpu.memory_space<vmem>>, vector<1x128x128xbf16>
    %174 = vector.shape_cast %173 : vector<1x128x128xbf16> to vector<128x128xbf16>
    %cst_213 = arith.constant dense<0.000000e+00> : vector<16x128xf32>
    %175 = tpu.matmul %172, %174, %cst_213 {dimension_numbers = #tpu.dot_dimension_numbers<[1], [0], [0], [1], [0, 0, 1, 1], [], []>} : vector<16x128xbf16>, vector<128x128xbf16>, vector<16x128xf32> -> vector<16x128xf32>
    %176 = arith.addf %169, %175 : vector<16x128xf32>
    %c0_214 = arith.constant 0 : index
    %c1_215 = arith.constant 1 : index
    %c0_216 = arith.constant 0 : index
    %c0_217 = arith.constant 0 : index
    %c0_218 = arith.constant 0 : index
    %177 = vector.load %arg14[%c0_214, %c1_215, %c0_216, %c0_217, %c0_218] : memref<2x2x5x5x128xbf16, #tpu.memory_space<vmem>>, vector<1x1x4x4x128xbf16>
    %178 = vector.shape_cast %177 : vector<1x1x4x4x128xbf16> to vector<4x4x128xbf16>
    %179 = vector.shape_cast %178 : vector<4x4x128xbf16> to vector<16x128xbf16>
    %c1_219 = arith.constant 1 : index
    %c0_220 = arith.constant 0 : index
    %c0_221 = arith.constant 0 : index
    %180 = vector.load %arg3[%c1_219, %c0_220, %c0_221] : memref<9x128x128xbf16, #tpu.memory_space<vmem>>, vector<1x128x128xbf16>
    %181 = vector.shape_cast %180 : vector<1x128x128xbf16> to vector<128x128xbf16>
    %cst_222 = arith.constant dense<0.000000e+00> : vector<16x128xf32>
    %182 = tpu.matmul %179, %181, %cst_222 {dimension_numbers = #tpu.dot_dimension_numbers<[1], [0], [0], [1], [0, 0, 1, 1], [], []>} : vector<16x128xbf16>, vector<128x128xbf16>, vector<16x128xf32> -> vector<16x128xf32>
    %183 = arith.addf %176, %182 : vector<16x128xf32>
    %c0_223 = arith.constant 0 : index
    %c0_224 = arith.constant 0 : index
    %c0_225 = arith.constant 0 : index
    %c1_226 = arith.constant 1 : index
    %c0_227 = arith.constant 0 : index
    %184 = vector.load %arg14[%c0_223, %c0_224, %c0_225, %c1_226, %c0_227] : memref<2x2x5x5x128xbf16, #tpu.memory_space<vmem>>, vector<1x1x4x4x128xbf16>
    %185 = vector.shape_cast %184 : vector<1x1x4x4x128xbf16> to vector<4x4x128xbf16>
    %186 = vector.shape_cast %185 : vector<4x4x128xbf16> to vector<16x128xbf16>
    %c2_228 = arith.constant 2 : index
    %c0_229 = arith.constant 0 : index
    %c0_230 = arith.constant 0 : index
    %187 = vector.load %arg3[%c2_228, %c0_229, %c0_230] : memref<9x128x128xbf16, #tpu.memory_space<vmem>>, vector<1x128x128xbf16>
    %188 = vector.shape_cast %187 : vector<1x128x128xbf16> to vector<128x128xbf16>
    %cst_231 = arith.constant dense<0.000000e+00> : vector<16x128xf32>
    %189 = tpu.matmul %186, %188, %cst_231 {dimension_numbers = #tpu.dot_dimension_numbers<[1], [0], [0], [1], [0, 0, 1, 1], [], []>} : vector<16x128xbf16>, vector<128x128xbf16>, vector<16x128xf32> -> vector<16x128xf32>
    %190 = arith.addf %183, %189 : vector<16x128xf32>
    %c1_232 = arith.constant 1 : index
    %c0_233 = arith.constant 0 : index
    %c0_234 = arith.constant 0 : index
    %c0_235 = arith.constant 0 : index
    %c0_236 = arith.constant 0 : index
    %191 = vector.load %arg14[%c1_232, %c0_233, %c0_234, %c0_235, %c0_236] : memref<2x2x5x5x128xbf16, #tpu.memory_space<vmem>>, vector<1x1x4x4x128xbf16>
    %192 = vector.shape_cast %191 : vector<1x1x4x4x128xbf16> to vector<4x4x128xbf16>
    %193 = vector.shape_cast %192 : vector<4x4x128xbf16> to vector<16x128xbf16>
    %c3_237 = arith.constant 3 : index
    %c0_238 = arith.constant 0 : index
    %c0_239 = arith.constant 0 : index
    %194 = vector.load %arg3[%c3_237, %c0_238, %c0_239] : memref<9x128x128xbf16, #tpu.memory_space<vmem>>, vector<1x128x128xbf16>
    %195 = vector.shape_cast %194 : vector<1x128x128xbf16> to vector<128x128xbf16>
    %cst_240 = arith.constant dense<0.000000e+00> : vector<16x128xf32>
    %196 = tpu.matmul %193, %195, %cst_240 {dimension_numbers = #tpu.dot_dimension_numbers<[1], [0], [0], [1], [0, 0, 1, 1], [], []>} : vector<16x128xbf16>, vector<128x128xbf16>, vector<16x128xf32> -> vector<16x128xf32>
    %197 = arith.addf %190, %196 : vector<16x128xf32>
    %c1_241 = arith.constant 1 : index
    %c1_242 = arith.constant 1 : index
    %c0_243 = arith.constant 0 : index
    %c0_244 = arith.constant 0 : index
    %c0_245 = arith.constant 0 : index
    %198 = vector.load %arg14[%c1_241, %c1_242, %c0_243, %c0_244, %c0_245] : memref<2x2x5x5x128xbf16, #tpu.memory_space<vmem>>, vector<1x1x4x4x128xbf16>
    %199 = vector.shape_cast %198 : vector<1x1x4x4x128xbf16> to vector<4x4x128xbf16>
    %200 = vector.shape_cast %199 : vector<4x4x128xbf16> to vector<16x128xbf16>
    %c4_246 = arith.constant 4 : index
    %c0_247 = arith.constant 0 : index
    %c0_248 = arith.constant 0 : index
    %201 = vector.load %arg3[%c4_246, %c0_247, %c0_248] : memref<9x128x128xbf16, #tpu.memory_space<vmem>>, vector<1x128x128xbf16>
    %202 = vector.shape_cast %201 : vector<1x128x128xbf16> to vector<128x128xbf16>
    %cst_249 = arith.constant dense<0.000000e+00> : vector<16x128xf32>
    %203 = tpu.matmul %200, %202, %cst_249 {dimension_numbers = #tpu.dot_dimension_numbers<[1], [0], [0], [1], [0, 0, 1, 1], [], []>} : vector<16x128xbf16>, vector<128x128xbf16>, vector<16x128xf32> -> vector<16x128xf32>
    %204 = arith.addf %197, %203 : vector<16x128xf32>
    %c1_250 = arith.constant 1 : index
    %c0_251 = arith.constant 0 : index
    %c0_252 = arith.constant 0 : index
    %c1_253 = arith.constant 1 : index
    %c0_254 = arith.constant 0 : index
    %205 = vector.load %arg14[%c1_250, %c0_251, %c0_252, %c1_253, %c0_254] : memref<2x2x5x5x128xbf16, #tpu.memory_space<vmem>>, vector<1x1x4x4x128xbf16>
    %206 = vector.shape_cast %205 : vector<1x1x4x4x128xbf16> to vector<4x4x128xbf16>
    %207 = vector.shape_cast %206 : vector<4x4x128xbf16> to vector<16x128xbf16>
    %c5_255 = arith.constant 5 : index
    %c0_256 = arith.constant 0 : index
    %c0_257 = arith.constant 0 : index
    %208 = vector.load %arg3[%c5_255, %c0_256, %c0_257] : memref<9x128x128xbf16, #tpu.memory_space<vmem>>, vector<1x128x128xbf16>
    %209 = vector.shape_cast %208 : vector<1x128x128xbf16> to vector<128x128xbf16>
    %cst_258 = arith.constant dense<0.000000e+00> : vector<16x128xf32>
    %210 = tpu.matmul %207, %209, %cst_258 {dimension_numbers = #tpu.dot_dimension_numbers<[1], [0], [0], [1], [0, 0, 1, 1], [], []>} : vector<16x128xbf16>, vector<128x128xbf16>, vector<16x128xf32> -> vector<16x128xf32>
    %211 = arith.addf %204, %210 : vector<16x128xf32>
    %c0_259 = arith.constant 0 : index
    %c0_260 = arith.constant 0 : index
    %c1_261 = arith.constant 1 : index
    %c0_262 = arith.constant 0 : index
    %c0_263 = arith.constant 0 : index
    %212 = vector.load %arg14[%c0_259, %c0_260, %c1_261, %c0_262, %c0_263] : memref<2x2x5x5x128xbf16, #tpu.memory_space<vmem>>, vector<1x1x4x4x128xbf16>
    %213 = vector.shape_cast %212 : vector<1x1x4x4x128xbf16> to vector<4x4x128xbf16>
    %214 = vector.shape_cast %213 : vector<4x4x128xbf16> to vector<16x128xbf16>
    %c6_264 = arith.constant 6 : index
    %c0_265 = arith.constant 0 : index
    %c0_266 = arith.constant 0 : index
    %215 = vector.load %arg3[%c6_264, %c0_265, %c0_266] : memref<9x128x128xbf16, #tpu.memory_space<vmem>>, vector<1x128x128xbf16>
    %216 = vector.shape_cast %215 : vector<1x128x128xbf16> to vector<128x128xbf16>
    %cst_267 = arith.constant dense<0.000000e+00> : vector<16x128xf32>
    %217 = tpu.matmul %214, %216, %cst_267 {dimension_numbers = #tpu.dot_dimension_numbers<[1], [0], [0], [1], [0, 0, 1, 1], [], []>} : vector<16x128xbf16>, vector<128x128xbf16>, vector<16x128xf32> -> vector<16x128xf32>
    %218 = arith.addf %211, %217 : vector<16x128xf32>
    %c0_268 = arith.constant 0 : index
    %c1_269 = arith.constant 1 : index
    %c1_270 = arith.constant 1 : index
    %c0_271 = arith.constant 0 : index
    %c0_272 = arith.constant 0 : index
    %219 = vector.load %arg14[%c0_268, %c1_269, %c1_270, %c0_271, %c0_272] : memref<2x2x5x5x128xbf16, #tpu.memory_space<vmem>>, vector<1x1x4x4x128xbf16>
    %220 = vector.shape_cast %219 : vector<1x1x4x4x128xbf16> to vector<4x4x128xbf16>
    %221 = vector.shape_cast %220 : vector<4x4x128xbf16> to vector<16x128xbf16>
    %c7_273 = arith.constant 7 : index
    %c0_274 = arith.constant 0 : index
    %c0_275 = arith.constant 0 : index
    %222 = vector.load %arg3[%c7_273, %c0_274, %c0_275] : memref<9x128x128xbf16, #tpu.memory_space<vmem>>, vector<1x128x128xbf16>
    %223 = vector.shape_cast %222 : vector<1x128x128xbf16> to vector<128x128xbf16>
    %cst_276 = arith.constant dense<0.000000e+00> : vector<16x128xf32>
    %224 = tpu.matmul %221, %223, %cst_276 {dimension_numbers = #tpu.dot_dimension_numbers<[1], [0], [0], [1], [0, 0, 1, 1], [], []>} : vector<16x128xbf16>, vector<128x128xbf16>, vector<16x128xf32> -> vector<16x128xf32>
    %225 = arith.addf %218, %224 : vector<16x128xf32>
    %c0_277 = arith.constant 0 : index
    %c0_278 = arith.constant 0 : index
    %c1_279 = arith.constant 1 : index
    %c1_280 = arith.constant 1 : index
    %c0_281 = arith.constant 0 : index
    %226 = vector.load %arg14[%c0_277, %c0_278, %c1_279, %c1_280, %c0_281] : memref<2x2x5x5x128xbf16, #tpu.memory_space<vmem>>, vector<1x1x4x4x128xbf16>
    %227 = vector.shape_cast %226 : vector<1x1x4x4x128xbf16> to vector<4x4x128xbf16>
    %228 = vector.shape_cast %227 : vector<4x4x128xbf16> to vector<16x128xbf16>
    %c8_282 = arith.constant 8 : index
    %c0_283 = arith.constant 0 : index
    %c0_284 = arith.constant 0 : index
    %229 = vector.load %arg3[%c8_282, %c0_283, %c0_284] : memref<9x128x128xbf16, #tpu.memory_space<vmem>>, vector<1x128x128xbf16>
    %230 = vector.shape_cast %229 : vector<1x128x128xbf16> to vector<128x128xbf16>
    %cst_285 = arith.constant dense<0.000000e+00> : vector<16x128xf32>
    %231 = tpu.matmul %228, %230, %cst_285 {dimension_numbers = #tpu.dot_dimension_numbers<[1], [0], [0], [1], [0, 0, 1, 1], [], []>} : vector<16x128xbf16>, vector<128x128xbf16>, vector<16x128xf32> -> vector<16x128xf32>
    %232 = arith.addf %225, %231 : vector<16x128xf32>
    %c0_286 = arith.constant 0 : index
    %c0_287 = arith.constant 0 : index
    %233 = vector.load %arg7[%c0_286, %c0_287] : memref<1x128xf32, #tpu.memory_space<vmem>>, vector<1x128xf32>
    %234 = vector.broadcast %233 : vector<1x128xf32> to vector<16x128xf32>
    %235 = arith.addf %232, %234 : vector<16x128xf32>
    %cst_288 = arith.constant 0.000000e+00 : f32
    %236 = vector.broadcast %cst_288 : f32 to vector<16x128xf32>
    %237 = arith.cmpf oge, %235, %236 : vector<16x128xf32>
    %cst_289 = arith.constant 0.00999999977 : f32
    %238 = vector.broadcast %cst_289 : f32 to vector<16x128xf32>
    %239 = arith.mulf %235, %238 : vector<16x128xf32>
    %240 = arith.select %237, %235, %239 : vector<16x128xi1>, vector<16x128xf32>
    %241 = arith.truncf %240 : vector<16x128xf32> to vector<16x128xbf16>
    %cst_290 = arith.constant 0.000000e+00 : bf16
    %242 = vector.broadcast %cst_290 : bf16 to vector<3x128xbf16>
    %cst_291 = arith.constant 0.000000e+00 : bf16
    %243 = vector.broadcast %cst_291 : bf16 to vector<3x1x128xbf16>
    %c0_292 = arith.constant 0 : index
    %c0_293 = arith.constant 0 : index
    %c0_294 = arith.constant 0 : index
    %c0_295 = arith.constant 0 : index
    %c0_296 = arith.constant 0 : index
    %244 = vector.load %arg15[%c0_292, %c0_293, %c0_294, %c0_295, %c0_296] : memref<2x2x3x3x128xbf16, #tpu.memory_space<vmem>>, vector<1x1x1x3x128xbf16>
    %245 = vector.shape_cast %244 : vector<1x1x1x3x128xbf16> to vector<3x128xbf16>
    %246 = vector.shape_cast %242 : vector<3x128xbf16> to vector<1x1x1x3x128xbf16>
    tpu.vector_store %arg15[%c0_292, %c0_293, %c0_294, %c0_295, %c0_296], %246 {strides = array<i32>} : memref<2x2x3x3x128xbf16, #tpu.memory_space<vmem>>, vector<1x1x1x3x128xbf16>,
    %c1_297 = arith.constant 1 : index
    %c0_298 = arith.constant 0 : index
    %c2_299 = arith.constant 2 : index
    %c0_300 = arith.constant 0 : index
    %c0_301 = arith.constant 0 : index
    %247 = vector.load %arg15[%c1_297, %c0_298, %c2_299, %c0_300, %c0_301] : memref<2x2x3x3x128xbf16, #tpu.memory_space<vmem>>, vector<1x1x1x3x128xbf16>
    %248 = vector.shape_cast %247 : vector<1x1x1x3x128xbf16> to vector<3x128xbf16>
    %249 = vector.shape_cast %242 : vector<3x128xbf16> to vector<1x1x1x3x128xbf16>
    tpu.vector_store %arg15[%c1_297, %c0_298, %c2_299, %c0_300, %c0_301], %249 {strides = array<i32>} : memref<2x2x3x3x128xbf16, #tpu.memory_space<vmem>>, vector<1x1x1x3x128xbf16>,
    %c0_302 = arith.constant 0 : index
    %c0_303 = arith.constant 0 : index
    %c0_304 = arith.constant 0 : index
    %c0_305 = arith.constant 0 : index
    %c0_306 = arith.constant 0 : index
    %250 = vector.load %arg15[%c0_302, %c0_303, %c0_304, %c0_305, %c0_306] : memref<2x2x3x3x128xbf16, #tpu.memory_space<vmem>>, vector<1x1x3x1x128xbf16>
    %251 = vector.shape_cast %250 : vector<1x1x3x1x128xbf16> to vector<3x1x128xbf16>
    %252 = vector.shape_cast %243 : vector<3x1x128xbf16> to vector<1x1x3x1x128xbf16>
    tpu.vector_store %arg15[%c0_302, %c0_303, %c0_304, %c0_305, %c0_306], %252 {strides = array<i32>} : memref<2x2x3x3x128xbf16, #tpu.memory_space<vmem>>, vector<1x1x3x1x128xbf16>,
    %c0_307 = arith.constant 0 : index
    %c1_308 = arith.constant 1 : index
    %c0_309 = arith.constant 0 : index
    %c2_310 = arith.constant 2 : index
    %c0_311 = arith.constant 0 : index
    %253 = vector.load %arg15[%c0_307, %c1_308, %c0_309, %c2_310, %c0_311] : memref<2x2x3x3x128xbf16, #tpu.memory_space<vmem>>, vector<1x1x3x1x128xbf16>
    %254 = vector.shape_cast %253 : vector<1x1x3x1x128xbf16> to vector<3x1x128xbf16>
    %255 = vector.shape_cast %243 : vector<3x1x128xbf16> to vector<1x1x3x1x128xbf16>
    tpu.vector_store %arg15[%c0_307, %c1_308, %c0_309, %c2_310, %c0_311], %255 {strides = array<i32>} : memref<2x2x3x3x128xbf16, #tpu.memory_space<vmem>>, vector<1x1x3x1x128xbf16>,
    %c0_312 = arith.constant 0 : index
    %c1_313 = arith.constant 1 : index
    %c0_314 = arith.constant 0 : index
    %c0_315 = arith.constant 0 : index
    %c0_316 = arith.constant 0 : index
    %256 = vector.load %arg15[%c0_312, %c1_313, %c0_314, %c0_315, %c0_316] : memref<2x2x3x3x128xbf16, #tpu.memory_space<vmem>>, vector<1x1x1x3x128xbf16>
    %257 = vector.shape_cast %256 : vector<1x1x1x3x128xbf16> to vector<3x128xbf16>
    %258 = vector.shape_cast %242 : vector<3x128xbf16> to vector<1x1x1x3x128xbf16>
    tpu.vector_store %arg15[%c0_312, %c1_313, %c0_314, %c0_315, %c0_316], %258 {strides = array<i32>} : memref<2x2x3x3x128xbf16, #tpu.memory_space<vmem>>, vector<1x1x1x3x128xbf16>,
    %c1_317 = arith.constant 1 : index
    %c1_318 = arith.constant 1 : index
    %c2_319 = arith.constant 2 : index
    %c0_320 = arith.constant 0 : index
    %c0_321 = arith.constant 0 : index
    %259 = vector.load %arg15[%c1_317, %c1_318, %c2_319, %c0_320, %c0_321] : memref<2x2x3x3x128xbf16, #tpu.memory_space<vmem>>, vector<1x1x1x3x128xbf16>
    %260 = vector.shape_cast %259 : vector<1x1x1x3x128xbf16> to vector<3x128xbf16>
    %261 = vector.shape_cast %242 : vector<3x128xbf16> to vector<1x1x1x3x128xbf16>
    tpu.vector_store %arg15[%c1_317, %c1_318, %c2_319, %c0_320, %c0_321], %261 {strides = array<i32>} : memref<2x2x3x3x128xbf16, #tpu.memory_space<vmem>>, vector<1x1x1x3x128xbf16>,
    %c1_322 = arith.constant 1 : index
    %c0_323 = arith.constant 0 : index
    %c0_324 = arith.constant 0 : index
    %c0_325 = arith.constant 0 : index
    %c0_326 = arith.constant 0 : index
    %262 = vector.load %arg15[%c1_322, %c0_323, %c0_324, %c0_325, %c0_326] : memref<2x2x3x3x128xbf16, #tpu.memory_space<vmem>>, vector<1x1x3x1x128xbf16>
    %263 = vector.shape_cast %262 : vector<1x1x3x1x128xbf16> to vector<3x1x128xbf16>
    %264 = vector.shape_cast %243 : vector<3x1x128xbf16> to vector<1x1x3x1x128xbf16>
    tpu.vector_store %arg15[%c1_322, %c0_323, %c0_324, %c0_325, %c0_326], %264 {strides = array<i32>} : memref<2x2x3x3x128xbf16, #tpu.memory_space<vmem>>, vector<1x1x3x1x128xbf16>,
    %c1_327 = arith.constant 1 : index
    %c1_328 = arith.constant 1 : index
    %c0_329 = arith.constant 0 : index
    %c2_330 = arith.constant 2 : index
    %c0_331 = arith.constant 0 : index
    %265 = vector.load %arg15[%c1_327, %c1_328, %c0_329, %c2_330, %c0_331] : memref<2x2x3x3x128xbf16, #tpu.memory_space<vmem>>, vector<1x1x3x1x128xbf16>
    %266 = vector.shape_cast %265 : vector<1x1x3x1x128xbf16> to vector<3x1x128xbf16>
    %267 = vector.shape_cast %243 : vector<3x1x128xbf16> to vector<1x1x3x1x128xbf16>
    tpu.vector_store %arg15[%c1_327, %c1_328, %c0_329, %c2_330, %c0_331], %267 {strides = array<i32>} : memref<2x2x3x3x128xbf16, #tpu.memory_space<vmem>>, vector<1x1x3x1x128xbf16>,
    %268 = vector.shape_cast %241 : vector<16x128xbf16> to vector<2x2x2x2x128xbf16>
    %269 = vector.extract_strided_slice %268 {offsets = [0, 0, 0, 0, 0], sizes = [2, 1, 2, 1, 128], strides = [1, 1, 1, 1, 1]} : vector<2x2x2x2x128xbf16> to vector<2x1x2x1x128xbf16>
    %270 = vector.shape_cast %269 : vector<2x1x2x1x128xbf16> to vector<2x2x128xbf16>
    %c1_332 = arith.constant 1 : index
    %c1_333 = arith.constant 1 : index
    %c0_334 = arith.constant 0 : index
    %c0_335 = arith.constant 0 : index
    %c0_336 = arith.constant 0 : index
    %271 = vector.load %arg15[%c1_332, %c1_333, %c0_334, %c0_335, %c0_336] : memref<2x2x3x3x128xbf16, #tpu.memory_space<vmem>>, vector<1x1x2x2x128xbf16>
    %272 = vector.shape_cast %271 : vector<1x1x2x2x128xbf16> to vector<2x2x128xbf16>
    %273 = vector.shape_cast %270 : vector<2x2x128xbf16> to vector<1x1x2x2x128xbf16>
    tpu.vector_store %arg15[%c1_332, %c1_333, %c0_334, %c0_335, %c0_336], %273 {strides = array<i32>} : memref<2x2x3x3x128xbf16, #tpu.memory_space<vmem>>, vector<1x1x2x2x128xbf16>,
    %274 = vector.extract_strided_slice %268 {offsets = [0, 0, 0, 1, 0], sizes = [2, 1, 2, 1, 128], strides = [1, 1, 1, 1, 1]} : vector<2x2x2x2x128xbf16> to vector<2x1x2x1x128xbf16>
    %275 = vector.shape_cast %274 : vector<2x1x2x1x128xbf16> to vector<2x2x128xbf16>
    %c1_337 = arith.constant 1 : index
    %c0_338 = arith.constant 0 : index
    %c0_339 = arith.constant 0 : index
    %c1_340 = arith.constant 1 : index
    %c0_341 = arith.constant 0 : index
    %276 = vector.load %arg15[%c1_337, %c0_338, %c0_339, %c1_340, %c0_341] : memref<2x2x3x3x128xbf16, #tpu.memory_space<vmem>>, vector<1x1x2x2x128xbf16>
    %277 = vector.shape_cast %276 : vector<1x1x2x2x128xbf16> to vector<2x2x128xbf16>
    %278 = vector.shape_cast %275 : vector<2x2x128xbf16> to vector<1x1x2x2x128xbf16>
    tpu.vector_store %arg15[%c1_337, %c0_338, %c0_339, %c1_340, %c0_341], %278 {strides = array<i32>} : memref<2x2x3x3x128xbf16, #tpu.memory_space<vmem>>, vector<1x1x2x2x128xbf16>,
    %279 = vector.extract_strided_slice %268 {offsets = [0, 1, 0, 0, 0], sizes = [2, 1, 2, 1, 128], strides = [1, 1, 1, 1, 1]} : vector<2x2x2x2x128xbf16> to vector<2x1x2x1x128xbf16>
    %280 = vector.shape_cast %279 : vector<2x1x2x1x128xbf16> to vector<2x2x128xbf16>
    %c0_342 = arith.constant 0 : index
    %c1_343 = arith.constant 1 : index
    %c1_344 = arith.constant 1 : index
    %c0_345 = arith.constant 0 : index
    %c0_346 = arith.constant 0 : index
    %281 = vector.load %arg15[%c0_342, %c1_343, %c1_344, %c0_345, %c0_346] : memref<2x2x3x3x128xbf16, #tpu.memory_space<vmem>>, vector<1x1x2x2x128xbf16>
    %282 = vector.shape_cast %281 : vector<1x1x2x2x128xbf16> to vector<2x2x128xbf16>
    %283 = vector.shape_cast %280 : vector<2x2x128xbf16> to vector<1x1x2x2x128xbf16>
    tpu.vector_store %arg15[%c0_342, %c1_343, %c1_344, %c0_345, %c0_346], %283 {strides = array<i32>} : memref<2x2x3x3x128xbf16, #tpu.memory_space<vmem>>, vector<1x1x2x2x128xbf16>,
    %284 = vector.extract_strided_slice %268 {offsets = [0, 1, 0, 1, 0], sizes = [2, 1, 2, 1, 128], strides = [1, 1, 1, 1, 1]} : vector<2x2x2x2x128xbf16> to vector<2x1x2x1x128xbf16>
    %285 = vector.shape_cast %284 : vector<2x1x2x1x128xbf16> to vector<2x2x128xbf16>
    %c0_347 = arith.constant 0 : index
    %c0_348 = arith.constant 0 : index
    %c1_349 = arith.constant 1 : index
    %c1_350 = arith.constant 1 : index
    %c0_351 = arith.constant 0 : index
    %286 = vector.load %arg15[%c0_347, %c0_348, %c1_349, %c1_350, %c0_351] : memref<2x2x3x3x128xbf16, #tpu.memory_space<vmem>>, vector<1x1x2x2x128xbf16>
    %287 = vector.shape_cast %286 : vector<1x1x2x2x128xbf16> to vector<2x2x128xbf16>
    %288 = vector.shape_cast %285 : vector<2x2x128xbf16> to vector<1x1x2x2x128xbf16>
    tpu.vector_store %arg15[%c0_347, %c0_348, %c1_349, %c1_350, %c0_351], %288 {strides = array<i32>} : memref<2x2x3x3x128xbf16, #tpu.memory_space<vmem>>, vector<1x1x2x2x128xbf16>,
    %cst_352 = arith.constant 0.000000e+00 : f32
    %289 = vector.broadcast %cst_352 : f32 to vector<4x128xf32>
    %c0_353 = arith.constant 0 : index
    %c0_354 = arith.constant 0 : index
    %c0_355 = arith.constant 0 : index
    %c0_356 = arith.constant 0 : index
    %c0_357 = arith.constant 0 : index
    %290 = vector.load %arg15[%c0_353, %c0_354, %c0_355, %c0_356, %c0_357] : memref<2x2x3x3x128xbf16, #tpu.memory_space<vmem>>, vector<1x1x2x2x128xbf16>
    %291 = vector.shape_cast %290 : vector<1x1x2x2x128xbf16> to vector<2x2x128xbf16>
    %292 = vector.shape_cast %291 : vector<2x2x128xbf16> to vector<4x128xbf16>
    %c0_358 = arith.constant 0 : index
    %c0_359 = arith.constant 0 : index
    %c0_360 = arith.constant 0 : index
    %293 = vector.load %arg4[%c0_358, %c0_359, %c0_360] : memref<9x128x128xbf16, #tpu.memory_space<vmem>>, vector<1x128x128xbf16>
    %294 = vector.shape_cast %293 : vector<1x128x128xbf16> to vector<128x128xbf16>
    %cst_361 = arith.constant dense<0.000000e+00> : vector<4x128xf32>
    %295 = tpu.matmul %292, %294, %cst_361 {dimension_numbers = #tpu.dot_dimension_numbers<[1], [0], [0], [1], [0, 0, 1, 1], [], []>} : vector<4x128xbf16>, vector<128x128xbf16>, vector<4x128xf32> -> vector<4x128xf32>
    %296 = arith.addf %289, %295 : vector<4x128xf32>
    %c0_362 = arith.constant 0 : index
    %c1_363 = arith.constant 1 : index
    %c0_364 = arith.constant 0 : index
    %c0_365 = arith.constant 0 : index
    %c0_366 = arith.constant 0 : index
    %297 = vector.load %arg15[%c0_362, %c1_363, %c0_364, %c0_365, %c0_366] : memref<2x2x3x3x128xbf16, #tpu.memory_space<vmem>>, vector<1x1x2x2x128xbf16>
    %298 = vector.shape_cast %297 : vector<1x1x2x2x128xbf16> to vector<2x2x128xbf16>
    %299 = vector.shape_cast %298 : vector<2x2x128xbf16> to vector<4x128xbf16>
    %c1_367 = arith.constant 1 : index
    %c0_368 = arith.constant 0 : index
    %c0_369 = arith.constant 0 : index
    %300 = vector.load %arg4[%c1_367, %c0_368, %c0_369] : memref<9x128x128xbf16, #tpu.memory_space<vmem>>, vector<1x128x128xbf16>
    %301 = vector.shape_cast %300 : vector<1x128x128xbf16> to vector<128x128xbf16>
    %cst_370 = arith.constant dense<0.000000e+00> : vector<4x128xf32>
    %302 = tpu.matmul %299, %301, %cst_370 {dimension_numbers = #tpu.dot_dimension_numbers<[1], [0], [0], [1], [0, 0, 1, 1], [], []>} : vector<4x128xbf16>, vector<128x128xbf16>, vector<4x128xf32> -> vector<4x128xf32>
    %303 = arith.addf %296, %302 : vector<4x128xf32>
    %c0_371 = arith.constant 0 : index
    %c0_372 = arith.constant 0 : index
    %c0_373 = arith.constant 0 : index
    %c1_374 = arith.constant 1 : index
    %c0_375 = arith.constant 0 : index
    %304 = vector.load %arg15[%c0_371, %c0_372, %c0_373, %c1_374, %c0_375] : memref<2x2x3x3x128xbf16, #tpu.memory_space<vmem>>, vector<1x1x2x2x128xbf16>
    %305 = vector.shape_cast %304 : vector<1x1x2x2x128xbf16> to vector<2x2x128xbf16>
    %306 = vector.shape_cast %305 : vector<2x2x128xbf16> to vector<4x128xbf16>
    %c2_376 = arith.constant 2 : index
    %c0_377 = arith.constant 0 : index
    %c0_378 = arith.constant 0 : index
    %307 = vector.load %arg4[%c2_376, %c0_377, %c0_378] : memref<9x128x128xbf16, #tpu.memory_space<vmem>>, vector<1x128x128xbf16>
    %308 = vector.shape_cast %307 : vector<1x128x128xbf16> to vector<128x128xbf16>
    %cst_379 = arith.constant dense<0.000000e+00> : vector<4x128xf32>
    %309 = tpu.matmul %306, %308, %cst_379 {dimension_numbers = #tpu.dot_dimension_numbers<[1], [0], [0], [1], [0, 0, 1, 1], [], []>} : vector<4x128xbf16>, vector<128x128xbf16>, vector<4x128xf32> -> vector<4x128xf32>
    %310 = arith.addf %303, %309 : vector<4x128xf32>
    %c1_380 = arith.constant 1 : index
    %c0_381 = arith.constant 0 : index
    %c0_382 = arith.constant 0 : index
    %c0_383 = arith.constant 0 : index
    %c0_384 = arith.constant 0 : index
    %311 = vector.load %arg15[%c1_380, %c0_381, %c0_382, %c0_383, %c0_384] : memref<2x2x3x3x128xbf16, #tpu.memory_space<vmem>>, vector<1x1x2x2x128xbf16>
    %312 = vector.shape_cast %311 : vector<1x1x2x2x128xbf16> to vector<2x2x128xbf16>
    %313 = vector.shape_cast %312 : vector<2x2x128xbf16> to vector<4x128xbf16>
    %c3_385 = arith.constant 3 : index
    %c0_386 = arith.constant 0 : index
    %c0_387 = arith.constant 0 : index
    %314 = vector.load %arg4[%c3_385, %c0_386, %c0_387] : memref<9x128x128xbf16, #tpu.memory_space<vmem>>, vector<1x128x128xbf16>
    %315 = vector.shape_cast %314 : vector<1x128x128xbf16> to vector<128x128xbf16>
    %cst_388 = arith.constant dense<0.000000e+00> : vector<4x128xf32>
    %316 = tpu.matmul %313, %315, %cst_388 {dimension_numbers = #tpu.dot_dimension_numbers<[1], [0], [0], [1], [0, 0, 1, 1], [], []>} : vector<4x128xbf16>, vector<128x128xbf16>, vector<4x128xf32> -> vector<4x128xf32>
    %317 = arith.addf %310, %316 : vector<4x128xf32>
    %c1_389 = arith.constant 1 : index
    %c1_390 = arith.constant 1 : index
    %c0_391 = arith.constant 0 : index
    %c0_392 = arith.constant 0 : index
    %c0_393 = arith.constant 0 : index
    %318 = vector.load %arg15[%c1_389, %c1_390, %c0_391, %c0_392, %c0_393] : memref<2x2x3x3x128xbf16, #tpu.memory_space<vmem>>, vector<1x1x2x2x128xbf16>
    %319 = vector.shape_cast %318 : vector<1x1x2x2x128xbf16> to vector<2x2x128xbf16>
    %320 = vector.shape_cast %319 : vector<2x2x128xbf16> to vector<4x128xbf16>
    %c4_394 = arith.constant 4 : index
    %c0_395 = arith.constant 0 : index
    %c0_396 = arith.constant 0 : index
    %321 = vector.load %arg4[%c4_394, %c0_395, %c0_396] : memref<9x128x128xbf16, #tpu.memory_space<vmem>>, vector<1x128x128xbf16>
    %322 = vector.shape_cast %321 : vector<1x128x128xbf16> to vector<128x128xbf16>
    %cst_397 = arith.constant dense<0.000000e+00> : vector<4x128xf32>
    %323 = tpu.matmul %320, %322, %cst_397 {dimension_numbers = #tpu.dot_dimension_numbers<[1], [0], [0], [1], [0, 0, 1, 1], [], []>} : vector<4x128xbf16>, vector<128x128xbf16>, vector<4x128xf32> -> vector<4x128xf32>
    %324 = arith.addf %317, %323 : vector<4x128xf32>
    %c1_398 = arith.constant 1 : index
    %c0_399 = arith.constant 0 : index
    %c0_400 = arith.constant 0 : index
    %c1_401 = arith.constant 1 : index
    %c0_402 = arith.constant 0 : index
    %325 = vector.load %arg15[%c1_398, %c0_399, %c0_400, %c1_401, %c0_402] : memref<2x2x3x3x128xbf16, #tpu.memory_space<vmem>>, vector<1x1x2x2x128xbf16>
    %326 = vector.shape_cast %325 : vector<1x1x2x2x128xbf16> to vector<2x2x128xbf16>
    %327 = vector.shape_cast %326 : vector<2x2x128xbf16> to vector<4x128xbf16>
    %c5_403 = arith.constant 5 : index
    %c0_404 = arith.constant 0 : index
    %c0_405 = arith.constant 0 : index
    %328 = vector.load %arg4[%c5_403, %c0_404, %c0_405] : memref<9x128x128xbf16, #tpu.memory_space<vmem>>, vector<1x128x128xbf16>
    %329 = vector.shape_cast %328 : vector<1x128x128xbf16> to vector<128x128xbf16>
    %cst_406 = arith.constant dense<0.000000e+00> : vector<4x128xf32>
    %330 = tpu.matmul %327, %329, %cst_406 {dimension_numbers = #tpu.dot_dimension_numbers<[1], [0], [0], [1], [0, 0, 1, 1], [], []>} : vector<4x128xbf16>, vector<128x128xbf16>, vector<4x128xf32> -> vector<4x128xf32>
    %331 = arith.addf %324, %330 : vector<4x128xf32>
    %c0_407 = arith.constant 0 : index
    %c0_408 = arith.constant 0 : index
    %c1_409 = arith.constant 1 : index
    %c0_410 = arith.constant 0 : index
    %c0_411 = arith.constant 0 : index
    %332 = vector.load %arg15[%c0_407, %c0_408, %c1_409, %c0_410, %c0_411] : memref<2x2x3x3x128xbf16, #tpu.memory_space<vmem>>, vector<1x1x2x2x128xbf16>
    %333 = vector.shape_cast %332 : vector<1x1x2x2x128xbf16> to vector<2x2x128xbf16>
    %334 = vector.shape_cast %333 : vector<2x2x128xbf16> to vector<4x128xbf16>
    %c6_412 = arith.constant 6 : index
    %c0_413 = arith.constant 0 : index
    %c0_414 = arith.constant 0 : index
    %335 = vector.load %arg4[%c6_412, %c0_413, %c0_414] : memref<9x128x128xbf16, #tpu.memory_space<vmem>>, vector<1x128x128xbf16>
    %336 = vector.shape_cast %335 : vector<1x128x128xbf16> to vector<128x128xbf16>
    %cst_415 = arith.constant dense<0.000000e+00> : vector<4x128xf32>
    %337 = tpu.matmul %334, %336, %cst_415 {dimension_numbers = #tpu.dot_dimension_numbers<[1], [0], [0], [1], [0, 0, 1, 1], [], []>} : vector<4x128xbf16>, vector<128x128xbf16>, vector<4x128xf32> -> vector<4x128xf32>
    %338 = arith.addf %331, %337 : vector<4x128xf32>
    %c0_416 = arith.constant 0 : index
    %c1_417 = arith.constant 1 : index
    %c1_418 = arith.constant 1 : index
    %c0_419 = arith.constant 0 : index
    %c0_420 = arith.constant 0 : index
    %339 = vector.load %arg15[%c0_416, %c1_417, %c1_418, %c0_419, %c0_420] : memref<2x2x3x3x128xbf16, #tpu.memory_space<vmem>>, vector<1x1x2x2x128xbf16>
    %340 = vector.shape_cast %339 : vector<1x1x2x2x128xbf16> to vector<2x2x128xbf16>
    %341 = vector.shape_cast %340 : vector<2x2x128xbf16> to vector<4x128xbf16>
    %c7_421 = arith.constant 7 : index
    %c0_422 = arith.constant 0 : index
    %c0_423 = arith.constant 0 : index
    %342 = vector.load %arg4[%c7_421, %c0_422, %c0_423] : memref<9x128x128xbf16, #tpu.memory_space<vmem>>, vector<1x128x128xbf16>
    %343 = vector.shape_cast %342 : vector<1x128x128xbf16> to vector<128x128xbf16>
    %cst_424 = arith.constant dense<0.000000e+00> : vector<4x128xf32>
    %344 = tpu.matmul %341, %343, %cst_424 {dimension_numbers = #tpu.dot_dimension_numbers<[1], [0], [0], [1], [0, 0, 1, 1], [], []>} : vector<4x128xbf16>, vector<128x128xbf16>, vector<4x128xf32> -> vector<4x128xf32>
    %345 = arith.addf %338, %344 : vector<4x128xf32>
    %c0_425 = arith.constant 0 : index
    %c0_426 = arith.constant 0 : index
    %c1_427 = arith.constant 1 : index
    %c1_428 = arith.constant 1 : index
    %c0_429 = arith.constant 0 : index
    %346 = vector.load %arg15[%c0_425, %c0_426, %c1_427, %c1_428, %c0_429] : memref<2x2x3x3x128xbf16, #tpu.memory_space<vmem>>, vector<1x1x2x2x128xbf16>
    %347 = vector.shape_cast %346 : vector<1x1x2x2x128xbf16> to vector<2x2x128xbf16>
    %348 = vector.shape_cast %347 : vector<2x2x128xbf16> to vector<4x128xbf16>
    %c8_430 = arith.constant 8 : index
    %c0_431 = arith.constant 0 : index
    %c0_432 = arith.constant 0 : index
    %349 = vector.load %arg4[%c8_430, %c0_431, %c0_432] : memref<9x128x128xbf16, #tpu.memory_space<vmem>>, vector<1x128x128xbf16>
    %350 = vector.shape_cast %349 : vector<1x128x128xbf16> to vector<128x128xbf16>
    %cst_433 = arith.constant dense<0.000000e+00> : vector<4x128xf32>
    %351 = tpu.matmul %348, %350, %cst_433 {dimension_numbers = #tpu.dot_dimension_numbers<[1], [0], [0], [1], [0, 0, 1, 1], [], []>} : vector<4x128xbf16>, vector<128x128xbf16>, vector<4x128xf32> -> vector<4x128xf32>
    %352 = arith.addf %345, %351 : vector<4x128xf32>
    %c0_434 = arith.constant 0 : index
    %c0_435 = arith.constant 0 : index
    %353 = vector.load %arg8[%c0_434, %c0_435] : memref<1x128xf32, #tpu.memory_space<vmem>>, vector<1x128xf32>
    %354 = vector.broadcast %353 : vector<1x128xf32> to vector<4x128xf32>
    %355 = arith.addf %352, %354 : vector<4x128xf32>
    %cst_436 = arith.constant 0.000000e+00 : f32
    %356 = vector.broadcast %cst_436 : f32 to vector<4x128xf32>
    %357 = arith.cmpf oge, %355, %356 : vector<4x128xf32>
    %cst_437 = arith.constant 0.00999999977 : f32
    %358 = vector.broadcast %cst_437 : f32 to vector<4x128xf32>
    %359 = arith.mulf %355, %358 : vector<4x128xf32>
    %360 = arith.select %357, %355, %359 : vector<4x128xi1>, vector<4x128xf32>
    %361 = arith.truncf %360 : vector<4x128xf32> to vector<4x128xbf16>
    %cst_438 = arith.constant 0.000000e+00 : bf16
    %362 = vector.broadcast %cst_438 : bf16 to vector<2x128xbf16>
    %cst_439 = arith.constant 0.000000e+00 : bf16
    %363 = vector.broadcast %cst_439 : bf16 to vector<2x1x128xbf16>
    %c0_440 = arith.constant 0 : index
    %c0_441 = arith.constant 0 : index
    %c0_442 = arith.constant 0 : index
    %c0_443 = arith.constant 0 : index
    %c0_444 = arith.constant 0 : index
    %364 = vector.load %arg16[%c0_440, %c0_441, %c0_442, %c0_443, %c0_444] : memref<2x2x2x2x128xbf16, #tpu.memory_space<vmem>>, vector<1x1x1x2x128xbf16>
    %365 = vector.shape_cast %364 : vector<1x1x1x2x128xbf16> to vector<2x128xbf16>
    %366 = vector.shape_cast %362 : vector<2x128xbf16> to vector<1x1x1x2x128xbf16>
    tpu.vector_store %arg16[%c0_440, %c0_441, %c0_442, %c0_443, %c0_444], %366 {strides = array<i32>} : memref<2x2x2x2x128xbf16, #tpu.memory_space<vmem>>, vector<1x1x1x2x128xbf16>,
    %c1_445 = arith.constant 1 : index
    %c0_446 = arith.constant 0 : index
    %c1_447 = arith.constant 1 : index
    %c0_448 = arith.constant 0 : index
    %c0_449 = arith.constant 0 : index
    %367 = vector.load %arg16[%c1_445, %c0_446, %c1_447, %c0_448, %c0_449] : memref<2x2x2x2x128xbf16, #tpu.memory_space<vmem>>, vector<1x1x1x2x128xbf16>
    %368 = vector.shape_cast %367 : vector<1x1x1x2x128xbf16> to vector<2x128xbf16>
    %369 = vector.shape_cast %362 : vector<2x128xbf16> to vector<1x1x1x2x128xbf16>
    tpu.vector_store %arg16[%c1_445, %c0_446, %c1_447, %c0_448, %c0_449], %369 {strides = array<i32>} : memref<2x2x2x2x128xbf16, #tpu.memory_space<vmem>>, vector<1x1x1x2x128xbf16>,
    %c0_450 = arith.constant 0 : index
    %c0_451 = arith.constant 0 : index
    %c0_452 = arith.constant 0 : index
    %c0_453 = arith.constant 0 : index
    %c0_454 = arith.constant 0 : index
    %370 = vector.load %arg16[%c0_450, %c0_451, %c0_452, %c0_453, %c0_454] : memref<2x2x2x2x128xbf16, #tpu.memory_space<vmem>>, vector<1x1x2x1x128xbf16>
    %371 = vector.shape_cast %370 : vector<1x1x2x1x128xbf16> to vector<2x1x128xbf16>
    %372 = vector.shape_cast %363 : vector<2x1x128xbf16> to vector<1x1x2x1x128xbf16>
    tpu.vector_store %arg16[%c0_450, %c0_451, %c0_452, %c0_453, %c0_454], %372 {strides = array<i32>} : memref<2x2x2x2x128xbf16, #tpu.memory_space<vmem>>, vector<1x1x2x1x128xbf16>,
    %c0_455 = arith.constant 0 : index
    %c1_456 = arith.constant 1 : index
    %c0_457 = arith.constant 0 : index
    %c1_458 = arith.constant 1 : index
    %c0_459 = arith.constant 0 : index
    %373 = vector.load %arg16[%c0_455, %c1_456, %c0_457, %c1_458, %c0_459] : memref<2x2x2x2x128xbf16, #tpu.memory_space<vmem>>, vector<1x1x2x1x128xbf16>
    %374 = vector.shape_cast %373 : vector<1x1x2x1x128xbf16> to vector<2x1x128xbf16>
    %375 = vector.shape_cast %363 : vector<2x1x128xbf16> to vector<1x1x2x1x128xbf16>
    tpu.vector_store %arg16[%c0_455, %c1_456, %c0_457, %c1_458, %c0_459], %375 {strides = array<i32>} : memref<2x2x2x2x128xbf16, #tpu.memory_space<vmem>>, vector<1x1x2x1x128xbf16>,
    %c0_460 = arith.constant 0 : index
    %c1_461 = arith.constant 1 : index
    %c0_462 = arith.constant 0 : index
    %c0_463 = arith.constant 0 : index
    %c0_464 = arith.constant 0 : index
    %376 = vector.load %arg16[%c0_460, %c1_461, %c0_462, %c0_463, %c0_464] : memref<2x2x2x2x128xbf16, #tpu.memory_space<vmem>>, vector<1x1x1x2x128xbf16>
    %377 = vector.shape_cast %376 : vector<1x1x1x2x128xbf16> to vector<2x128xbf16>
    %378 = vector.shape_cast %362 : vector<2x128xbf16> to vector<1x1x1x2x128xbf16>
    tpu.vector_store %arg16[%c0_460, %c1_461, %c0_462, %c0_463, %c0_464], %378 {strides = array<i32>} : memref<2x2x2x2x128xbf16, #tpu.memory_space<vmem>>, vector<1x1x1x2x128xbf16>,
    %c1_465 = arith.constant 1 : index
    %c1_466 = arith.constant 1 : index
    %c1_467 = arith.constant 1 : index
    %c0_468 = arith.constant 0 : index
    %c0_469 = arith.constant 0 : index
    %379 = vector.load %arg16[%c1_465, %c1_466, %c1_467, %c0_468, %c0_469] : memref<2x2x2x2x128xbf16, #tpu.memory_space<vmem>>, vector<1x1x1x2x128xbf16>
    %380 = vector.shape_cast %379 : vector<1x1x1x2x128xbf16> to vector<2x128xbf16>
    %381 = vector.shape_cast %362 : vector<2x128xbf16> to vector<1x1x1x2x128xbf16>
    tpu.vector_store %arg16[%c1_465, %c1_466, %c1_467, %c0_468, %c0_469], %381 {strides = array<i32>} : memref<2x2x2x2x128xbf16, #tpu.memory_space<vmem>>, vector<1x1x1x2x128xbf16>,
    %c1_470 = arith.constant 1 : index
    %c0_471 = arith.constant 0 : index
    %c0_472 = arith.constant 0 : index
    %c0_473 = arith.constant 0 : index
    %c0_474 = arith.constant 0 : index
    %382 = vector.load %arg16[%c1_470, %c0_471, %c0_472, %c0_473, %c0_474] : memref<2x2x2x2x128xbf16, #tpu.memory_space<vmem>>, vector<1x1x2x1x128xbf16>
    %383 = vector.shape_cast %382 : vector<1x1x2x1x128xbf16> to vector<2x1x128xbf16>
    %384 = vector.shape_cast %363 : vector<2x1x128xbf16> to vector<1x1x2x1x128xbf16>
    tpu.vector_store %arg16[%c1_470, %c0_471, %c0_472, %c0_473, %c0_474], %384 {strides = array<i32>} : memref<2x2x2x2x128xbf16, #tpu.memory_space<vmem>>, vector<1x1x2x1x128xbf16>,
    %c1_475 = arith.constant 1 : index
    %c1_476 = arith.constant 1 : index
    %c0_477 = arith.constant 0 : index
    %c1_478 = arith.constant 1 : index
    %c0_479 = arith.constant 0 : index
    %385 = vector.load %arg16[%c1_475, %c1_476, %c0_477, %c1_478, %c0_479] : memref<2x2x2x2x128xbf16, #tpu.memory_space<vmem>>, vector<1x1x2x1x128xbf16>
    %386 = vector.shape_cast %385 : vector<1x1x2x1x128xbf16> to vector<2x1x128xbf16>
    %387 = vector.shape_cast %363 : vector<2x1x128xbf16> to vector<1x1x2x1x128xbf16>
    tpu.vector_store %arg16[%c1_475, %c1_476, %c0_477, %c1_478, %c0_479], %387 {strides = array<i32>} : memref<2x2x2x2x128xbf16, #tpu.memory_space<vmem>>, vector<1x1x2x1x128xbf16>,
    %388 = vector.shape_cast %361 : vector<4x128xbf16> to vector<1x2x1x2x128xbf16>
    %389 = vector.extract_strided_slice %388 {offsets = [0, 0, 0, 0, 0], sizes = [1, 1, 1, 1, 128], strides = [1, 1, 1, 1, 1]} : vector<1x2x1x2x128xbf16> to vector<1x1x1x1x128xbf16>
    %390 = vector.shape_cast %389 : vector<1x1x1x1x128xbf16> to vector<1x1x128xbf16>
    %c1_480 = arith.constant 1 : index
    %c1_481 = arith.constant 1 : index
    %c0_482 = arith.constant 0 : index
    %c0_483 = arith.constant 0 : index
    %c0_484 = arith.constant 0 : index
    %391 = vector.load %arg16[%c1_480, %c1_481, %c0_482, %c0_483, %c0_484] : memref<2x2x2x2x128xbf16, #tpu.memory_space<vmem>>, vector<1x1x1x1x128xbf16>
    %392 = vector.shape_cast %391 : vector<1x1x1x1x128xbf16> to vector<1x1x128xbf16>
    %393 = vector.shape_cast %390 : vector<1x1x128xbf16> to vector<1x1x1x1x128xbf16>
    tpu.vector_store %arg16[%c1_480, %c1_481, %c0_482, %c0_483, %c0_484], %393 {strides = array<i32>} : memref<2x2x2x2x128xbf16, #tpu.memory_space<vmem>>, vector<1x1x1x1x128xbf16>,
    %394 = vector.extract_strided_slice %388 {offsets = [0, 0, 0, 1, 0], sizes = [1, 1, 1, 1, 128], strides = [1, 1, 1, 1, 1]} : vector<1x2x1x2x128xbf16> to vector<1x1x1x1x128xbf16>
    %395 = vector.shape_cast %394 : vector<1x1x1x1x128xbf16> to vector<1x1x128xbf16>
    %c1_485 = arith.constant 1 : index
    %c0_486 = arith.constant 0 : index
    %c0_487 = arith.constant 0 : index
    %c1_488 = arith.constant 1 : index
    %c0_489 = arith.constant 0 : index
    %396 = vector.load %arg16[%c1_485, %c0_486, %c0_487, %c1_488, %c0_489] : memref<2x2x2x2x128xbf16, #tpu.memory_space<vmem>>, vector<1x1x1x1x128xbf16>
    %397 = vector.shape_cast %396 : vector<1x1x1x1x128xbf16> to vector<1x1x128xbf16>
    %398 = vector.shape_cast %395 : vector<1x1x128xbf16> to vector<1x1x1x1x128xbf16>
    tpu.vector_store %arg16[%c1_485, %c0_486, %c0_487, %c1_488, %c0_489], %398 {strides = array<i32>} : memref<2x2x2x2x128xbf16, #tpu.memory_space<vmem>>, vector<1x1x1x1x128xbf16>,
    %399 = vector.extract_strided_slice %388 {offsets = [0, 1, 0, 0, 0], sizes = [1, 1, 1, 1, 128], strides = [1, 1, 1, 1, 1]} : vector<1x2x1x2x128xbf16> to vector<1x1x1x1x128xbf16>
    %400 = vector.shape_cast %399 : vector<1x1x1x1x128xbf16> to vector<1x1x128xbf16>
    %c0_490 = arith.constant 0 : index
    %c1_491 = arith.constant 1 : index
    %c1_492 = arith.constant 1 : index
    %c0_493 = arith.constant 0 : index
    %c0_494 = arith.constant 0 : index
    %401 = vector.load %arg16[%c0_490, %c1_491, %c1_492, %c0_493, %c0_494] : memref<2x2x2x2x128xbf16, #tpu.memory_space<vmem>>, vector<1x1x1x1x128xbf16>
    %402 = vector.shape_cast %401 : vector<1x1x1x1x128xbf16> to vector<1x1x128xbf16>
    %403 = vector.shape_cast %400 : vector<1x1x128xbf16> to vector<1x1x1x1x128xbf16>
    tpu.vector_store %arg16[%c0_490, %c1_491, %c1_492, %c0_493, %c0_494], %403 {strides = array<i32>} : memref<2x2x2x2x128xbf16, #tpu.memory_space<vmem>>, vector<1x1x1x1x128xbf16>,
    %404 = vector.extract_strided_slice %388 {offsets = [0, 1, 0, 1, 0], sizes = [1, 1, 1, 1, 128], strides = [1, 1, 1, 1, 1]} : vector<1x2x1x2x128xbf16> to vector<1x1x1x1x128xbf16>
    %405 = vector.shape_cast %404 : vector<1x1x1x1x128xbf16> to vector<1x1x128xbf16>
    %c0_495 = arith.constant 0 : index
    %c0_496 = arith.constant 0 : index
    %c1_497 = arith.constant 1 : index
    %c1_498 = arith.constant 1 : index
    %c0_499 = arith.constant 0 : index
    %406 = vector.load %arg16[%c0_495, %c0_496, %c1_497, %c1_498, %c0_499] : memref<2x2x2x2x128xbf16, #tpu.memory_space<vmem>>, vector<1x1x1x1x128xbf16>
    %407 = vector.shape_cast %406 : vector<1x1x1x1x128xbf16> to vector<1x1x128xbf16>
    %408 = vector.shape_cast %405 : vector<1x1x128xbf16> to vector<1x1x1x1x128xbf16>
    tpu.vector_store %arg16[%c0_495, %c0_496, %c1_497, %c1_498, %c0_499], %408 {strides = array<i32>} : memref<2x2x2x2x128xbf16, #tpu.memory_space<vmem>>, vector<1x1x1x1x128xbf16>,
    %cst_500 = arith.constant 0.000000e+00 : f32
    %409 = vector.broadcast %cst_500 : f32 to vector<1x128xf32>
    %c0_501 = arith.constant 0 : index
    %c0_502 = arith.constant 0 : index
    %c0_503 = arith.constant 0 : index
    %c0_504 = arith.constant 0 : index
    %c0_505 = arith.constant 0 : index
    %410 = vector.load %arg16[%c0_501, %c0_502, %c0_503, %c0_504, %c0_505] : memref<2x2x2x2x128xbf16, #tpu.memory_space<vmem>>, vector<1x1x1x1x128xbf16>
    %411 = vector.shape_cast %410 : vector<1x1x1x1x128xbf16> to vector<1x1x128xbf16>
    %412 = vector.shape_cast %411 : vector<1x1x128xbf16> to vector<1x128xbf16>
    %c0_506 = arith.constant 0 : index
    %c0_507 = arith.constant 0 : index
    %c0_508 = arith.constant 0 : index
    %413 = vector.load %arg5[%c0_506, %c0_507, %c0_508] : memref<9x128x128xbf16, #tpu.memory_space<vmem>>, vector<1x128x128xbf16>
    %414 = vector.shape_cast %413 : vector<1x128x128xbf16> to vector<128x128xbf16>
    %cst_509 = arith.constant dense<0.000000e+00> : vector<1x128xf32>
    %415 = tpu.matmul %412, %414, %cst_509 {dimension_numbers = #tpu.dot_dimension_numbers<[1], [0], [0], [1], [0, 0, 1, 1], [], []>} : vector<1x128xbf16>, vector<128x128xbf16>, vector<1x128xf32> -> vector<1x128xf32>
    %416 = arith.addf %409, %415 : vector<1x128xf32>
    %c0_510 = arith.constant 0 : index
    %c1_511 = arith.constant 1 : index
    %c0_512 = arith.constant 0 : index
    %c0_513 = arith.constant 0 : index
    %c0_514 = arith.constant 0 : index
    %417 = vector.load %arg16[%c0_510, %c1_511, %c0_512, %c0_513, %c0_514] : memref<2x2x2x2x128xbf16, #tpu.memory_space<vmem>>, vector<1x1x1x1x128xbf16>
    %418 = vector.shape_cast %417 : vector<1x1x1x1x128xbf16> to vector<1x1x128xbf16>
    %419 = vector.shape_cast %418 : vector<1x1x128xbf16> to vector<1x128xbf16>
    %c1_515 = arith.constant 1 : index
    %c0_516 = arith.constant 0 : index
    %c0_517 = arith.constant 0 : index
    %420 = vector.load %arg5[%c1_515, %c0_516, %c0_517] : memref<9x128x128xbf16, #tpu.memory_space<vmem>>, vector<1x128x128xbf16>
    %421 = vector.shape_cast %420 : vector<1x128x128xbf16> to vector<128x128xbf16>
    %cst_518 = arith.constant dense<0.000000e+00> : vector<1x128xf32>
    %422 = tpu.matmul %419, %421, %cst_518 {dimension_numbers = #tpu.dot_dimension_numbers<[1], [0], [0], [1], [0, 0, 1, 1], [], []>} : vector<1x128xbf16>, vector<128x128xbf16>, vector<1x128xf32> -> vector<1x128xf32>
    %423 = arith.addf %416, %422 : vector<1x128xf32>
    %c0_519 = arith.constant 0 : index
    %c0_520 = arith.constant 0 : index
    %c0_521 = arith.constant 0 : index
    %c1_522 = arith.constant 1 : index
    %c0_523 = arith.constant 0 : index
    %424 = vector.load %arg16[%c0_519, %c0_520, %c0_521, %c1_522, %c0_523] : memref<2x2x2x2x128xbf16, #tpu.memory_space<vmem>>, vector<1x1x1x1x128xbf16>
    %425 = vector.shape_cast %424 : vector<1x1x1x1x128xbf16> to vector<1x1x128xbf16>
    %426 = vector.shape_cast %425 : vector<1x1x128xbf16> to vector<1x128xbf16>
    %c2_524 = arith.constant 2 : index
    %c0_525 = arith.constant 0 : index
    %c0_526 = arith.constant 0 : index
    %427 = vector.load %arg5[%c2_524, %c0_525, %c0_526] : memref<9x128x128xbf16, #tpu.memory_space<vmem>>, vector<1x128x128xbf16>
    %428 = vector.shape_cast %427 : vector<1x128x128xbf16> to vector<128x128xbf16>
    %cst_527 = arith.constant dense<0.000000e+00> : vector<1x128xf32>
    %429 = tpu.matmul %426, %428, %cst_527 {dimension_numbers = #tpu.dot_dimension_numbers<[1], [0], [0], [1], [0, 0, 1, 1], [], []>} : vector<1x128xbf16>, vector<128x128xbf16>, vector<1x128xf32> -> vector<1x128xf32>
    %430 = arith.addf %423, %429 : vector<1x128xf32>
    %c1_528 = arith.constant 1 : index
    %c0_529 = arith.constant 0 : index
    %c0_530 = arith.constant 0 : index
    %c0_531 = arith.constant 0 : index
    %c0_532 = arith.constant 0 : index
    %431 = vector.load %arg16[%c1_528, %c0_529, %c0_530, %c0_531, %c0_532] : memref<2x2x2x2x128xbf16, #tpu.memory_space<vmem>>, vector<1x1x1x1x128xbf16>
    %432 = vector.shape_cast %431 : vector<1x1x1x1x128xbf16> to vector<1x1x128xbf16>
    %433 = vector.shape_cast %432 : vector<1x1x128xbf16> to vector<1x128xbf16>
    %c3_533 = arith.constant 3 : index
    %c0_534 = arith.constant 0 : index
    %c0_535 = arith.constant 0 : index
    %434 = vector.load %arg5[%c3_533, %c0_534, %c0_535] : memref<9x128x128xbf16, #tpu.memory_space<vmem>>, vector<1x128x128xbf16>
    %435 = vector.shape_cast %434 : vector<1x128x128xbf16> to vector<128x128xbf16>
    %cst_536 = arith.constant dense<0.000000e+00> : vector<1x128xf32>
    %436 = tpu.matmul %433, %435, %cst_536 {dimension_numbers = #tpu.dot_dimension_numbers<[1], [0], [0], [1], [0, 0, 1, 1], [], []>} : vector<1x128xbf16>, vector<128x128xbf16>, vector<1x128xf32> -> vector<1x128xf32>
    %437 = arith.addf %430, %436 : vector<1x128xf32>
    %c1_537 = arith.constant 1 : index
    %c1_538 = arith.constant 1 : index
    %c0_539 = arith.constant 0 : index
    %c0_540 = arith.constant 0 : index
    %c0_541 = arith.constant 0 : index
    %438 = vector.load %arg16[%c1_537, %c1_538, %c0_539, %c0_540, %c0_541] : memref<2x2x2x2x128xbf16, #tpu.memory_space<vmem>>, vector<1x1x1x1x128xbf16>
    %439 = vector.shape_cast %438 : vector<1x1x1x1x128xbf16> to vector<1x1x128xbf16>
    %440 = vector.shape_cast %439 : vector<1x1x128xbf16> to vector<1x128xbf16>
    %c4_542 = arith.constant 4 : index
    %c0_543 = arith.constant 0 : index
    %c0_544 = arith.constant 0 : index
    %441 = vector.load %arg5[%c4_542, %c0_543, %c0_544] : memref<9x128x128xbf16, #tpu.memory_space<vmem>>, vector<1x128x128xbf16>
    %442 = vector.shape_cast %441 : vector<1x128x128xbf16> to vector<128x128xbf16>
    %cst_545 = arith.constant dense<0.000000e+00> : vector<1x128xf32>
    %443 = tpu.matmul %440, %442, %cst_545 {dimension_numbers = #tpu.dot_dimension_numbers<[1], [0], [0], [1], [0, 0, 1, 1], [], []>} : vector<1x128xbf16>, vector<128x128xbf16>, vector<1x128xf32> -> vector<1x128xf32>
    %444 = arith.addf %437, %443 : vector<1x128xf32>
    %c1_546 = arith.constant 1 : index
    %c0_547 = arith.constant 0 : index
    %c0_548 = arith.constant 0 : index
    %c1_549 = arith.constant 1 : index
    %c0_550 = arith.constant 0 : index
    %445 = vector.load %arg16[%c1_546, %c0_547, %c0_548, %c1_549, %c0_550] : memref<2x2x2x2x128xbf16, #tpu.memory_space<vmem>>, vector<1x1x1x1x128xbf16>
    %446 = vector.shape_cast %445 : vector<1x1x1x1x128xbf16> to vector<1x1x128xbf16>
    %447 = vector.shape_cast %446 : vector<1x1x128xbf16> to vector<1x128xbf16>
    %c5_551 = arith.constant 5 : index
    %c0_552 = arith.constant 0 : index
    %c0_553 = arith.constant 0 : index
    %448 = vector.load %arg5[%c5_551, %c0_552, %c0_553] : memref<9x128x128xbf16, #tpu.memory_space<vmem>>, vector<1x128x128xbf16>
    %449 = vector.shape_cast %448 : vector<1x128x128xbf16> to vector<128x128xbf16>
    %cst_554 = arith.constant dense<0.000000e+00> : vector<1x128xf32>
    %450 = tpu.matmul %447, %449, %cst_554 {dimension_numbers = #tpu.dot_dimension_numbers<[1], [0], [0], [1], [0, 0, 1, 1], [], []>} : vector<1x128xbf16>, vector<128x128xbf16>, vector<1x128xf32> -> vector<1x128xf32>
    %451 = arith.addf %444, %450 : vector<1x128xf32>
    %c0_555 = arith.constant 0 : index
    %c0_556 = arith.constant 0 : index
    %c1_557 = arith.constant 1 : index
    %c0_558 = arith.constant 0 : index
    %c0_559 = arith.constant 0 : index
    %452 = vector.load %arg16[%c0_555, %c0_556, %c1_557, %c0_558, %c0_559] : memref<2x2x2x2x128xbf16, #tpu.memory_space<vmem>>, vector<1x1x1x1x128xbf16>
    %453 = vector.shape_cast %452 : vector<1x1x1x1x128xbf16> to vector<1x1x128xbf16>
    %454 = vector.shape_cast %453 : vector<1x1x128xbf16> to vector<1x128xbf16>
    %c6_560 = arith.constant 6 : index
    %c0_561 = arith.constant 0 : index
    %c0_562 = arith.constant 0 : index
    %455 = vector.load %arg5[%c6_560, %c0_561, %c0_562] : memref<9x128x128xbf16, #tpu.memory_space<vmem>>, vector<1x128x128xbf16>
    %456 = vector.shape_cast %455 : vector<1x128x128xbf16> to vector<128x128xbf16>
    %cst_563 = arith.constant dense<0.000000e+00> : vector<1x128xf32>
    %457 = tpu.matmul %454, %456, %cst_563 {dimension_numbers = #tpu.dot_dimension_numbers<[1], [0], [0], [1], [0, 0, 1, 1], [], []>} : vector<1x128xbf16>, vector<128x128xbf16>, vector<1x128xf32> -> vector<1x128xf32>
    %458 = arith.addf %451, %457 : vector<1x128xf32>
    %c0_564 = arith.constant 0 : index
    %c1_565 = arith.constant 1 : index
    %c1_566 = arith.constant 1 : index
    %c0_567 = arith.constant 0 : index
    %c0_568 = arith.constant 0 : index
    %459 = vector.load %arg16[%c0_564, %c1_565, %c1_566, %c0_567, %c0_568] : memref<2x2x2x2x128xbf16, #tpu.memory_space<vmem>>, vector<1x1x1x1x128xbf16>
    %460 = vector.shape_cast %459 : vector<1x1x1x1x128xbf16> to vector<1x1x128xbf16>
    %461 = vector.shape_cast %460 : vector<1x1x128xbf16> to vector<1x128xbf16>
    %c7_569 = arith.constant 7 : index
    %c0_570 = arith.constant 0 : index
    %c0_571 = arith.constant 0 : index
    %462 = vector.load %arg5[%c7_569, %c0_570, %c0_571] : memref<9x128x128xbf16, #tpu.memory_space<vmem>>, vector<1x128x128xbf16>
    %463 = vector.shape_cast %462 : vector<1x128x128xbf16> to vector<128x128xbf16>
    %cst_572 = arith.constant dense<0.000000e+00> : vector<1x128xf32>
    %464 = tpu.matmul %461, %463, %cst_572 {dimension_numbers = #tpu.dot_dimension_numbers<[1], [0], [0], [1], [0, 0, 1, 1], [], []>} : vector<1x128xbf16>, vector<128x128xbf16>, vector<1x128xf32> -> vector<1x128xf32>
    %465 = arith.addf %458, %464 : vector<1x128xf32>
    %c0_573 = arith.constant 0 : index
    %c0_574 = arith.constant 0 : index
    %c1_575 = arith.constant 1 : index
    %c1_576 = arith.constant 1 : index
    %c0_577 = arith.constant 0 : index
    %466 = vector.load %arg16[%c0_573, %c0_574, %c1_575, %c1_576, %c0_577] : memref<2x2x2x2x128xbf16, #tpu.memory_space<vmem>>, vector<1x1x1x1x128xbf16>
    %467 = vector.shape_cast %466 : vector<1x1x1x1x128xbf16> to vector<1x1x128xbf16>
    %468 = vector.shape_cast %467 : vector<1x1x128xbf16> to vector<1x128xbf16>
    %c8_578 = arith.constant 8 : index
    %c0_579 = arith.constant 0 : index
    %c0_580 = arith.constant 0 : index
    %469 = vector.load %arg5[%c8_578, %c0_579, %c0_580] : memref<9x128x128xbf16, #tpu.memory_space<vmem>>, vector<1x128x128xbf16>
    %470 = vector.shape_cast %469 : vector<1x128x128xbf16> to vector<128x128xbf16>
    %cst_581 = arith.constant dense<0.000000e+00> : vector<1x128xf32>
    %471 = tpu.matmul %468, %470, %cst_581 {dimension_numbers = #tpu.dot_dimension_numbers<[1], [0], [0], [1], [0, 0, 1, 1], [], []>} : vector<1x128xbf16>, vector<128x128xbf16>, vector<1x128xf32> -> vector<1x128xf32>
    %472 = arith.addf %465, %471 : vector<1x128xf32>
    %c0_582 = arith.constant 0 : index
    %c0_583 = arith.constant 0 : index
    %473 = vector.load %arg9[%c0_582, %c0_583] : memref<1x128xf32, #tpu.memory_space<vmem>>, vector<1x128xf32>
    %474 = arith.addf %472, %473 : vector<1x128xf32>
    %cst_584 = arith.constant 0.000000e+00 : f32
    %475 = vector.broadcast %cst_584 : f32 to vector<1x128xf32>
    %476 = arith.cmpf oge, %474, %475 : vector<1x128xf32>
    %cst_585 = arith.constant 0.00999999977 : f32
    %477 = vector.broadcast %cst_585 : f32 to vector<1x128xf32>
    %478 = arith.mulf %474, %477 : vector<1x128xf32>
    %479 = arith.select %476, %474, %478 : vector<1x128xi1>, vector<1x128xf32>
    %480 = arith.truncf %479 : vector<1x128xf32> to vector<1x128xbf16>
    %c0_586 = arith.constant 0 : index
    %c0_587 = arith.constant 0 : index
    %481 = vector.load %arg10[%c0_586, %c0_587] : memref<128x128xbf16, #tpu.memory_space<vmem>>, vector<128x128xbf16>
    %cst_588 = arith.constant dense<0.000000e+00> : vector<1x128xf32>
    %482 = tpu.matmul %480, %481, %cst_588 {dimension_numbers = #tpu.dot_dimension_numbers<[1], [0], [0], [1], [0, 0, 1, 1], [], []>} : vector<1x128xbf16>, vector<128x128xbf16>, vector<1x128xf32> -> vector<1x128xf32>
    %c0_589 = arith.constant 0 : index
    %c0_590 = arith.constant 0 : index
    %483 = vector.load %arg11[%c0_589, %c0_590] : memref<1x128xf32, #tpu.memory_space<vmem>>, vector<1x128xf32>
    %484 = arith.addf %482, %483 : vector<1x128xf32>
    %c0_591 = arith.constant 0 : index
    %c0_592 = arith.constant 0 : index
    %c0_593 = arith.constant 0 : index
    %485 = vector.load %arg12[%c0_591, %c0_592, %c0_593] : memref<1x1x128xf32, #tpu.memory_space<vmem>>, vector<1x1x128xf32>
    %486 = vector.shape_cast %485 : vector<1x1x128xf32> to vector<1x128xf32>
    %487 = vector.shape_cast %484 : vector<1x128xf32> to vector<1x1x128xf32>
    tpu.vector_store %arg12[%c0_591, %c0_592, %c0_593], %487 {strides = array<i32>} : memref<1x1x128xf32, #tpu.memory_space<vmem>>, vector<1x1x128xf32>,
    return
  }
  func.func @transform_0(%arg0: i32) -> (i32, i32, i32, i32) {
    %c0_i32 = arith.constant 0 : i32
    %c0_i32_0 = arith.constant 0 : i32
    %c0_i32_1 = arith.constant 0 : i32
    %c0_i32_2 = arith.constant 0 : i32
    return %arg0, %c0_i32, %c0_i32_0, %c0_i32_1 : i32, i32, i32, i32
  }
  func.func @transform_1(%arg0: i32) -> (i32, i32, i32) {
    %c0_i32 = arith.constant 0 : i32
    %c0_i32_0 = arith.constant 0 : i32
    %c0_i32_1 = arith.constant 0 : i32
    %c0_i32_2 = arith.constant 0 : i32
    return %c0_i32, %c0_i32_0, %c0_i32_1 : i32, i32, i32
  }
  func.func @transform_2(%arg0: i32) -> (i32, i32, i32) {
    %c0_i32 = arith.constant 0 : i32
    %c0_i32_0 = arith.constant 0 : i32
    %c0_i32_1 = arith.constant 0 : i32
    %c0_i32_2 = arith.constant 0 : i32
    return %c0_i32, %c0_i32_0, %c0_i32_1 : i32, i32, i32
  }
  func.func @transform_3(%arg0: i32) -> (i32, i32, i32) {
    %c0_i32 = arith.constant 0 : i32
    %c0_i32_0 = arith.constant 0 : i32
    %c0_i32_1 = arith.constant 0 : i32
    %c0_i32_2 = arith.constant 0 : i32
    return %c0_i32, %c0_i32_0, %c0_i32_1 : i32, i32, i32
  }
  func.func @transform_4(%arg0: i32) -> (i32, i32, i32) {
    %c0_i32 = arith.constant 0 : i32
    %c0_i32_0 = arith.constant 0 : i32
    %c0_i32_1 = arith.constant 0 : i32
    %c0_i32_2 = arith.constant 0 : i32
    return %c0_i32, %c0_i32_0, %c0_i32_1 : i32, i32, i32
  }
  func.func @transform_5(%arg0: i32) -> (i32, i32) {
    %c0_i32 = arith.constant 0 : i32
    %c0_i32_0 = arith.constant 0 : i32
    %c0_i32_1 = arith.constant 0 : i32
    return %c0_i32, %c0_i32_0 : i32, i32
  }
  func.func @transform_6(%arg0: i32) -> (i32, i32) {
    %c0_i32 = arith.constant 0 : i32
    %c0_i32_0 = arith.constant 0 : i32
    %c0_i32_1 = arith.constant 0 : i32
    return %c0_i32, %c0_i32_0 : i32, i32
  }
  func.func @transform_7(%arg0: i32) -> (i32, i32) {
    %c0_i32 = arith.constant 0 : i32
    %c0_i32_0 = arith.constant 0 : i32
    %c0_i32_1 = arith.constant 0 : i32
    return %c0_i32, %c0_i32_0 : i32, i32
  }
  func.func @transform_8(%arg0: i32) -> (i32, i32) {
    %c0_i32 = arith.constant 0 : i32
    %c0_i32_0 = arith.constant 0 : i32
    %c0_i32_1 = arith.constant 0 : i32
    return %c0_i32, %c0_i32_0 : i32, i32
  }
  func.func @transform_9(%arg0: i32) -> (i32, i32) {
    %c0_i32 = arith.constant 0 : i32
    %c0_i32_0 = arith.constant 0 : i32
    %c0_i32_1 = arith.constant 0 : i32
    return %c0_i32, %c0_i32_0 : i32, i32
  }
  func.func @transform_10(%arg0: i32) -> (i32, i32) {
    %c0_i32 = arith.constant 0 : i32
    %c0_i32_0 = arith.constant 0 : i32
    %c0_i32_1 = arith.constant 0 : i32
    return %c0_i32, %c0_i32_0 : i32, i32
  }
  func.func @transform_11(%arg0: i32) -> (i32, i32, i32) {
    %c0_i32 = arith.constant 0 : i32
    %c0_i32_0 = arith.constant 0 : i32
    %c0_i32_1 = arith.constant 0 : i32
    return %arg0, %c0_i32, %c0_i32_0 : i32, i32, i32
  }
}

</mosaic_0001>

<llo_original>
// kernel: branch2_forward.1
$region0: #{branch2_forward.1}
  #allocation0 [shape = 'u32[]', space=smem, size = 0x4, offset = 0x4, fixed_abs, tag = 'smem constant byte address 0x4 - core index']
  #allocation1 [shape = 'u32[144,128]{1,0:T(1,128)}', space=vmem, size = 0x12000, scoped, tag = 'internal scratch']
  #allocation2 [shape = 'bf16[2,2,9,9,128]{4,3,2,1,0:T(8,128)(2,1)}', space=vmem, size = 0x24000, scoped, tag = 'scratch operand']
  #allocation3 [shape = 'bf16[2,2,5,5,128]{4,3,2,1,0:T(8,128)(2,1)}', space=vmem, size = 0xa000, scoped, tag = 'scratch operand']
  #allocation4 [shape = 'bf16[2,2,3,3,128]{4,3,2,1,0:T(4,128)(2,1)}', space=vmem, size = 0x3000, scoped, tag = 'scratch operand']
  #allocation5 [shape = 'bf16[2,2,2,2,128]{4,3,2,1,0:T(2,128)(2,1)}', space=vmem, size = 0x1000, scoped, tag = 'scratch operand']
  %s0 = inlined_call_operand.vmem [shape: bf16[2,16,16,128], index: 0, kind: input, shape index: {}]
  %s1 = inlined_call_operand.vmem [shape: bf16[9,128,128], index: 1, kind: input, shape index: {}]
  %s2 = inlined_call_operand.hbm [shape: bf16[9,128,128], index: 2, kind: input, shape index: {}]
  %s3 = inlined_call_operand.hbm [shape: bf16[9,128,128], index: 3, kind: input, shape index: {}]
  %s4 = inlined_call_operand.hbm [shape: bf16[9,128,128], index: 4, kind: input, shape index: {}]
  %s5 = inlined_call_operand.vmem [shape: f32[1,128], index: 5, kind: input, shape index: {}]
  %s6 = inlined_call_operand.vmem [shape: f32[1,128], index: 6, kind: input, shape index: {}]
  %s7 = inlined_call_operand.vmem [shape: f32[1,128], index: 7, kind: input, shape index: {}]
  %s8 = inlined_call_operand.vmem [shape: f32[1,128], index: 8, kind: input, shape index: {}]
  %s9 = inlined_call_operand.vmem [shape: bf16[128,128], index: 9, kind: input, shape index: {}]
  %s10 = inlined_call_operand.vmem [shape: f32[1,128], index: 10, kind: input, shape index: {}]
  %s11 = inlined_call_operand.hbm [shape: f32[2,1,128], index: 11, kind: output, shape index: {}]
  %s12 = sld [smem:[#allocation0]]
  $region89: #{branch2_forward.1} parent=0
    _
  %s14 = ssub.s32 1, %s12
  %s15 = scalar_select 0, %s14, %s12
  $region1: #{branch2_forward.1} parent=0
    #allocation6 [shape = 'u8[294912]{0}', space=vmem, size = 0x48000, scoped, tag = 'input window, operand 2, single buffered']
    #allocation7 [shape = 's32[2]{0}', space=sflag, size = 0x8, scoped, tag = 'scoped memory for branch2_forward.1']
    #allocation8 [shape = 's32[2]{0}', space=sflag, size = 0x8, scoped, tag = 'scoped memory for branch2_forward.1']
    #allocation9 [shape = 'u8[294912]{0}', space=vmem, size = 0x48000, scoped, tag = 'input window, operand 3, single buffered']
    #allocation10 [shape = 's32[1]{0}', space=sflag, size = 0x4, scoped, tag = 'scoped memory for branch2_forward.1']
    #allocation11 [shape = 'u8[294912]{0}', space=vmem, size = 0x48000, scoped, tag = 'input window, operand 4, single buffered']
    #allocation12 [shape = 'u8[1024]{0}', space=vmem, size = 0x400, scoped, tag = 'output window, operand 0']
    %16 = vsyncpa [#allocation7], 0
    %17 = vsyncpa [#allocation10], 0
    %18 = vsyncpa [#allocation8], 0
    %s19 = scalar_lea.sflag [#allocation8], 1
    %20 = vsyncpa %s19, 0
    loop: start=0, step=1, limit=4
    $region2: #{branch2_forward.1} parent=1 // loop_pre_header
      _
    $region3: #{branch2_forward.1} parent=1 // loop_header
      %s22 = sphi 0, %s26
      %p23 = scmp.ge.s32.totalorder %s22, 4
      %s32 = sphi 0, %s34
      %s35 = sphi 0, %s32
      %s36 = sphi 0, %s35
      %s52 = sphi 0, %s36
      %s56 = sphi 0, %s56
      %s58 = sphi 0, %s56
      %s59 = sphi 0, %s58
      %s73 = sphi 0, %s59
      %s77 = sphi 0, %s77
      %s79 = sphi 0, %s77
      %s80 = sphi 0, %s79
      %s94 = sphi 0, %s80
      %s98 = sphi 0, %s98
      %s100 = sphi 0, %s98
      %s101 = sphi 0, %s100
      %s115 = sphi 0, %s101
      %s119 = sphi 0, %s119
      %s121 = sphi 0, %s119
      %s122 = sphi 0, %s121
      %s136 = sphi 0, %s122
      %s140 = sphi 0, %s140
      %s142 = sphi 0, %s140
      %s143 = sphi 0, %s142
      %s157 = sphi 0, %s143
      %s161 = sphi 0, %s161
      %s163 = sphi 0, %s161
      %s164 = sphi 0, %s163
      %s178 = sphi 0, %s164
      %s182 = sphi 0, %s182
      %s184 = sphi 0, %s182
      %s185 = sphi 0, %s184
      %s199 = sphi 0, %s185
      %s203 = sphi 0, %s203
      %s205 = sphi 0, %s203
      %s206 = sphi 0, %s205
      %s220 = sphi 0, %s206
      %s224 = sphi 0, %s224
      %s226 = sphi 0, %s224
      %s227 = sphi 0, %s226
      %s241 = sphi 0, %s227
      %s245 = sphi 0, %s245
      %s247 = sphi 0, %s245
      %s248 = sphi 0, %s247
      %s262 = sphi 0, %s248
      %s268 = sphi 0, %s270
      %s271 = sphi 0, %s268
      %s272 = sphi 0, %s271
      %s288 = sphi 0, %s272
    $region4: #{branch2_forward.1} parent=1 // loop_header_branch
      %25 = sbr.rel (%p23) target = $region8
    $region5: #{branch2_forward.1} parent=1 // loop_body
      %s27 = ssub.s32 %s22, 1
      %s28 = ssub.s32 %s22, 2
      %s29 = sadd.s32 %s22, 1
      %s30 = ssub.s32 %s22, %s29
      %p31 = scmp.eq.s32.totalorder %s30, 0
      %s33 = sadd.s32 %s32, 1
      %s34 = scalar_select %p31, %s32, %s33
      %p37 = pneg %p31
      %p38 = scmp.eq.s32.totalorder %s22, 1
      %p39 = por %p37, %p38
      %p40 = scmp.ne.s32.totalorder %s32, %s35
      %p41 = scmp.eq.s32.totalorder %s22, 0
      %p42 = por %p40, %p41
      %p43 = scmp.ne.s32.totalorder %s32, %s35
      %p44 = scmp.eq.s32.totalorder %s27, 1
      %p45 = por %p43, %p44
      %p46 = scmp.ne.s32.totalorder %s35, %s36
      %p47 = scmp.eq.s32.totalorder %s27, 0
      %p48 = por %p46, %p47
      %p49 = scmp.ne.s32.totalorder %s35, %s36
      %p50 = scmp.eq.s32.totalorder %s28, 1
      %p51 = por %p49, %p50
      %p53 = scmp.ne.s32.totalorder %s36, %s52
      %p54 = scmp.eq.s32.totalorder %s28, 0
      %p55 = por %p53, %p54
      %s57 = sadd.s32 %s56, 1
      %p60 = scmp.eq.s32.totalorder %s22, 1
      %p61 = scmp.ne.s32.totalorder %s56, %s58
      %p62 = scmp.eq.s32.totalorder %s22, 0
      %p63 = por %p61, %p62
      %p64 = scmp.ne.s32.totalorder %s56, %s58
      %p65 = scmp.eq.s32.totalorder %s27, 1
      %p66 = por %p64, %p65
      %p67 = scmp.ne.s32.totalorder %s58, %s59
      %p68 = scmp.eq.s32.totalorder %s27, 0
      %p69 = por %p67, %p68
      %p70 = scmp.ne.s32.totalorder %s58, %s59
      %p71 = scmp.eq.s32.totalorder %s28, 1
      %p72 = por %p70, %p71
      %p74 = scmp.ne.s32.totalorder %s59, %s73
      %p75 = scmp.eq.s32.totalorder %s28, 0
      %p76 = por %p74, %p75
      %s78 = sadd.s32 %s77, 1
      %p81 = scmp.eq.s32.totalorder %s22, 1
      %p82 = scmp.ne.s32.totalorder %s77, %s79
      %p83 = scmp.eq.s32.totalorder %s22, 0
      %p84 = por %p82, %p83
      %p85 = scmp.ne.s32.totalorder %s77, %s79
      %p86 = scmp.eq.s32.totalorder %s27, 1
      %p87 = por %p85, %p86
      %p88 = scmp.ne.s32.totalorder %s79, %s80
      %p89 = scmp.eq.s32.totalorder %s27, 0
      %p90 = por %p88, %p89
      %p91 = scmp.ne.s32.totalorder %s79, %s80
      %p92 = scmp.eq.s32.totalorder %s28, 1
      %p93 = por %p91, %p92
      %p95 = scmp.ne.s32.totalorder %s80, %s94
      %p96 = scmp.eq.s32.totalorder %s28, 0
      %p97 = por %p95, %p96
      %s99 = sadd.s32 %s98, 1
      %p102 = scmp.eq.s32.totalorder %s22, 1
      %p103 = scmp.ne.s32.totalorder %s98, %s100
      %p104 = scmp.eq.s32.totalorder %s22, 0
      %p105 = por %p103, %p104
      %p106 = scmp.ne.s32.totalorder %s98, %s100
      %p107 = scmp.eq.s32.totalorder %s27, 1
      %p108 = por %p106, %p107
      %p109 = scmp.ne.s32.totalorder %s100, %s101
      %p110 = scmp.eq.s32.totalorder %s27, 0
      %p111 = por %p109, %p110
      %p112 = scmp.ne.s32.totalorder %s100, %s101
      %p113 = scmp.eq.s32.totalorder %s28, 1
      %p114 = por %p112, %p113
      %p116 = scmp.ne.s32.totalorder %s101, %s115
      %p117 = scmp.eq.s32.totalorder %s28, 0
      %p118 = por %p116, %p117
      %s120 = sadd.s32 %s119, 1
      %p123 = scmp.eq.s32.totalorder %s22, 1
      %p124 = scmp.ne.s32.totalorder %s119, %s121
      %p125 = scmp.eq.s32.totalorder %s22, 0
      %p126 = por %p124, %p125
      %p127 = scmp.ne.s32.totalorder %s119, %s121
      %p128 = scmp.eq.s32.totalorder %s27, 1
      %p129 = por %p127, %p128
      %p130 = scmp.ne.s32.totalorder %s121, %s122
      %p131 = scmp.eq.s32.totalorder %s27, 0
      %p132 = por %p130, %p131
      %p133 = scmp.ne.s32.totalorder %s121, %s122
      %p134 = scmp.eq.s32.totalorder %s28, 1
      %p135 = por %p133, %p134
      %p137 = scmp.ne.s32.totalorder %s122, %s136
      %p138 = scmp.eq.s32.totalorder %s28, 0
      %p139 = por %p137, %p138
      %s141 = sadd.s32 %s140, 1
      %p144 = scmp.eq.s32.totalorder %s22, 1
      %p145 = scmp.ne.s32.totalorder %s140, %s142
      %p146 = scmp.eq.s32.totalorder %s22, 0
      %p147 = por %p145, %p146
      %p148 = scmp.ne.s32.totalorder %s140, %s142
      %p149 = scmp.eq.s32.totalorder %s27, 1
      %p150 = por %p148, %p149
      %p151 = scmp.ne.s32.totalorder %s142, %s143
      %p152 = scmp.eq.s32.totalorder %s27, 0
      %p153 = por %p151, %p152
      %p154 = scmp.ne.s32.totalorder %s142, %s143
      %p155 = scmp.eq.s32.totalorder %s28, 1
      %p156 = por %p154, %p155
      %p158 = scmp.ne.s32.totalorder %s143, %s157
      %p159 = scmp.eq.s32.totalorder %s28, 0
      %p160 = por %p158, %p159
      %s162 = sadd.s32 %s161, 1
      %p165 = scmp.eq.s32.totalorder %s22, 1
      %p166 = scmp.ne.s32.totalorder %s161, %s163
      %p167 = scmp.eq.s32.totalorder %s22, 0
      %p168 = por %p166, %p167
      %p169 = scmp.ne.s32.totalorder %s161, %s163
      %p170 = scmp.eq.s32.totalorder %s27, 1
      %p171 = por %p169, %p170
      %p172 = scmp.ne.s32.totalorder %s163, %s164
      %p173 = scmp.eq.s32.totalorder %s27, 0
      %p174 = por %p172, %p173
      %p175 = scmp.ne.s32.totalorder %s163, %s164
      %p176 = scmp.eq.s32.totalorder %s28, 1
      %p177 = por %p175, %p176
      %p179 = scmp.ne.s32.totalorder %s164, %s178
      %p180 = scmp.eq.s32.totalorder %s28, 0
      %p181 = por %p179, %p180
      %s183 = sadd.s32 %s182, 1
      %p186 = scmp.eq.s32.totalorder %s22, 1
      %p187 = scmp.ne.s32.totalorder %s182, %s184
      %p188 = scmp.eq.s32.totalorder %s22, 0
      %p189 = por %p187, %p188
      %p190 = scmp.ne.s32.totalorder %s182, %s184
      %p191 = scmp.eq.s32.totalorder %s27, 1
      %p192 = por %p190, %p191
      %p193 = scmp.ne.s32.totalorder %s184, %s185
      %p194 = scmp.eq.s32.totalorder %s27, 0
      %p195 = por %p193, %p194
      %p196 = scmp.ne.s32.totalorder %s184, %s185
      %p197 = scmp.eq.s32.totalorder %s28, 1
      %p198 = por %p196, %p197
      %p200 = scmp.ne.s32.totalorder %s185, %s199
      %p201 = scmp.eq.s32.totalorder %s28, 0
      %p202 = por %p200, %p201
      %s204 = sadd.s32 %s203, 1
      %p207 = scmp.eq.s32.totalorder %s22, 1
      %p208 = scmp.ne.s32.totalorder %s203, %s205
      %p209 = scmp.eq.s32.totalorder %s22, 0
      %p210 = por %p208, %p209
      %p211 = scmp.ne.s32.totalorder %s203, %s205
      %p212 = scmp.eq.s32.totalorder %s27, 1
      %p213 = por %p211, %p212
      %p214 = scmp.ne.s32.totalorder %s205, %s206
      %p215 = scmp.eq.s32.totalorder %s27, 0
      %p216 = por %p214, %p215
      %p217 = scmp.ne.s32.totalorder %s205, %s206
      %p218 = scmp.eq.s32.totalorder %s28, 1
      %p219 = por %p217, %p218
      %p221 = scmp.ne.s32.totalorder %s206, %s220
      %p222 = scmp.eq.s32.totalorder %s28, 0
      %p223 = por %p221, %p222
      %s225 = sadd.s32 %s224, 1
      %p228 = scmp.eq.s32.totalorder %s22, 1
      %p229 = scmp.ne.s32.totalorder %s224, %s226
      %p230 = scmp.eq.s32.totalorder %s22, 0
      %p231 = por %p229, %p230
      %p232 = scmp.ne.s32.totalorder %s224, %s226
      %p233 = scmp.eq.s32.totalorder %s27, 1
      %p234 = por %p232, %p233
      %p235 = scmp.ne.s32.totalorder %s226, %s227
      %p236 = scmp.eq.s32.totalorder %s27, 0
      %p237 = por %p235, %p236
      %p238 = scmp.ne.s32.totalorder %s226, %s227
      %p239 = scmp.eq.s32.totalorder %s28, 1
      %p240 = por %p238, %p239
      %p242 = scmp.ne.s32.totalorder %s227, %s241
      %p243 = scmp.eq.s32.totalorder %s28, 0
      %p244 = por %p242, %p243
      %s246 = sadd.s32 %s245, 1
      %p249 = scmp.eq.s32.totalorder %s22, 1
      %p250 = scmp.ne.s32.totalorder %s245, %s247
      %p251 = scmp.eq.s32.totalorder %s22, 0
      %p252 = por %p250, %p251
      %p253 = scmp.ne.s32.totalorder %s245, %s247
      %p254 = scmp.eq.s32.totalorder %s27, 1
      %p255 = por %p253, %p254
      %p256 = scmp.ne.s32.totalorder %s247, %s248
      %p257 = scmp.eq.s32.totalorder %s27, 0
      %p258 = por %p256, %p257
      %p259 = scmp.ne.s32.totalorder %s247, %s248
      %p260 = scmp.eq.s32.totalorder %s28, 1
      %p261 = por %p259, %p260
      %p263 = scmp.ne.s32.totalorder %s248, %s262
      %p264 = scmp.eq.s32.totalorder %s28, 0
      %p265 = por %p263, %p264
      %s266 = ssub.s32 %s22, %s29
      %p267 = scmp.eq.s32.totalorder %s266, 0
      %s269 = sadd.s32 %s268, 1
      %s270 = scalar_select %p267, %s268, %s269
      %p273 = pneg %p267
      %p274 = scmp.eq.s32.totalorder %s22, 1
      %p275 = por %p273, %p274
      %p276 = scmp.ne.s32.totalorder %s268, %s271
      %p277 = scmp.eq.s32.totalorder %s22, 0
      %p278 = por %p276, %p277
      %p279 = scmp.ne.s32.totalorder %s268, %s271
      %p280 = scmp.eq.s32.totalorder %s27, 1
      %p281 = por %p279, %p280
      %p282 = scmp.ne.s32.totalorder %s271, %s272
      %p283 = scmp.eq.s32.totalorder %s27, 0
      %p284 = por %p282, %p283
      %p285 = scmp.ne.s32.totalorder %s271, %s272
      %p286 = scmp.eq.s32.totalorder %s28, 1
      %p287 = por %p285, %p286
      %p289 = scmp.ne.s32.totalorder %s272, %s288
      %p290 = scmp.eq.s32.totalorder %s28, 0
      %p291 = por %p289, %p290
      %p292 = scmp.le.s32.totalorder 1, %s22
      %p293 = scmp.lt.s32.totalorder %s22, 3
      %p294 = pnand %p292, %p293
      %p295 = pneg %p294
      // Predicated region
      $region9: #{branch2_forward.1} parent=5 // pred_check
        _
      $region10: #{branch2_forward.1} parent=5 // pred_check_branch
        %297 = sbr.rel (%p294) target = $region12
      $region11: #{branch2_forward.1} parent=5 // pred_region
        %s298 = ssub.s32 %s22, 1
        // Predicated region
        $region13: #{branch2_forward.1} parent=11 // pred_check
          %p299 = pneg %p69
        $region14: #{branch2_forward.1} parent=11 // pred_check_branch
          %301 = sbr.rel (%p299) target = $region16
        $region15: #{branch2_forward.1} parent=11 // pred_region
          _
        $region16: #{branch2_forward.1} parent=11 // pred_fallthru
          _
        // Predicated region
        $region17: #{branch2_forward.1} parent=11 // pred_check
          %p302 = pneg %p90
        $region18: #{branch2_forward.1} parent=11 // pred_check_branch
          %304 = sbr.rel (%p302) target = $region20
        $region19: #{branch2_forward.1} parent=11 // pred_region
          %s306 = ssub.s32 9216, 9216
          %307 = vsyncadd [#allocation7], %s306
          %s308 = sshll.u32 [#allocation6], 4
          %s309 = int_to_ptr.vmem [resolvable:$true] %s308
          %314 = dma.hbm_to_vmem [thread:$0]  %s2, 9216, %s309, [#allocation7], 64, 64, 4
        $region20: #{branch2_forward.1} parent=11 // pred_fallthru
          _
        // Predicated region
        $region21: #{branch2_forward.1} parent=11 // pred_check
          %p315 = pneg %p111
        $region22: #{branch2_forward.1} parent=11 // pred_check_branch
          %317 = sbr.rel (%p315) target = $region24
        $region23: #{branch2_forward.1} parent=11 // pred_region
          %s319 = ssub.s32 9216, 9216
          %320 = vsyncadd [#allocation10], %s319
          %s321 = sshll.u32 [#allocation9], 4
          %s322 = int_to_ptr.vmem [resolvable:$true] %s321
          %327 = dma.hbm_to_vmem [thread:$0]  %s3, 9216, %s322, [#allocation10], 64, 64, 4
        $region24: #{branch2_forward.1} parent=11 // pred_fallthru
          _
        // Predicated region
        $region25: #{branch2_forward.1} parent=11 // pred_check
          %p328 = pneg %p132
        $region26: #{branch2_forward.1} parent=11 // pred_check_branch
          %330 = sbr.rel (%p328) target = $region28
        $region27: #{branch2_forward.1} parent=11 // pred_region
          %s332 = ssub.s32 9216, 9216
          %333 = vsyncadd [#allocation10], %s332
          %s334 = sshll.u32 [#allocation11], 4
          %s335 = int_to_ptr.vmem [resolvable:$true] %s334
          %340 = dma.hbm_to_vmem [thread:$0]  %s4, 9216, %s335, [#allocation10], 64, 64, 4
        $region28: #{branch2_forward.1} parent=11 // pred_fallthru
          _
        // Predicated region
        $region29: #{branch2_forward.1} parent=11 // pred_check
          %p341 = pneg %p153
        $region30: #{branch2_forward.1} parent=11 // pred_check_branch
          %343 = sbr.rel (%p341) target = $region32
        $region31: #{branch2_forward.1} parent=11 // pred_region
          _
        $region32: #{branch2_forward.1} parent=11 // pred_fallthru
          _
        // Predicated region
        $region33: #{branch2_forward.1} parent=11 // pred_check
          %p344 = pneg %p174
        $region34: #{branch2_forward.1} parent=11 // pred_check_branch
          %346 = sbr.rel (%p344) target = $region36
        $region35: #{branch2_forward.1} parent=11 // pred_region
          _
        $region36: #{branch2_forward.1} parent=11 // pred_fallthru
          _
        // Predicated region
        $region37: #{branch2_forward.1} parent=11 // pred_check
          %p347 = pneg %p195
        $region38: #{branch2_forward.1} parent=11 // pred_check_branch
          %349 = sbr.rel (%p347) target = $region40
        $region39: #{branch2_forward.1} parent=11 // pred_region
          _
        $region40: #{branch2_forward.1} parent=11 // pred_fallthru
          _
        // Predicated region
        $region41: #{branch2_forward.1} parent=11 // pred_check
          %p350 = pneg %p216
        $region42: #{branch2_forward.1} parent=11 // pred_check_branch
          %352 = sbr.rel (%p350) target = $region44
        $region43: #{branch2_forward.1} parent=11 // pred_region
          _
        $region44: #{branch2_forward.1} parent=11 // pred_fallthru
          _
        // Predicated region
        $region45: #{branch2_forward.1} parent=11 // pred_check
          %p353 = pneg %p237
        $region46: #{branch2_forward.1} parent=11 // pred_check_branch
          %355 = sbr.rel (%p353) target = $region48
        $region47: #{branch2_forward.1} parent=11 // pred_region
          _
        $region48: #{branch2_forward.1} parent=11 // pred_fallthru
          _
        // Predicated region
        $region49: #{branch2_forward.1} parent=11 // pred_check
          %p356 = pneg %p258
        $region50: #{branch2_forward.1} parent=11 // pred_check_branch
          %358 = sbr.rel (%p356) target = $region52
        $region51: #{branch2_forward.1} parent=11 // pred_region
          _
        $region52: #{branch2_forward.1} parent=11 // pred_fallthru
          _
      $region12: #{branch2_forward.1} parent=5 // pred_fallthru
        _
      %p359 = scmp.lt.s32.totalorder %s22, 2
      // Predicated region
      $region53: #{branch2_forward.1} parent=5 // pred_check
        %p360 = pneg %p359
      $region54: #{branch2_forward.1} parent=5 // pred_check_branch
        %362 = sbr.rel (%p360) target = $region56
      $region55: #{branch2_forward.1} parent=5 // pred_region
        // Predicated region
        $region57: #{branch2_forward.1} parent=55 // pred_check
          %p363 = pneg %p42
        $region58: #{branch2_forward.1} parent=55 // pred_check_branch
          %365 = sbr.rel (%p363) target = $region60
        $region59: #{branch2_forward.1} parent=55 // pred_region
          %p366 = scmp.lt.s32.totalorder %s22, 1
          %s367 = scalar_select %p366, %s22, 1
          %s368 = smul.addr %s367, 32
          %s369 = smul.addr %s368, 4
          %s370 = scalar_lea.vmem %s0, %s369
        $region60: #{branch2_forward.1} parent=55 // pred_fallthru
          _
      $region56: #{branch2_forward.1} parent=5 // pred_fallthru
        _
      %p371 = scmp.le.s32.totalorder 1, %s22
      %p372 = scmp.lt.s32.totalorder %s22, 3
      %p373 = pnand %p371, %p372
      %p374 = pneg %p373
      // Predicated region
      $region61: #{branch2_forward.1} parent=5 // pred_check
        _
      $region62: #{branch2_forward.1} parent=5 // pred_check_branch
        %376 = sbr.rel (%p373) target = $region64
      $region63: #{branch2_forward.1} parent=5 // pred_region
        %s377 = ssub.s32 %s22, 1
        // Predicated region
        $region65: #{branch2_forward.1} parent=63 // pred_check
          %p378 = pneg %p90
        $region66: #{branch2_forward.1} parent=63 // pred_check_branch
          %380 = sbr.rel (%p378) target = $region68
        $region67: #{branch2_forward.1} parent=63 // pred_region
          %381 = dma.done [#allocation7], 9216
        $region68: #{branch2_forward.1} parent=63 // pred_fallthru
          _
        // Predicated region
        $region69: #{branch2_forward.1} parent=63 // pred_check
          %p382 = pneg %p111
        $region70: #{branch2_forward.1} parent=63 // pred_check_branch
          %384 = sbr.rel (%p382) target = $region72
        $region71: #{branch2_forward.1} parent=63 // pred_region
          %385 = dma.done [#allocation10], 9216
        $region72: #{branch2_forward.1} parent=63 // pred_fallthru
          _
        // Predicated region
        $region73: #{branch2_forward.1} parent=63 // pred_check
          %p386 = pneg %p132
        $region74: #{branch2_forward.1} parent=63 // pred_check_branch
          %388 = sbr.rel (%p386) target = $region76
        $region75: #{branch2_forward.1} parent=63 // pred_region
          %389 = dma.done [#allocation10], 9216
        $region76: #{branch2_forward.1} parent=63 // pred_fallthru
          _
        %p390 = scmp.lt.s32.totalorder %s27, 1
        %s391 = scalar_select %p390, %s27, 1
        %s392 = smul.addr %s391, 32
        %s393 = smul.addr %s392, 4
        %s394 = scalar_lea.vmem %s0, %s393
        %p395 = pneg %p48
        %p396 = pneg %p45
        %p397 = pneg %p69
        %p398 = pneg %p66
        %p399 = pneg %p90
        %p400 = pneg %p87
        %p401 = pneg %p111
        %p402 = pneg %p108
        %p403 = pneg %p132
        %p404 = pneg %p129
        %p405 = pneg %p153
        %p406 = pneg %p150
        %p407 = pneg %p174
        %p408 = pneg %p171
        %p409 = pneg %p195
        %p410 = pneg %p192
        %p411 = pneg %p216
        %p412 = pneg %p213
        %p413 = pneg %p237
        %p414 = pneg %p234
        %p415 = pneg %p258
        %p416 = pneg %p255
        %p417 = pneg %p284
        %p418 = pneg %p281
        %s419 = sand.u32 %s271, 1
        %s420 = scalar_lea.sflag [#allocation8], %s419
        %s421 = sand.u32 %s271, 1
        %s422 = scalar_lea.vmem [#allocation12], %s421
        %p423 = scmp.lt.s32.totalorder %s27, 1
        %s424 = scalar_select %p423, %s27, 1
        %s425 = smul.addr %s424, 32
        %s426 = smul.addr %s425, 4
        %s427 = scalar_lea.vmem %s0, %s426
        %429 = vst [vmem:[#allocation2] sm:$0xf] 0
        %vm430 = vcmask 1040384
        %vm431 = vsmask.f32 256
        %vm432 = vmand %vm430, %vm431
        %v433 = vld [vmem:[#allocation2 + $0x4] sm:$0x1]
        %v434 = vsel %vm432, 0, %v433
        %435 = vst [vmem:[#allocation2 + $0x4] sm:$0x1] %v434
        %s436 = scalar_lea.vmem [#allocation2], 208
        %437 = vst [vmem:[%s436] sm:$0xf] 0
        %v438 = vld [vmem:[%s436 + $0x4] sm:$0x1]
        %v439 = vsel %vm432, 0, %v438
        %440 = vst [vmem:[%s436 + $0x4] sm:$0x1] %v439
        %v441 = vld [vmem:[#allocation2] sm:$0x1]
        %v442 = vsel %vm432, 0, %v441
        %443 = vst [vmem:[#allocation2] sm:$0x1] %v442
        %v444 = vld [vmem:[#allocation2 + $0x8] sm:$0x1]
        %v445 = vsel %vm432, 0, %v444
        %446 = vst [vmem:[#allocation2 + $0x8] sm:$0x1] %v445
        %v447 = vld [vmem:[#allocation2 + $0x10] sm:$0x1]
        %v448 = vsel %vm432, 0, %v447
        %449 = vst [vmem:[#allocation2 + $0x10] sm:$0x1] %v448
        %v450 = vld [vmem:[#allocation2 + $0x18] sm:$0x1]
        %v451 = vsel %vm432, 0, %v450
        %452 = vst [vmem:[#allocation2 + $0x18] sm:$0x1] %v451
        %v453 = vld [vmem:[#allocation2 + $0x20] sm:$0x1]
        %v454 = vsel %vm432, 0, %v453
        %455 = vst [vmem:[#allocation2 + $0x20] sm:$0x1] %v454
        %v456 = vld [vmem:[#allocation2 + $0x28] sm:$0x1]
        %v457 = vsel %vm432, 0, %v456
        %458 = vst [vmem:[#allocation2 + $0x28] sm:$0x1] %v457
        %v459 = vld [vmem:[#allocation2 + $0x30] sm:$0x1]
        %v460 = vsel %vm432, 0, %v459
        %461 = vst [vmem:[#allocation2 + $0x30] sm:$0x1] %v460
        %v462 = vld [vmem:[#allocation2 + $0x38] sm:$0x1]
        %v463 = vsel %vm432, 0, %v462
        %464 = vst [vmem:[#allocation2 + $0x38] sm:$0x1] %v463
        %v465 = vld [vmem:[#allocation2 + $0x40] sm:$0x1]
        %v466 = vsel %vm432, 0, %v465
        %467 = vst [vmem:[#allocation2 + $0x40] sm:$0x1] %v466
        %s468 = scalar_lea.vmem [#allocation2], 72
        %v469 = vld [vmem:[%s468 + $0x4] sm:$0x1]
        %v470 = vsel %vm432, 0, %v469
        %471 = vst [vmem:[%s468 + $0x4] sm:$0x1] %v470
        %v472 = vld [vmem:[%s468 + $0xc] sm:$0x1]
        %v473 = vsel %vm432, 0, %v472
        %474 = vst [vmem:[%s468 + $0xc] sm:$0x1] %v473
        %v475 = vld [vmem:[%s468 + $0x14] sm:$0x1]
        %v476 = vsel %vm432, 0, %v475
        %477 = vst [vmem:[%s468 + $0x14] sm:$0x1] %v476
        %v478 = vld [vmem:[%s468 + $0x1c] sm:$0x1]
        %v479 = vsel %vm432, 0, %v478
        %480 = vst [vmem:[%s468 + $0x1c] sm:$0x1] %v479
        %v481 = vld [vmem:[%s468 + $0x24] sm:$0x1]
        %v482 = vsel %vm432, 0, %v481
        %483 = vst [vmem:[%s468 + $0x24] sm:$0x1] %v482
        %v484 = vld [vmem:[%s468 + $0x2c] sm:$0x1]
        %v485 = vsel %vm432, 0, %v484
        %486 = vst [vmem:[%s468 + $0x2c] sm:$0x1] %v485
        %v487 = vld [vmem:[%s468 + $0x34] sm:$0x1]
        %v488 = vsel %vm432, 0, %v487
        %489 = vst [vmem:[%s468 + $0x34] sm:$0x1] %v488
        %v490 = vld [vmem:[%s468 + $0x3c] sm:$0x1]
        %v491 = vsel %vm432, 0, %v490
        %492 = vst [vmem:[%s468 + $0x3c] sm:$0x1] %v491
        %v493 = vld [vmem:[%s468 + $0x44] sm:$0x1]
        %v494 = vsel %vm432, 0, %v493
        %495 = vst [vmem:[%s468 + $0x44] sm:$0x1] %v494
        %496 = vst [vmem:[%s468] sm:$0xf] 0
        %v497 = vld [vmem:[%s468 + $0x4] sm:$0x1]
        %v498 = vsel %vm432, 0, %v497
        %499 = vst [vmem:[%s468 + $0x4] sm:$0x1] %v498
        %s500 = scalar_lea.vmem [#allocation2], 280
        %501 = vst [vmem:[%s500] sm:$0xf] 0
        %v502 = vld [vmem:[%s500 + $0x4] sm:$0x1]
        %v503 = vsel %vm432, 0, %v502
        %504 = vst [vmem:[%s500 + $0x4] sm:$0x1] %v503
        %s505 = scalar_lea.vmem [#allocation2], 144
        %v506 = vld [vmem:[%s505] sm:$0x1]
        %v507 = vsel %vm432, 0, %v506
        %508 = vst [vmem:[%s505] sm:$0x1] %v507
        %v509 = vld [vmem:[%s505 + $0x8] sm:$0x1]
        %v510 = vsel %vm432, 0, %v509
        %511 = vst [vmem:[%s505 + $0x8] sm:$0x1] %v510
        %v512 = vld [vmem:[%s505 + $0x10] sm:$0x1]
        %v513 = vsel %vm432, 0, %v512
        %514 = vst [vmem:[%s505 + $0x10] sm:$0x1] %v513
        %v515 = vld [vmem:[%s505 + $0x18] sm:$0x1]
        %v516 = vsel %vm432, 0, %v515
        %517 = vst [vmem:[%s505 + $0x18] sm:$0x1] %v516
        %v518 = vld [vmem:[%s505 + $0x20] sm:$0x1]
        %v519 = vsel %vm432, 0, %v518
        %520 = vst [vmem:[%s505 + $0x20] sm:$0x1] %v519
        %v521 = vld [vmem:[%s505 + $0x28] sm:$0x1]
        %v522 = vsel %vm432, 0, %v521
        %523 = vst [vmem:[%s505 + $0x28] sm:$0x1] %v522
        %v524 = vld [vmem:[%s505 + $0x30] sm:$0x1]
        %v525 = vsel %vm432, 0, %v524
        %526 = vst [vmem:[%s505 + $0x30] sm:$0x1] %v525
        %v527 = vld [vmem:[%s505 + $0x38] sm:$0x1]
        %v528 = vsel %vm432, 0, %v527
        %529 = vst [vmem:[%s505 + $0x38] sm:$0x1] %v528
        %v530 = vld [vmem:[%s505 + $0x40] sm:$0x1]
        %v531 = vsel %vm432, 0, %v530
        %532 = vst [vmem:[%s505 + $0x40] sm:$0x1] %v531
        %s533 = scalar_lea.vmem [#allocation2], 216
        %v534 = vld [vmem:[%s533 + $0x4] sm:$0x1]
        %v535 = vsel %vm432, 0, %v534
        %536 = vst [vmem:[%s533 + $0x4] sm:$0x1] %v535
        %v537 = vld [vmem:[%s533 + $0xc] sm:$0x1]
        %v538 = vsel %vm432, 0, %v537
        %539 = vst [vmem:[%s533 + $0xc] sm:$0x1] %v538
        %v540 = vld [vmem:[%s533 + $0x14] sm:$0x1]
        %v541 = vsel %vm432, 0, %v540
        %542 = vst [vmem:[%s533 + $0x14] sm:$0x1] %v541
        %v543 = vld [vmem:[%s533 + $0x1c] sm:$0x1]
        %v544 = vsel %vm432, 0, %v543
        %545 = vst [vmem:[%s533 + $0x1c] sm:$0x1] %v544
        %v546 = vld [vmem:[%s533 + $0x24] sm:$0x1]
        %v547 = vsel %vm432, 0, %v546
        %548 = vst [vmem:[%s533 + $0x24] sm:$0x1] %v547
        %v549 = vld [vmem:[%s533 + $0x2c] sm:$0x1]
        %v550 = vsel %vm432, 0, %v549
        %551 = vst [vmem:[%s533 + $0x2c] sm:$0x1] %v550
        %v552 = vld [vmem:[%s533 + $0x34] sm:$0x1]
        %v553 = vsel %vm432, 0, %v552
        %554 = vst [vmem:[%s533 + $0x34] sm:$0x1] %v553
        %v555 = vld [vmem:[%s533 + $0x3c] sm:$0x1]
        %v556 = vsel %vm432, 0, %v555
        %557 = vst [vmem:[%s533 + $0x3c] sm:$0x1] %v556
        %v558 = vld [vmem:[%s533 + $0x44] sm:$0x1]
        %v559 = vsel %vm432, 0, %v558
        %560 = vst [vmem:[%s533 + $0x44] sm:$0x1] %v559
        %v561 = vld [vmem:[%s427] sm:$0xf]
        %v562 = vld [vmem:[%s427 + $0x4] sm:$0xf]
        %v563 = vld [vmem:[%s427 + $0x8] sm:$0xf]
        %v564 = vld [vmem:[%s427 + $0xc] sm:$0xf]
        %v565 = vld [vmem:[%s427 + $0x10] sm:$0xf]
        %v566 = vld [vmem:[%s427 + $0x14] sm:$0xf]
        %v567 = vld [vmem:[%s427 + $0x18] sm:$0xf]
        %v568 = vld [vmem:[%s427 + $0x1c] sm:$0xf]
        %v569 = vld [vmem:[%s427 + $0x20] sm:$0xf]
        %v570 = vld [vmem:[%s427 + $0x24] sm:$0xf]
        %v571 = vld [vmem:[%s427 + $0x28] sm:$0xf]
        %v572 = vld [vmem:[%s427 + $0x2c] sm:$0xf]
        %v573 = vld [vmem:[%s427 + $0x30] sm:$0xf]
        %v574 = vld [vmem:[%s427 + $0x34] sm:$0xf]
        %v575 = vld [vmem:[%s427 + $0x38] sm:$0xf]
        %v576 = vld [vmem:[%s427 + $0x3c] sm:$0xf]
        %v577 = vld [vmem:[%s427 + $0x40] sm:$0xf]
        %v578 = vld [vmem:[%s427 + $0x44] sm:$0xf]
        %v579 = vld [vmem:[%s427 + $0x48] sm:$0xf]
        %v580 = vld [vmem:[%s427 + $0x4c] sm:$0xf]
        %v581 = vld [vmem:[%s427 + $0x50] sm:$0xf]
        %v582 = vld [vmem:[%s427 + $0x54] sm:$0xf]
        %v583 = vld [vmem:[%s427 + $0x58] sm:$0xf]
        %v584 = vld [vmem:[%s427 + $0x5c] sm:$0xf]
        %v585 = vld [vmem:[%s427 + $0x60] sm:$0xf]
        %v586 = vld [vmem:[%s427 + $0x64] sm:$0xf]
        %v587 = vld [vmem:[%s427 + $0x68] sm:$0xf]
        %v588 = vld [vmem:[%s427 + $0x6c] sm:$0xf]
        %v589 = vld [vmem:[%s427 + $0x70] sm:$0xf]
        %v590 = vld [vmem:[%s427 + $0x74] sm:$0xf]
        %v591 = vld [vmem:[%s427 + $0x78] sm:$0xf]
        %v592 = vld [vmem:[%s427 + $0x7c] sm:$0xf]
        %v626 = vunpack.c.l.s4 1966171168
        %v627 = vunpack.c.0.s8 %v626
        %v628 = vlaneseq
        %v629 = vshrl.u32 %v628, 7
        %v630 = vsub.s32 %v627, %v629
        %v631 = vrot.slane %v561, %v630
        %v632 = vcombine.high %v631, %v631
        %v634 = vunpack.c.l.s4 1966171168
        %v635 = vunpack.c.0.s8 %v634
        %v636 = vlaneseq
        %v637 = vshrl.u32 %v636, 7
        %v638 = vsub.s32 %v635, %v637
        %v639 = vrot.slane %v631, %v638
        %v641 = vunpack.c.l.s4 1966171168
        %v642 = vunpack.c.0.s8 %v641
        %v643 = vlaneseq
        %v644 = vshrl.u32 %v643, 7
        %v645 = vsub.s32 %v642, %v644
        %v646 = vrot.slane %v632, %v645
        %v647 = vcombine.high %v639, %v639
        %v648 = vcombine.high %v646, %v646
        %v650 = vunpack.c.l.s4 1966171168
        %v651 = vunpack.c.0.s8 %v650
        %v652 = vlaneseq
        %v653 = vshrl.u32 %v652, 7
        %v654 = vsub.s32 %v651, %v653
        %v655 = vrot.slane %v562, %v654
        %v656 = vcombine.high %v655, %v655
        %v658 = vunpack.c.l.s4 1966171168
        %v659 = vunpack.c.0.s8 %v658
        %v660 = vlaneseq
        %v661 = vshrl.u32 %v660, 7
        %v662 = vsub.s32 %v659, %v661
        %v663 = vrot.slane %v655, %v662
        %v665 = vunpack.c.l.s4 1966171168
        %v666 = vunpack.c.0.s8 %v665
        %v667 = vlaneseq
        %v668 = vshrl.u32 %v667, 7
        %v669 = vsub.s32 %v666, %v668
        %v670 = vrot.slane %v656, %v669
        %v671 = vcombine.high %v663, %v663
        %v672 = vcombine.high %v670, %v670
        %v674 = vunpack.c.l.s4 1966171168
        %v675 = vunpack.c.0.s8 %v674
        %v676 = vlaneseq
        %v677 = vshrl.u32 %v676, 7
        %v678 = vsub.s32 %v675, %v677
        %v679 = vrot.slane %v563, %v678
        %v680 = vcombine.high %v679, %v679
        %v682 = vunpack.c.l.s4 1966171168
        %v683 = vunpack.c.0.s8 %v682
        %v684 = vlaneseq
        %v685 = vshrl.u32 %v684, 7
        %v686 = vsub.s32 %v683, %v685
        %v687 = vrot.slane %v679, %v686
        %v689 = vunpack.c.l.s4 1966171168
        %v690 = vunpack.c.0.s8 %v689
        %v691 = vlaneseq
        %v692 = vshrl.u32 %v691, 7
        %v693 = vsub.s32 %v690, %v692
        %v694 = vrot.slane %v680, %v693
        %v695 = vcombine.high %v687, %v687
        %v696 = vcombine.high %v694, %v694
        %v698 = vunpack.c.l.s4 1966171168
        %v699 = vunpack.c.0.s8 %v698
        %v700 = vlaneseq
        %v701 = vshrl.u32 %v700, 7
        %v702 = vsub.s32 %v699, %v701
        %v703 = vrot.slane %v564, %v702
        %v704 = vcombine.high %v703, %v703
        %v706 = vunpack.c.l.s4 1966171168
        %v707 = vunpack.c.0.s8 %v706
        %v708 = vlaneseq
        %v709 = vshrl.u32 %v708, 7
        %v710 = vsub.s32 %v707, %v709
        %v711 = vrot.slane %v703, %v710
        %v713 = vunpack.c.l.s4 1966171168
        %v714 = vunpack.c.0.s8 %v713
        %v715 = vlaneseq
        %v716 = vshrl.u32 %v715, 7
        %v717 = vsub.s32 %v714, %v716
        %v718 = vrot.slane %v704, %v717
        %v719 = vcombine.high %v711, %v711
        %v720 = vcombine.high %v718, %v718
        %v722 = vunpack.c.l.s4 1966171168
        %v723 = vunpack.c.0.s8 %v722
        %v724 = vlaneseq
        %v725 = vshrl.u32 %v724, 7
        %v726 = vsub.s32 %v723, %v725
        %v727 = vrot.slane %v565, %v726
        %v728 = vcombine.high %v727, %v727
        %v730 = vunpack.c.l.s4 1966171168
        %v731 = vunpack.c.0.s8 %v730
        %v732 = vlaneseq
        %v733 = vshrl.u32 %v732, 7
        %v734 = vsub.s32 %v731, %v733
        %v735 = vrot.slane %v727, %v734
        %v737 = vunpack.c.l.s4 1966171168
        %v738 = vunpack.c.0.s8 %v737
        %v739 = vlaneseq
        %v740 = vshrl.u32 %v739, 7
        %v741 = vsub.s32 %v738, %v740
        %v742 = vrot.slane %v728, %v741
        %v743 = vcombine.high %v735, %v735
        %v744 = vcombine.high %v742, %v742
        %v746 = vunpack.c.l.s4 1966171168
        %v747 = vunpack.c.0.s8 %v746
        %v748 = vlaneseq
        %v749 = vshrl.u32 %v748, 7
        %v750 = vsub.s32 %v747, %v749
        %v751 = vrot.slane %v566, %v750
        %v752 = vcombine.high %v751, %v751
        %v754 = vunpack.c.l.s4 1966171168
        %v755 = vunpack.c.0.s8 %v754
        %v756 = vlaneseq
        %v757 = vshrl.u32 %v756, 7
        %v758 = vsub.s32 %v755, %v757
        %v759 = vrot.slane %v751, %v758
        %v761 = vunpack.c.l.s4 1966171168
        %v762 = vunpack.c.0.s8 %v761
        %v763 = vlaneseq
        %v764 = vshrl.u32 %v763, 7
        %v765 = vsub.s32 %v762, %v764
        %v766 = vrot.slane %v752, %v765
        %v767 = vcombine.high %v759, %v759
        %v768 = vcombine.high %v766, %v766
        %v770 = vunpack.c.l.s4 1966171168
        %v771 = vunpack.c.0.s8 %v770
        %v772 = vlaneseq
        %v773 = vshrl.u32 %v772, 7
        %v774 = vsub.s32 %v771, %v773
        %v775 = vrot.slane %v567, %v774
        %v776 = vcombine.high %v775, %v775
        %v778 = vunpack.c.l.s4 1966171168
        %v779 = vunpack.c.0.s8 %v778
        %v780 = vlaneseq
        %v781 = vshrl.u32 %v780, 7
        %v782 = vsub.s32 %v779, %v781
        %v783 = vrot.slane %v775, %v782
        %v785 = vunpack.c.l.s4 1966171168
        %v786 = vunpack.c.0.s8 %v785
        %v787 = vlaneseq
        %v788 = vshrl.u32 %v787, 7
        %v789 = vsub.s32 %v786, %v788
        %v790 = vrot.slane %v776, %v789
        %v791 = vcombine.high %v783, %v783
        %v792 = vcombine.high %v790, %v790
        %v794 = vunpack.c.l.s4 1966171168
        %v795 = vunpack.c.0.s8 %v794
        %v796 = vlaneseq
        %v797 = vshrl.u32 %v796, 7
        %v798 = vsub.s32 %v795, %v797
        %v799 = vrot.slane %v568, %v798
        %v800 = vcombine.high %v799, %v799
        %v802 = vunpack.c.l.s4 1966171168
        %v803 = vunpack.c.0.s8 %v802
        %v804 = vlaneseq
        %v805 = vshrl.u32 %v804, 7
        %v806 = vsub.s32 %v803, %v805
        %v807 = vrot.slane %v799, %v806
        %v809 = vunpack.c.l.s4 1966171168
        %v810 = vunpack.c.0.s8 %v809
        %v811 = vlaneseq
        %v812 = vshrl.u32 %v811, 7
        %v813 = vsub.s32 %v810, %v812
        %v814 = vrot.slane %v800, %v813
        %v815 = vcombine.high %v807, %v807
        %v816 = vcombine.high %v814, %v814
        %v818 = vunpack.c.l.s4 1966171168
        %v819 = vunpack.c.0.s8 %v818
        %v820 = vlaneseq
        %v821 = vshrl.u32 %v820, 7
        %v822 = vsub.s32 %v819, %v821
        %v823 = vrot.slane %v569, %v822
        %v824 = vcombine.high %v823, %v823
        %v826 = vunpack.c.l.s4 1966171168
        %v827 = vunpack.c.0.s8 %v826
        %v828 = vlaneseq
        %v829 = vshrl.u32 %v828, 7
        %v830 = vsub.s32 %v827, %v829
        %v831 = vrot.slane %v823, %v830
        %v833 = vunpack.c.l.s4 1966171168
        %v834 = vunpack.c.0.s8 %v833
        %v835 = vlaneseq
        %v836 = vshrl.u32 %v835, 7
        %v837 = vsub.s32 %v834, %v836
        %v838 = vrot.slane %v824, %v837
        %v839 = vcombine.high %v831, %v831
        %v840 = vcombine.high %v838, %v838
        %v842 = vunpack.c.l.s4 1966171168
        %v843 = vunpack.c.0.s8 %v842
        %v844 = vlaneseq
        %v845 = vshrl.u32 %v844, 7
        %v846 = vsub.s32 %v843, %v845
        %v847 = vrot.slane %v570, %v846
        %v848 = vcombine.high %v847, %v847
        %v850 = vunpack.c.l.s4 1966171168
        %v851 = vunpack.c.0.s8 %v850
        %v852 = vlaneseq
        %v853 = vshrl.u32 %v852, 7
        %v854 = vsub.s32 %v851, %v853
        %v855 = vrot.slane %v847, %v854
        %v857 = vunpack.c.l.s4 1966171168
        %v858 = vunpack.c.0.s8 %v857
        %v859 = vlaneseq
        %v860 = vshrl.u32 %v859, 7
        %v861 = vsub.s32 %v858, %v860
        %v862 = vrot.slane %v848, %v861
        %v863 = vcombine.high %v855, %v855
        %v864 = vcombine.high %v862, %v862
        %v866 = vunpack.c.l.s4 1966171168
        %v867 = vunpack.c.0.s8 %v866
        %v868 = vlaneseq
        %v869 = vshrl.u32 %v868, 7
        %v870 = vsub.s32 %v867, %v869
        %v871 = vrot.slane %v571, %v870
        %v872 = vcombine.high %v871, %v871
        %v874 = vunpack.c.l.s4 1966171168
        %v875 = vunpack.c.0.s8 %v874
        %v876 = vlaneseq
        %v877 = vshrl.u32 %v876, 7
        %v878 = vsub.s32 %v875, %v877
        %v879 = vrot.slane %v871, %v878
        %v881 = vunpack.c.l.s4 1966171168
        %v882 = vunpack.c.0.s8 %v881
        %v883 = vlaneseq
        %v884 = vshrl.u32 %v883, 7
        %v885 = vsub.s32 %v882, %v884
        %v886 = vrot.slane %v872, %v885
        %v887 = vcombine.high %v879, %v879
        %v888 = vcombine.high %v886, %v886
        %v890 = vunpack.c.l.s4 1966171168
        %v891 = vunpack.c.0.s8 %v890
        %v892 = vlaneseq
        %v893 = vshrl.u32 %v892, 7
        %v894 = vsub.s32 %v891, %v893
        %v895 = vrot.slane %v572, %v894
        %v896 = vcombine.high %v895, %v895
        %v898 = vunpack.c.l.s4 1966171168
        %v899 = vunpack.c.0.s8 %v898
        %v900 = vlaneseq
        %v901 = vshrl.u32 %v900, 7
        %v902 = vsub.s32 %v899, %v901
        %v903 = vrot.slane %v895, %v902
        %v905 = vunpack.c.l.s4 1966171168
        %v906 = vunpack.c.0.s8 %v905
        %v907 = vlaneseq
        %v908 = vshrl.u32 %v907, 7
        %v909 = vsub.s32 %v906, %v908
        %v910 = vrot.slane %v896, %v909
        %v911 = vcombine.high %v903, %v903
        %v912 = vcombine.high %v910, %v910
        %v914 = vunpack.c.l.s4 1966171168
        %v915 = vunpack.c.0.s8 %v914
        %v916 = vlaneseq
        %v917 = vshrl.u32 %v916, 7
        %v918 = vsub.s32 %v915, %v917
        %v919 = vrot.slane %v573, %v918
        %v920 = vcombine.high %v919, %v919
        %v922 = vunpack.c.l.s4 1966171168
        %v923 = vunpack.c.0.s8 %v922
        %v924 = vlaneseq
        %v925 = vshrl.u32 %v924, 7
        %v926 = vsub.s32 %v923, %v925
        %v927 = vrot.slane %v919, %v926
        %v929 = vunpack.c.l.s4 1966171168
        %v930 = vunpack.c.0.s8 %v929
        %v931 = vlaneseq
        %v932 = vshrl.u32 %v931, 7
        %v933 = vsub.s32 %v930, %v932
        %v934 = vrot.slane %v920, %v933
        %v935 = vcombine.high %v927, %v927
        %v936 = vcombine.high %v934, %v934
        %v938 = vunpack.c.l.s4 1966171168
        %v939 = vunpack.c.0.s8 %v938
        %v940 = vlaneseq
        %v941 = vshrl.u32 %v940, 7
        %v942 = vsub.s32 %v939, %v941
        %v943 = vrot.slane %v574, %v942
        %v944 = vcombine.high %v943, %v943
        %v946 = vunpack.c.l.s4 1966171168
        %v947 = vunpack.c.0.s8 %v946
        %v948 = vlaneseq
        %v949 = vshrl.u32 %v948, 7
        %v950 = vsub.s32 %v947, %v949
        %v951 = vrot.slane %v943, %v950
        %v953 = vunpack.c.l.s4 1966171168
        %v954 = vunpack.c.0.s8 %v953
        %v955 = vlaneseq
        %v956 = vshrl.u32 %v955, 7
        %v957 = vsub.s32 %v954, %v956
        %v958 = vrot.slane %v944, %v957
        %v959 = vcombine.high %v951, %v951
        %v960 = vcombine.high %v958, %v958
        %v962 = vunpack.c.l.s4 1966171168
        %v963 = vunpack.c.0.s8 %v962
        %v964 = vlaneseq
        %v965 = vshrl.u32 %v964, 7
        %v966 = vsub.s32 %v963, %v965
        %v967 = vrot.slane %v575, %v966
        %v968 = vcombine.high %v967, %v967
        %v970 = vunpack.c.l.s4 1966171168
        %v971 = vunpack.c.0.s8 %v970
        %v972 = vlaneseq
        %v973 = vshrl.u32 %v972, 7
        %v974 = vsub.s32 %v971, %v973
        %v975 = vrot.slane %v967, %v974
        %v977 = vunpack.c.l.s4 1966171168
        %v978 = vunpack.c.0.s8 %v977
        %v979 = vlaneseq
        %v980 = vshrl.u32 %v979, 7
        %v981 = vsub.s32 %v978, %v980
        %v982 = vrot.slane %v968, %v981
        %v983 = vcombine.high %v975, %v975
        %v984 = vcombine.high %v982, %v982
        %v986 = vunpack.c.l.s4 1966171168
        %v987 = vunpack.c.0.s8 %v986
        %v988 = vlaneseq
        %v989 = vshrl.u32 %v988, 7
        %v990 = vsub.s32 %v987, %v989
        %v991 = vrot.slane %v576, %v990
        %v992 = vcombine.high %v991, %v991
        %v994 = vunpack.c.l.s4 1966171168
        %v995 = vunpack.c.0.s8 %v994
        %v996 = vlaneseq
        %v997 = vshrl.u32 %v996, 7
        %v998 = vsub.s32 %v995, %v997
        %v999 = vrot.slane %v991, %v998
        %v1001 = vunpack.c.l.s4 1966171168
        %v1002 = vunpack.c.0.s8 %v1001
        %v1003 = vlaneseq
        %v1004 = vshrl.u32 %v1003, 7
        %v1005 = vsub.s32 %v1002, %v1004
        %v1006 = vrot.slane %v992, %v1005
        %v1007 = vcombine.high %v999, %v999
        %v1008 = vcombine.high %v1006, %v1006
        %v1010 = vunpack.c.l.s4 1966171168
        %v1011 = vunpack.c.0.s8 %v1010
        %v1012 = vlaneseq
        %v1013 = vshrl.u32 %v1012, 7
        %v1014 = vsub.s32 %v1011, %v1013
        %v1015 = vrot.slane %v577, %v1014
        %v1016 = vcombine.high %v1015, %v1015
        %v1018 = vunpack.c.l.s4 1966171168
        %v1019 = vunpack.c.0.s8 %v1018
        %v1020 = vlaneseq
        %v1021 = vshrl.u32 %v1020, 7
        %v1022 = vsub.s32 %v1019, %v1021
        %v1023 = vrot.slane %v1015, %v1022
        %v1025 = vunpack.c.l.s4 1966171168
        %v1026 = vunpack.c.0.s8 %v1025
        %v1027 = vlaneseq
        %v1028 = vshrl.u32 %v1027, 7
        %v1029 = vsub.s32 %v1026, %v1028
        %v1030 = vrot.slane %v1016, %v1029
        %v1031 = vcombine.high %v1023, %v1023
        %v1032 = vcombine.high %v1030, %v1030
        %v1034 = vunpack.c.l.s4 1966171168
        %v1035 = vunpack.c.0.s8 %v1034
        %v1036 = vlaneseq
        %v1037 = vshrl.u32 %v1036, 7
        %v1038 = vsub.s32 %v1035, %v1037
        %v1039 = vrot.slane %v578, %v1038
        %v1040 = vcombine.high %v1039, %v1039
        %v1042 = vunpack.c.l.s4 1966171168
        %v1043 = vunpack.c.0.s8 %v1042
        %v1044 = vlaneseq
        %v1045 = vshrl.u32 %v1044, 7
        %v1046 = vsub.s32 %v1043, %v1045
        %v1047 = vrot.slane %v1039, %v1046
        %v1049 = vunpack.c.l.s4 1966171168
        %v1050 = vunpack.c.0.s8 %v1049
        %v1051 = vlaneseq
        %v1052 = vshrl.u32 %v1051, 7
        %v1053 = vsub.s32 %v1050, %v1052
        %v1054 = vrot.slane %v1040, %v1053
        %v1055 = vcombine.high %v1047, %v1047
        %v1056 = vcombine.high %v1054, %v1054
        %v1058 = vunpack.c.l.s4 1966171168
        %v1059 = vunpack.c.0.s8 %v1058
        %v1060 = vlaneseq
        %v1061 = vshrl.u32 %v1060, 7
        %v1062 = vsub.s32 %v1059, %v1061
        %v1063 = vrot.slane %v579, %v1062
        %v1064 = vcombine.high %v1063, %v1063
        %v1066 = vunpack.c.l.s4 1966171168
        %v1067 = vunpack.c.0.s8 %v1066
        %v1068 = vlaneseq
        %v1069 = vshrl.u32 %v1068, 7
        %v1070 = vsub.s32 %v1067, %v1069
        %v1071 = vrot.slane %v1063, %v1070
        %v1073 = vunpack.c.l.s4 1966171168
        %v1074 = vunpack.c.0.s8 %v1073
        %v1075 = vlaneseq
        %v1076 = vshrl.u32 %v1075, 7
        %v1077 = vsub.s32 %v1074, %v1076
        %v1078 = vrot.slane %v1064, %v1077
        %v1079 = vcombine.high %v1071, %v1071
        %v1080 = vcombine.high %v1078, %v1078
        %v1082 = vunpack.c.l.s4 1966171168
        %v1083 = vunpack.c.0.s8 %v1082
        %v1084 = vlaneseq
        %v1085 = vshrl.u32 %v1084, 7
        %v1086 = vsub.s32 %v1083, %v1085
        %v1087 = vrot.slane %v580, %v1086
        %v1088 = vcombine.high %v1087, %v1087
        %v1090 = vunpack.c.l.s4 1966171168
        %v1091 = vunpack.c.0.s8 %v1090
        %v1092 = vlaneseq
        %v1093 = vshrl.u32 %v1092, 7
        %v1094 = vsub.s32 %v1091, %v1093
        %v1095 = vrot.slane %v1087, %v1094
        %v1097 = vunpack.c.l.s4 1966171168
        %v1098 = vunpack.c.0.s8 %v1097
        %v1099 = vlaneseq
        %v1100 = vshrl.u32 %v1099, 7
        %v1101 = vsub.s32 %v1098, %v1100
        %v1102 = vrot.slane %v1088, %v1101
        %v1103 = vcombine.high %v1095, %v1095
        %v1104 = vcombine.high %v1102, %v1102
        %v1106 = vunpack.c.l.s4 1966171168
        %v1107 = vunpack.c.0.s8 %v1106
        %v1108 = vlaneseq
        %v1109 = vshrl.u32 %v1108, 7
        %v1110 = vsub.s32 %v1107, %v1109
        %v1111 = vrot.slane %v581, %v1110
        %v1112 = vcombine.high %v1111, %v1111
        %v1114 = vunpack.c.l.s4 1966171168
        %v1115 = vunpack.c.0.s8 %v1114
        %v1116 = vlaneseq
        %v1117 = vshrl.u32 %v1116, 7
        %v1118 = vsub.s32 %v1115, %v1117
        %v1119 = vrot.slane %v1111, %v1118
        %v1121 = vunpack.c.l.s4 1966171168
        %v1122 = vunpack.c.0.s8 %v1121
        %v1123 = vlaneseq
        %v1124 = vshrl.u32 %v1123, 7
        %v1125 = vsub.s32 %v1122, %v1124
        %v1126 = vrot.slane %v1112, %v1125
        %v1127 = vcombine.high %v1119, %v1119
        %v1128 = vcombine.high %v1126, %v1126
        %v1130 = vunpack.c.l.s4 1966171168
        %v1131 = vunpack.c.0.s8 %v1130
        %v1132 = vlaneseq
        %v1133 = vshrl.u32 %v1132, 7
        %v1134 = vsub.s32 %v1131, %v1133
        %v1135 = vrot.slane %v582, %v1134
        %v1136 = vcombine.high %v1135, %v1135
        %v1138 = vunpack.c.l.s4 1966171168
        %v1139 = vunpack.c.0.s8 %v1138
        %v1140 = vlaneseq
        %v1141 = vshrl.u32 %v1140, 7
        %v1142 = vsub.s32 %v1139, %v1141
        %v1143 = vrot.slane %v1135, %v1142
        %v1145 = vunpack.c.l.s4 1966171168
        %v1146 = vunpack.c.0.s8 %v1145
        %v1147 = vlaneseq
        %v1148 = vshrl.u32 %v1147, 7
        %v1149 = vsub.s32 %v1146, %v1148
        %v1150 = vrot.slane %v1136, %v1149
        %v1151 = vcombine.high %v1143, %v1143
        %v1152 = vcombine.high %v1150, %v1150
        %v1154 = vunpack.c.l.s4 1966171168
        %v1155 = vunpack.c.0.s8 %v1154
        %v1156 = vlaneseq
        %v1157 = vshrl.u32 %v1156, 7
        %v1158 = vsub.s32 %v1155, %v1157
        %v1159 = vrot.slane %v583, %v1158
        %v1160 = vcombine.high %v1159, %v1159
        %v1162 = vunpack.c.l.s4 1966171168
        %v1163 = vunpack.c.0.s8 %v1162
        %v1164 = vlaneseq
        %v1165 = vshrl.u32 %v1164, 7
        %v1166 = vsub.s32 %v1163, %v1165
        %v1167 = vrot.slane %v1159, %v1166
        %v1169 = vunpack.c.l.s4 1966171168
        %v1170 = vunpack.c.0.s8 %v1169
        %v1171 = vlaneseq
        %v1172 = vshrl.u32 %v1171, 7
        %v1173 = vsub.s32 %v1170, %v1172
        %v1174 = vrot.slane %v1160, %v1173
        %v1175 = vcombine.high %v1167, %v1167
        %v1176 = vcombine.high %v1174, %v1174
        %v1178 = vunpack.c.l.s4 1966171168
        %v1179 = vunpack.c.0.s8 %v1178
        %v1180 = vlaneseq
        %v1181 = vshrl.u32 %v1180, 7
        %v1182 = vsub.s32 %v1179, %v1181
        %v1183 = vrot.slane %v584, %v1182
        %v1184 = vcombine.high %v1183, %v1183
        %v1186 = vunpack.c.l.s4 1966171168
        %v1187 = vunpack.c.0.s8 %v1186
        %v1188 = vlaneseq
        %v1189 = vshrl.u32 %v1188, 7
        %v1190 = vsub.s32 %v1187, %v1189
        %v1191 = vrot.slane %v1183, %v1190
        %v1193 = vunpack.c.l.s4 1966171168
        %v1194 = vunpack.c.0.s8 %v1193
        %v1195 = vlaneseq
        %v1196 = vshrl.u32 %v1195, 7
        %v1197 = vsub.s32 %v1194, %v1196
        %v1198 = vrot.slane %v1184, %v1197
        %v1199 = vcombine.high %v1191, %v1191
        %v1200 = vcombine.high %v1198, %v1198
        %v1202 = vunpack.c.l.s4 1966171168
        %v1203 = vunpack.c.0.s8 %v1202
        %v1204 = vlaneseq
        %v1205 = vshrl.u32 %v1204, 7
        %v1206 = vsub.s32 %v1203, %v1205
        %v1207 = vrot.slane %v585, %v1206
        %v1208 = vcombine.high %v1207, %v1207
        %v1210 = vunpack.c.l.s4 1966171168
        %v1211 = vunpack.c.0.s8 %v1210
        %v1212 = vlaneseq
        %v1213 = vshrl.u32 %v1212, 7
        %v1214 = vsub.s32 %v1211, %v1213
        %v1215 = vrot.slane %v1207, %v1214
        %v1217 = vunpack.c.l.s4 1966171168
        %v1218 = vunpack.c.0.s8 %v1217
        %v1219 = vlaneseq
        %v1220 = vshrl.u32 %v1219, 7
        %v1221 = vsub.s32 %v1218, %v1220
        %v1222 = vrot.slane %v1208, %v1221
        %v1223 = vcombine.high %v1215, %v1215
        %v1224 = vcombine.high %v1222, %v1222
        %v1226 = vunpack.c.l.s4 1966171168
        %v1227 = vunpack.c.0.s8 %v1226
        %v1228 = vlaneseq
        %v1229 = vshrl.u32 %v1228, 7
        %v1230 = vsub.s32 %v1227, %v1229
        %v1231 = vrot.slane %v586, %v1230
        %v1232 = vcombine.high %v1231, %v1231
        %v1234 = vunpack.c.l.s4 1966171168
        %v1235 = vunpack.c.0.s8 %v1234
        %v1236 = vlaneseq
        %v1237 = vshrl.u32 %v1236, 7
        %v1238 = vsub.s32 %v1235, %v1237
        %v1239 = vrot.slane %v1231, %v1238
        %v1241 = vunpack.c.l.s4 1966171168
        %v1242 = vunpack.c.0.s8 %v1241
        %v1243 = vlaneseq
        %v1244 = vshrl.u32 %v1243, 7
        %v1245 = vsub.s32 %v1242, %v1244
        %v1246 = vrot.slane %v1232, %v1245
        %v1247 = vcombine.high %v1239, %v1239
        %v1248 = vcombine.high %v1246, %v1246
        %v1250 = vunpack.c.l.s4 1966171168
        %v1251 = vunpack.c.0.s8 %v1250
        %v1252 = vlaneseq
        %v1253 = vshrl.u32 %v1252, 7
        %v1254 = vsub.s32 %v1251, %v1253
        %v1255 = vrot.slane %v587, %v1254
        %v1256 = vcombine.high %v1255, %v1255
        %v1258 = vunpack.c.l.s4 1966171168
        %v1259 = vunpack.c.0.s8 %v1258
        %v1260 = vlaneseq
        %v1261 = vshrl.u32 %v1260, 7
        %v1262 = vsub.s32 %v1259, %v1261
        %v1263 = vrot.slane %v1255, %v1262
        %v1265 = vunpack.c.l.s4 1966171168
        %v1266 = vunpack.c.0.s8 %v1265
        %v1267 = vlaneseq
        %v1268 = vshrl.u32 %v1267, 7
        %v1269 = vsub.s32 %v1266, %v1268
        %v1270 = vrot.slane %v1256, %v1269
        %v1271 = vcombine.high %v1263, %v1263
        %v1272 = vcombine.high %v1270, %v1270
        %v1274 = vunpack.c.l.s4 1966171168
        %v1275 = vunpack.c.0.s8 %v1274
        %v1276 = vlaneseq
        %v1277 = vshrl.u32 %v1276, 7
        %v1278 = vsub.s32 %v1275, %v1277
        %v1279 = vrot.slane %v588, %v1278
        %v1280 = vcombine.high %v1279, %v1279
        %v1282 = vunpack.c.l.s4 1966171168
        %v1283 = vunpack.c.0.s8 %v1282
        %v1284 = vlaneseq
        %v1285 = vshrl.u32 %v1284, 7
        %v1286 = vsub.s32 %v1283, %v1285
        %v1287 = vrot.slane %v1279, %v1286
        %v1289 = vunpack.c.l.s4 1966171168
        %v1290 = vunpack.c.0.s8 %v1289
        %v1291 = vlaneseq
        %v1292 = vshrl.u32 %v1291, 7
        %v1293 = vsub.s32 %v1290, %v1292
        %v1294 = vrot.slane %v1280, %v1293
        %v1295 = vcombine.high %v1287, %v1287
        %v1296 = vcombine.high %v1294, %v1294
        %v1298 = vunpack.c.l.s4 1966171168
        %v1299 = vunpack.c.0.s8 %v1298
        %v1300 = vlaneseq
        %v1301 = vshrl.u32 %v1300, 7
        %v1302 = vsub.s32 %v1299, %v1301
        %v1303 = vrot.slane %v589, %v1302
        %v1304 = vcombine.high %v1303, %v1303
        %v1306 = vunpack.c.l.s4 1966171168
        %v1307 = vunpack.c.0.s8 %v1306
        %v1308 = vlaneseq
        %v1309 = vshrl.u32 %v1308, 7
        %v1310 = vsub.s32 %v1307, %v1309
        %v1311 = vrot.slane %v1303, %v1310
        %v1313 = vunpack.c.l.s4 1966171168
        %v1314 = vunpack.c.0.s8 %v1313
        %v1315 = vlaneseq
        %v1316 = vshrl.u32 %v1315, 7
        %v1317 = vsub.s32 %v1314, %v1316
        %v1318 = vrot.slane %v1304, %v1317
        %v1319 = vcombine.high %v1311, %v1311
        %v1320 = vcombine.high %v1318, %v1318
        %v1322 = vunpack.c.l.s4 1966171168
        %v1323 = vunpack.c.0.s8 %v1322
        %v1324 = vlaneseq
        %v1325 = vshrl.u32 %v1324, 7
        %v1326 = vsub.s32 %v1323, %v1325
        %v1327 = vrot.slane %v590, %v1326
        %v1328 = vcombine.high %v1327, %v1327
        %v1330 = vunpack.c.l.s4 1966171168
        %v1331 = vunpack.c.0.s8 %v1330
        %v1332 = vlaneseq
        %v1333 = vshrl.u32 %v1332, 7
        %v1334 = vsub.s32 %v1331, %v1333
        %v1335 = vrot.slane %v1327, %v1334
        %v1337 = vunpack.c.l.s4 1966171168
        %v1338 = vunpack.c.0.s8 %v1337
        %v1339 = vlaneseq
        %v1340 = vshrl.u32 %v1339, 7
        %v1341 = vsub.s32 %v1338, %v1340
        %v1342 = vrot.slane %v1328, %v1341
        %v1343 = vcombine.high %v1335, %v1335
        %v1344 = vcombine.high %v1342, %v1342
        %v1346 = vunpack.c.l.s4 1966171168
        %v1347 = vunpack.c.0.s8 %v1346
        %v1348 = vlaneseq
        %v1349 = vshrl.u32 %v1348, 7
        %v1350 = vsub.s32 %v1347, %v1349
        %v1351 = vrot.slane %v591, %v1350
        %v1352 = vcombine.high %v1351, %v1351
        %v1354 = vunpack.c.l.s4 1966171168
        %v1355 = vunpack.c.0.s8 %v1354
        %v1356 = vlaneseq
        %v1357 = vshrl.u32 %v1356, 7
        %v1358 = vsub.s32 %v1355, %v1357
        %v1359 = vrot.slane %v1351, %v1358
        %v1361 = vunpack.c.l.s4 1966171168
        %v1362 = vunpack.c.0.s8 %v1361
        %v1363 = vlaneseq
        %v1364 = vshrl.u32 %v1363, 7
        %v1365 = vsub.s32 %v1362, %v1364
        %v1366 = vrot.slane %v1352, %v1365
        %v1367 = vcombine.high %v1359, %v1359
        %v1368 = vcombine.high %v1366, %v1366
        %v1370 = vunpack.c.l.s4 1966171168
        %v1371 = vunpack.c.0.s8 %v1370
        %v1372 = vlaneseq
        %v1373 = vshrl.u32 %v1372, 7
        %v1374 = vsub.s32 %v1371, %v1373
        %v1375 = vrot.slane %v592, %v1374
        %v1376 = vcombine.high %v1375, %v1375
        %v1378 = vunpack.c.l.s4 1966171168
        %v1379 = vunpack.c.0.s8 %v1378
        %v1380 = vlaneseq
        %v1381 = vshrl.u32 %v1380, 7
        %v1382 = vsub.s32 %v1379, %v1381
        %v1383 = vrot.slane %v1375, %v1382
        %v1385 = vunpack.c.l.s4 1966171168
        %v1386 = vunpack.c.0.s8 %v1385
        %v1387 = vlaneseq
        %v1388 = vshrl.u32 %v1387, 7
        %v1389 = vsub.s32 %v1386, %v1388
        %v1390 = vrot.slane %v1376, %v1389
        %v1391 = vcombine.high %v1383, %v1383
        %v1392 = vcombine.high %v1390, %v1390
        %v1394 = vunpack.c.l.s4 1935823168
        %v1395 = vunpack.c.0.s8 %v1394
        %v1396 = vlaneseq
        %v1397 = vshrl.u32 %v1396, 7
        %v1398 = vsub.s32 %v1395, %v1397
        %v1399 = vrot.slane %v639, %v1398
        %v1401 = vunpack.c.l.s4 1935823168
        %v1402 = vunpack.c.0.s8 %v1401
        %v1403 = vlaneseq
        %v1404 = vshrl.u32 %v1403, 7
        %v1405 = vsub.s32 %v1402, %v1404
        %v1406 = vrot.slane %v1399, %v1405
        %v1408 = vunpack.c.l.s4 1935823168
        %v1409 = vunpack.c.0.s8 %v1408
        %v1410 = vlaneseq
        %v1411 = vshrl.u32 %v1410, 7
        %v1412 = vsub.s32 %v1409, %v1411
        %v1413 = vrot.slane %v646, %v1412
        %v1415 = vunpack.c.l.s4 1935823168
        %v1416 = vunpack.c.0.s8 %v1415
        %v1417 = vlaneseq
        %v1418 = vshrl.u32 %v1417, 7
        %v1419 = vsub.s32 %v1416, %v1418
        %v1420 = vrot.slane %v1413, %v1419
        %v1422 = vunpack.c.l.s4 1935823168
        %v1423 = vunpack.c.0.s8 %v1422
        %v1424 = vlaneseq
        %v1425 = vshrl.u32 %v1424, 7
        %v1426 = vsub.s32 %v1423, %v1425
        %v1427 = vrot.slane %v647, %v1426
        %v1429 = vunpack.c.l.s4 1935823168
        %v1430 = vunpack.c.0.s8 %v1429
        %v1431 = vlaneseq
        %v1432 = vshrl.u32 %v1431, 7
        %v1433 = vsub.s32 %v1430, %v1432
        %v1434 = vrot.slane %v1427, %v1433
        %v1436 = vunpack.c.l.s4 1935823168
        %v1437 = vunpack.c.0.s8 %v1436
        %v1438 = vlaneseq
        %v1439 = vshrl.u32 %v1438, 7
        %v1440 = vsub.s32 %v1437, %v1439
        %v1441 = vrot.slane %v648, %v1440
        %v1443 = vunpack.c.l.s4 1935823168
        %v1444 = vunpack.c.0.s8 %v1443
        %v1445 = vlaneseq
        %v1446 = vshrl.u32 %v1445, 7
        %v1447 = vsub.s32 %v1444, %v1446
        %v1448 = vrot.slane %v1441, %v1447
        %v1450 = vunpack.c.l.s4 1935823168
        %v1451 = vunpack.c.0.s8 %v1450
        %v1452 = vlaneseq
        %v1453 = vshrl.u32 %v1452, 7
        %v1454 = vsub.s32 %v1451, %v1453
        %v1455 = vrot.slane %v663, %v1454
        %v1457 = vunpack.c.l.s4 1935823168
        %v1458 = vunpack.c.0.s8 %v1457
        %v1459 = vlaneseq
        %v1460 = vshrl.u32 %v1459, 7
        %v1461 = vsub.s32 %v1458, %v1460
        %v1462 = vrot.slane %v1455, %v1461
        %v1464 = vunpack.c.l.s4 1935823168
        %v1465 = vunpack.c.0.s8 %v1464
        %v1466 = vlaneseq
        %v1467 = vshrl.u32 %v1466, 7
        %v1468 = vsub.s32 %v1465, %v1467
        %v1469 = vrot.slane %v670, %v1468
        %v1471 = vunpack.c.l.s4 1935823168
        %v1472 = vunpack.c.0.s8 %v1471
        %v1473 = vlaneseq
        %v1474 = vshrl.u32 %v1473, 7
        %v1475 = vsub.s32 %v1472, %v1474
        %v1476 = vrot.slane %v1469, %v1475
        %v1478 = vunpack.c.l.s4 1935823168
        %v1479 = vunpack.c.0.s8 %v1478
        %v1480 = vlaneseq
        %v1481 = vshrl.u32 %v1480, 7
        %v1482 = vsub.s32 %v1479, %v1481
        %v1483 = vrot.slane %v671, %v1482
        %v1485 = vunpack.c.l.s4 1935823168
        %v1486 = vunpack.c.0.s8 %v1485
        %v1487 = vlaneseq
        %v1488 = vshrl.u32 %v1487, 7
        %v1489 = vsub.s32 %v1486, %v1488
        %v1490 = vrot.slane %v1483, %v1489
        %v1492 = vunpack.c.l.s4 1935823168
        %v1493 = vunpack.c.0.s8 %v1492
        %v1494 = vlaneseq
        %v1495 = vshrl.u32 %v1494, 7
        %v1496 = vsub.s32 %v1493, %v1495
        %v1497 = vrot.slane %v672, %v1496
        %v1499 = vunpack.c.l.s4 1935823168
        %v1500 = vunpack.c.0.s8 %v1499
        %v1501 = vlaneseq
        %v1502 = vshrl.u32 %v1501, 7
        %v1503 = vsub.s32 %v1500, %v1502
        %v1504 = vrot.slane %v1497, %v1503
        %v1506 = vunpack.c.l.s4 1935823168
        %v1507 = vunpack.c.0.s8 %v1506
        %v1508 = vlaneseq
        %v1509 = vshrl.u32 %v1508, 7
        %v1510 = vsub.s32 %v1507, %v1509
        %v1511 = vrot.slane %v735, %v1510
        %v1513 = vunpack.c.l.s4 1935823168
        %v1514 = vunpack.c.0.s8 %v1513
        %v1515 = vlaneseq
        %v1516 = vshrl.u32 %v1515, 7
        %v1517 = vsub.s32 %v1514, %v1516
        %v1518 = vrot.slane %v1511, %v1517
        %v1520 = vunpack.c.l.s4 1935823168
        %v1521 = vunpack.c.0.s8 %v1520
        %v1522 = vlaneseq
        %v1523 = vshrl.u32 %v1522, 7
        %v1524 = vsub.s32 %v1521, %v1523
        %v1525 = vrot.slane %v742, %v1524
        %v1527 = vunpack.c.l.s4 1935823168
        %v1528 = vunpack.c.0.s8 %v1527
        %v1529 = vlaneseq
        %v1530 = vshrl.u32 %v1529, 7
        %v1531 = vsub.s32 %v1528, %v1530
        %v1532 = vrot.slane %v1525, %v1531
        %v1534 = vunpack.c.l.s4 1935823168
        %v1535 = vunpack.c.0.s8 %v1534
        %v1536 = vlaneseq
        %v1537 = vshrl.u32 %v1536, 7
        %v1538 = vsub.s32 %v1535, %v1537
        %v1539 = vrot.slane %v743, %v1538
        %v1541 = vunpack.c.l.s4 1935823168
        %v1542 = vunpack.c.0.s8 %v1541
        %v1543 = vlaneseq
        %v1544 = vshrl.u32 %v1543, 7
        %v1545 = vsub.s32 %v1542, %v1544
        %v1546 = vrot.slane %v1539, %v1545
        %v1548 = vunpack.c.l.s4 1935823168
        %v1549 = vunpack.c.0.s8 %v1548
        %v1550 = vlaneseq
        %v1551 = vshrl.u32 %v1550, 7
        %v1552 = vsub.s32 %v1549, %v1551
        %v1553 = vrot.slane %v744, %v1552
        %v1555 = vunpack.c.l.s4 1935823168
        %v1556 = vunpack.c.0.s8 %v1555
        %v1557 = vlaneseq
        %v1558 = vshrl.u32 %v1557, 7
        %v1559 = vsub.s32 %v1556, %v1558
        %v1560 = vrot.slane %v1553, %v1559
        %v1562 = vunpack.c.l.s4 1935823168
        %v1563 = vunpack.c.0.s8 %v1562
        %v1564 = vlaneseq
        %v1565 = vshrl.u32 %v1564, 7
        %v1566 = vsub.s32 %v1563, %v1565
        %v1567 = vrot.slane %v759, %v1566
        %v1569 = vunpack.c.l.s4 1935823168
        %v1570 = vunpack.c.0.s8 %v1569
        %v1571 = vlaneseq
        %v1572 = vshrl.u32 %v1571, 7
        %v1573 = vsub.s32 %v1570, %v1572
        %v1574 = vrot.slane %v1567, %v1573
        %v1576 = vunpack.c.l.s4 1935823168
        %v1577 = vunpack.c.0.s8 %v1576
        %v1578 = vlaneseq
        %v1579 = vshrl.u32 %v1578, 7
        %v1580 = vsub.s32 %v1577, %v1579
        %v1581 = vrot.slane %v766, %v1580
        %v1583 = vunpack.c.l.s4 1935823168
        %v1584 = vunpack.c.0.s8 %v1583
        %v1585 = vlaneseq
        %v1586 = vshrl.u32 %v1585, 7
        %v1587 = vsub.s32 %v1584, %v1586
        %v1588 = vrot.slane %v1581, %v1587
        %v1590 = vunpack.c.l.s4 1935823168
        %v1591 = vunpack.c.0.s8 %v1590
        %v1592 = vlaneseq
        %v1593 = vshrl.u32 %v1592, 7
        %v1594 = vsub.s32 %v1591, %v1593
        %v1595 = vrot.slane %v767, %v1594
        %v1597 = vunpack.c.l.s4 1935823168
        %v1598 = vunpack.c.0.s8 %v1597
        %v1599 = vlaneseq
        %v1600 = vshrl.u32 %v1599, 7
        %v1601 = vsub.s32 %v1598, %v1600
        %v1602 = vrot.slane %v1595, %v1601
        %v1604 = vunpack.c.l.s4 1935823168
        %v1605 = vunpack.c.0.s8 %v1604
        %v1606 = vlaneseq
        %v1607 = vshrl.u32 %v1606, 7
        %v1608 = vsub.s32 %v1605, %v1607
        %v1609 = vrot.slane %v768, %v1608
        %v1611 = vunpack.c.l.s4 1935823168
        %v1612 = vunpack.c.0.s8 %v1611
        %v1613 = vlaneseq
        %v1614 = vshrl.u32 %v1613, 7
        %v1615 = vsub.s32 %v1612, %v1614
        %v1616 = vrot.slane %v1609, %v1615
        %v1618 = vunpack.c.l.s4 1935823168
        %v1619 = vunpack.c.0.s8 %v1618
        %v1620 = vlaneseq
        %v1621 = vshrl.u32 %v1620, 7
        %v1622 = vsub.s32 %v1619, %v1621
        %v1623 = vrot.slane %v831, %v1622
        %v1625 = vunpack.c.l.s4 1935823168
        %v1626 = vunpack.c.0.s8 %v1625
        %v1627 = vlaneseq
        %v1628 = vshrl.u32 %v1627, 7
        %v1629 = vsub.s32 %v1626, %v1628
        %v1630 = vrot.slane %v1623, %v1629
        %v1632 = vunpack.c.l.s4 1935823168
        %v1633 = vunpack.c.0.s8 %v1632
        %v1634 = vlaneseq
        %v1635 = vshrl.u32 %v1634, 7
        %v1636 = vsub.s32 %v1633, %v1635
        %v1637 = vrot.slane %v838, %v1636
        %v1639 = vunpack.c.l.s4 1935823168
        %v1640 = vunpack.c.0.s8 %v1639
        %v1641 = vlaneseq
        %v1642 = vshrl.u32 %v1641, 7
        %v1643 = vsub.s32 %v1640, %v1642
        %v1644 = vrot.slane %v1637, %v1643
        %v1646 = vunpack.c.l.s4 1935823168
        %v1647 = vunpack.c.0.s8 %v1646
        %v1648 = vlaneseq
        %v1649 = vshrl.u32 %v1648, 7
        %v1650 = vsub.s32 %v1647, %v1649
        %v1651 = vrot.slane %v839, %v1650
        %v1653 = vunpack.c.l.s4 1935823168
        %v1654 = vunpack.c.0.s8 %v1653
        %v1655 = vlaneseq
        %v1656 = vshrl.u32 %v1655, 7
        %v1657 = vsub.s32 %v1654, %v1656
        %v1658 = vrot.slane %v1651, %v1657
        %v1660 = vunpack.c.l.s4 1935823168
        %v1661 = vunpack.c.0.s8 %v1660
        %v1662 = vlaneseq
        %v1663 = vshrl.u32 %v1662, 7
        %v1664 = vsub.s32 %v1661, %v1663
        %v1665 = vrot.slane %v840, %v1664
        %v1667 = vunpack.c.l.s4 1935823168
        %v1668 = vunpack.c.0.s8 %v1667
        %v1669 = vlaneseq
        %v1670 = vshrl.u32 %v1669, 7
        %v1671 = vsub.s32 %v1668, %v1670
        %v1672 = vrot.slane %v1665, %v1671
        %v1674 = vunpack.c.l.s4 1935823168
        %v1675 = vunpack.c.0.s8 %v1674
        %v1676 = vlaneseq
        %v1677 = vshrl.u32 %v1676, 7
        %v1678 = vsub.s32 %v1675, %v1677
        %v1679 = vrot.slane %v855, %v1678
        %v1681 = vunpack.c.l.s4 1935823168
        %v1682 = vunpack.c.0.s8 %v1681
        %v1683 = vlaneseq
        %v1684 = vshrl.u32 %v1683, 7
        %v1685 = vsub.s32 %v1682, %v1684
        %v1686 = vrot.slane %v1679, %v1685
        %v1688 = vunpack.c.l.s4 1935823168
        %v1689 = vunpack.c.0.s8 %v1688
        %v1690 = vlaneseq
        %v1691 = vshrl.u32 %v1690, 7
        %v1692 = vsub.s32 %v1689, %v1691
        %v1693 = vrot.slane %v862, %v1692
        %v1695 = vunpack.c.l.s4 1935823168
        %v1696 = vunpack.c.0.s8 %v1695
        %v1697 = vlaneseq
        %v1698 = vshrl.u32 %v1697, 7
        %v1699 = vsub.s32 %v1696, %v1698
        %v1700 = vrot.slane %v1693, %v1699
        %v1702 = vunpack.c.l.s4 1935823168
        %v1703 = vunpack.c.0.s8 %v1702
        %v1704 = vlaneseq
        %v1705 = vshrl.u32 %v1704, 7
        %v1706 = vsub.s32 %v1703, %v1705
        %v1707 = vrot.slane %v863, %v1706
        %v1709 = vunpack.c.l.s4 1935823168
        %v1710 = vunpack.c.0.s8 %v1709
        %v1711 = vlaneseq
        %v1712 = vshrl.u32 %v1711, 7
        %v1713 = vsub.s32 %v1710, %v1712
        %v1714 = vrot.slane %v1707, %v1713
        %v1716 = vunpack.c.l.s4 1935823168
        %v1717 = vunpack.c.0.s8 %v1716
        %v1718 = vlaneseq
        %v1719 = vshrl.u32 %v1718, 7
        %v1720 = vsub.s32 %v1717, %v1719
        %v1721 = vrot.slane %v864, %v1720
        %v1723 = vunpack.c.l.s4 1935823168
        %v1724 = vunpack.c.0.s8 %v1723
        %v1725 = vlaneseq
        %v1726 = vshrl.u32 %v1725, 7
        %v1727 = vsub.s32 %v1724, %v1726
        %v1728 = vrot.slane %v1721, %v1727
        %v1730 = vunpack.c.l.s4 1935823168
        %v1731 = vunpack.c.0.s8 %v1730
        %v1732 = vlaneseq
        %v1733 = vshrl.u32 %v1732, 7
        %v1734 = vsub.s32 %v1731, %v1733
        %v1735 = vrot.slane %v927, %v1734
        %v1737 = vunpack.c.l.s4 1935823168
        %v1738 = vunpack.c.0.s8 %v1737
        %v1739 = vlaneseq
        %v1740 = vshrl.u32 %v1739, 7
        %v1741 = vsub.s32 %v1738, %v1740
        %v1742 = vrot.slane %v1735, %v1741
        %v1744 = vunpack.c.l.s4 1935823168
        %v1745 = vunpack.c.0.s8 %v1744
        %v1746 = vlaneseq
        %v1747 = vshrl.u32 %v1746, 7
        %v1748 = vsub.s32 %v1745, %v1747
        %v1749 = vrot.slane %v934, %v1748
        %v1751 = vunpack.c.l.s4 1935823168
        %v1752 = vunpack.c.0.s8 %v1751
        %v1753 = vlaneseq
        %v1754 = vshrl.u32 %v1753, 7
        %v1755 = vsub.s32 %v1752, %v1754
        %v1756 = vrot.slane %v1749, %v1755
        %v1758 = vunpack.c.l.s4 1935823168
        %v1759 = vunpack.c.0.s8 %v1758
        %v1760 = vlaneseq
        %v1761 = vshrl.u32 %v1760, 7
        %v1762 = vsub.s32 %v1759, %v1761
        %v1763 = vrot.slane %v935, %v1762
        %v1765 = vunpack.c.l.s4 1935823168
        %v1766 = vunpack.c.0.s8 %v1765
        %v1767 = vlaneseq
        %v1768 = vshrl.u32 %v1767, 7
        %v1769 = vsub.s32 %v1766, %v1768
        %v1770 = vrot.slane %v1763, %v1769
        %v1772 = vunpack.c.l.s4 1935823168
        %v1773 = vunpack.c.0.s8 %v1772
        %v1774 = vlaneseq
        %v1775 = vshrl.u32 %v1774, 7
        %v1776 = vsub.s32 %v1773, %v1775
        %v1777 = vrot.slane %v936, %v1776
        %v1779 = vunpack.c.l.s4 1935823168
        %v1780 = vunpack.c.0.s8 %v1779
        %v1781 = vlaneseq
        %v1782 = vshrl.u32 %v1781, 7
        %v1783 = vsub.s32 %v1780, %v1782
        %v1784 = vrot.slane %v1777, %v1783
        %v1786 = vunpack.c.l.s4 1935823168
        %v1787 = vunpack.c.0.s8 %v1786
        %v1788 = vlaneseq
        %v1789 = vshrl.u32 %v1788, 7
        %v1790 = vsub.s32 %v1787, %v1789
        %v1791 = vrot.slane %v951, %v1790
        %v1793 = vunpack.c.l.s4 1935823168
        %v1794 = vunpack.c.0.s8 %v1793
        %v1795 = vlaneseq
        %v1796 = vshrl.u32 %v1795, 7
        %v1797 = vsub.s32 %v1794, %v1796
        %v1798 = vrot.slane %v1791, %v1797
        %v1800 = vunpack.c.l.s4 1935823168
        %v1801 = vunpack.c.0.s8 %v1800
        %v1802 = vlaneseq
        %v1803 = vshrl.u32 %v1802, 7
        %v1804 = vsub.s32 %v1801, %v1803
        %v1805 = vrot.slane %v958, %v1804
        %v1807 = vunpack.c.l.s4 1935823168
        %v1808 = vunpack.c.0.s8 %v1807
        %v1809 = vlaneseq
        %v1810 = vshrl.u32 %v1809, 7
        %v1811 = vsub.s32 %v1808, %v1810
        %v1812 = vrot.slane %v1805, %v1811
        %v1814 = vunpack.c.l.s4 1935823168
        %v1815 = vunpack.c.0.s8 %v1814
        %v1816 = vlaneseq
        %v1817 = vshrl.u32 %v1816, 7
        %v1818 = vsub.s32 %v1815, %v1817
        %v1819 = vrot.slane %v959, %v1818
        %v1821 = vunpack.c.l.s4 1935823168
        %v1822 = vunpack.c.0.s8 %v1821
        %v1823 = vlaneseq
        %v1824 = vshrl.u32 %v1823, 7
        %v1825 = vsub.s32 %v1822, %v1824
        %v1826 = vrot.slane %v1819, %v1825
        %v1828 = vunpack.c.l.s4 1935823168
        %v1829 = vunpack.c.0.s8 %v1828
        %v1830 = vlaneseq
        %v1831 = vshrl.u32 %v1830, 7
        %v1832 = vsub.s32 %v1829, %v1831
        %v1833 = vrot.slane %v960, %v1832
        %v1835 = vunpack.c.l.s4 1935823168
        %v1836 = vunpack.c.0.s8 %v1835
        %v1837 = vlaneseq
        %v1838 = vshrl.u32 %v1837, 7
        %v1839 = vsub.s32 %v1836, %v1838
        %v1840 = vrot.slane %v1833, %v1839
        %v1842 = vunpack.c.l.s4 1935823168
        %v1843 = vunpack.c.0.s8 %v1842
        %v1844 = vlaneseq
        %v1845 = vshrl.u32 %v1844, 7
        %v1846 = vsub.s32 %v1843, %v1845
        %v1847 = vrot.slane %v1023, %v1846
        %v1849 = vunpack.c.l.s4 1935823168
        %v1850 = vunpack.c.0.s8 %v1849
        %v1851 = vlaneseq
        %v1852 = vshrl.u32 %v1851, 7
        %v1853 = vsub.s32 %v1850, %v1852
        %v1854 = vrot.slane %v1847, %v1853
        %v1856 = vunpack.c.l.s4 1935823168
        %v1857 = vunpack.c.0.s8 %v1856
        %v1858 = vlaneseq
        %v1859 = vshrl.u32 %v1858, 7
        %v1860 = vsub.s32 %v1857, %v1859
        %v1861 = vrot.slane %v1030, %v1860
        %v1863 = vunpack.c.l.s4 1935823168
        %v1864 = vunpack.c.0.s8 %v1863
        %v1865 = vlaneseq
        %v1866 = vshrl.u32 %v1865, 7
        %v1867 = vsub.s32 %v1864, %v1866
        %v1868 = vrot.slane %v1861, %v1867
        %v1870 = vunpack.c.l.s4 1935823168
        %v1871 = vunpack.c.0.s8 %v1870
        %v1872 = vlaneseq
        %v1873 = vshrl.u32 %v1872, 7
        %v1874 = vsub.s32 %v1871, %v1873
        %v1875 = vrot.slane %v1031, %v1874
        %v1877 = vunpack.c.l.s4 1935823168
        %v1878 = vunpack.c.0.s8 %v1877
        %v1879 = vlaneseq
        %v1880 = vshrl.u32 %v1879, 7
        %v1881 = vsub.s32 %v1878, %v1880
        %v1882 = vrot.slane %v1875, %v1881
        %v1884 = vunpack.c.l.s4 1935823168
        %v1885 = vunpack.c.0.s8 %v1884
        %v1886 = vlaneseq
        %v1887 = vshrl.u32 %v1886, 7
        %v1888 = vsub.s32 %v1885, %v1887
        %v1889 = vrot.slane %v1032, %v1888
        %v1891 = vunpack.c.l.s4 1935823168
        %v1892 = vunpack.c.0.s8 %v1891
        %v1893 = vlaneseq
        %v1894 = vshrl.u32 %v1893, 7
        %v1895 = vsub.s32 %v1892, %v1894
        %v1896 = vrot.slane %v1889, %v1895
        %v1898 = vunpack.c.l.s4 1935823168
        %v1899 = vunpack.c.0.s8 %v1898
        %v1900 = vlaneseq
        %v1901 = vshrl.u32 %v1900, 7
        %v1902 = vsub.s32 %v1899, %v1901
        %v1903 = vrot.slane %v1047, %v1902
        %v1905 = vunpack.c.l.s4 1935823168
        %v1906 = vunpack.c.0.s8 %v1905
        %v1907 = vlaneseq
        %v1908 = vshrl.u32 %v1907, 7
        %v1909 = vsub.s32 %v1906, %v1908
        %v1910 = vrot.slane %v1903, %v1909
        %v1912 = vunpack.c.l.s4 1935823168
        %v1913 = vunpack.c.0.s8 %v1912
        %v1914 = vlaneseq
        %v1915 = vshrl.u32 %v1914, 7
        %v1916 = vsub.s32 %v1913, %v1915
        %v1917 = vrot.slane %v1054, %v1916
        %v1919 = vunpack.c.l.s4 1935823168
        %v1920 = vunpack.c.0.s8 %v1919
        %v1921 = vlaneseq
        %v1922 = vshrl.u32 %v1921, 7
        %v1923 = vsub.s32 %v1920, %v1922
        %v1924 = vrot.slane %v1917, %v1923
        %v1926 = vunpack.c.l.s4 1935823168
        %v1927 = vunpack.c.0.s8 %v1926
        %v1928 = vlaneseq
        %v1929 = vshrl.u32 %v1928, 7
        %v1930 = vsub.s32 %v1927, %v1929
        %v1931 = vrot.slane %v1055, %v1930
        %v1933 = vunpack.c.l.s4 1935823168
        %v1934 = vunpack.c.0.s8 %v1933
        %v1935 = vlaneseq
        %v1936 = vshrl.u32 %v1935, 7
        %v1937 = vsub.s32 %v1934, %v1936
        %v1938 = vrot.slane %v1931, %v1937
        %v1940 = vunpack.c.l.s4 1935823168
        %v1941 = vunpack.c.0.s8 %v1940
        %v1942 = vlaneseq
        %v1943 = vshrl.u32 %v1942, 7
        %v1944 = vsub.s32 %v1941, %v1943
        %v1945 = vrot.slane %v1056, %v1944
        %v1947 = vunpack.c.l.s4 1935823168
        %v1948 = vunpack.c.0.s8 %v1947
        %v1949 = vlaneseq
        %v1950 = vshrl.u32 %v1949, 7
        %v1951 = vsub.s32 %v1948, %v1950
        %v1952 = vrot.slane %v1945, %v1951
        %v1954 = vunpack.c.l.s4 1935823168
        %v1955 = vunpack.c.0.s8 %v1954
        %v1956 = vlaneseq
        %v1957 = vshrl.u32 %v1956, 7
        %v1958 = vsub.s32 %v1955, %v1957
        %v1959 = vrot.slane %v1119, %v1958
        %v1961 = vunpack.c.l.s4 1935823168
        %v1962 = vunpack.c.0.s8 %v1961
        %v1963 = vlaneseq
        %v1964 = vshrl.u32 %v1963, 7
        %v1965 = vsub.s32 %v1962, %v1964
        %v1966 = vrot.slane %v1959, %v1965
        %v1968 = vunpack.c.l.s4 1935823168
        %v1969 = vunpack.c.0.s8 %v1968
        %v1970 = vlaneseq
        %v1971 = vshrl.u32 %v1970, 7
        %v1972 = vsub.s32 %v1969, %v1971
        %v1973 = vrot.slane %v1126, %v1972
        %v1975 = vunpack.c.l.s4 1935823168
        %v1976 = vunpack.c.0.s8 %v1975
        %v1977 = vlaneseq
        %v1978 = vshrl.u32 %v1977, 7
        %v1979 = vsub.s32 %v1976, %v1978
        %v1980 = vrot.slane %v1973, %v1979
        %v1982 = vunpack.c.l.s4 1935823168
        %v1983 = vunpack.c.0.s8 %v1982
        %v1984 = vlaneseq
        %v1985 = vshrl.u32 %v1984, 7
        %v1986 = vsub.s32 %v1983, %v1985
        %v1987 = vrot.slane %v1127, %v1986
        %v1989 = vunpack.c.l.s4 1935823168
        %v1990 = vunpack.c.0.s8 %v1989
        %v1991 = vlaneseq
        %v1992 = vshrl.u32 %v1991, 7
        %v1993 = vsub.s32 %v1990, %v1992
        %v1994 = vrot.slane %v1987, %v1993
        %v1996 = vunpack.c.l.s4 1935823168
        %v1997 = vunpack.c.0.s8 %v1996
        %v1998 = vlaneseq
        %v1999 = vshrl.u32 %v1998, 7
        %v2000 = vsub.s32 %v1997, %v1999
        %v2001 = vrot.slane %v1128, %v2000
        %v2003 = vunpack.c.l.s4 1935823168
        %v2004 = vunpack.c.0.s8 %v2003
        %v2005 = vlaneseq
        %v2006 = vshrl.u32 %v2005, 7
        %v2007 = vsub.s32 %v2004, %v2006
        %v2008 = vrot.slane %v2001, %v2007
        %v2010 = vunpack.c.l.s4 1935823168
        %v2011 = vunpack.c.0.s8 %v2010
        %v2012 = vlaneseq
        %v2013 = vshrl.u32 %v2012, 7
        %v2014 = vsub.s32 %v2011, %v2013
        %v2015 = vrot.slane %v1143, %v2014
        %v2017 = vunpack.c.l.s4 1935823168
        %v2018 = vunpack.c.0.s8 %v2017
        %v2019 = vlaneseq
        %v2020 = vshrl.u32 %v2019, 7
        %v2021 = vsub.s32 %v2018, %v2020
        %v2022 = vrot.slane %v2015, %v2021
        %v2024 = vunpack.c.l.s4 1935823168
        %v2025 = vunpack.c.0.s8 %v2024
        %v2026 = vlaneseq
        %v2027 = vshrl.u32 %v2026, 7
        %v2028 = vsub.s32 %v2025, %v2027
        %v2029 = vrot.slane %v1150, %v2028
        %v2031 = vunpack.c.l.s4 1935823168
        %v2032 = vunpack.c.0.s8 %v2031
        %v2033 = vlaneseq
        %v2034 = vshrl.u32 %v2033, 7
        %v2035 = vsub.s32 %v2032, %v2034
        %v2036 = vrot.slane %v2029, %v2035
        %v2038 = vunpack.c.l.s4 1935823168
        %v2039 = vunpack.c.0.s8 %v2038
        %v2040 = vlaneseq
        %v2041 = vshrl.u32 %v2040, 7
        %v2042 = vsub.s32 %v2039, %v2041
        %v2043 = vrot.slane %v1151, %v2042
        %v2045 = vunpack.c.l.s4 1935823168
        %v2046 = vunpack.c.0.s8 %v2045
        %v2047 = vlaneseq
        %v2048 = vshrl.u32 %v2047, 7
        %v2049 = vsub.s32 %v2046, %v2048
        %v2050 = vrot.slane %v2043, %v2049
        %v2052 = vunpack.c.l.s4 1935823168
        %v2053 = vunpack.c.0.s8 %v2052
        %v2054 = vlaneseq
        %v2055 = vshrl.u32 %v2054, 7
        %v2056 = vsub.s32 %v2053, %v2055
        %v2057 = vrot.slane %v1152, %v2056
        %v2059 = vunpack.c.l.s4 1935823168
        %v2060 = vunpack.c.0.s8 %v2059
        %v2061 = vlaneseq
        %v2062 = vshrl.u32 %v2061, 7
        %v2063 = vsub.s32 %v2060, %v2062
        %v2064 = vrot.slane %v2057, %v2063
        %v2066 = vunpack.c.l.s4 1935823168
        %v2067 = vunpack.c.0.s8 %v2066
        %v2068 = vlaneseq
        %v2069 = vshrl.u32 %v2068, 7
        %v2070 = vsub.s32 %v2067, %v2069
        %v2071 = vrot.slane %v1215, %v2070
        %v2073 = vunpack.c.l.s4 1935823168
        %v2074 = vunpack.c.0.s8 %v2073
        %v2075 = vlaneseq
        %v2076 = vshrl.u32 %v2075, 7
        %v2077 = vsub.s32 %v2074, %v2076
        %v2078 = vrot.slane %v2071, %v2077
        %v2080 = vunpack.c.l.s4 1935823168
        %v2081 = vunpack.c.0.s8 %v2080
        %v2082 = vlaneseq
        %v2083 = vshrl.u32 %v2082, 7
        %v2084 = vsub.s32 %v2081, %v2083
        %v2085 = vrot.slane %v1222, %v2084
        %v2087 = vunpack.c.l.s4 1935823168
        %v2088 = vunpack.c.0.s8 %v2087
        %v2089 = vlaneseq
        %v2090 = vshrl.u32 %v2089, 7
        %v2091 = vsub.s32 %v2088, %v2090
        %v2092 = vrot.slane %v2085, %v2091
        %v2094 = vunpack.c.l.s4 1935823168
        %v2095 = vunpack.c.0.s8 %v2094
        %v2096 = vlaneseq
        %v2097 = vshrl.u32 %v2096, 7
        %v2098 = vsub.s32 %v2095, %v2097
        %v2099 = vrot.slane %v1223, %v2098
        %v2101 = vunpack.c.l.s4 1935823168
        %v2102 = vunpack.c.0.s8 %v2101
        %v2103 = vlaneseq
        %v2104 = vshrl.u32 %v2103, 7
        %v2105 = vsub.s32 %v2102, %v2104
        %v2106 = vrot.slane %v2099, %v2105
        %v2108 = vunpack.c.l.s4 1935823168
        %v2109 = vunpack.c.0.s8 %v2108
        %v2110 = vlaneseq
        %v2111 = vshrl.u32 %v2110, 7
        %v2112 = vsub.s32 %v2109, %v2111
        %v2113 = vrot.slane %v1224, %v2112
        %v2115 = vunpack.c.l.s4 1935823168
        %v2116 = vunpack.c.0.s8 %v2115
        %v2117 = vlaneseq
        %v2118 = vshrl.u32 %v2117, 7
        %v2119 = vsub.s32 %v2116, %v2118
        %v2120 = vrot.slane %v2113, %v2119
        %v2122 = vunpack.c.l.s4 1935823168
        %v2123 = vunpack.c.0.s8 %v2122
        %v2124 = vlaneseq
        %v2125 = vshrl.u32 %v2124, 7
        %v2126 = vsub.s32 %v2123, %v2125
        %v2127 = vrot.slane %v1239, %v2126
        %v2129 = vunpack.c.l.s4 1935823168
        %v2130 = vunpack.c.0.s8 %v2129
        %v2131 = vlaneseq
        %v2132 = vshrl.u32 %v2131, 7
        %v2133 = vsub.s32 %v2130, %v2132
        %v2134 = vrot.slane %v2127, %v2133
        %v2136 = vunpack.c.l.s4 1935823168
        %v2137 = vunpack.c.0.s8 %v2136
        %v2138 = vlaneseq
        %v2139 = vshrl.u32 %v2138, 7
        %v2140 = vsub.s32 %v2137, %v2139
        %v2141 = vrot.slane %v1246, %v2140
        %v2143 = vunpack.c.l.s4 1935823168
        %v2144 = vunpack.c.0.s8 %v2143
        %v2145 = vlaneseq
        %v2146 = vshrl.u32 %v2145, 7
        %v2147 = vsub.s32 %v2144, %v2146
        %v2148 = vrot.slane %v2141, %v2147
        %v2150 = vunpack.c.l.s4 1935823168
        %v2151 = vunpack.c.0.s8 %v2150
        %v2152 = vlaneseq
        %v2153 = vshrl.u32 %v2152, 7
        %v2154 = vsub.s32 %v2151, %v2153
        %v2155 = vrot.slane %v1247, %v2154
        %v2157 = vunpack.c.l.s4 1935823168
        %v2158 = vunpack.c.0.s8 %v2157
        %v2159 = vlaneseq
        %v2160 = vshrl.u32 %v2159, 7
        %v2161 = vsub.s32 %v2158, %v2160
        %v2162 = vrot.slane %v2155, %v2161
        %v2164 = vunpack.c.l.s4 1935823168
        %v2165 = vunpack.c.0.s8 %v2164
        %v2166 = vlaneseq
        %v2167 = vshrl.u32 %v2166, 7
        %v2168 = vsub.s32 %v2165, %v2167
        %v2169 = vrot.slane %v1248, %v2168
        %v2171 = vunpack.c.l.s4 1935823168
        %v2172 = vunpack.c.0.s8 %v2171
        %v2173 = vlaneseq
        %v2174 = vshrl.u32 %v2173, 7
        %v2175 = vsub.s32 %v2172, %v2174
        %v2176 = vrot.slane %v2169, %v2175
        %v2178 = vunpack.c.l.s4 1935823168
        %v2179 = vunpack.c.0.s8 %v2178
        %v2180 = vlaneseq
        %v2181 = vshrl.u32 %v2180, 7
        %v2182 = vsub.s32 %v2179, %v2181
        %v2183 = vrot.slane %v1311, %v2182
        %v2185 = vunpack.c.l.s4 1935823168
        %v2186 = vunpack.c.0.s8 %v2185
        %v2187 = vlaneseq
        %v2188 = vshrl.u32 %v2187, 7
        %v2189 = vsub.s32 %v2186, %v2188
        %v2190 = vrot.slane %v2183, %v2189
        %v2192 = vunpack.c.l.s4 1935823168
        %v2193 = vunpack.c.0.s8 %v2192
        %v2194 = vlaneseq
        %v2195 = vshrl.u32 %v2194, 7
        %v2196 = vsub.s32 %v2193, %v2195
        %v2197 = vrot.slane %v1318, %v2196
        %v2199 = vunpack.c.l.s4 1935823168
        %v2200 = vunpack.c.0.s8 %v2199
        %v2201 = vlaneseq
        %v2202 = vshrl.u32 %v2201, 7
        %v2203 = vsub.s32 %v2200, %v2202
        %v2204 = vrot.slane %v2197, %v2203
        %v2206 = vunpack.c.l.s4 1935823168
        %v2207 = vunpack.c.0.s8 %v2206
        %v2208 = vlaneseq
        %v2209 = vshrl.u32 %v2208, 7
        %v2210 = vsub.s32 %v2207, %v2209
        %v2211 = vrot.slane %v1319, %v2210
        %v2213 = vunpack.c.l.s4 1935823168
        %v2214 = vunpack.c.0.s8 %v2213
        %v2215 = vlaneseq
        %v2216 = vshrl.u32 %v2215, 7
        %v2217 = vsub.s32 %v2214, %v2216
        %v2218 = vrot.slane %v2211, %v2217
        %v2220 = vunpack.c.l.s4 1935823168
        %v2221 = vunpack.c.0.s8 %v2220
        %v2222 = vlaneseq
        %v2223 = vshrl.u32 %v2222, 7
        %v2224 = vsub.s32 %v2221, %v2223
        %v2225 = vrot.slane %v1320, %v2224
        %v2227 = vunpack.c.l.s4 1935823168
        %v2228 = vunpack.c.0.s8 %v2227
        %v2229 = vlaneseq
        %v2230 = vshrl.u32 %v2229, 7
        %v2231 = vsub.s32 %v2228, %v2230
        %v2232 = vrot.slane %v2225, %v2231
        %v2234 = vunpack.c.l.s4 1935823168
        %v2235 = vunpack.c.0.s8 %v2234
        %v2236 = vlaneseq
        %v2237 = vshrl.u32 %v2236, 7
        %v2238 = vsub.s32 %v2235, %v2237
        %v2239 = vrot.slane %v1335, %v2238
        %v2241 = vunpack.c.l.s4 1935823168
        %v2242 = vunpack.c.0.s8 %v2241
        %v2243 = vlaneseq
        %v2244 = vshrl.u32 %v2243, 7
        %v2245 = vsub.s32 %v2242, %v2244
        %v2246 = vrot.slane %v2239, %v2245
        %v2248 = vunpack.c.l.s4 1935823168
        %v2249 = vunpack.c.0.s8 %v2248
        %v2250 = vlaneseq
        %v2251 = vshrl.u32 %v2250, 7
        %v2252 = vsub.s32 %v2249, %v2251
        %v2253 = vrot.slane %v1342, %v2252
        %v2255 = vunpack.c.l.s4 1935823168
        %v2256 = vunpack.c.0.s8 %v2255
        %v2257 = vlaneseq
        %v2258 = vshrl.u32 %v2257, 7
        %v2259 = vsub.s32 %v2256, %v2258
        %v2260 = vrot.slane %v2253, %v2259
        %v2262 = vunpack.c.l.s4 1935823168
        %v2263 = vunpack.c.0.s8 %v2262
        %v2264 = vlaneseq
        %v2265 = vshrl.u32 %v2264, 7
        %v2266 = vsub.s32 %v2263, %v2265
        %v2267 = vrot.slane %v1343, %v2266
        %v2269 = vunpack.c.l.s4 1935823168
        %v2270 = vunpack.c.0.s8 %v2269
        %v2271 = vlaneseq
        %v2272 = vshrl.u32 %v2271, 7
        %v2273 = vsub.s32 %v2270, %v2272
        %v2274 = vrot.slane %v2267, %v2273
        %v2276 = vunpack.c.l.s4 1935823168
        %v2277 = vunpack.c.0.s8 %v2276
        %v2278 = vlaneseq
        %v2279 = vshrl.u32 %v2278, 7
        %v2280 = vsub.s32 %v2277, %v2279
        %v2281 = vrot.slane %v1344, %v2280
        %v2283 = vunpack.c.l.s4 1935823168
        %v2284 = vunpack.c.0.s8 %v2283
        %v2285 = vlaneseq
        %v2286 = vshrl.u32 %v2285, 7
        %v2287 = vsub.s32 %v2284, %v2286
        %v2288 = vrot.slane %v2281, %v2287
        %v2289 = vunpack.c.l.b16 %v1406
        %v2290 = vunpack.c.l.b16 %v1420
        %v2291 = vunpack.c.l.b16 %v1434
        %v2292 = vunpack.c.l.b16 %v1448
        %v2293 = vunpack.c.l.b16 %v1462
        %v2294 = vunpack.c.l.b16 %v1476
        %v2295 = vunpack.c.l.b16 %v1490
        %v2296 = vunpack.c.l.b16 %v1504
        %v2297 = vunpack.c.l.b16 %v1518
        %v2298 = vunpack.c.l.b16 %v1532
        %v2299 = vunpack.c.l.b16 %v1546
        %v2300 = vunpack.c.l.b16 %v1560
        %v2301 = vunpack.c.l.b16 %v1574
        %v2302 = vunpack.c.l.b16 %v1588
        %v2303 = vunpack.c.l.b16 %v1602
        %v2304 = vunpack.c.l.b16 %v1616
        %v2305 = vunpack.c.l.b16 %v1630
        %v2306 = vunpack.c.l.b16 %v1644
        %v2307 = vunpack.c.l.b16 %v1658
        %v2308 = vunpack.c.l.b16 %v1672
        %v2309 = vunpack.c.l.b16 %v1686
        %v2310 = vunpack.c.l.b16 %v1700
        %v2311 = vunpack.c.l.b16 %v1714
        %v2312 = vunpack.c.l.b16 %v1728
        %v2313 = vunpack.c.l.b16 %v1742
        %v2314 = vunpack.c.l.b16 %v1756
        %v2315 = vunpack.c.l.b16 %v1770
        %v2316 = vunpack.c.l.b16 %v1784
        %v2317 = vunpack.c.l.b16 %v1798
        %v2318 = vunpack.c.l.b16 %v1812
        %v2319 = vunpack.c.l.b16 %v1826
        %v2320 = vunpack.c.l.b16 %v1840
        %v2321 = vunpack.c.l.b16 %v1854
        %v2322 = vunpack.c.l.b16 %v1868
        %v2323 = vunpack.c.l.b16 %v1882
        %v2324 = vunpack.c.l.b16 %v1896
        %v2325 = vunpack.c.l.b16 %v1910
        %v2326 = vunpack.c.l.b16 %v1924
        %v2327 = vunpack.c.l.b16 %v1938
        %v2328 = vunpack.c.l.b16 %v1952
        %v2329 = vunpack.c.l.b16 %v1966
        %v2330 = vunpack.c.l.b16 %v1980
        %v2331 = vunpack.c.l.b16 %v1994
        %v2332 = vunpack.c.l.b16 %v2008
        %v2333 = vunpack.c.l.b16 %v2022
        %v2334 = vunpack.c.l.b16 %v2036
        %v2335 = vunpack.c.l.b16 %v2050
        %v2336 = vunpack.c.l.b16 %v2064
        %v2337 = vunpack.c.l.b16 %v2078
        %v2338 = vunpack.c.l.b16 %v2092
        %v2339 = vunpack.c.l.b16 %v2106
        %v2340 = vunpack.c.l.b16 %v2120
        %v2341 = vunpack.c.l.b16 %v2134
        %v2342 = vunpack.c.l.b16 %v2148
        %v2343 = vunpack.c.l.b16 %v2162
        %v2344 = vunpack.c.l.b16 %v2176
        %v2345 = vunpack.c.l.b16 %v2190
        %v2346 = vunpack.c.l.b16 %v2204
        %v2347 = vunpack.c.l.b16 %v2218
        %v2348 = vunpack.c.l.b16 %v2232
        %v2349 = vunpack.c.l.b16 %v2246
        %v2350 = vunpack.c.l.b16 %v2260
        %v2351 = vunpack.c.l.b16 %v2274
        %v2352 = vunpack.c.l.b16 %v2288
        %v2353 = vrot.slane %v2290, 7
        %vm2354 = vcmask 1041409
        %v2355 = vsel %vm2354, %v2353, %v2289
        %v2356 = vrot.slane %v2291, 6
        %vm2357 = vcmask 1042434
        %v2358 = vsel %vm2357, %v2356, %v2355
        %v2359 = vrot.slane %v2292, 5
        %vm2360 = vcmask 1043459
        %v2361 = vsel %vm2360, %v2359, %v2358
        %v2362 = vrot.slane %v2293, 4
        %vm2363 = vcmask 1044484
        %v2364 = vsel %vm2363, %v2362, %v2361
        %v2365 = vrot.slane %v2294, 3
        %vm2366 = vcmask 1045509
        %v2367 = vsel %vm2366, %v2365, %v2364
        %v2368 = vrot.slane %v2295, 2
        %vm2369 = vcmask 1046534
        %v2370 = vsel %vm2369, %v2368, %v2367
        %v2371 = vrot.slane %v2296, 1
        %vm2372 = vcmask 1047559
        %v2373 = vsel %vm2372, %v2371, %v2370
        %v2374 = vrot.slane %v2298, 7
        %v2375 = vsel %vm2354, %v2374, %v2297
        %v2376 = vrot.slane %v2299, 6
        %v2377 = vsel %vm2357, %v2376, %v2375
        %v2378 = vrot.slane %v2300, 5
        %v2379 = vsel %vm2360, %v2378, %v2377
        %v2380 = vrot.slane %v2301, 4
        %v2381 = vsel %vm2363, %v2380, %v2379
        %v2382 = vrot.slane %v2302, 3
        %v2383 = vsel %vm2366, %v2382, %v2381
        %v2384 = vrot.slane %v2303, 2
        %v2385 = vsel %vm2369, %v2384, %v2383
        %v2386 = vrot.slane %v2304, 1
        %v2387 = vsel %vm2372, %v2386, %v2385
        %v2388 = vrot.slane %v2306, 7
        %v2389 = vsel %vm2354, %v2388, %v2305
        %v2390 = vrot.slane %v2307, 6
        %v2391 = vsel %vm2357, %v2390, %v2389
        %v2392 = vrot.slane %v2308, 5
        %v2393 = vsel %vm2360, %v2392, %v2391
        %v2394 = vrot.slane %v2309, 4
        %v2395 = vsel %vm2363, %v2394, %v2393
        %v2396 = vrot.slane %v2310, 3
        %v2397 = vsel %vm2366, %v2396, %v2395
        %v2398 = vrot.slane %v2311, 2
        %v2399 = vsel %vm2369, %v2398, %v2397
        %v2400 = vrot.slane %v2312, 1
        %v2401 = vsel %vm2372, %v2400, %v2399
        %v2402 = vrot.slane %v2314, 7
        %v2403 = vsel %vm2354, %v2402, %v2313
        %v2404 = vrot.slane %v2315, 6
        %v2405 = vsel %vm2357, %v2404, %v2403
        %v2406 = vrot.slane %v2316, 5
        %v2407 = vsel %vm2360, %v2406, %v2405
        %v2408 = vrot.slane %v2317, 4
        %v2409 = vsel %vm2363, %v2408, %v2407
        %v2410 = vrot.slane %v2318, 3
        %v2411 = vsel %vm2366, %v2410, %v2409
        %v2412 = vrot.slane %v2319, 2
        %v2413 = vsel %vm2369, %v2412, %v2411
        %v2414 = vrot.slane %v2320, 1
        %v2415 = vsel %vm2372, %v2414, %v2413
        %v2416 = vrot.slane %v2322, 7
        %v2417 = vsel %vm2354, %v2416, %v2321
        %v2418 = vrot.slane %v2323, 6
        %v2419 = vsel %vm2357, %v2418, %v2417
        %v2420 = vrot.slane %v2324, 5
        %v2421 = vsel %vm2360, %v2420, %v2419
        %v2422 = vrot.slane %v2325, 4
        %v2423 = vsel %vm2363, %v2422, %v2421
        %v2424 = vrot.slane %v2326, 3
        %v2425 = vsel %vm2366, %v2424, %v2423
        %v2426 = vrot.slane %v2327, 2
        %v2427 = vsel %vm2369, %v2426, %v2425
        %v2428 = vrot.slane %v2328, 1
        %v2429 = vsel %vm2372, %v2428, %v2427
        %v2430 = vrot.slane %v2330, 7
        %v2431 = vsel %vm2354, %v2430, %v2329
        %v2432 = vrot.slane %v2331, 6
        %v2433 = vsel %vm2357, %v2432, %v2431
        %v2434 = vrot.slane %v2332, 5
        %v2435 = vsel %vm2360, %v2434, %v2433
        %v2436 = vrot.slane %v2333, 4
        %v2437 = vsel %vm2363, %v2436, %v2435
        %v2438 = vrot.slane %v2334, 3
        %v2439 = vsel %vm2366, %v2438, %v2437
        %v2440 = vrot.slane %v2335, 2
        %v2441 = vsel %vm2369, %v2440, %v2439
        %v2442 = vrot.slane %v2336, 1
        %v2443 = vsel %vm2372, %v2442, %v2441
        %v2444 = vrot.slane %v2338, 7
        %v2445 = vsel %vm2354, %v2444, %v2337
        %v2446 = vrot.slane %v2339, 6
        %v2447 = vsel %vm2357, %v2446, %v2445
        %v2448 = vrot.slane %v2340, 5
        %v2449 = vsel %vm2360, %v2448, %v2447
        %v2450 = vrot.slane %v2341, 4
        %v2451 = vsel %vm2363, %v2450, %v2449
        %v2452 = vrot.slane %v2342, 3
        %v2453 = vsel %vm2366, %v2452, %v2451
        %v2454 = vrot.slane %v2343, 2
        %v2455 = vsel %vm2369, %v2454, %v2453
        %v2456 = vrot.slane %v2344, 1
        %v2457 = vsel %vm2372, %v2456, %v2455
        %v2458 = vrot.slane %v2346, 7
        %v2459 = vsel %vm2354, %v2458, %v2345
        %v2460 = vrot.slane %v2347, 6
        %v2461 = vsel %vm2357, %v2460, %v2459
        %v2462 = vrot.slane %v2348, 5
        %v2463 = vsel %vm2360, %v2462, %v2461
        %v2464 = vrot.slane %v2349, 4
        %v2465 = vsel %vm2363, %v2464, %v2463
        %v2466 = vrot.slane %v2350, 3
        %v2467 = vsel %vm2366, %v2466, %v2465
        %v2468 = vrot.slane %v2351, 2
        %v2469 = vsel %vm2369, %v2468, %v2467
        %v2470 = vrot.slane %v2352, 1
        %v2471 = vsel %vm2372, %v2470, %v2469
        %v2472 = vpack.c.b16 %v2373, %v2373
        %v2473 = vpack.c.b16 %v2387, %v2387
        %v2474 = vpack.c.b16 %v2401, %v2401
        %v2475 = vpack.c.b16 %v2415, %v2415
        %v2476 = vpack.c.b16 %v2429, %v2429
        %v2477 = vpack.c.b16 %v2443, %v2443
        %v2478 = vpack.c.b16 %v2457, %v2457
        %v2479 = vpack.c.b16 %v2471, %v2471
        %2488 = vst [vmem:[%s533] sm:$0xf] %v2472
        %2489 = vst [vmem:[%s533 + $0x8] sm:$0xf] %v2473
        %2490 = vst [vmem:[%s533 + $0x10] sm:$0xf] %v2474
        %2491 = vst [vmem:[%s533 + $0x18] sm:$0xf] %v2475
        %2492 = vst [vmem:[%s533 + $0x20] sm:$0xf] %v2476
        %2493 = vst [vmem:[%s533 + $0x28] sm:$0xf] %v2477
        %2494 = vst [vmem:[%s533 + $0x30] sm:$0xf] %v2478
        %2495 = vst [vmem:[%s533 + $0x38] sm:$0xf] %v2479
        %v2496 = vsel %vm2357, %v2353, %v2289
        %v2497 = vsel %vm2360, %v2356, %v2496
        %v2498 = vsel %vm2363, %v2359, %v2497
        %v2499 = vsel %vm2366, %v2362, %v2498
        %v2500 = vsel %vm2369, %v2365, %v2499
        %v2501 = vsel %vm2372, %v2368, %v2500
        %v2502 = vsel %vm2357, %v2374, %v2297
        %v2503 = vsel %vm2360, %v2376, %v2502
        %v2504 = vsel %vm2363, %v2378, %v2503
        %v2505 = vsel %vm2366, %v2380, %v2504
        %v2506 = vsel %vm2369, %v2382, %v2505
        %v2507 = vsel %vm2372, %v2384, %v2506
        %v2508 = vsel %vm2357, %v2388, %v2305
        %v2509 = vsel %vm2360, %v2390, %v2508
        %v2510 = vsel %vm2363, %v2392, %v2509
        %v2511 = vsel %vm2366, %v2394, %v2510
        %v2512 = vsel %vm2369, %v2396, %v2511
        %v2513 = vsel %vm2372, %v2398, %v2512
        %v2514 = vsel %vm2357, %v2402, %v2313
        %v2515 = vsel %vm2360, %v2404, %v2514
        %v2516 = vsel %vm2363, %v2406, %v2515
        %v2517 = vsel %vm2366, %v2408, %v2516
        %v2518 = vsel %vm2369, %v2410, %v2517
        %v2519 = vsel %vm2372, %v2412, %v2518
        %v2520 = vsel %vm2357, %v2416, %v2321
        %v2521 = vsel %vm2360, %v2418, %v2520
        %v2522 = vsel %vm2363, %v2420, %v2521
        %v2523 = vsel %vm2366, %v2422, %v2522
        %v2524 = vsel %vm2369, %v2424, %v2523
        %v2525 = vsel %vm2372, %v2426, %v2524
        %v2526 = vsel %vm2357, %v2430, %v2329
        %v2527 = vsel %vm2360, %v2432, %v2526
        %v2528 = vsel %vm2363, %v2434, %v2527
        %v2529 = vsel %vm2366, %v2436, %v2528
        %v2530 = vsel %vm2369, %v2438, %v2529
        %v2531 = vsel %vm2372, %v2440, %v2530
        %v2532 = vsel %vm2357, %v2444, %v2337
        %v2533 = vsel %vm2360, %v2446, %v2532
        %v2534 = vsel %vm2363, %v2448, %v2533
        %v2535 = vsel %vm2366, %v2450, %v2534
        %v2536 = vsel %vm2369, %v2452, %v2535
        %v2537 = vsel %vm2372, %v2454, %v2536
        %v2538 = vsel %vm2357, %v2458, %v2345
        %v2539 = vsel %vm2360, %v2460, %v2538
        %v2540 = vsel %vm2363, %v2462, %v2539
        %v2541 = vsel %vm2366, %v2464, %v2540
        %v2542 = vsel %vm2369, %v2466, %v2541
        %v2543 = vsel %vm2372, %v2468, %v2542
        %v2544 = vpack.c.b16 %v2501, %v2501
        %v2545 = vpack.c.b16 %v2371, %v2371
        %v2546 = vpack.c.b16 %v2507, %v2507
        %v2547 = vpack.c.b16 %v2386, %v2386
        %v2548 = vpack.c.b16 %v2513, %v2513
        %v2549 = vpack.c.b16 %v2400, %v2400
        %v2550 = vpack.c.b16 %v2519, %v2519
        %v2551 = vpack.c.b16 %v2414, %v2414
        %v2552 = vpack.c.b16 %v2525, %v2525
        %v2553 = vpack.c.b16 %v2428, %v2428
        %v2554 = vpack.c.b16 %v2531, %v2531
        %v2555 = vpack.c.b16 %v2442, %v2442
        %v2556 = vpack.c.b16 %v2537, %v2537
        %v2557 = vpack.c.b16 %v2456, %v2456
        %v2558 = vpack.c.b16 %v2543, %v2543
        %v2559 = vpack.c.b16 %v2470, %v2470
        %vm2576 = vcmask 1043456
        %vm2577 = vsmask.f32 7938
        %vm2578 = vmand %vm2576, %vm2577
        %v2579 = vld [vmem:[%s505] sm:$0xf]
        %v2580 = vsel %vm2578, %v2544, %v2579
        %2581 = vst [vmem:[%s505] sm:$0xf] %v2580
        %v2582 = vld [vmem:[%s505 + $0x4] sm:$0x1]
        %v2583 = vsel %vm432, %v2545, %v2582
        %2584 = vst [vmem:[%s505 + $0x4] sm:$0x1] %v2583
        %v2585 = vld [vmem:[%s505 + $0x8] sm:$0xf]
        %v2586 = vsel %vm2578, %v2546, %v2585
        %2587 = vst [vmem:[%s505 + $0x8] sm:$0xf] %v2586
        %v2588 = vld [vmem:[%s505 + $0xc] sm:$0x1]
        %v2589 = vsel %vm432, %v2547, %v2588
        %2590 = vst [vmem:[%s505 + $0xc] sm:$0x1] %v2589
        %v2591 = vld [vmem:[%s505 + $0x10] sm:$0xf]
        %v2592 = vsel %vm2578, %v2548, %v2591
        %2593 = vst [vmem:[%s505 + $0x10] sm:$0xf] %v2592
        %v2594 = vld [vmem:[%s505 + $0x14] sm:$0x1]
        %v2595 = vsel %vm432, %v2549, %v2594
        %2596 = vst [vmem:[%s505 + $0x14] sm:$0x1] %v2595
        %v2597 = vld [vmem:[%s505 + $0x18] sm:$0xf]
        %v2598 = vsel %vm2578, %v2550, %v2597
        %2599 = vst [vmem:[%s505 + $0x18] sm:$0xf] %v2598
        %v2600 = vld [vmem:[%s505 + $0x1c] sm:$0x1]
        %v2601 = vsel %vm432, %v2551, %v2600
        %2602 = vst [vmem:[%s505 + $0x1c] sm:$0x1] %v2601
        %v2603 = vld [vmem:[%s505 + $0x20] sm:$0xf]
        %v2604 = vsel %vm2578, %v2552, %v2603
        %2605 = vst [vmem:[%s505 + $0x20] sm:$0xf] %v2604
        %v2606 = vld [vmem:[%s505 + $0x24] sm:$0x1]
        %v2607 = vsel %vm432, %v2553, %v2606
        %2608 = vst [vmem:[%s505 + $0x24] sm:$0x1] %v2607
        %v2609 = vld [vmem:[%s505 + $0x28] sm:$0xf]
        %v2610 = vsel %vm2578, %v2554, %v2609
        %2611 = vst [vmem:[%s505 + $0x28] sm:$0xf] %v2610
        %v2612 = vld [vmem:[%s505 + $0x2c] sm:$0x1]
        %v2613 = vsel %vm432, %v2555, %v2612
        %2614 = vst [vmem:[%s505 + $0x2c] sm:$0x1] %v2613
        %v2615 = vld [vmem:[%s505 + $0x30] sm:$0xf]
        %v2616 = vsel %vm2578, %v2556, %v2615
        %2617 = vst [vmem:[%s505 + $0x30] sm:$0xf] %v2616
        %v2618 = vld [vmem:[%s505 + $0x34] sm:$0x1]
        %v2619 = vsel %vm432, %v2557, %v2618
        %2620 = vst [vmem:[%s505 + $0x34] sm:$0x1] %v2619
        %v2621 = vld [vmem:[%s505 + $0x38] sm:$0xf]
        %v2622 = vsel %vm2578, %v2558, %v2621
        %2623 = vst [vmem:[%s505 + $0x38] sm:$0xf] %v2622
        %v2624 = vld [vmem:[%s505 + $0x3c] sm:$0x1]
        %v2625 = vsel %vm432, %v2559, %v2624
        %2626 = vst [vmem:[%s505 + $0x3c] sm:$0x1] %v2625
        %v2628 = vunpack.c.l.s4 1935823168
        %v2629 = vunpack.c.0.s8 %v2628
        %v2630 = vlaneseq
        %v2631 = vshrl.u32 %v2630, 7
        %v2632 = vsub.s32 %v2629, %v2631
        %v2633 = vrot.slane %v687, %v2632
        %v2635 = vunpack.c.l.s4 1935823168
        %v2636 = vunpack.c.0.s8 %v2635
        %v2637 = vlaneseq
        %v2638 = vshrl.u32 %v2637, 7
        %v2639 = vsub.s32 %v2636, %v2638
        %v2640 = vrot.slane %v2633, %v2639
        %v2642 = vunpack.c.l.s4 1935823168
        %v2643 = vunpack.c.0.s8 %v2642
        %v2644 = vlaneseq
        %v2645 = vshrl.u32 %v2644, 7
        %v2646 = vsub.s32 %v2643, %v2645
        %v2647 = vrot.slane %v694, %v2646
        %v2649 = vunpack.c.l.s4 1935823168
        %v2650 = vunpack.c.0.s8 %v2649
        %v2651 = vlaneseq
        %v2652 = vshrl.u32 %v2651, 7
        %v2653 = vsub.s32 %v2650, %v2652
        %v2654 = vrot.slane %v2647, %v2653
        %v2656 = vunpack.c.l.s4 1935823168
        %v2657 = vunpack.c.0.s8 %v2656
        %v2658 = vlaneseq
        %v2659 = vshrl.u32 %v2658, 7
        %v2660 = vsub.s32 %v2657, %v2659
        %v2661 = vrot.slane %v695, %v2660
        %v2663 = vunpack.c.l.s4 1935823168
        %v2664 = vunpack.c.0.s8 %v2663
        %v2665 = vlaneseq
        %v2666 = vshrl.u32 %v2665, 7
        %v2667 = vsub.s32 %v2664, %v2666
        %v2668 = vrot.slane %v2661, %v2667
        %v2670 = vunpack.c.l.s4 1935823168
        %v2671 = vunpack.c.0.s8 %v2670
        %v2672 = vlaneseq
        %v2673 = vshrl.u32 %v2672, 7
        %v2674 = vsub.s32 %v2671, %v2673
        %v2675 = vrot.slane %v696, %v2674
        %v2677 = vunpack.c.l.s4 1935823168
        %v2678 = vunpack.c.0.s8 %v2677
        %v2679 = vlaneseq
        %v2680 = vshrl.u32 %v2679, 7
        %v2681 = vsub.s32 %v2678, %v2680
        %v2682 = vrot.slane %v2675, %v2681
        %v2684 = vunpack.c.l.s4 1935823168
        %v2685 = vunpack.c.0.s8 %v2684
        %v2686 = vlaneseq
        %v2687 = vshrl.u32 %v2686, 7
        %v2688 = vsub.s32 %v2685, %v2687
        %v2689 = vrot.slane %v711, %v2688
        %v2691 = vunpack.c.l.s4 1935823168
        %v2692 = vunpack.c.0.s8 %v2691
        %v2693 = vlaneseq
        %v2694 = vshrl.u32 %v2693, 7
        %v2695 = vsub.s32 %v2692, %v2694
        %v2696 = vrot.slane %v2689, %v2695
        %v2698 = vunpack.c.l.s4 1935823168
        %v2699 = vunpack.c.0.s8 %v2698
        %v2700 = vlaneseq
        %v2701 = vshrl.u32 %v2700, 7
        %v2702 = vsub.s32 %v2699, %v2701
        %v2703 = vrot.slane %v718, %v2702
        %v2705 = vunpack.c.l.s4 1935823168
        %v2706 = vunpack.c.0.s8 %v2705
        %v2707 = vlaneseq
        %v2708 = vshrl.u32 %v2707, 7
        %v2709 = vsub.s32 %v2706, %v2708
        %v2710 = vrot.slane %v2703, %v2709
        %v2712 = vunpack.c.l.s4 1935823168
        %v2713 = vunpack.c.0.s8 %v2712
        %v2714 = vlaneseq
        %v2715 = vshrl.u32 %v2714, 7
        %v2716 = vsub.s32 %v2713, %v2715
        %v2717 = vrot.slane %v719, %v2716
        %v2719 = vunpack.c.l.s4 1935823168
        %v2720 = vunpack.c.0.s8 %v2719
        %v2721 = vlaneseq
        %v2722 = vshrl.u32 %v2721, 7
        %v2723 = vsub.s32 %v2720, %v2722
        %v2724 = vrot.slane %v2717, %v2723
        %v2726 = vunpack.c.l.s4 1935823168
        %v2727 = vunpack.c.0.s8 %v2726
        %v2728 = vlaneseq
        %v2729 = vshrl.u32 %v2728, 7
        %v2730 = vsub.s32 %v2727, %v2729
        %v2731 = vrot.slane %v720, %v2730
        %v2733 = vunpack.c.l.s4 1935823168
        %v2734 = vunpack.c.0.s8 %v2733
        %v2735 = vlaneseq
        %v2736 = vshrl.u32 %v2735, 7
        %v2737 = vsub.s32 %v2734, %v2736
        %v2738 = vrot.slane %v2731, %v2737
        %v2740 = vunpack.c.l.s4 1935823168
        %v2741 = vunpack.c.0.s8 %v2740
        %v2742 = vlaneseq
        %v2743 = vshrl.u32 %v2742, 7
        %v2744 = vsub.s32 %v2741, %v2743
        %v2745 = vrot.slane %v783, %v2744
        %v2747 = vunpack.c.l.s4 1935823168
        %v2748 = vunpack.c.0.s8 %v2747
        %v2749 = vlaneseq
        %v2750 = vshrl.u32 %v2749, 7
        %v2751 = vsub.s32 %v2748, %v2750
        %v2752 = vrot.slane %v2745, %v2751
        %v2754 = vunpack.c.l.s4 1935823168
        %v2755 = vunpack.c.0.s8 %v2754
        %v2756 = vlaneseq
        %v2757 = vshrl.u32 %v2756, 7
        %v2758 = vsub.s32 %v2755, %v2757
        %v2759 = vrot.slane %v790, %v2758
        %v2761 = vunpack.c.l.s4 1935823168
        %v2762 = vunpack.c.0.s8 %v2761
        %v2763 = vlaneseq
        %v2764 = vshrl.u32 %v2763, 7
        %v2765 = vsub.s32 %v2762, %v2764
        %v2766 = vrot.slane %v2759, %v2765
        %v2768 = vunpack.c.l.s4 1935823168
        %v2769 = vunpack.c.0.s8 %v2768
        %v2770 = vlaneseq
        %v2771 = vshrl.u32 %v2770, 7
        %v2772 = vsub.s32 %v2769, %v2771
        %v2773 = vrot.slane %v791, %v2772
        %v2775 = vunpack.c.l.s4 1935823168
        %v2776 = vunpack.c.0.s8 %v2775
        %v2777 = vlaneseq
        %v2778 = vshrl.u32 %v2777, 7
        %v2779 = vsub.s32 %v2776, %v2778
        %v2780 = vrot.slane %v2773, %v2779
        %v2782 = vunpack.c.l.s4 1935823168
        %v2783 = vunpack.c.0.s8 %v2782
        %v2784 = vlaneseq
        %v2785 = vshrl.u32 %v2784, 7
        %v2786 = vsub.s32 %v2783, %v2785
        %v2787 = vrot.slane %v792, %v2786
        %v2789 = vunpack.c.l.s4 1935823168
        %v2790 = vunpack.c.0.s8 %v2789
        %v2791 = vlaneseq
        %v2792 = vshrl.u32 %v2791, 7
        %v2793 = vsub.s32 %v2790, %v2792
        %v2794 = vrot.slane %v2787, %v2793
        %v2796 = vunpack.c.l.s4 1935823168
        %v2797 = vunpack.c.0.s8 %v2796
        %v2798 = vlaneseq
        %v2799 = vshrl.u32 %v2798, 7
        %v2800 = vsub.s32 %v2797, %v2799
        %v2801 = vrot.slane %v807, %v2800
        %v2803 = vunpack.c.l.s4 1935823168
        %v2804 = vunpack.c.0.s8 %v2803
        %v2805 = vlaneseq
        %v2806 = vshrl.u32 %v2805, 7
        %v2807 = vsub.s32 %v2804, %v2806
        %v2808 = vrot.slane %v2801, %v2807
        %v2810 = vunpack.c.l.s4 1935823168
        %v2811 = vunpack.c.0.s8 %v2810
        %v2812 = vlaneseq
        %v2813 = vshrl.u32 %v2812, 7
        %v2814 = vsub.s32 %v2811, %v2813
        %v2815 = vrot.slane %v814, %v2814
        %v2817 = vunpack.c.l.s4 1935823168
        %v2818 = vunpack.c.0.s8 %v2817
        %v2819 = vlaneseq
        %v2820 = vshrl.u32 %v2819, 7
        %v2821 = vsub.s32 %v2818, %v2820
        %v2822 = vrot.slane %v2815, %v2821
        %v2824 = vunpack.c.l.s4 1935823168
        %v2825 = vunpack.c.0.s8 %v2824
        %v2826 = vlaneseq
        %v2827 = vshrl.u32 %v2826, 7
        %v2828 = vsub.s32 %v2825, %v2827
        %v2829 = vrot.slane %v815, %v2828
        %v2831 = vunpack.c.l.s4 1935823168
        %v2832 = vunpack.c.0.s8 %v2831
        %v2833 = vlaneseq
        %v2834 = vshrl.u32 %v2833, 7
        %v2835 = vsub.s32 %v2832, %v2834
        %v2836 = vrot.slane %v2829, %v2835
        %v2838 = vunpack.c.l.s4 1935823168
        %v2839 = vunpack.c.0.s8 %v2838
        %v2840 = vlaneseq
        %v2841 = vshrl.u32 %v2840, 7
        %v2842 = vsub.s32 %v2839, %v2841
        %v2843 = vrot.slane %v816, %v2842
        %v2845 = vunpack.c.l.s4 1935823168
        %v2846 = vunpack.c.0.s8 %v2845
        %v2847 = vlaneseq
        %v2848 = vshrl.u32 %v2847, 7
        %v2849 = vsub.s32 %v2846, %v2848
        %v2850 = vrot.slane %v2843, %v2849
        %v2852 = vunpack.c.l.s4 1935823168
        %v2853 = vunpack.c.0.s8 %v2852
        %v2854 = vlaneseq
        %v2855 = vshrl.u32 %v2854, 7
        %v2856 = vsub.s32 %v2853, %v2855
        %v2857 = vrot.slane %v879, %v2856
        %v2859 = vunpack.c.l.s4 1935823168
        %v2860 = vunpack.c.0.s8 %v2859
        %v2861 = vlaneseq
        %v2862 = vshrl.u32 %v2861, 7
        %v2863 = vsub.s32 %v2860, %v2862
        %v2864 = vrot.slane %v2857, %v2863
        %v2866 = vunpack.c.l.s4 1935823168
        %v2867 = vunpack.c.0.s8 %v2866
        %v2868 = vlaneseq
        %v2869 = vshrl.u32 %v2868, 7
        %v2870 = vsub.s32 %v2867, %v2869
        %v2871 = vrot.slane %v886, %v2870
        %v2873 = vunpack.c.l.s4 1935823168
        %v2874 = vunpack.c.0.s8 %v2873
        %v2875 = vlaneseq
        %v2876 = vshrl.u32 %v2875, 7
        %v2877 = vsub.s32 %v2874, %v2876
        %v2878 = vrot.slane %v2871, %v2877
        %v2880 = vunpack.c.l.s4 1935823168
        %v2881 = vunpack.c.0.s8 %v2880
        %v2882 = vlaneseq
        %v2883 = vshrl.u32 %v2882, 7
        %v2884 = vsub.s32 %v2881, %v2883
        %v2885 = vrot.slane %v887, %v2884
        %v2887 = vunpack.c.l.s4 1935823168
        %v2888 = vunpack.c.0.s8 %v2887
        %v2889 = vlaneseq
        %v2890 = vshrl.u32 %v2889, 7
        %v2891 = vsub.s32 %v2888, %v2890
        %v2892 = vrot.slane %v2885, %v2891
        %v2894 = vunpack.c.l.s4 1935823168
        %v2895 = vunpack.c.0.s8 %v2894
        %v2896 = vlaneseq
        %v2897 = vshrl.u32 %v2896, 7
        %v2898 = vsub.s32 %v2895, %v2897
        %v2899 = vrot.slane %v888, %v2898
        %v2901 = vunpack.c.l.s4 1935823168
        %v2902 = vunpack.c.0.s8 %v2901
        %v2903 = vlaneseq
        %v2904 = vshrl.u32 %v2903, 7
        %v2905 = vsub.s32 %v2902, %v2904
        %v2906 = vrot.slane %v2899, %v2905
        %v2908 = vunpack.c.l.s4 1935823168
        %v2909 = vunpack.c.0.s8 %v2908
        %v2910 = vlaneseq
        %v2911 = vshrl.u32 %v2910, 7
        %v2912 = vsub.s32 %v2909, %v2911
        %v2913 = vrot.slane %v903, %v2912
        %v2915 = vunpack.c.l.s4 1935823168
        %v2916 = vunpack.c.0.s8 %v2915
        %v2917 = vlaneseq
        %v2918 = vshrl.u32 %v2917, 7
        %v2919 = vsub.s32 %v2916, %v2918
        %v2920 = vrot.slane %v2913, %v2919
        %v2922 = vunpack.c.l.s4 1935823168
        %v2923 = vunpack.c.0.s8 %v2922
        %v2924 = vlaneseq
        %v2925 = vshrl.u32 %v2924, 7
        %v2926 = vsub.s32 %v2923, %v2925
        %v2927 = vrot.slane %v910, %v2926
        %v2929 = vunpack.c.l.s4 1935823168
        %v2930 = vunpack.c.0.s8 %v2929
        %v2931 = vlaneseq
        %v2932 = vshrl.u32 %v2931, 7
        %v2933 = vsub.s32 %v2930, %v2932
        %v2934 = vrot.slane %v2927, %v2933
        %v2936 = vunpack.c.l.s4 1935823168
        %v2937 = vunpack.c.0.s8 %v2936
        %v2938 = vlaneseq
        %v2939 = vshrl.u32 %v2938, 7
        %v2940 = vsub.s32 %v2937, %v2939
        %v2941 = vrot.slane %v911, %v2940
        %v2943 = vunpack.c.l.s4 1935823168
        %v2944 = vunpack.c.0.s8 %v2943
        %v2945 = vlaneseq
        %v2946 = vshrl.u32 %v2945, 7
        %v2947 = vsub.s32 %v2944, %v2946
        %v2948 = vrot.slane %v2941, %v2947
        %v2950 = vunpack.c.l.s4 1935823168
        %v2951 = vunpack.c.0.s8 %v2950
        %v2952 = vlaneseq
        %v2953 = vshrl.u32 %v2952, 7
        %v2954 = vsub.s32 %v2951, %v2953
        %v2955 = vrot.slane %v912, %v2954
        %v2957 = vunpack.c.l.s4 1935823168
        %v2958 = vunpack.c.0.s8 %v2957
        %v2959 = vlaneseq
        %v2960 = vshrl.u32 %v2959, 7
        %v2961 = vsub.s32 %v2958, %v2960
        %v2962 = vrot.slane %v2955, %v2961
        %v2964 = vunpack.c.l.s4 1935823168
        %v2965 = vunpack.c.0.s8 %v2964
        %v2966 = vlaneseq
        %v2967 = vshrl.u32 %v2966, 7
        %v2968 = vsub.s32 %v2965, %v2967
        %v2969 = vrot.slane %v975, %v2968
        %v2971 = vunpack.c.l.s4 1935823168
        %v2972 = vunpack.c.0.s8 %v2971
        %v2973 = vlaneseq
        %v2974 = vshrl.u32 %v2973, 7
        %v2975 = vsub.s32 %v2972, %v2974
        %v2976 = vrot.slane %v2969, %v2975
        %v2978 = vunpack.c.l.s4 1935823168
        %v2979 = vunpack.c.0.s8 %v2978
        %v2980 = vlaneseq
        %v2981 = vshrl.u32 %v2980, 7
        %v2982 = vsub.s32 %v2979, %v2981
        %v2983 = vrot.slane %v982, %v2982
        %v2985 = vunpack.c.l.s4 1935823168
        %v2986 = vunpack.c.0.s8 %v2985
        %v2987 = vlaneseq
        %v2988 = vshrl.u32 %v2987, 7
        %v2989 = vsub.s32 %v2986, %v2988
        %v2990 = vrot.slane %v2983, %v2989
        %v2992 = vunpack.c.l.s4 1935823168
        %v2993 = vunpack.c.0.s8 %v2992
        %v2994 = vlaneseq
        %v2995 = vshrl.u32 %v2994, 7
        %v2996 = vsub.s32 %v2993, %v2995
        %v2997 = vrot.slane %v983, %v2996
        %v2999 = vunpack.c.l.s4 1935823168
        %v3000 = vunpack.c.0.s8 %v2999
        %v3001 = vlaneseq
        %v3002 = vshrl.u32 %v3001, 7
        %v3003 = vsub.s32 %v3000, %v3002
        %v3004 = vrot.slane %v2997, %v3003
        %v3006 = vunpack.c.l.s4 1935823168
        %v3007 = vunpack.c.0.s8 %v3006
        %v3008 = vlaneseq
        %v3009 = vshrl.u32 %v3008, 7
        %v3010 = vsub.s32 %v3007, %v3009
        %v3011 = vrot.slane %v984, %v3010
        %v3013 = vunpack.c.l.s4 1935823168
        %v3014 = vunpack.c.0.s8 %v3013
        %v3015 = vlaneseq
        %v3016 = vshrl.u32 %v3015, 7
        %v3017 = vsub.s32 %v3014, %v3016
        %v3018 = vrot.slane %v3011, %v3017
        %v3020 = vunpack.c.l.s4 1935823168
        %v3021 = vunpack.c.0.s8 %v3020
        %v3022 = vlaneseq
        %v3023 = vshrl.u32 %v3022, 7
        %v3024 = vsub.s32 %v3021, %v3023
        %v3025 = vrot.slane %v999, %v3024
        %v3027 = vunpack.c.l.s4 1935823168
        %v3028 = vunpack.c.0.s8 %v3027
        %v3029 = vlaneseq
        %v3030 = vshrl.u32 %v3029, 7
        %v3031 = vsub.s32 %v3028, %v3030
        %v3032 = vrot.slane %v3025, %v3031
        %v3034 = vunpack.c.l.s4 1935823168
        %v3035 = vunpack.c.0.s8 %v3034
        %v3036 = vlaneseq
        %v3037 = vshrl.u32 %v3036, 7
        %v3038 = vsub.s32 %v3035, %v3037
        %v3039 = vrot.slane %v1006, %v3038
        %v3041 = vunpack.c.l.s4 1935823168
        %v3042 = vunpack.c.0.s8 %v3041
        %v3043 = vlaneseq
        %v3044 = vshrl.u32 %v3043, 7
        %v3045 = vsub.s32 %v3042, %v3044
        %v3046 = vrot.slane %v3039, %v3045
        %v3048 = vunpack.c.l.s4 1935823168
        %v3049 = vunpack.c.0.s8 %v3048
        %v3050 = vlaneseq
        %v3051 = vshrl.u32 %v3050, 7
        %v3052 = vsub.s32 %v3049, %v3051
        %v3053 = vrot.slane %v1007, %v3052
        %v3055 = vunpack.c.l.s4 1935823168
        %v3056 = vunpack.c.0.s8 %v3055
        %v3057 = vlaneseq
        %v3058 = vshrl.u32 %v3057, 7
        %v3059 = vsub.s32 %v3056, %v3058
        %v3060 = vrot.slane %v3053, %v3059
        %v3062 = vunpack.c.l.s4 1935823168
        %v3063 = vunpack.c.0.s8 %v3062
        %v3064 = vlaneseq
        %v3065 = vshrl.u32 %v3064, 7
        %v3066 = vsub.s32 %v3063, %v3065
        %v3067 = vrot.slane %v1008, %v3066
        %v3069 = vunpack.c.l.s4 1935823168
        %v3070 = vunpack.c.0.s8 %v3069
        %v3071 = vlaneseq
        %v3072 = vshrl.u32 %v3071, 7
        %v3073 = vsub.s32 %v3070, %v3072
        %v3074 = vrot.slane %v3067, %v3073
        %v3076 = vunpack.c.l.s4 1935823168
        %v3077 = vunpack.c.0.s8 %v3076
        %v3078 = vlaneseq
        %v3079 = vshrl.u32 %v3078, 7
        %v3080 = vsub.s32 %v3077, %v3079
        %v3081 = vrot.slane %v1071, %v3080
        %v3083 = vunpack.c.l.s4 1935823168
        %v3084 = vunpack.c.0.s8 %v3083
        %v3085 = vlaneseq
        %v3086 = vshrl.u32 %v3085, 7
        %v3087 = vsub.s32 %v3084, %v3086
        %v3088 = vrot.slane %v3081, %v3087
        %v3090 = vunpack.c.l.s4 1935823168
        %v3091 = vunpack.c.0.s8 %v3090
        %v3092 = vlaneseq
        %v3093 = vshrl.u32 %v3092, 7
        %v3094 = vsub.s32 %v3091, %v3093
        %v3095 = vrot.slane %v1078, %v3094
        %v3097 = vunpack.c.l.s4 1935823168
        %v3098 = vunpack.c.0.s8 %v3097
        %v3099 = vlaneseq
        %v3100 = vshrl.u32 %v3099, 7
        %v3101 = vsub.s32 %v3098, %v3100
        %v3102 = vrot.slane %v3095, %v3101
        %v3104 = vunpack.c.l.s4 1935823168
        %v3105 = vunpack.c.0.s8 %v3104
        %v3106 = vlaneseq
        %v3107 = vshrl.u32 %v3106, 7
        %v3108 = vsub.s32 %v3105, %v3107
        %v3109 = vrot.slane %v1079, %v3108
        %v3111 = vunpack.c.l.s4 1935823168
        %v3112 = vunpack.c.0.s8 %v3111
        %v3113 = vlaneseq
        %v3114 = vshrl.u32 %v3113, 7
        %v3115 = vsub.s32 %v3112, %v3114
        %v3116 = vrot.slane %v3109, %v3115
        %v3118 = vunpack.c.l.s4 1935823168
        %v3119 = vunpack.c.0.s8 %v3118
        %v3120 = vlaneseq
        %v3121 = vshrl.u32 %v3120, 7
        %v3122 = vsub.s32 %v3119, %v3121
        %v3123 = vrot.slane %v1080, %v3122
        %v3125 = vunpack.c.l.s4 1935823168
        %v3126 = vunpack.c.0.s8 %v3125
        %v3127 = vlaneseq
        %v3128 = vshrl.u32 %v3127, 7
        %v3129 = vsub.s32 %v3126, %v3128
        %v3130 = vrot.slane %v3123, %v3129
        %v3132 = vunpack.c.l.s4 1935823168
        %v3133 = vunpack.c.0.s8 %v3132
        %v3134 = vlaneseq
        %v3135 = vshrl.u32 %v3134, 7
        %v3136 = vsub.s32 %v3133, %v3135
        %v3137 = vrot.slane %v1095, %v3136
        %v3139 = vunpack.c.l.s4 1935823168
        %v3140 = vunpack.c.0.s8 %v3139
        %v3141 = vlaneseq
        %v3142 = vshrl.u32 %v3141, 7
        %v3143 = vsub.s32 %v3140, %v3142
        %v3144 = vrot.slane %v3137, %v3143
        %v3146 = vunpack.c.l.s4 1935823168
        %v3147 = vunpack.c.0.s8 %v3146
        %v3148 = vlaneseq
        %v3149 = vshrl.u32 %v3148, 7
        %v3150 = vsub.s32 %v3147, %v3149
        %v3151 = vrot.slane %v1102, %v3150
        %v3153 = vunpack.c.l.s4 1935823168
        %v3154 = vunpack.c.0.s8 %v3153
        %v3155 = vlaneseq
        %v3156 = vshrl.u32 %v3155, 7
        %v3157 = vsub.s32 %v3154, %v3156
        %v3158 = vrot.slane %v3151, %v3157
        %v3160 = vunpack.c.l.s4 1935823168
        %v3161 = vunpack.c.0.s8 %v3160
        %v3162 = vlaneseq
        %v3163 = vshrl.u32 %v3162, 7
        %v3164 = vsub.s32 %v3161, %v3163
        %v3165 = vrot.slane %v1103, %v3164
        %v3167 = vunpack.c.l.s4 1935823168
        %v3168 = vunpack.c.0.s8 %v3167
        %v3169 = vlaneseq
        %v3170 = vshrl.u32 %v3169, 7
        %v3171 = vsub.s32 %v3168, %v3170
        %v3172 = vrot.slane %v3165, %v3171
        %v3174 = vunpack.c.l.s4 1935823168
        %v3175 = vunpack.c.0.s8 %v3174
        %v3176 = vlaneseq
        %v3177 = vshrl.u32 %v3176, 7
        %v3178 = vsub.s32 %v3175, %v3177
        %v3179 = vrot.slane %v1104, %v3178
        %v3181 = vunpack.c.l.s4 1935823168
        %v3182 = vunpack.c.0.s8 %v3181
        %v3183 = vlaneseq
        %v3184 = vshrl.u32 %v3183, 7
        %v3185 = vsub.s32 %v3182, %v3184
        %v3186 = vrot.slane %v3179, %v3185
        %v3188 = vunpack.c.l.s4 1935823168
        %v3189 = vunpack.c.0.s8 %v3188
        %v3190 = vlaneseq
        %v3191 = vshrl.u32 %v3190, 7
        %v3192 = vsub.s32 %v3189, %v3191
        %v3193 = vrot.slane %v1167, %v3192
        %v3195 = vunpack.c.l.s4 1935823168
        %v3196 = vunpack.c.0.s8 %v3195
        %v3197 = vlaneseq
        %v3198 = vshrl.u32 %v3197, 7
        %v3199 = vsub.s32 %v3196, %v3198
        %v3200 = vrot.slane %v3193, %v3199
        %v3202 = vunpack.c.l.s4 1935823168
        %v3203 = vunpack.c.0.s8 %v3202
        %v3204 = vlaneseq
        %v3205 = vshrl.u32 %v3204, 7
        %v3206 = vsub.s32 %v3203, %v3205
        %v3207 = vrot.slane %v1174, %v3206
        %v3209 = vunpack.c.l.s4 1935823168
        %v3210 = vunpack.c.0.s8 %v3209
        %v3211 = vlaneseq
        %v3212 = vshrl.u32 %v3211, 7
        %v3213 = vsub.s32 %v3210, %v3212
        %v3214 = vrot.slane %v3207, %v3213
        %v3216 = vunpack.c.l.s4 1935823168
        %v3217 = vunpack.c.0.s8 %v3216
        %v3218 = vlaneseq
        %v3219 = vshrl.u32 %v3218, 7
        %v3220 = vsub.s32 %v3217, %v3219
        %v3221 = vrot.slane %v1175, %v3220
        %v3223 = vunpack.c.l.s4 1935823168
        %v3224 = vunpack.c.0.s8 %v3223
        %v3225 = vlaneseq
        %v3226 = vshrl.u32 %v3225, 7
        %v3227 = vsub.s32 %v3224, %v3226
        %v3228 = vrot.slane %v3221, %v3227
        %v3230 = vunpack.c.l.s4 1935823168
        %v3231 = vunpack.c.0.s8 %v3230
        %v3232 = vlaneseq
        %v3233 = vshrl.u32 %v3232, 7
        %v3234 = vsub.s32 %v3231, %v3233
        %v3235 = vrot.slane %v1176, %v3234
        %v3237 = vunpack.c.l.s4 1935823168
        %v3238 = vunpack.c.0.s8 %v3237
        %v3239 = vlaneseq
        %v3240 = vshrl.u32 %v3239, 7
        %v3241 = vsub.s32 %v3238, %v3240
        %v3242 = vrot.slane %v3235, %v3241
        %v3244 = vunpack.c.l.s4 1935823168
        %v3245 = vunpack.c.0.s8 %v3244
        %v3246 = vlaneseq
        %v3247 = vshrl.u32 %v3246, 7
        %v3248 = vsub.s32 %v3245, %v3247
        %v3249 = vrot.slane %v1191, %v3248
        %v3251 = vunpack.c.l.s4 1935823168
        %v3252 = vunpack.c.0.s8 %v3251
        %v3253 = vlaneseq
        %v3254 = vshrl.u32 %v3253, 7
        %v3255 = vsub.s32 %v3252, %v3254
        %v3256 = vrot.slane %v3249, %v3255
        %v3258 = vunpack.c.l.s4 1935823168
        %v3259 = vunpack.c.0.s8 %v3258
        %v3260 = vlaneseq
        %v3261 = vshrl.u32 %v3260, 7
        %v3262 = vsub.s32 %v3259, %v3261
        %v3263 = vrot.slane %v1198, %v3262
        %v3265 = vunpack.c.l.s4 1935823168
        %v3266 = vunpack.c.0.s8 %v3265
        %v3267 = vlaneseq
        %v3268 = vshrl.u32 %v3267, 7
        %v3269 = vsub.s32 %v3266, %v3268
        %v3270 = vrot.slane %v3263, %v3269
        %v3272 = vunpack.c.l.s4 1935823168
        %v3273 = vunpack.c.0.s8 %v3272
        %v3274 = vlaneseq
        %v3275 = vshrl.u32 %v3274, 7
        %v3276 = vsub.s32 %v3273, %v3275
        %v3277 = vrot.slane %v1199, %v3276
        %v3279 = vunpack.c.l.s4 1935823168
        %v3280 = vunpack.c.0.s8 %v3279
        %v3281 = vlaneseq
        %v3282 = vshrl.u32 %v3281, 7
        %v3283 = vsub.s32 %v3280, %v3282
        %v3284 = vrot.slane %v3277, %v3283
        %v3286 = vunpack.c.l.s4 1935823168
        %v3287 = vunpack.c.0.s8 %v3286
        %v3288 = vlaneseq
        %v3289 = vshrl.u32 %v3288, 7
        %v3290 = vsub.s32 %v3287, %v3289
        %v3291 = vrot.slane %v1200, %v3290
        %v3293 = vunpack.c.l.s4 1935823168
        %v3294 = vunpack.c.0.s8 %v3293
        %v3295 = vlaneseq
        %v3296 = vshrl.u32 %v3295, 7
        %v3297 = vsub.s32 %v3294, %v3296
        %v3298 = vrot.slane %v3291, %v3297
        %v3300 = vunpack.c.l.s4 1935823168
        %v3301 = vunpack.c.0.s8 %v3300
        %v3302 = vlaneseq
        %v3303 = vshrl.u32 %v3302, 7
        %v3304 = vsub.s32 %v3301, %v3303
        %v3305 = vrot.slane %v1263, %v3304
        %v3307 = vunpack.c.l.s4 1935823168
        %v3308 = vunpack.c.0.s8 %v3307
        %v3309 = vlaneseq
        %v3310 = vshrl.u32 %v3309, 7
        %v3311 = vsub.s32 %v3308, %v3310
        %v3312 = vrot.slane %v3305, %v3311
        %v3314 = vunpack.c.l.s4 1935823168
        %v3315 = vunpack.c.0.s8 %v3314
        %v3316 = vlaneseq
        %v3317 = vshrl.u32 %v3316, 7
        %v3318 = vsub.s32 %v3315, %v3317
        %v3319 = vrot.slane %v1270, %v3318
        %v3321 = vunpack.c.l.s4 1935823168
        %v3322 = vunpack.c.0.s8 %v3321
        %v3323 = vlaneseq
        %v3324 = vshrl.u32 %v3323, 7
        %v3325 = vsub.s32 %v3322, %v3324
        %v3326 = vrot.slane %v3319, %v3325
        %v3328 = vunpack.c.l.s4 1935823168
        %v3329 = vunpack.c.0.s8 %v3328
        %v3330 = vlaneseq
        %v3331 = vshrl.u32 %v3330, 7
        %v3332 = vsub.s32 %v3329, %v3331
        %v3333 = vrot.slane %v1271, %v3332
        %v3335 = vunpack.c.l.s4 1935823168
        %v3336 = vunpack.c.0.s8 %v3335
        %v3337 = vlaneseq
        %v3338 = vshrl.u32 %v3337, 7
        %v3339 = vsub.s32 %v3336, %v3338
        %v3340 = vrot.slane %v3333, %v3339
        %v3342 = vunpack.c.l.s4 1935823168
        %v3343 = vunpack.c.0.s8 %v3342
        %v3344 = vlaneseq
        %v3345 = vshrl.u32 %v3344, 7
        %v3346 = vsub.s32 %v3343, %v3345
        %v3347 = vrot.slane %v1272, %v3346
        %v3349 = vunpack.c.l.s4 1935823168
        %v3350 = vunpack.c.0.s8 %v3349
        %v3351 = vlaneseq
        %v3352 = vshrl.u32 %v3351, 7
        %v3353 = vsub.s32 %v3350, %v3352
        %v3354 = vrot.slane %v3347, %v3353
        %v3356 = vunpack.c.l.s4 1935823168
        %v3357 = vunpack.c.0.s8 %v3356
        %v3358 = vlaneseq
        %v3359 = vshrl.u32 %v3358, 7
        %v3360 = vsub.s32 %v3357, %v3359
        %v3361 = vrot.slane %v1287, %v3360
        %v3363 = vunpack.c.l.s4 1935823168
        %v3364 = vunpack.c.0.s8 %v3363
        %v3365 = vlaneseq
        %v3366 = vshrl.u32 %v3365, 7
        %v3367 = vsub.s32 %v3364, %v3366
        %v3368 = vrot.slane %v3361, %v3367
        %v3370 = vunpack.c.l.s4 1935823168
        %v3371 = vunpack.c.0.s8 %v3370
        %v3372 = vlaneseq
        %v3373 = vshrl.u32 %v3372, 7
        %v3374 = vsub.s32 %v3371, %v3373
        %v3375 = vrot.slane %v1294, %v3374
        %v3377 = vunpack.c.l.s4 1935823168
        %v3378 = vunpack.c.0.s8 %v3377
        %v3379 = vlaneseq
        %v3380 = vshrl.u32 %v3379, 7
        %v3381 = vsub.s32 %v3378, %v3380
        %v3382 = vrot.slane %v3375, %v3381
        %v3384 = vunpack.c.l.s4 1935823168
        %v3385 = vunpack.c.0.s8 %v3384
        %v3386 = vlaneseq
        %v3387 = vshrl.u32 %v3386, 7
        %v3388 = vsub.s32 %v3385, %v3387
        %v3389 = vrot.slane %v1295, %v3388
        %v3391 = vunpack.c.l.s4 1935823168
        %v3392 = vunpack.c.0.s8 %v3391
        %v3393 = vlaneseq
        %v3394 = vshrl.u32 %v3393, 7
        %v3395 = vsub.s32 %v3392, %v3394
        %v3396 = vrot.slane %v3389, %v3395
        %v3398 = vunpack.c.l.s4 1935823168
        %v3399 = vunpack.c.0.s8 %v3398
        %v3400 = vlaneseq
        %v3401 = vshrl.u32 %v3400, 7
        %v3402 = vsub.s32 %v3399, %v3401
        %v3403 = vrot.slane %v1296, %v3402
        %v3405 = vunpack.c.l.s4 1935823168
        %v3406 = vunpack.c.0.s8 %v3405
        %v3407 = vlaneseq
        %v3408 = vshrl.u32 %v3407, 7
        %v3409 = vsub.s32 %v3406, %v3408
        %v3410 = vrot.slane %v3403, %v3409
        %v3412 = vunpack.c.l.s4 1935823168
        %v3413 = vunpack.c.0.s8 %v3412
        %v3414 = vlaneseq
        %v3415 = vshrl.u32 %v3414, 7
        %v3416 = vsub.s32 %v3413, %v3415
        %v3417 = vrot.slane %v1359, %v3416
        %v3419 = vunpack.c.l.s4 1935823168
        %v3420 = vunpack.c.0.s8 %v3419
        %v3421 = vlaneseq
        %v3422 = vshrl.u32 %v3421, 7
        %v3423 = vsub.s32 %v3420, %v3422
        %v3424 = vrot.slane %v3417, %v3423
        %v3426 = vunpack.c.l.s4 1935823168
        %v3427 = vunpack.c.0.s8 %v3426
        %v3428 = vlaneseq
        %v3429 = vshrl.u32 %v3428, 7
        %v3430 = vsub.s32 %v3427, %v3429
        %v3431 = vrot.slane %v1366, %v3430
        %v3433 = vunpack.c.l.s4 1935823168
        %v3434 = vunpack.c.0.s8 %v3433
        %v3435 = vlaneseq
        %v3436 = vshrl.u32 %v3435, 7
        %v3437 = vsub.s32 %v3434, %v3436
        %v3438 = vrot.slane %v3431, %v3437
        %v3440 = vunpack.c.l.s4 1935823168
        %v3441 = vunpack.c.0.s8 %v3440
        %v3442 = vlaneseq
        %v3443 = vshrl.u32 %v3442, 7
        %v3444 = vsub.s32 %v3441, %v3443
        %v3445 = vrot.slane %v1367, %v3444
        %v3447 = vunpack.c.l.s4 1935823168
        %v3448 = vunpack.c.0.s8 %v3447
        %v3449 = vlaneseq
        %v3450 = vshrl.u32 %v3449, 7
        %v3451 = vsub.s32 %v3448, %v3450
        %v3452 = vrot.slane %v3445, %v3451
        %v3454 = vunpack.c.l.s4 1935823168
        %v3455 = vunpack.c.0.s8 %v3454
        %v3456 = vlaneseq
        %v3457 = vshrl.u32 %v3456, 7
        %v3458 = vsub.s32 %v3455, %v3457
        %v3459 = vrot.slane %v1368, %v3458
        %v3461 = vunpack.c.l.s4 1935823168
        %v3462 = vunpack.c.0.s8 %v3461
        %v3463 = vlaneseq
        %v3464 = vshrl.u32 %v3463, 7
        %v3465 = vsub.s32 %v3462, %v3464
        %v3466 = vrot.slane %v3459, %v3465
        %v3468 = vunpack.c.l.s4 1935823168
        %v3469 = vunpack.c.0.s8 %v3468
        %v3470 = vlaneseq
        %v3471 = vshrl.u32 %v3470, 7
        %v3472 = vsub.s32 %v3469, %v3471
        %v3473 = vrot.slane %v1383, %v3472
        %v3475 = vunpack.c.l.s4 1935823168
        %v3476 = vunpack.c.0.s8 %v3475
        %v3477 = vlaneseq
        %v3478 = vshrl.u32 %v3477, 7
        %v3479 = vsub.s32 %v3476, %v3478
        %v3480 = vrot.slane %v3473, %v3479
        %v3482 = vunpack.c.l.s4 1935823168
        %v3483 = vunpack.c.0.s8 %v3482
        %v3484 = vlaneseq
        %v3485 = vshrl.u32 %v3484, 7
        %v3486 = vsub.s32 %v3483, %v3485
        %v3487 = vrot.slane %v1390, %v3486
        %v3489 = vunpack.c.l.s4 1935823168
        %v3490 = vunpack.c.0.s8 %v3489
        %v3491 = vlaneseq
        %v3492 = vshrl.u32 %v3491, 7
        %v3493 = vsub.s32 %v3490, %v3492
        %v3494 = vrot.slane %v3487, %v3493
        %v3496 = vunpack.c.l.s4 1935823168
        %v3497 = vunpack.c.0.s8 %v3496
        %v3498 = vlaneseq
        %v3499 = vshrl.u32 %v3498, 7
        %v3500 = vsub.s32 %v3497, %v3499
        %v3501 = vrot.slane %v1391, %v3500
        %v3503 = vunpack.c.l.s4 1935823168
        %v3504 = vunpack.c.0.s8 %v3503
        %v3505 = vlaneseq
        %v3506 = vshrl.u32 %v3505, 7
        %v3507 = vsub.s32 %v3504, %v3506
        %v3508 = vrot.slane %v3501, %v3507
        %v3510 = vunpack.c.l.s4 1935823168
        %v3511 = vunpack.c.0.s8 %v3510
        %v3512 = vlaneseq
        %v3513 = vshrl.u32 %v3512, 7
        %v3514 = vsub.s32 %v3511, %v3513
        %v3515 = vrot.slane %v1392, %v3514
        %v3517 = vunpack.c.l.s4 1935823168
        %v3518 = vunpack.c.0.s8 %v3517
        %v3519 = vlaneseq
        %v3520 = vshrl.u32 %v3519, 7
        %v3521 = vsub.s32 %v3518, %v3520
        %v3522 = vrot.slane %v3515, %v3521
        %v3523 = vunpack.c.l.b16 %v2640
        %v3524 = vunpack.c.l.b16 %v2654
        %v3525 = vunpack.c.l.b16 %v2668
        %v3526 = vunpack.c.l.b16 %v2682
        %v3527 = vunpack.c.l.b16 %v2696
        %v3528 = vunpack.c.l.b16 %v2710
        %v3529 = vunpack.c.l.b16 %v2724
        %v3530 = vunpack.c.l.b16 %v2738
        %v3531 = vunpack.c.l.b16 %v2752
        %v3532 = vunpack.c.l.b16 %v2766
        %v3533 = vunpack.c.l.b16 %v2780
        %v3534 = vunpack.c.l.b16 %v2794
        %v3535 = vunpack.c.l.b16 %v2808
        %v3536 = vunpack.c.l.b16 %v2822
        %v3537 = vunpack.c.l.b16 %v2836
        %v3538 = vunpack.c.l.b16 %v2850
        %v3539 = vunpack.c.l.b16 %v2864
        %v3540 = vunpack.c.l.b16 %v2878
        %v3541 = vunpack.c.l.b16 %v2892
        %v3542 = vunpack.c.l.b16 %v2906
        %v3543 = vunpack.c.l.b16 %v2920
        %v3544 = vunpack.c.l.b16 %v2934
        %v3545 = vunpack.c.l.b16 %v2948
        %v3546 = vunpack.c.l.b16 %v2962
        %v3547 = vunpack.c.l.b16 %v2976
        %v3548 = vunpack.c.l.b16 %v2990
        %v3549 = vunpack.c.l.b16 %v3004
        %v3550 = vunpack.c.l.b16 %v3018
        %v3551 = vunpack.c.l.b16 %v3032
        %v3552 = vunpack.c.l.b16 %v3046
        %v3553 = vunpack.c.l.b16 %v3060
        %v3554 = vunpack.c.l.b16 %v3074
        %v3555 = vunpack.c.l.b16 %v3088
        %v3556 = vunpack.c.l.b16 %v3102
        %v3557 = vunpack.c.l.b16 %v3116
        %v3558 = vunpack.c.l.b16 %v3130
        %v3559 = vunpack.c.l.b16 %v3144
        %v3560 = vunpack.c.l.b16 %v3158
        %v3561 = vunpack.c.l.b16 %v3172
        %v3562 = vunpack.c.l.b16 %v3186
        %v3563 = vunpack.c.l.b16 %v3200
        %v3564 = vunpack.c.l.b16 %v3214
        %v3565 = vunpack.c.l.b16 %v3228
        %v3566 = vunpack.c.l.b16 %v3242
        %v3567 = vunpack.c.l.b16 %v3256
        %v3568 = vunpack.c.l.b16 %v3270
        %v3569 = vunpack.c.l.b16 %v3284
        %v3570 = vunpack.c.l.b16 %v3298
        %v3571 = vunpack.c.l.b16 %v3312
        %v3572 = vunpack.c.l.b16 %v3326
        %v3573 = vunpack.c.l.b16 %v3340
        %v3574 = vunpack.c.l.b16 %v3354
        %v3575 = vunpack.c.l.b16 %v3368
        %v3576 = vunpack.c.l.b16 %v3382
        %v3577 = vunpack.c.l.b16 %v3396
        %v3578 = vunpack.c.l.b16 %v3410
        %v3579 = vunpack.c.l.b16 %v3424
        %v3580 = vunpack.c.l.b16 %v3438
        %v3581 = vunpack.c.l.b16 %v3452
        %v3582 = vunpack.c.l.b16 %v3466
        %v3583 = vunpack.c.l.b16 %v3480
        %v3584 = vunpack.c.l.b16 %v3494
        %v3585 = vunpack.c.l.b16 %v3508
        %v3586 = vunpack.c.l.b16 %v3522
        %v3587 = vrot.slane %v3524, 7
        %v3588 = vsel %vm2354, %v3587, %v3523
        %v3589 = vrot.slane %v3525, 6
        %v3590 = vsel %vm2357, %v3589, %v3588
        %v3591 = vrot.slane %v3526, 5
        %v3592 = vsel %vm2360, %v3591, %v3590
        %v3593 = vrot.slane %v3527, 4
        %v3594 = vsel %vm2363, %v3593, %v3592
        %v3595 = vrot.slane %v3528, 3
        %v3596 = vsel %vm2366, %v3595, %v3594
        %v3597 = vrot.slane %v3529, 2
        %v3598 = vsel %vm2369, %v3597, %v3596
        %v3599 = vrot.slane %v3530, 1
        %v3600 = vsel %vm2372, %v3599, %v3598
        %v3601 = vrot.slane %v3532, 7
        %v3602 = vsel %vm2354, %v3601, %v3531
        %v3603 = vrot.slane %v3533, 6
        %v3604 = vsel %vm2357, %v3603, %v3602
        %v3605 = vrot.slane %v3534, 5
        %v3606 = vsel %vm2360, %v3605, %v3604
        %v3607 = vrot.slane %v3535, 4
        %v3608 = vsel %vm2363, %v3607, %v3606
        %v3609 = vrot.slane %v3536, 3
        %v3610 = vsel %vm2366, %v3609, %v3608
        %v3611 = vrot.slane %v3537, 2
        %v3612 = vsel %vm2369, %v3611, %v3610
        %v3613 = vrot.slane %v3538, 1
        %v3614 = vsel %vm2372, %v3613, %v3612
        %v3615 = vrot.slane %v3540, 7
        %v3616 = vsel %vm2354, %v3615, %v3539
        %v3617 = vrot.slane %v3541, 6
        %v3618 = vsel %vm2357, %v3617, %v3616
        %v3619 = vrot.slane %v3542, 5
        %v3620 = vsel %vm2360, %v3619, %v3618
        %v3621 = vrot.slane %v3543, 4
        %v3622 = vsel %vm2363, %v3621, %v3620
        %v3623 = vrot.slane %v3544, 3
        %v3624 = vsel %vm2366, %v3623, %v3622
        %v3625 = vrot.slane %v3545, 2
        %v3626 = vsel %vm2369, %v3625, %v3624
        %v3627 = vrot.slane %v3546, 1
        %v3628 = vsel %vm2372, %v3627, %v3626
        %v3629 = vrot.slane %v3548, 7
        %v3630 = vsel %vm2354, %v3629, %v3547
        %v3631 = vrot.slane %v3549, 6
        %v3632 = vsel %vm2357, %v3631, %v3630
        %v3633 = vrot.slane %v3550, 5
        %v3634 = vsel %vm2360, %v3633, %v3632
        %v3635 = vrot.slane %v3551, 4
        %v3636 = vsel %vm2363, %v3635, %v3634
        %v3637 = vrot.slane %v3552, 3
        %v3638 = vsel %vm2366, %v3637, %v3636
        %v3639 = vrot.slane %v3553, 2
        %v3640 = vsel %vm2369, %v3639, %v3638
        %v3641 = vrot.slane %v3554, 1
        %v3642 = vsel %vm2372, %v3641, %v3640
        %v3643 = vrot.slane %v3556, 7
        %v3644 = vsel %vm2354, %v3643, %v3555
        %v3645 = vrot.slane %v3557, 6
        %v3646 = vsel %vm2357, %v3645, %v3644
        %v3647 = vrot.slane %v3558, 5
        %v3648 = vsel %vm2360, %v3647, %v3646
        %v3649 = vrot.slane %v3559, 4
        %v3650 = vsel %vm2363, %v3649, %v3648
        %v3651 = vrot.slane %v3560, 3
        %v3652 = vsel %vm2366, %v3651, %v3650
        %v3653 = vrot.slane %v3561, 2
        %v3654 = vsel %vm2369, %v3653, %v3652
        %v3655 = vrot.slane %v3562, 1
        %v3656 = vsel %vm2372, %v3655, %v3654
        %v3657 = vrot.slane %v3564, 7
        %v3658 = vsel %vm2354, %v3657, %v3563
        %v3659 = vrot.slane %v3565, 6
        %v3660 = vsel %vm2357, %v3659, %v3658
        %v3661 = vrot.slane %v3566, 5
        %v3662 = vsel %vm2360, %v3661, %v3660
        %v3663 = vrot.slane %v3567, 4
        %v3664 = vsel %vm2363, %v3663, %v3662
        %v3665 = vrot.slane %v3568, 3
        %v3666 = vsel %vm2366, %v3665, %v3664
        %v3667 = vrot.slane %v3569, 2
        %v3668 = vsel %vm2369, %v3667, %v3666
        %v3669 = vrot.slane %v3570, 1
        %v3670 = vsel %vm2372, %v3669, %v3668
        %v3671 = vrot.slane %v3572, 7
        %v3672 = vsel %vm2354, %v3671, %v3571
        %v3673 = vrot.slane %v3573, 6
        %v3674 = vsel %vm2357, %v3673, %v3672
        %v3675 = vrot.slane %v3574, 5
        %v3676 = vsel %vm2360, %v3675, %v3674
        %v3677 = vrot.slane %v3575, 4
        %v3678 = vsel %vm2363, %v3677, %v3676
        %v3679 = vrot.slane %v3576, 3
        %v3680 = vsel %vm2366, %v3679, %v3678
        %v3681 = vrot.slane %v3577, 2
        %v3682 = vsel %vm2369, %v3681, %v3680
        %v3683 = vrot.slane %v3578, 1
        %v3684 = vsel %vm2372, %v3683, %v3682
        %v3685 = vrot.slane %v3580, 7
        %v3686 = vsel %vm2354, %v3685, %v3579
        %v3687 = vrot.slane %v3581, 6
        %v3688 = vsel %vm2357, %v3687, %v3686
        %v3689 = vrot.slane %v3582, 5
        %v3690 = vsel %vm2360, %v3689, %v3688
        %v3691 = vrot.slane %v3583, 4
        %v3692 = vsel %vm2363, %v3691, %v3690
        %v3693 = vrot.slane %v3584, 3
        %v3694 = vsel %vm2366, %v3693, %v3692
        %v3695 = vrot.slane %v3585, 2
        %v3696 = vsel %vm2369, %v3695, %v3694
        %v3697 = vrot.slane %v3586, 1
        %v3698 = vsel %vm2372, %v3697, %v3696
        %v3699 = vpack.c.b16 %v3600, %v3600
        %v3700 = vpack.c.b16 %v3614, %v3614
        %v3701 = vpack.c.b16 %v3628, %v3628
        %v3702 = vpack.c.b16 %v3642, %v3642
        %v3703 = vpack.c.b16 %v3656, %v3656
        %v3704 = vpack.c.b16 %v3670, %v3670
        %v3705 = vpack.c.b16 %v3684, %v3684
        %v3706 = vpack.c.b16 %v3698, %v3698
        %s3715 = scalar_lea.vmem [#allocation2], 80
        %3716 = vst [vmem:[%s3715] sm:$0xf] %v3699
        %3717 = vst [vmem:[%s3715 + $0x8] sm:$0xf] %v3700
        %3718 = vst [vmem:[%s3715 + $0x10] sm:$0xf] %v3701
        %3719 = vst [vmem:[%s3715 + $0x18] sm:$0xf] %v3702
        %3720 = vst [vmem:[%s3715 + $0x20] sm:$0xf] %v3703
        %3721 = vst [vmem:[%s3715 + $0x28] sm:$0xf] %v3704
        %3722 = vst [vmem:[%s3715 + $0x30] sm:$0xf] %v3705
        %3723 = vst [vmem:[%s3715 + $0x38] sm:$0xf] %v3706
        %v3724 = vsel %vm2357, %v3587, %v3523
        %v3725 = vsel %vm2360, %v3589, %v3724
        %v3726 = vsel %vm2363, %v3591, %v3725
        %v3727 = vsel %vm2366, %v3593, %v3726
        %v3728 = vsel %vm2369, %v3595, %v3727
        %v3729 = vsel %vm2372, %v3597, %v3728
        %v3730 = vsel %vm2357, %v3601, %v3531
        %v3731 = vsel %vm2360, %v3603, %v3730
        %v3732 = vsel %vm2363, %v3605, %v3731
        %v3733 = vsel %vm2366, %v3607, %v3732
        %v3734 = vsel %vm2369, %v3609, %v3733
        %v3735 = vsel %vm2372, %v3611, %v3734
        %v3736 = vsel %vm2357, %v3615, %v3539
        %v3737 = vsel %vm2360, %v3617, %v3736
        %v3738 = vsel %vm2363, %v3619, %v3737
        %v3739 = vsel %vm2366, %v3621, %v3738
        %v3740 = vsel %vm2369, %v3623, %v3739
        %v3741 = vsel %vm2372, %v3625, %v3740
        %v3742 = vsel %vm2357, %v3629, %v3547
        %v3743 = vsel %vm2360, %v3631, %v3742
        %v3744 = vsel %vm2363, %v3633, %v3743
        %v3745 = vsel %vm2366, %v3635, %v3744
        %v3746 = vsel %vm2369, %v3637, %v3745
        %v3747 = vsel %vm2372, %v3639, %v3746
        %v3748 = vsel %vm2357, %v3643, %v3555
        %v3749 = vsel %vm2360, %v3645, %v3748
        %v3750 = vsel %vm2363, %v3647, %v3749
        %v3751 = vsel %vm2366, %v3649, %v3750
        %v3752 = vsel %vm2369, %v3651, %v3751
        %v3753 = vsel %vm2372, %v3653, %v3752
        %v3754 = vsel %vm2357, %v3657, %v3563
        %v3755 = vsel %vm2360, %v3659, %v3754
        %v3756 = vsel %vm2363, %v3661, %v3755
        %v3757 = vsel %vm2366, %v3663, %v3756
        %v3758 = vsel %vm2369, %v3665, %v3757
        %v3759 = vsel %vm2372, %v3667, %v3758
        %v3760 = vsel %vm2357, %v3671, %v3571
        %v3761 = vsel %vm2360, %v3673, %v3760
        %v3762 = vsel %vm2363, %v3675, %v3761
        %v3763 = vsel %vm2366, %v3677, %v3762
        %v3764 = vsel %vm2369, %v3679, %v3763
        %v3765 = vsel %vm2372, %v3681, %v3764
        %v3766 = vsel %vm2357, %v3685, %v3579
        %v3767 = vsel %vm2360, %v3687, %v3766
        %v3768 = vsel %vm2363, %v3689, %v3767
        %v3769 = vsel %vm2366, %v3691, %v3768
        %v3770 = vsel %vm2369, %v3693, %v3769
        %v3771 = vsel %vm2372, %v3695, %v3770
        %v3772 = vpack.c.b16 %v3729, %v3729
        %v3773 = vpack.c.b16 %v3599, %v3599
        %v3774 = vpack.c.b16 %v3735, %v3735
        %v3775 = vpack.c.b16 %v3613, %v3613
        %v3776 = vpack.c.b16 %v3741, %v3741
        %v3777 = vpack.c.b16 %v3627, %v3627
        %v3778 = vpack.c.b16 %v3747, %v3747
        %v3779 = vpack.c.b16 %v3641, %v3641
        %v3780 = vpack.c.b16 %v3753, %v3753
        %v3781 = vpack.c.b16 %v3655, %v3655
        %v3782 = vpack.c.b16 %v3759, %v3759
        %v3783 = vpack.c.b16 %v3669, %v3669
        %v3784 = vpack.c.b16 %v3765, %v3765
        %v3785 = vpack.c.b16 %v3683, %v3683
        %v3786 = vpack.c.b16 %v3771, %v3771
        %v3787 = vpack.c.b16 %v3697, %v3697
        %s3804 = scalar_lea.vmem [#allocation2], 8
        %v3805 = vld [vmem:[%s3804] sm:$0xf]
        %v3806 = vsel %vm2578, %v3772, %v3805
        %3807 = vst [vmem:[%s3804] sm:$0xf] %v3806
        %v3808 = vld [vmem:[%s3804 + $0x4] sm:$0x1]
        %v3809 = vsel %vm432, %v3773, %v3808
        %3810 = vst [vmem:[%s3804 + $0x4] sm:$0x1] %v3809
        %v3811 = vld [vmem:[%s3804 + $0x8] sm:$0xf]
        %v3812 = vsel %vm2578, %v3774, %v3811
        %3813 = vst [vmem:[%s3804 + $0x8] sm:$0xf] %v3812
        %v3814 = vld [vmem:[%s3804 + $0xc] sm:$0x1]
        %v3815 = vsel %vm432, %v3775, %v3814
        %3816 = vst [vmem:[%s3804 + $0xc] sm:$0x1] %v3815
        %v3817 = vld [vmem:[%s3804 + $0x10] sm:$0xf]
        %v3818 = vsel %vm2578, %v3776, %v3817
        %3819 = vst [vmem:[%s3804 + $0x10] sm:$0xf] %v3818
        %v3820 = vld [vmem:[%s3804 + $0x14] sm:$0x1]
        %v3821 = vsel %vm432, %v3777, %v3820
        %3822 = vst [vmem:[%s3804 + $0x14] sm:$0x1] %v3821
        %v3823 = vld [vmem:[%s3804 + $0x18] sm:$0xf]
        %v3824 = vsel %vm2578, %v3778, %v3823
        %3825 = vst [vmem:[%s3804 + $0x18] sm:$0xf] %v3824
        %v3826 = vld [vmem:[%s3804 + $0x1c] sm:$0x1]
        %v3827 = vsel %vm432, %v3779, %v3826
        %3828 = vst [vmem:[%s3804 + $0x1c] sm:$0x1] %v3827
        %v3829 = vld [vmem:[%s3804 + $0x20] sm:$0xf]
        %v3830 = vsel %vm2578, %v3780, %v3829
        %3831 = vst [vmem:[%s3804 + $0x20] sm:$0xf] %v3830
        %v3832 = vld [vmem:[%s3804 + $0x24] sm:$0x1]
        %v3833 = vsel %vm432, %v3781, %v3832
        %3834 = vst [vmem:[%s3804 + $0x24] sm:$0x1] %v3833
        %v3835 = vld [vmem:[%s3804 + $0x28] sm:$0xf]
        %v3836 = vsel %vm2578, %v3782, %v3835
        %3837 = vst [vmem:[%s3804 + $0x28] sm:$0xf] %v3836
        %v3838 = vld [vmem:[%s3804 + $0x2c] sm:$0x1]
        %v3839 = vsel %vm432, %v3783, %v3838
        %3840 = vst [vmem:[%s3804 + $0x2c] sm:$0x1] %v3839
        %v3841 = vld [vmem:[%s3804 + $0x30] sm:$0xf]
        %v3842 = vsel %vm2578, %v3784, %v3841
        %3843 = vst [vmem:[%s3804 + $0x30] sm:$0xf] %v3842
        %v3844 = vld [vmem:[%s3804 + $0x34] sm:$0x1]
        %v3845 = vsel %vm432, %v3785, %v3844
        %3846 = vst [vmem:[%s3804 + $0x34] sm:$0x1] %v3845
        %v3847 = vld [vmem:[%s3804 + $0x38] sm:$0xf]
        %v3848 = vsel %vm2578, %v3786, %v3847
        %3849 = vst [vmem:[%s3804 + $0x38] sm:$0xf] %v3848
        %v3850 = vld [vmem:[%s3804 + $0x3c] sm:$0x1]
        %v3851 = vsel %vm432, %v3787, %v3850
        %3852 = vst [vmem:[%s3804 + $0x3c] sm:$0x1] %v3851
        %v3853 = vld [vmem:[#allocation2] sm:$0xf]
        %v3854 = vld [vmem:[#allocation2 + $0x8] sm:$0xf]
        %v3855 = vld [vmem:[#allocation2 + $0x10] sm:$0xf]
        %v3856 = vld [vmem:[#allocation2 + $0x18] sm:$0xf]
        %v3857 = vld [vmem:[#allocation2 + $0x20] sm:$0xf]
        %v3858 = vld [vmem:[#allocation2 + $0x28] sm:$0xf]
        %v3859 = vld [vmem:[#allocation2 + $0x30] sm:$0xf]
        %v3860 = vld [vmem:[#allocation2 + $0x38] sm:$0xf]
        %v3861 = vld [vmem:[%s1] sm:$0xf]
        %v3862 = vld [vmem:[%s1 + $0x4] sm:$0xf]
        %v3863 = vld [vmem:[%s1 + $0x8] sm:$0xf]
        %v3864 = vld [vmem:[%s1 + $0xc] sm:$0xf]
        %v3865 = vld [vmem:[%s1 + $0x10] sm:$0xf]
        %v3866 = vld [vmem:[%s1 + $0x14] sm:$0xf]
        %v3867 = vld [vmem:[%s1 + $0x18] sm:$0xf]
        %v3868 = vld [vmem:[%s1 + $0x1c] sm:$0xf]
        %v3869 = vld [vmem:[%s1 + $0x20] sm:$0xf]
        %v3870 = vld [vmem:[%s1 + $0x24] sm:$0xf]
        %v3871 = vld [vmem:[%s1 + $0x28] sm:$0xf]
        %v3872 = vld [vmem:[%s1 + $0x2c] sm:$0xf]
        %v3873 = vld [vmem:[%s1 + $0x30] sm:$0xf]
        %v3874 = vld [vmem:[%s1 + $0x34] sm:$0xf]
        %v3875 = vld [vmem:[%s1 + $0x38] sm:$0xf]
        %v3876 = vld [vmem:[%s1 + $0x3c] sm:$0xf]
        %v3877 = vld [vmem:[%s468] sm:$0xf]
        %v3878 = vld [vmem:[%s468 + $0x8] sm:$0xf]
        %v3879 = vld [vmem:[%s468 + $0x10] sm:$0xf]
        %v3880 = vld [vmem:[%s468 + $0x18] sm:$0xf]
        %v3881 = vld [vmem:[%s468 + $0x20] sm:$0xf]
        %v3882 = vld [vmem:[%s468 + $0x28] sm:$0xf]
        %v3883 = vld [vmem:[%s468 + $0x30] sm:$0xf]
        %v3884 = vld [vmem:[%s468 + $0x38] sm:$0xf]
        %s3885 = scalar_lea.vmem %s1, 64
        %v3886 = vld [vmem:[%s3885] sm:$0xf]
        %v3887 = vld [vmem:[%s3885 + $0x4] sm:$0xf]
        %v3888 = vld [vmem:[%s3885 + $0x8] sm:$0xf]
        %v3889 = vld [vmem:[%s3885 + $0xc] sm:$0xf]
        %v3890 = vld [vmem:[%s3885 + $0x10] sm:$0xf]
        %v3891 = vld [vmem:[%s3885 + $0x14] sm:$0xf]
        %v3892 = vld [vmem:[%s3885 + $0x18] sm:$0xf]
        %v3893 = vld [vmem:[%s3885 + $0x1c] sm:$0xf]
        %v3894 = vld [vmem:[%s3885 + $0x20] sm:$0xf]
        %v3895 = vld [vmem:[%s3885 + $0x24] sm:$0xf]
        %v3896 = vld [vmem:[%s3885 + $0x28] sm:$0xf]
        %v3897 = vld [vmem:[%s3885 + $0x2c] sm:$0xf]
        %v3898 = vld [vmem:[%s3885 + $0x30] sm:$0xf]
        %v3899 = vld [vmem:[%s3885 + $0x34] sm:$0xf]
        %v3900 = vld [vmem:[%s3885 + $0x38] sm:$0xf]
        %v3901 = vld [vmem:[%s3885 + $0x3c] sm:$0xf]
        %v3910 = vunpack.c.l.b16 %v3877
        %v3911 = vunpack.c.l.b16 %v3878
        %v3912 = vunpack.c.l.b16 %v3879
        %v3913 = vunpack.c.l.b16 %v3880
        %v3914 = vunpack.c.l.b16 %v3881
        %v3915 = vunpack.c.l.b16 %v3882
        %v3916 = vunpack.c.l.b16 %v3883
        %v3917 = vunpack.c.l.b16 %v3884
        %v3918 = vpack.c.b16 %v3911, %v3910
        %v3919 = vpack.c.b16 %v3913, %v3912
        %v3920 = vpack.c.b16 %v3915, %v3914
        %v3921 = vpack.c.b16 %v3917, %v3916
        %v3942 = vunpack.c.l.b16 %v3886
        %v3943 = vunpack.c.l.b16 %v3887
        %v3944 = vunpack.c.l.b16 %v3888
        %v3945 = vunpack.c.l.b16 %v3889
        %v3946 = vunpack.c.l.b16 %v3890
        %v3947 = vunpack.c.l.b16 %v3891
        %v3948 = vunpack.c.l.b16 %v3892
        %v3949 = vunpack.c.l.b16 %v3893
        %v3950 = vunpack.c.l.b16 %v3894
        %v3951 = vunpack.c.l.b16 %v3895
        %v3952 = vunpack.c.l.b16 %v3896
        %v3953 = vunpack.c.l.b16 %v3897
        %v3954 = vunpack.c.l.b16 %v3898
        %v3955 = vunpack.c.l.b16 %v3899
        %v3956 = vunpack.c.l.b16 %v3900
        %v3957 = vunpack.c.l.b16 %v3901
        %v3958 = vpack.c.b16 %v3943, %v3942
        %v3959 = vpack.c.b16 %v3945, %v3944
        %v3960 = vpack.c.b16 %v3947, %v3946
        %v3961 = vpack.c.b16 %v3949, %v3948
        %v3962 = vpack.c.b16 %v3951, %v3950
        %v3963 = vpack.c.b16 %v3953, %v3952
        %v3964 = vpack.c.b16 %v3955, %v3954
        %v3965 = vpack.c.b16 %v3957, %v3956
        %3974 = vmatprep.subr.bf16.mxu0 0
        %3975 = vmatpush1.bf16.msra.mxu0 %v3958
        %3976 = vmatprep.subr.bf16.mxu0 0
        %3977 = vmatpush1.bf16.msra.mxu0 %v3959
        %3978 = vmatprep.subr.bf16.mxu0 0
        %3979 = vmatpush1.bf16.msra.mxu0 %v3960
        %3980 = vmatprep.subr.bf16.mxu0 0
        %3981 = vmatpush1.bf16.msra.mxu0 %v3961
        %3982 = vmatprep.subr.bf16.mxu0 0
        %3983 = vmatpush1.bf16.msra.mxu0 %v3962
        %3984 = vmatprep.subr.bf16.mxu0 0
        %3985 = vmatpush1.bf16.msra.mxu0 %v3963
        %3986 = vmatprep.subr.bf16.mxu0 0
        %3987 = vmatpush1.bf16.msra.mxu0 %v3964
        %3988 = vmatprep.subr.bf16.mxu0 0
        %3989 = vmatpush1.bf16.msra.mxu0 %v3965
        %3990 = vmatprep.subr.bf16.mxu0 0
        %3991 = vmatpush1.bf16.msra.mxu0 0
        %3992 = vmatprep.subr.bf16.mxu0 0
        %3993 = vmatpush1.bf16.msra.mxu0 0
        %3994 = vmatprep.subr.bf16.mxu0 0
        %3995 = vmatpush1.bf16.msra.mxu0 0
        %3996 = vmatprep.subr.bf16.mxu0 0
        %3997 = vmatpush1.bf16.msra.mxu0 0
        %3998 = vmatprep.subr.bf16.mxu0 0
        %3999 = vmatpush1.bf16.msra.mxu0 0
        %4000 = vmatprep.subr.bf16.mxu0 0
        %4001 = vmatpush1.bf16.msra.mxu0 0
        %4002 = vmatprep.subr.bf16.mxu0 0
        %4003 = vmatpush1.bf16.msra.mxu0 0
        %4004 = vmatprep.subr.bf16.mxu0 0
        %4005 = vmatpush1.bf16.msra.mxu0 0
        %4006 = vmatprep.mubr.bf16.mxu0 0
        %4007 = vmatmul.mubr.bf16.gmra.mrb[0].mxu0 %v3918
        %v4008 = vpop.f32.mrb[0].mxu0
        %v4009 = vadd.f32 0.0, %v4008
        %v4010 = vpop.f32.mrb[0].mxu0
        %v4011 = vpop.f32.mrb[0].mxu0
        %v4012 = vadd.f32 0.0, %v4011
        %v4013 = vpop.f32.mrb[0].mxu0
        %4014 = vmatprep.mubr.bf16.mxu0 0
        %4015 = vmatmul.mubr.bf16.gmra.mrb[0].mxu0 %v3919
        %v4016 = vpop.f32.mrb[0].mxu0
        %v4017 = vadd.f32 0.0, %v4016
        %v4018 = vpop.f32.mrb[0].mxu0
        %v4019 = vpop.f32.mrb[0].mxu0
        %v4020 = vadd.f32 0.0, %v4019
        %v4021 = vpop.f32.mrb[0].mxu0
        %4022 = vmatprep.mubr.bf16.mxu0 0
        %4023 = vmatmul.mubr.bf16.gmra.mrb[0].mxu0 %v3920
        %v4024 = vpop.f32.mrb[0].mxu0
        %v4025 = vadd.f32 0.0, %v4024
        %v4026 = vpop.f32.mrb[0].mxu0
        %v4027 = vpop.f32.mrb[0].mxu0
        %v4028 = vadd.f32 0.0, %v4027
        %v4029 = vpop.f32.mrb[0].mxu0
        %4030 = vmatprep.mubr.bf16.mxu0 0
        %4031 = vmatmul.mubr.bf16.gmra.mrb[0].mxu0 %v3921
        %v4032 = vpop.f32.mrb[0].mxu0
        %v4033 = vadd.f32 0.0, %v4032
        %v4034 = vpop.f32.mrb[0].mxu0
        %v4035 = vpop.f32.mrb[0].mxu0
        %v4036 = vadd.f32 0.0, %v4035
        %v4037 = vpop.f32.mrb[0].mxu0
        %4038 = vdwg.mxu0
        %v4047 = vunpack.c.l.b16 %v3853
        %v4048 = vunpack.c.l.b16 %v3854
        %v4049 = vunpack.c.l.b16 %v3855
        %v4050 = vunpack.c.l.b16 %v3856
        %v4051 = vunpack.c.l.b16 %v3857
        %v4052 = vunpack.c.l.b16 %v3858
        %v4053 = vunpack.c.l.b16 %v3859
        %v4054 = vunpack.c.l.b16 %v3860
        %v4055 = vpack.c.b16 %v4048, %v4047
        %v4056 = vpack.c.b16 %v4050, %v4049
        %v4057 = vpack.c.b16 %v4052, %v4051
        %v4058 = vpack.c.b16 %v4054, %v4053
        %v4079 = vunpack.c.l.b16 %v3861
        %v4080 = vunpack.c.l.b16 %v3862
        %v4081 = vunpack.c.l.b16 %v3863
        %v4082 = vunpack.c.l.b16 %v3864
        %v4083 = vunpack.c.l.b16 %v3865
        %v4084 = vunpack.c.l.b16 %v3866
        %v4085 = vunpack.c.l.b16 %v3867
        %v4086 = vunpack.c.l.b16 %v3868
        %v4087 = vunpack.c.l.b16 %v3869
        %v4088 = vunpack.c.l.b16 %v3870
        %v4089 = vunpack.c.l.b16 %v3871
        %v4090 = vunpack.c.l.b16 %v3872
        %v4091 = vunpack.c.l.b16 %v3873
        %v4092 = vunpack.c.l.b16 %v3874
        %v4093 = vunpack.c.l.b16 %v3875
        %v4094 = vunpack.c.l.b16 %v3876
        %v4095 = vpack.c.b16 %v4080, %v4079
        %v4096 = vpack.c.b16 %v4082, %v4081
        %v4097 = vpack.c.b16 %v4084, %v4083
        %v4098 = vpack.c.b16 %v4086, %v4085
        %v4099 = vpack.c.b16 %v4088, %v4087
        %v4100 = vpack.c.b16 %v4090, %v4089
        %v4101 = vpack.c.b16 %v4092, %v4091
        %v4102 = vpack.c.b16 %v4094, %v4093
        %4111 = vmatprep.subr.bf16.mxu0 0
        %4112 = vmatpush1.bf16.msra.mxu0 %v4095
        %4113 = vmatprep.subr.bf16.mxu0 0
        %4114 = vmatpush1.bf16.msra.mxu0 %v4096
        %4115 = vmatprep.subr.bf16.mxu0 0
        %4116 = vmatpush1.bf16.msra.mxu0 %v4097
        %4117 = vmatprep.subr.bf16.mxu0 0
        %4118 = vmatpush1.bf16.msra.mxu0 %v4098
        %4119 = vmatprep.subr.bf16.mxu0 0
        %4120 = vmatpush1.bf16.msra.mxu0 %v4099
        %4121 = vmatprep.subr.bf16.mxu0 0
        %4122 = vmatpush1.bf16.msra.mxu0 %v4100
        %4123 = vmatprep.subr.bf16.mxu0 0
        %4124 = vmatpush1.bf16.msra.mxu0 %v4101
        %4125 = vmatprep.subr.bf16.mxu0 0
        %4126 = vmatpush1.bf16.msra.mxu0 %v4102
        %4127 = vmatprep.subr.bf16.mxu0 0
        %4128 = vmatpush1.bf16.msra.mxu0 0
        %4129 = vmatprep.subr.bf16.mxu0 0
        %4130 = vmatpush1.bf16.msra.mxu0 0
        %4131 = vmatprep.subr.bf16.mxu0 0
        %4132 = vmatpush1.bf16.msra.mxu0 0
        %4133 = vmatprep.subr.bf16.mxu0 0
        %4134 = vmatpush1.bf16.msra.mxu0 0
        %4135 = vmatprep.subr.bf16.mxu0 0
        %4136 = vmatpush1.bf16.msra.mxu0 0
        %4137 = vmatprep.subr.bf16.mxu0 0
        %4138 = vmatpush1.bf16.msra.mxu0 0
        %4139 = vmatprep.subr.bf16.mxu0 0
        %4140 = vmatpush1.bf16.msra.mxu0 0
        %4141 = vmatprep.subr.bf16.mxu0 0
        %4142 = vmatpush1.bf16.msra.mxu0 0
        %4143 = vmatprep.mubr.bf16.mxu0 0
        %4144 = vmatmul.mubr.bf16.gmra.mrb[0].mxu0 %v4055
        %v4145 = vpop.f32.mrb[0].mxu0
        %v4146 = vadd.f32 %v4009, %v4145
        %v4147 = vpop.f32.mrb[0].mxu0
        %v4148 = vpop.f32.mrb[0].mxu0
        %v4149 = vadd.f32 %v4012, %v4148
        %v4150 = vpop.f32.mrb[0].mxu0
        %4151 = vmatprep.mubr.bf16.mxu0 0
        %4152 = vmatmul.mubr.bf16.gmra.mrb[0].mxu0 %v4056
        %v4153 = vpop.f32.mrb[0].mxu0
        %v4154 = vadd.f32 %v4017, %v4153
        %v4155 = vpop.f32.mrb[0].mxu0
        %v4156 = vpop.f32.mrb[0].mxu0
        %v4157 = vadd.f32 %v4020, %v4156
        %v4158 = vpop.f32.mrb[0].mxu0
        %4159 = vmatprep.mubr.bf16.mxu0 0
        %4160 = vmatmul.mubr.bf16.gmra.mrb[0].mxu0 %v4057
        %v4161 = vpop.f32.mrb[0].mxu0
        %v4162 = vadd.f32 %v4025, %v4161
        %v4163 = vpop.f32.mrb[0].mxu0
        %v4164 = vpop.f32.mrb[0].mxu0
        %v4165 = vadd.f32 %v4028, %v4164
        %v4166 = vpop.f32.mrb[0].mxu0
        %4167 = vmatprep.mubr.bf16.mxu0 0
        %4168 = vmatmul.mubr.bf16.gmra.mrb[0].mxu0 %v4058
        %v4169 = vpop.f32.mrb[0].mxu0
        %v4170 = vadd.f32 %v4033, %v4169
        %v4171 = vpop.f32.mrb[0].mxu0
        %v4172 = vpop.f32.mrb[0].mxu0
        %v4173 = vadd.f32 %v4036, %v4172
        %v4174 = vpop.f32.mrb[0].mxu0
        %4175 = vdwg.mxu0
        %v4176 = vld [vmem:[#allocation2] sm:$0xf]
        %v4177 = vld [vmem:[#allocation2 + $0x4] sm:$0x1]
        %v4178 = vld [vmem:[#allocation2 + $0x8] sm:$0xf]
        %v4179 = vld [vmem:[#allocation2 + $0xc] sm:$0x1]
        %v4180 = vld [vmem:[#allocation2 + $0x10] sm:$0xf]
        %v4181 = vld [vmem:[#allocation2 + $0x14] sm:$0x1]
        %v4182 = vld [vmem:[#allocation2 + $0x18] sm:$0xf]
        %v4183 = vld [vmem:[#allocation2 + $0x1c] sm:$0x1]
        %v4184 = vld [vmem:[#allocation2 + $0x20] sm:$0xf]
        %v4185 = vld [vmem:[#allocation2 + $0x24] sm:$0x1]
        %v4186 = vld [vmem:[#allocation2 + $0x28] sm:$0xf]
        %v4187 = vld [vmem:[#allocation2 + $0x2c] sm:$0x1]
        %v4188 = vld [vmem:[#allocation2 + $0x30] sm:$0xf]
        %v4189 = vld [vmem:[#allocation2 + $0x34] sm:$0x1]
        %v4190 = vld [vmem:[#allocation2 + $0x38] sm:$0xf]
        %v4191 = vld [vmem:[#allocation2 + $0x3c] sm:$0x1]
        %vm4192 = vsmask.f32 3328
        %vm4193 = vsmask.f32 7440
        %vm4194 = vmor %vm4192, %vm4193
        %v4196 = vshrl.u32 %v4176, 16
        %v4198 = vrot.slane %v4196, 4
        %v4199 = vshll.u32 %v4176, 16
        %v4201 = vrot.slane %v4199, 5
        %v4202 = vor.u32 %v4198, %v4201
        %v4203 = vrot.slane %v4202, 4
        %v4205 = vshll.u32 %v4177, 16
        %v4207 = vrot.slane %v4205, 5
        %v4208 = vsel %vm4194, %v4203, %v4207
        %v4210 = vshrl.u32 %v4178, 16
        %v4212 = vrot.slane %v4210, 4
        %v4213 = vshll.u32 %v4178, 16
        %v4215 = vrot.slane %v4213, 5
        %v4216 = vor.u32 %v4212, %v4215
        %v4217 = vrot.slane %v4216, 4
        %v4219 = vshll.u32 %v4179, 16
        %v4221 = vrot.slane %v4219, 5
        %v4222 = vsel %vm4194, %v4217, %v4221
        %v4224 = vshrl.u32 %v4180, 16
        %v4226 = vrot.slane %v4224, 4
        %v4227 = vshll.u32 %v4180, 16
        %v4229 = vrot.slane %v4227, 5
        %v4230 = vor.u32 %v4226, %v4229
        %v4231 = vrot.slane %v4230, 4
        %v4233 = vshll.u32 %v4181, 16
        %v4235 = vrot.slane %v4233, 5
        %v4236 = vsel %vm4194, %v4231, %v4235
        %v4238 = vshrl.u32 %v4182, 16
        %v4240 = vrot.slane %v4238, 4
        %v4241 = vshll.u32 %v4182, 16
        %v4243 = vrot.slane %v4241, 5
        %v4244 = vor.u32 %v4240, %v4243
        %v4245 = vrot.slane %v4244, 4
        %v4247 = vshll.u32 %v4183, 16
        %v4249 = vrot.slane %v4247, 5
        %v4250 = vsel %vm4194, %v4245, %v4249
        %v4252 = vshrl.u32 %v4184, 16
        %v4254 = vrot.slane %v4252, 4
        %v4255 = vshll.u32 %v4184, 16
        %v4257 = vrot.slane %v4255, 5
        %v4258 = vor.u32 %v4254, %v4257
        %v4259 = vrot.slane %v4258, 4
        %v4261 = vshll.u32 %v4185, 16
        %v4263 = vrot.slane %v4261, 5
        %v4264 = vsel %vm4194, %v4259, %v4263
        %v4266 = vshrl.u32 %v4186, 16
        %v4268 = vrot.slane %v4266, 4
        %v4269 = vshll.u32 %v4186, 16
        %v4271 = vrot.slane %v4269, 5
        %v4272 = vor.u32 %v4268, %v4271
        %v4273 = vrot.slane %v4272, 4
        %v4275 = vshll.u32 %v4187, 16
        %v4277 = vrot.slane %v4275, 5
        %v4278 = vsel %vm4194, %v4273, %v4277
        %v4280 = vshrl.u32 %v4188, 16
        %v4282 = vrot.slane %v4280, 4
        %v4283 = vshll.u32 %v4188, 16
        %v4285 = vrot.slane %v4283, 5
        %v4286 = vor.u32 %v4282, %v4285
        %v4287 = vrot.slane %v4286, 4
        %v4289 = vshll.u32 %v4189, 16
        %v4291 = vrot.slane %v4289, 5
        %v4292 = vsel %vm4194, %v4287, %v4291
        %v4294 = vshrl.u32 %v4190, 16
        %v4296 = vrot.slane %v4294, 4
        %v4297 = vshll.u32 %v4190, 16
        %v4299 = vrot.slane %v4297, 5
        %v4300 = vor.u32 %v4296, %v4299
        %v4301 = vrot.slane %v4300, 4
        %v4303 = vshll.u32 %v4191, 16
        %v4305 = vrot.slane %v4303, 5
        %v4306 = vsel %vm4194, %v4301, %v4305
        %s4307 = scalar_lea.vmem %s1, 128
        %v4308 = vld [vmem:[%s4307] sm:$0xf]
        %v4309 = vld [vmem:[%s4307 + $0x4] sm:$0xf]
        %v4310 = vld [vmem:[%s4307 + $0x8] sm:$0xf]
        %v4311 = vld [vmem:[%s4307 + $0xc] sm:$0xf]
        %v4312 = vld [vmem:[%s4307 + $0x10] sm:$0xf]
        %v4313 = vld [vmem:[%s4307 + $0x14] sm:$0xf]
        %v4314 = vld [vmem:[%s4307 + $0x18] sm:$0xf]
        %v4315 = vld [vmem:[%s4307 + $0x1c] sm:$0xf]
        %v4316 = vld [vmem:[%s4307 + $0x20] sm:$0xf]
        %v4317 = vld [vmem:[%s4307 + $0x24] sm:$0xf]
        %v4318 = vld [vmem:[%s4307 + $0x28] sm:$0xf]
        %v4319 = vld [vmem:[%s4307 + $0x2c] sm:$0xf]
        %v4320 = vld [vmem:[%s4307 + $0x30] sm:$0xf]
        %v4321 = vld [vmem:[%s4307 + $0x34] sm:$0xf]
        %v4322 = vld [vmem:[%s4307 + $0x38] sm:$0xf]
        %v4323 = vld [vmem:[%s4307 + $0x3c] sm:$0xf]
        %v4324 = vunpack.c.l.b16 %v4208
        %v4325 = vunpack.c.l.b16 %v4222
        %v4326 = vunpack.c.l.b16 %v4236
        %v4327 = vunpack.c.l.b16 %v4250
        %v4328 = vunpack.c.l.b16 %v4264
        %v4329 = vunpack.c.l.b16 %v4278
        %v4330 = vunpack.c.l.b16 %v4292
        %v4331 = vunpack.c.l.b16 %v4306
        %v4332 = vpack.c.b16 %v4325, %v4324
        %v4333 = vpack.c.b16 %v4327, %v4326
        %v4334 = vpack.c.b16 %v4329, %v4328
        %v4335 = vpack.c.b16 %v4331, %v4330
        %v4356 = vunpack.c.l.b16 %v4308
        %v4357 = vunpack.c.l.b16 %v4309
        %v4358 = vunpack.c.l.b16 %v4310
        %v4359 = vunpack.c.l.b16 %v4311
        %v4360 = vunpack.c.l.b16 %v4312
        %v4361 = vunpack.c.l.b16 %v4313
        %v4362 = vunpack.c.l.b16 %v4314
        %v4363 = vunpack.c.l.b16 %v4315
        %v4364 = vunpack.c.l.b16 %v4316
        %v4365 = vunpack.c.l.b16 %v4317
        %v4366 = vunpack.c.l.b16 %v4318
        %v4367 = vunpack.c.l.b16 %v4319
        %v4368 = vunpack.c.l.b16 %v4320
        %v4369 = vunpack.c.l.b16 %v4321
        %v4370 = vunpack.c.l.b16 %v4322
        %v4371 = vunpack.c.l.b16 %v4323
        %v4372 = vpack.c.b16 %v4357, %v4356
        %v4373 = vpack.c.b16 %v4359, %v4358
        %v4374 = vpack.c.b16 %v4361, %v4360
        %v4375 = vpack.c.b16 %v4363, %v4362
        %v4376 = vpack.c.b16 %v4365, %v4364
        %v4377 = vpack.c.b16 %v4367, %v4366
        %v4378 = vpack.c.b16 %v4369, %v4368
        %v4379 = vpack.c.b16 %v4371, %v4370
        %4388 = vmatprep.subr.bf16.mxu0 0
        %4389 = vmatpush1.bf16.msra.mxu0 %v4372
        %4390 = vmatprep.subr.bf16.mxu0 0
        %4391 = vmatpush1.bf16.msra.mxu0 %v4373
        %4392 = vmatprep.subr.bf16.mxu0 0
        %4393 = vmatpush1.bf16.msra.mxu0 %v4374
        %4394 = vmatprep.subr.bf16.mxu0 0
        %4395 = vmatpush1.bf16.msra.mxu0 %v4375
        %4396 = vmatprep.subr.bf16.mxu0 0
        %4397 = vmatpush1.bf16.msra.mxu0 %v4376
        %4398 = vmatprep.subr.bf16.mxu0 0
        %4399 = vmatpush1.bf16.msra.mxu0 %v4377
        %4400 = vmatprep.subr.bf16.mxu0 0
        %4401 = vmatpush1.bf16.msra.mxu0 %v4378
        %4402 = vmatprep.subr.bf16.mxu0 0
        %4403 = vmatpush1.bf16.msra.mxu0 %v4379
        %4404 = vmatprep.subr.bf16.mxu0 0
        %4405 = vmatpush1.bf16.msra.mxu0 0
        %4406 = vmatprep.subr.bf16.mxu0 0
        %4407 = vmatpush1.bf16.msra.mxu0 0
        %4408 = vmatprep.subr.bf16.mxu0 0
        %4409 = vmatpush1.bf16.msra.mxu0 0
        %4410 = vmatprep.subr.bf16.mxu0 0
        %4411 = vmatpush1.bf16.msra.mxu0 0
        %4412 = vmatprep.subr.bf16.mxu0 0
        %4413 = vmatpush1.bf16.msra.mxu0 0
        %4414 = vmatprep.subr.bf16.mxu0 0
        %4415 = vmatpush1.bf16.msra.mxu0 0
        %4416 = vmatprep.subr.bf16.mxu0 0
        %4417 = vmatpush1.bf16.msra.mxu0 0
        %4418 = vmatprep.subr.bf16.mxu0 0
        %4419 = vmatpush1.bf16.msra.mxu0 0
        %4420 = vmatprep.mubr.bf16.mxu0 0
        %4421 = vmatmul.mubr.bf16.gmra.mrb[0].mxu0 %v4332
        %v4422 = vpop.f32.mrb[0].mxu0
        %v4423 = vadd.f32 0.0, %v4422
        %v4424 = vpop.f32.mrb[0].mxu0
        %v4425 = vpop.f32.mrb[0].mxu0
        %v4426 = vadd.f32 0.0, %v4425
        %v4427 = vpop.f32.mrb[0].mxu0
        %4428 = vmatprep.mubr.bf16.mxu0 0
        %4429 = vmatmul.mubr.bf16.gmra.mrb[0].mxu0 %v4333
        %v4430 = vpop.f32.mrb[0].mxu0
        %v4431 = vadd.f32 0.0, %v4430
        %v4432 = vpop.f32.mrb[0].mxu0
        %v4433 = vpop.f32.mrb[0].mxu0
        %v4434 = vadd.f32 0.0, %v4433
        %v4435 = vpop.f32.mrb[0].mxu0
        %4436 = vmatprep.mubr.bf16.mxu0 0
        %4437 = vmatmul.mubr.bf16.gmra.mrb[0].mxu0 %v4334
        %v4438 = vpop.f32.mrb[0].mxu0
        %v4439 = vadd.f32 0.0, %v4438
        %v4440 = vpop.f32.mrb[0].mxu0
        %v4441 = vpop.f32.mrb[0].mxu0
        %v4442 = vadd.f32 0.0, %v4441
        %v4443 = vpop.f32.mrb[0].mxu0
        %4444 = vmatprep.mubr.bf16.mxu0 0
        %4445 = vmatmul.mubr.bf16.gmra.mrb[0].mxu0 %v4335
        %v4446 = vpop.f32.mrb[0].mxu0
        %v4447 = vadd.f32 0.0, %v4446
        %v4448 = vpop.f32.mrb[0].mxu0
        %v4449 = vpop.f32.mrb[0].mxu0
        %v4450 = vadd.f32 0.0, %v4449
        %v4451 = vpop.f32.mrb[0].mxu0
        %4452 = vdwg.mxu0
        %v4453 = vadd.f32 %v4146, %v4423
        %v4454 = vadd.f32 %v4149, %v4426
        %v4455 = vadd.f32 %v4154, %v4431
        %v4456 = vadd.f32 %v4157, %v4434
        %v4457 = vadd.f32 %v4162, %v4439
        %v4458 = vadd.f32 %v4165, %v4442
        %v4459 = vadd.f32 %v4170, %v4447
        %v4460 = vadd.f32 %v4173, %v4450
        %v4461 = vld [vmem:[%s505] sm:$0xf]
        %v4462 = vld [vmem:[%s505 + $0x8] sm:$0xf]
        %v4463 = vld [vmem:[%s505 + $0x10] sm:$0xf]
        %v4464 = vld [vmem:[%s505 + $0x18] sm:$0xf]
        %v4465 = vld [vmem:[%s505 + $0x20] sm:$0xf]
        %v4466 = vld [vmem:[%s505 + $0x28] sm:$0xf]
        %v4467 = vld [vmem:[%s505 + $0x30] sm:$0xf]
        %v4468 = vld [vmem:[%s505 + $0x38] sm:$0xf]
        %s4469 = scalar_lea.vmem %s1, 192
        %v4470 = vld [vmem:[%s4469] sm:$0xf]
        %v4471 = vld [vmem:[%s4469 + $0x4] sm:$0xf]
        %v4472 = vld [vmem:[%s4469 + $0x8] sm:$0xf]
        %v4473 = vld [vmem:[%s4469 + $0xc] sm:$0xf]
        %v4474 = vld [vmem:[%s4469 + $0x10] sm:$0xf]
        %v4475 = vld [vmem:[%s4469 + $0x14] sm:$0xf]
        %v4476 = vld [vmem:[%s4469 + $0x18] sm:$0xf]
        %v4477 = vld [vmem:[%s4469 + $0x1c] sm:$0xf]
        %v4478 = vld [vmem:[%s4469 + $0x20] sm:$0xf]
        %v4479 = vld [vmem:[%s4469 + $0x24] sm:$0xf]
        %v4480 = vld [vmem:[%s4469 + $0x28] sm:$0xf]
        %v4481 = vld [vmem:[%s4469 + $0x2c] sm:$0xf]
        %v4482 = vld [vmem:[%s4469 + $0x30] sm:$0xf]
        %v4483 = vld [vmem:[%s4469 + $0x34] sm:$0xf]
        %v4484 = vld [vmem:[%s4469 + $0x38] sm:$0xf]
        %v4485 = vld [vmem:[%s4469 + $0x3c] sm:$0xf]
        %v4494 = vunpack.c.l.b16 %v4461
        %v4495 = vunpack.c.l.b16 %v4462
        %v4496 = vunpack.c.l.b16 %v4463
        %v4497 = vunpack.c.l.b16 %v4464
        %v4498 = vunpack.c.l.b16 %v4465
        %v4499 = vunpack.c.l.b16 %v4466
        %v4500 = vunpack.c.l.b16 %v4467
        %v4501 = vunpack.c.l.b16 %v4468
        %v4502 = vpack.c.b16 %v4495, %v4494
        %v4503 = vpack.c.b16 %v4497, %v4496
        %v4504 = vpack.c.b16 %v4499, %v4498
        %v4505 = vpack.c.b16 %v4501, %v4500
        %v4526 = vunpack.c.l.b16 %v4470
        %v4527 = vunpack.c.l.b16 %v4471
        %v4528 = vunpack.c.l.b16 %v4472
        %v4529 = vunpack.c.l.b16 %v4473
        %v4530 = vunpack.c.l.b16 %v4474
        %v4531 = vunpack.c.l.b16 %v4475
        %v4532 = vunpack.c.l.b16 %v4476
        %v4533 = vunpack.c.l.b16 %v4477
        %v4534 = vunpack.c.l.b16 %v4478
        %v4535 = vunpack.c.l.b16 %v4479
        %v4536 = vunpack.c.l.b16 %v4480
        %v4537 = vunpack.c.l.b16 %v4481
        %v4538 = vunpack.c.l.b16 %v4482
        %v4539 = vunpack.c.l.b16 %v4483
        %v4540 = vunpack.c.l.b16 %v4484
        %v4541 = vunpack.c.l.b16 %v4485
        %v4542 = vpack.c.b16 %v4527, %v4526
        %v4543 = vpack.c.b16 %v4529, %v4528
        %v4544 = vpack.c.b16 %v4531, %v4530
        %v4545 = vpack.c.b16 %v4533, %v4532
        %v4546 = vpack.c.b16 %v4535, %v4534
        %v4547 = vpack.c.b16 %v4537, %v4536
        %v4548 = vpack.c.b16 %v4539, %v4538
        %v4549 = vpack.c.b16 %v4541, %v4540
        %4558 = vmatprep.subr.bf16.mxu0 0
        %4559 = vmatpush1.bf16.msra.mxu0 %v4542
        %4560 = vmatprep.subr.bf16.mxu0 0
        %4561 = vmatpush1.bf16.msra.mxu0 %v4543
        %4562 = vmatprep.subr.bf16.mxu0 0
        %4563 = vmatpush1.bf16.msra.mxu0 %v4544
        %4564 = vmatprep.subr.bf16.mxu0 0
        %4565 = vmatpush1.bf16.msra.mxu0 %v4545
        %4566 = vmatprep.subr.bf16.mxu0 0
        %4567 = vmatpush1.bf16.msra.mxu0 %v4546
        %4568 = vmatprep.subr.bf16.mxu0 0
        %4569 = vmatpush1.bf16.msra.mxu0 %v4547
        %4570 = vmatprep.subr.bf16.mxu0 0
        %4571 = vmatpush1.bf16.msra.mxu0 %v4548
        %4572 = vmatprep.subr.bf16.mxu0 0
        %4573 = vmatpush1.bf16.msra.mxu0 %v4549
        %4574 = vmatprep.subr.bf16.mxu0 0
        %4575 = vmatpush1.bf16.msra.mxu0 0
        %4576 = vmatprep.subr.bf16.mxu0 0
        %4577 = vmatpush1.bf16.msra.mxu0 0
        %4578 = vmatprep.subr.bf16.mxu0 0
        %4579 = vmatpush1.bf16.msra.mxu0 0
        %4580 = vmatprep.subr.bf16.mxu0 0
        %4581 = vmatpush1.bf16.msra.mxu0 0
        %4582 = vmatprep.subr.bf16.mxu0 0
        %4583 = vmatpush1.bf16.msra.mxu0 0
        %4584 = vmatprep.subr.bf16.mxu0 0
        %4585 = vmatpush1.bf16.msra.mxu0 0
        %4586 = vmatprep.subr.bf16.mxu0 0
        %4587 = vmatpush1.bf16.msra.mxu0 0
        %4588 = vmatprep.subr.bf16.mxu0 0
        %4589 = vmatpush1.bf16.msra.mxu0 0
        %4590 = vmatprep.mubr.bf16.mxu0 0
        %4591 = vmatmul.mubr.bf16.gmra.mrb[0].mxu0 %v4502
        %v4592 = vpop.f32.mrb[0].mxu0
        %v4593 = vadd.f32 0.0, %v4592
        %v4594 = vpop.f32.mrb[0].mxu0
        %v4595 = vpop.f32.mrb[0].mxu0
        %v4596 = vadd.f32 0.0, %v4595
        %v4597 = vpop.f32.mrb[0].mxu0
        %4598 = vmatprep.mubr.bf16.mxu0 0
        %4599 = vmatmul.mubr.bf16.gmra.mrb[0].mxu0 %v4503
        %v4600 = vpop.f32.mrb[0].mxu0
        %v4601 = vadd.f32 0.0, %v4600
        %v4602 = vpop.f32.mrb[0].mxu0
        %v4603 = vpop.f32.mrb[0].mxu0
        %v4604 = vadd.f32 0.0, %v4603
        %v4605 = vpop.f32.mrb[0].mxu0
        %4606 = vmatprep.mubr.bf16.mxu0 0
        %4607 = vmatmul.mubr.bf16.gmra.mrb[0].mxu0 %v4504
        %v4608 = vpop.f32.mrb[0].mxu0
        %v4609 = vadd.f32 0.0, %v4608
        %v4610 = vpop.f32.mrb[0].mxu0
        %v4611 = vpop.f32.mrb[0].mxu0
        %v4612 = vadd.f32 0.0, %v4611
        %v4613 = vpop.f32.mrb[0].mxu0
        %4614 = vmatprep.mubr.bf16.mxu0 0
        %4615 = vmatmul.mubr.bf16.gmra.mrb[0].mxu0 %v4505
        %v4616 = vpop.f32.mrb[0].mxu0
        %v4617 = vadd.f32 0.0, %v4616
        %v4618 = vpop.f32.mrb[0].mxu0
        %v4619 = vpop.f32.mrb[0].mxu0
        %v4620 = vadd.f32 0.0, %v4619
        %v4621 = vpop.f32.mrb[0].mxu0
        %4622 = vdwg.mxu0
        %v4623 = vadd.f32 %v4453, %v4593
        %v4624 = vadd.f32 %v4454, %v4596
        %v4625 = vadd.f32 %v4455, %v4601
        %v4626 = vadd.f32 %v4456, %v4604
        %v4627 = vadd.f32 %v4457, %v4609
        %v4628 = vadd.f32 %v4458, %v4612
        %v4629 = vadd.f32 %v4459, %v4617
        %v4630 = vadd.f32 %v4460, %v4620
        %v4631 = vld [vmem:[%s533] sm:$0xf]
        %v4632 = vld [vmem:[%s533 + $0x8] sm:$0xf]
        %v4633 = vld [vmem:[%s533 + $0x10] sm:$0xf]
        %v4634 = vld [vmem:[%s533 + $0x18] sm:$0xf]
        %v4635 = vld [vmem:[%s533 + $0x20] sm:$0xf]
        %v4636 = vld [vmem:[%s533 + $0x28] sm:$0xf]
        %v4637 = vld [vmem:[%s533 + $0x30] sm:$0xf]
        %v4638 = vld [vmem:[%s533 + $0x38] sm:$0xf]
        %s4639 = scalar_lea.vmem %s1, 256
        %v4640 = vld [vmem:[%s4639] sm:$0xf]
        %v4641 = vld [vmem:[%s4639 + $0x4] sm:$0xf]
        %v4642 = vld [vmem:[%s4639 + $0x8] sm:$0xf]
        %v4643 = vld [vmem:[%s4639 + $0xc] sm:$0xf]
        %v4644 = vld [vmem:[%s4639 + $0x10] sm:$0xf]
        %v4645 = vld [vmem:[%s4639 + $0x14] sm:$0xf]
        %v4646 = vld [vmem:[%s4639 + $0x18] sm:$0xf]
        %v4647 = vld [vmem:[%s4639 + $0x1c] sm:$0xf]
        %v4648 = vld [vmem:[%s4639 + $0x20] sm:$0xf]
        %v4649 = vld [vmem:[%s4639 + $0x24] sm:$0xf]
        %v4650 = vld [vmem:[%s4639 + $0x28] sm:$0xf]
        %v4651 = vld [vmem:[%s4639 + $0x2c] sm:$0xf]
        %v4652 = vld [vmem:[%s4639 + $0x30] sm:$0xf]
        %v4653 = vld [vmem:[%s4639 + $0x34] sm:$0xf]
        %v4654 = vld [vmem:[%s4639 + $0x38] sm:$0xf]
        %v4655 = vld [vmem:[%s4639 + $0x3c] sm:$0xf]
        %v4664 = vunpack.c.l.b16 %v4631
        %v4665 = vunpack.c.l.b16 %v4632
        %v4666 = vunpack.c.l.b16 %v4633
        %v4667 = vunpack.c.l.b16 %v4634
        %v4668 = vunpack.c.l.b16 %v4635
        %v4669 = vunpack.c.l.b16 %v4636
        %v4670 = vunpack.c.l.b16 %v4637
        %v4671 = vunpack.c.l.b16 %v4638
        %v4672 = vpack.c.b16 %v4665, %v4664
        %v4673 = vpack.c.b16 %v4667, %v4666
        %v4674 = vpack.c.b16 %v4669, %v4668
        %v4675 = vpack.c.b16 %v4671, %v4670
        %v4696 = vunpack.c.l.b16 %v4640
        %v4697 = vunpack.c.l.b16 %v4641
        %v4698 = vunpack.c.l.b16 %v4642
        %v4699 = vunpack.c.l.b16 %v4643
        %v4700 = vunpack.c.l.b16 %v4644
        %v4701 = vunpack.c.l.b16 %v4645
        %v4702 = vunpack.c.l.b16 %v4646
        %v4703 = vunpack.c.l.b16 %v4647
        %v4704 = vunpack.c.l.b16 %v4648
        %v4705 = vunpack.c.l.b16 %v4649
        %v4706 = vunpack.c.l.b16 %v4650
        %v4707 = vunpack.c.l.b16 %v4651
        %v4708 = vunpack.c.l.b16 %v4652
        %v4709 = vunpack.c.l.b16 %v4653
        %v4710 = vunpack.c.l.b16 %v4654
        %v4711 = vunpack.c.l.b16 %v4655
        %v4712 = vpack.c.b16 %v4697, %v4696
        %v4713 = vpack.c.b16 %v4699, %v4698
        %v4714 = vpack.c.b16 %v4701, %v4700
        %v4715 = vpack.c.b16 %v4703, %v4702
        %v4716 = vpack.c.b16 %v4705, %v4704
        %v4717 = vpack.c.b16 %v4707, %v4706
        %v4718 = vpack.c.b16 %v4709, %v4708
        %v4719 = vpack.c.b16 %v4711, %v4710
        %4728 = vmatprep.subr.bf16.mxu0 0
        %4729 = vmatpush1.bf16.msra.mxu0 %v4712
        %4730 = vmatprep.subr.bf16.mxu0 0
        %4731 = vmatpush1.bf16.msra.mxu0 %v4713
        %4732 = vmatprep.subr.bf16.mxu0 0
        %4733 = vmatpush1.bf16.msra.mxu0 %v4714
        %4734 = vmatprep.subr.bf16.mxu0 0
        %4735 = vmatpush1.bf16.msra.mxu0 %v4715
        %4736 = vmatprep.subr.bf16.mxu0 0
        %4737 = vmatpush1.bf16.msra.mxu0 %v4716
        %4738 = vmatprep.subr.bf16.mxu0 0
        %4739 = vmatpush1.bf16.msra.mxu0 %v4717
        %4740 = vmatprep.subr.bf16.mxu0 0
        %4741 = vmatpush1.bf16.msra.mxu0 %v4718
        %4742 = vmatprep.subr.bf16.mxu0 0
        %4743 = vmatpush1.bf16.msra.mxu0 %v4719
        %4744 = vmatprep.subr.bf16.mxu0 0
        %4745 = vmatpush1.bf16.msra.mxu0 0
        %4746 = vmatprep.subr.bf16.mxu0 0
        %4747 = vmatpush1.bf16.msra.mxu0 0
        %4748 = vmatprep.subr.bf16.mxu0 0
        %4749 = vmatpush1.bf16.msra.mxu0 0
        %4750 = vmatprep.subr.bf16.mxu0 0
        %4751 = vmatpush1.bf16.msra.mxu0 0
        %4752 = vmatprep.subr.bf16.mxu0 0
        %4753 = vmatpush1.bf16.msra.mxu0 0
        %4754 = vmatprep.subr.bf16.mxu0 0
        %4755 = vmatpush1.bf16.msra.mxu0 0
        %4756 = vmatprep.subr.bf16.mxu0 0
        %4757 = vmatpush1.bf16.msra.mxu0 0
        %4758 = vmatprep.subr.bf16.mxu0 0
        %4759 = vmatpush1.bf16.msra.mxu0 0
        %4760 = vmatprep.mubr.bf16.mxu0 0
        %4761 = vmatmul.mubr.bf16.gmra.mrb[0].mxu0 %v4672
        %v4762 = vpop.f32.mrb[0].mxu0
        %v4763 = vadd.f32 0.0, %v4762
        %v4764 = vpop.f32.mrb[0].mxu0
        %v4765 = vpop.f32.mrb[0].mxu0
        %v4766 = vadd.f32 0.0, %v4765
        %v4767 = vpop.f32.mrb[0].mxu0
        %4768 = vmatprep.mubr.bf16.mxu0 0
        %4769 = vmatmul.mubr.bf16.gmra.mrb[0].mxu0 %v4673
        %v4770 = vpop.f32.mrb[0].mxu0
        %v4771 = vadd.f32 0.0, %v4770
        %v4772 = vpop.f32.mrb[0].mxu0
        %v4773 = vpop.f32.mrb[0].mxu0
        %v4774 = vadd.f32 0.0, %v4773
        %v4775 = vpop.f32.mrb[0].mxu0
        %4776 = vmatprep.mubr.bf16.mxu0 0
        %4777 = vmatmul.mubr.bf16.gmra.mrb[0].mxu0 %v4674
        %v4778 = vpop.f32.mrb[0].mxu0
        %v4779 = vadd.f32 0.0, %v4778
        %v4780 = vpop.f32.mrb[0].mxu0
        %v4781 = vpop.f32.mrb[0].mxu0
        %v4782 = vadd.f32 0.0, %v4781
        %v4783 = vpop.f32.mrb[0].mxu0
        %4784 = vmatprep.mubr.bf16.mxu0 0
        %4785 = vmatmul.mubr.bf16.gmra.mrb[0].mxu0 %v4675
        %v4786 = vpop.f32.mrb[0].mxu0
        %v4787 = vadd.f32 0.0, %v4786
        %v4788 = vpop.f32.mrb[0].mxu0
        %v4789 = vpop.f32.mrb[0].mxu0
        %v4790 = vadd.f32 0.0, %v4789
        %v4791 = vpop.f32.mrb[0].mxu0
        %4792 = vdwg.mxu0
        %v4793 = vadd.f32 %v4623, %v4763
        %v4794 = vadd.f32 %v4624, %v4766
        %v4795 = vadd.f32 %v4625, %v4771
        %v4796 = vadd.f32 %v4626, %v4774
        %v4797 = vadd.f32 %v4627, %v4779
        %v4798 = vadd.f32 %v4628, %v4782
        %v4799 = vadd.f32 %v4629, %v4787
        %v4800 = vadd.f32 %v4630, %v4790
        %v4801 = vld [vmem:[%s505] sm:$0xf]
        %v4802 = vld [vmem:[%s505 + $0x4] sm:$0x1]
        %v4803 = vld [vmem:[%s505 + $0x8] sm:$0xf]
        %v4804 = vld [vmem:[%s505 + $0xc] sm:$0x1]
        %v4805 = vld [vmem:[%s505 + $0x10] sm:$0xf]
        %v4806 = vld [vmem:[%s505 + $0x14] sm:$0x1]
        %v4807 = vld [vmem:[%s505 + $0x18] sm:$0xf]
        %v4808 = vld [vmem:[%s505 + $0x1c] sm:$0x1]
        %v4809 = vld [vmem:[%s505 + $0x20] sm:$0xf]
        %v4810 = vld [vmem:[%s505 + $0x24] sm:$0x1]
        %v4811 = vld [vmem:[%s505 + $0x28] sm:$0xf]
        %v4812 = vld [vmem:[%s505 + $0x2c] sm:$0x1]
        %v4813 = vld [vmem:[%s505 + $0x30] sm:$0xf]
        %v4814 = vld [vmem:[%s505 + $0x34] sm:$0x1]
        %v4815 = vld [vmem:[%s505 + $0x38] sm:$0xf]
        %v4816 = vld [vmem:[%s505 + $0x3c] sm:$0x1]
        %v4818 = vshrl.u32 %v4801, 16
        %v4820 = vrot.slane %v4818, 4
        %v4821 = vshll.u32 %v4801, 16
        %v4823 = vrot.slane %v4821, 5
        %v4824 = vor.u32 %v4820, %v4823
        %v4825 = vrot.slane %v4824, 4
        %v4827 = vshll.u32 %v4802, 16
        %v4829 = vrot.slane %v4827, 5
        %v4830 = vsel %vm4194, %v4825, %v4829
        %v4832 = vshrl.u32 %v4803, 16
        %v4834 = vrot.slane %v4832, 4
        %v4835 = vshll.u32 %v4803, 16
        %v4837 = vrot.slane %v4835, 5
        %v4838 = vor.u32 %v4834, %v4837
        %v4839 = vrot.slane %v4838, 4
        %v4841 = vshll.u32 %v4804, 16
        %v4843 = vrot.slane %v4841, 5
        %v4844 = vsel %vm4194, %v4839, %v4843
        %v4846 = vshrl.u32 %v4805, 16
        %v4848 = vrot.slane %v4846, 4
        %v4849 = vshll.u32 %v4805, 16
        %v4851 = vrot.slane %v4849, 5
        %v4852 = vor.u32 %v4848, %v4851
        %v4853 = vrot.slane %v4852, 4
        %v4855 = vshll.u32 %v4806, 16
        %v4857 = vrot.slane %v4855, 5
        %v4858 = vsel %vm4194, %v4853, %v4857
        %v4860 = vshrl.u32 %v4807, 16
        %v4862 = vrot.slane %v4860, 4
        %v4863 = vshll.u32 %v4807, 16
        %v4865 = vrot.slane %v4863, 5
        %v4866 = vor.u32 %v4862, %v4865
        %v4867 = vrot.slane %v4866, 4
        %v4869 = vshll.u32 %v4808, 16
        %v4871 = vrot.slane %v4869, 5
        %v4872 = vsel %vm4194, %v4867, %v4871
        %v4874 = vshrl.u32 %v4809, 16
        %v4876 = vrot.slane %v4874, 4
        %v4877 = vshll.u32 %v4809, 16
        %v4879 = vrot.slane %v4877, 5
        %v4880 = vor.u32 %v4876, %v4879
        %v4881 = vrot.slane %v4880, 4
        %v4883 = vshll.u32 %v4810, 16
        %v4885 = vrot.slane %v4883, 5
        %v4886 = vsel %vm4194, %v4881, %v4885
        %v4888 = vshrl.u32 %v4811, 16
        %v4890 = vrot.slane %v4888, 4
        %v4891 = vshll.u32 %v4811, 16
        %v4893 = vrot.slane %v4891, 5
        %v4894 = vor.u32 %v4890, %v4893
        %v4895 = vrot.slane %v4894, 4
        %v4897 = vshll.u32 %v4812, 16
        %v4899 = vrot.slane %v4897, 5
        %v4900 = vsel %vm4194, %v4895, %v4899
        %v4902 = vshrl.u32 %v4813, 16
        %v4904 = vrot.slane %v4902, 4
        %v4905 = vshll.u32 %v4813, 16
        %v4907 = vrot.slane %v4905, 5
        %v4908 = vor.u32 %v4904, %v4907
        %v4909 = vrot.slane %v4908, 4
        %v4911 = vshll.u32 %v4814, 16
        %v4913 = vrot.slane %v4911, 5
        %v4914 = vsel %vm4194, %v4909, %v4913
        %v4916 = vshrl.u32 %v4815, 16
        %v4918 = vrot.slane %v4916, 4
        %v4919 = vshll.u32 %v4815, 16
        %v4921 = vrot.slane %v4919, 5
        %v4922 = vor.u32 %v4918, %v4921
        %v4923 = vrot.slane %v4922, 4
        %v4925 = vshll.u32 %v4816, 16
        %v4927 = vrot.slane %v4925, 5
        %v4928 = vsel %vm4194, %v4923, %v4927
        %s4929 = scalar_lea.vmem %s1, 320
        %v4930 = vld [vmem:[%s4929] sm:$0xf]
        %v4931 = vld [vmem:[%s4929 + $0x4] sm:$0xf]
        %v4932 = vld [vmem:[%s4929 + $0x8] sm:$0xf]
        %v4933 = vld [vmem:[%s4929 + $0xc] sm:$0xf]
        %v4934 = vld [vmem:[%s4929 + $0x10] sm:$0xf]
        %v4935 = vld [vmem:[%s4929 + $0x14] sm:$0xf]
        %v4936 = vld [vmem:[%s4929 + $0x18] sm:$0xf]
        %v4937 = vld [vmem:[%s4929 + $0x1c] sm:$0xf]
        %v4938 = vld [vmem:[%s4929 + $0x20] sm:$0xf]
        %v4939 = vld [vmem:[%s4929 + $0x24] sm:$0xf]
        %v4940 = vld [vmem:[%s4929 + $0x28] sm:$0xf]
        %v4941 = vld [vmem:[%s4929 + $0x2c] sm:$0xf]
        %v4942 = vld [vmem:[%s4929 + $0x30] sm:$0xf]
        %v4943 = vld [vmem:[%s4929 + $0x34] sm:$0xf]
        %v4944 = vld [vmem:[%s4929 + $0x38] sm:$0xf]
        %v4945 = vld [vmem:[%s4929 + $0x3c] sm:$0xf]
        %v4946 = vunpack.c.l.b16 %v4830
        %v4947 = vunpack.c.l.b16 %v4844
        %v4948 = vunpack.c.l.b16 %v4858
        %v4949 = vunpack.c.l.b16 %v4872
        %v4950 = vunpack.c.l.b16 %v4886
        %v4951 = vunpack.c.l.b16 %v4900
        %v4952 = vunpack.c.l.b16 %v4914
        %v4953 = vunpack.c.l.b16 %v4928
        %v4954 = vpack.c.b16 %v4947, %v4946
        %v4955 = vpack.c.b16 %v4949, %v4948
        %v4956 = vpack.c.b16 %v4951, %v4950
        %v4957 = vpack.c.b16 %v4953, %v4952
        %v4978 = vunpack.c.l.b16 %v4930
        %v4979 = vunpack.c.l.b16 %v4931
        %v4980 = vunpack.c.l.b16 %v4932
        %v4981 = vunpack.c.l.b16 %v4933
        %v4982 = vunpack.c.l.b16 %v4934
        %v4983 = vunpack.c.l.b16 %v4935
        %v4984 = vunpack.c.l.b16 %v4936
        %v4985 = vunpack.c.l.b16 %v4937
        %v4986 = vunpack.c.l.b16 %v4938
        %v4987 = vunpack.c.l.b16 %v4939
        %v4988 = vunpack.c.l.b16 %v4940
        %v4989 = vunpack.c.l.b16 %v4941
        %v4990 = vunpack.c.l.b16 %v4942
        %v4991 = vunpack.c.l.b16 %v4943
        %v4992 = vunpack.c.l.b16 %v4944
        %v4993 = vunpack.c.l.b16 %v4945
        %v4994 = vpack.c.b16 %v4979, %v4978
        %v4995 = vpack.c.b16 %v4981, %v4980
        %v4996 = vpack.c.b16 %v4983, %v4982
        %v4997 = vpack.c.b16 %v4985, %v4984
        %v4998 = vpack.c.b16 %v4987, %v4986
        %v4999 = vpack.c.b16 %v4989, %v4988
        %v5000 = vpack.c.b16 %v4991, %v4990
        %v5001 = vpack.c.b16 %v4993, %v4992
        %5010 = vmatprep.subr.bf16.mxu0 0
        %5011 = vmatpush1.bf16.msra.mxu0 %v4994
        %5012 = vmatprep.subr.bf16.mxu0 0
        %5013 = vmatpush1.bf16.msra.mxu0 %v4995
        %5014 = vmatprep.subr.bf16.mxu0 0
        %5015 = vmatpush1.bf16.msra.mxu0 %v4996
        %5016 = vmatprep.subr.bf16.mxu0 0
        %5017 = vmatpush1.bf16.msra.mxu0 %v4997
        %5018 = vmatprep.subr.bf16.mxu0 0
        %5019 = vmatpush1.bf16.msra.mxu0 %v4998
        %5020 = vmatprep.subr.bf16.mxu0 0
        %5021 = vmatpush1.bf16.msra.mxu0 %v4999
        %5022 = vmatprep.subr.bf16.mxu0 0
        %5023 = vmatpush1.bf16.msra.mxu0 %v5000
        %5024 = vmatprep.subr.bf16.mxu0 0
        %5025 = vmatpush1.bf16.msra.mxu0 %v5001
        %5026 = vmatprep.subr.bf16.mxu0 0
        %5027 = vmatpush1.bf16.msra.mxu0 0
        %5028 = vmatprep.subr.bf16.mxu0 0
        %5029 = vmatpush1.bf16.msra.mxu0 0
        %5030 = vmatprep.subr.bf16.mxu0 0
        %5031 = vmatpush1.bf16.msra.mxu0 0
        %5032 = vmatprep.subr.bf16.mxu0 0
        %5033 = vmatpush1.bf16.msra.mxu0 0
        %5034 = vmatprep.subr.bf16.mxu0 0
        %5035 = vmatpush1.bf16.msra.mxu0 0
        %5036 = vmatprep.subr.bf16.mxu0 0
        %5037 = vmatpush1.bf16.msra.mxu0 0
        %5038 = vmatprep.subr.bf16.mxu0 0
        %5039 = vmatpush1.bf16.msra.mxu0 0
        %5040 = vmatprep.subr.bf16.mxu0 0
        %5041 = vmatpush1.bf16.msra.mxu0 0
        %5042 = vmatprep.mubr.bf16.mxu0 0
        %5043 = vmatmul.mubr.bf16.gmra.mrb[0].mxu0 %v4954
        %v5044 = vpop.f32.mrb[0].mxu0
        %v5045 = vadd.f32 0.0, %v5044
        %v5046 = vpop.f32.mrb[0].mxu0
        %v5047 = vpop.f32.mrb[0].mxu0
        %v5048 = vadd.f32 0.0, %v5047
        %v5049 = vpop.f32.mrb[0].mxu0
        %5050 = vmatprep.mubr.bf16.mxu0 0
        %5051 = vmatmul.mubr.bf16.gmra.mrb[0].mxu0 %v4955
        %v5052 = vpop.f32.mrb[0].mxu0
        %v5053 = vadd.f32 0.0, %v5052
        %v5054 = vpop.f32.mrb[0].mxu0
        %v5055 = vpop.f32.mrb[0].mxu0
        %v5056 = vadd.f32 0.0, %v5055
        %v5057 = vpop.f32.mrb[0].mxu0
        %5058 = vmatprep.mubr.bf16.mxu0 0
        %5059 = vmatmul.mubr.bf16.gmra.mrb[0].mxu0 %v4956
        %v5060 = vpop.f32.mrb[0].mxu0
        %v5061 = vadd.f32 0.0, %v5060
        %v5062 = vpop.f32.mrb[0].mxu0
        %v5063 = vpop.f32.mrb[0].mxu0
        %v5064 = vadd.f32 0.0, %v5063
        %v5065 = vpop.f32.mrb[0].mxu0
        %5066 = vmatprep.mubr.bf16.mxu0 0
        %5067 = vmatmul.mubr.bf16.gmra.mrb[0].mxu0 %v4957
        %v5068 = vpop.f32.mrb[0].mxu0
        %v5069 = vadd.f32 0.0, %v5068
        %v5070 = vpop.f32.mrb[0].mxu0
        %v5071 = vpop.f32.mrb[0].mxu0
        %v5072 = vadd.f32 0.0, %v5071
        %v5073 = vpop.f32.mrb[0].mxu0
        %5074 = vdwg.mxu0
        %v5075 = vadd.f32 %v4793, %v5045
        %v5076 = vadd.f32 %v4794, %v5048
        %v5077 = vadd.f32 %v4795, %v5053
        %v5078 = vadd.f32 %v4796, %v5056
        %v5079 = vadd.f32 %v4797, %v5061
        %v5080 = vadd.f32 %v4798, %v5064
        %v5081 = vadd.f32 %v4799, %v5069
        %v5082 = vadd.f32 %v4800, %v5072
        %v5083 = vld [vmem:[%s3804] sm:$0xf]
        %v5084 = vld [vmem:[%s3804 + $0x8] sm:$0xf]
        %v5085 = vld [vmem:[%s3804 + $0x10] sm:$0xf]
        %v5086 = vld [vmem:[%s3804 + $0x18] sm:$0xf]
        %v5087 = vld [vmem:[%s3804 + $0x20] sm:$0xf]
        %v5088 = vld [vmem:[%s3804 + $0x28] sm:$0xf]
        %v5089 = vld [vmem:[%s3804 + $0x30] sm:$0xf]
        %v5090 = vld [vmem:[%s3804 + $0x38] sm:$0xf]
        %s5091 = scalar_lea.vmem %s1, 384
        %v5092 = vld [vmem:[%s5091] sm:$0xf]
        %v5093 = vld [vmem:[%s5091 + $0x4] sm:$0xf]
        %v5094 = vld [vmem:[%s5091 + $0x8] sm:$0xf]
        %v5095 = vld [vmem:[%s5091 + $0xc] sm:$0xf]
        %v5096 = vld [vmem:[%s5091 + $0x10] sm:$0xf]
        %v5097 = vld [vmem:[%s5091 + $0x14] sm:$0xf]
        %v5098 = vld [vmem:[%s5091 + $0x18] sm:$0xf]
        %v5099 = vld [vmem:[%s5091 + $0x1c] sm:$0xf]
        %v5100 = vld [vmem:[%s5091 + $0x20] sm:$0xf]
        %v5101 = vld [vmem:[%s5091 + $0x24] sm:$0xf]
        %v5102 = vld [vmem:[%s5091 + $0x28] sm:$0xf]
        %v5103 = vld [vmem:[%s5091 + $0x2c] sm:$0xf]
        %v5104 = vld [vmem:[%s5091 + $0x30] sm:$0xf]
        %v5105 = vld [vmem:[%s5091 + $0x34] sm:$0xf]
        %v5106 = vld [vmem:[%s5091 + $0x38] sm:$0xf]
        %v5107 = vld [vmem:[%s5091 + $0x3c] sm:$0xf]
        %v5116 = vunpack.c.l.b16 %v5083
        %v5117 = vunpack.c.l.b16 %v5084
        %v5118 = vunpack.c.l.b16 %v5085
        %v5119 = vunpack.c.l.b16 %v5086
        %v5120 = vunpack.c.l.b16 %v5087
        %v5121 = vunpack.c.l.b16 %v5088
        %v5122 = vunpack.c.l.b16 %v5089
        %v5123 = vunpack.c.l.b16 %v5090
        %v5124 = vpack.c.b16 %v5117, %v5116
        %v5125 = vpack.c.b16 %v5119, %v5118
        %v5126 = vpack.c.b16 %v5121, %v5120
        %v5127 = vpack.c.b16 %v5123, %v5122
        %v5148 = vunpack.c.l.b16 %v5092
        %v5149 = vunpack.c.l.b16 %v5093
        %v5150 = vunpack.c.l.b16 %v5094
        %v5151 = vunpack.c.l.b16 %v5095
        %v5152 = vunpack.c.l.b16 %v5096
        %v5153 = vunpack.c.l.b16 %v5097
        %v5154 = vunpack.c.l.b16 %v5098
        %v5155 = vunpack.c.l.b16 %v5099
        %v5156 = vunpack.c.l.b16 %v5100
        %v5157 = vunpack.c.l.b16 %v5101
        %v5158 = vunpack.c.l.b16 %v5102
        %v5159 = vunpack.c.l.b16 %v5103
        %v5160 = vunpack.c.l.b16 %v5104
        %v5161 = vunpack.c.l.b16 %v5105
        %v5162 = vunpack.c.l.b16 %v5106
        %v5163 = vunpack.c.l.b16 %v5107
        %v5164 = vpack.c.b16 %v5149, %v5148
        %v5165 = vpack.c.b16 %v5151, %v5150
        %v5166 = vpack.c.b16 %v5153, %v5152
        %v5167 = vpack.c.b16 %v5155, %v5154
        %v5168 = vpack.c.b16 %v5157, %v5156
        %v5169 = vpack.c.b16 %v5159, %v5158
        %v5170 = vpack.c.b16 %v5161, %v5160
        %v5171 = vpack.c.b16 %v5163, %v5162
        %5180 = vmatprep.subr.bf16.mxu0 0
        %5181 = vmatpush1.bf16.msra.mxu0 %v5164
        %5182 = vmatprep.subr.bf16.mxu0 0
        %5183 = vmatpush1.bf16.msra.mxu0 %v5165
        %5184 = vmatprep.subr.bf16.mxu0 0
        %5185 = vmatpush1.bf16.msra.mxu0 %v5166
        %5186 = vmatprep.subr.bf16.mxu0 0
        %5187 = vmatpush1.bf16.msra.mxu0 %v5167
        %5188 = vmatprep.subr.bf16.mxu0 0
        %5189 = vmatpush1.bf16.msra.mxu0 %v5168
        %5190 = vmatprep.subr.bf16.mxu0 0
        %5191 = vmatpush1.bf16.msra.mxu0 %v5169
        %5192 = vmatprep.subr.bf16.mxu0 0
        %5193 = vmatpush1.bf16.msra.mxu0 %v5170
        %5194 = vmatprep.subr.bf16.mxu0 0
        %5195 = vmatpush1.bf16.msra.mxu0 %v5171
        %5196 = vmatprep.subr.bf16.mxu0 0
        %5197 = vmatpush1.bf16.msra.mxu0 0
        %5198 = vmatprep.subr.bf16.mxu0 0
        %5199 = vmatpush1.bf16.msra.mxu0 0
        %5200 = vmatprep.subr.bf16.mxu0 0
        %5201 = vmatpush1.bf16.msra.mxu0 0
        %5202 = vmatprep.subr.bf16.mxu0 0
        %5203 = vmatpush1.bf16.msra.mxu0 0
        %5204 = vmatprep.subr.bf16.mxu0 0
        %5205 = vmatpush1.bf16.msra.mxu0 0
        %5206 = vmatprep.subr.bf16.mxu0 0
        %5207 = vmatpush1.bf16.msra.mxu0 0
        %5208 = vmatprep.subr.bf16.mxu0 0
        %5209 = vmatpush1.bf16.msra.mxu0 0
        %5210 = vmatprep.subr.bf16.mxu0 0
        %5211 = vmatpush1.bf16.msra.mxu0 0
        %5212 = vmatprep.mubr.bf16.mxu0 0
        %5213 = vmatmul.mubr.bf16.gmra.mrb[0].mxu0 %v5124
        %v5214 = vpop.f32.mrb[0].mxu0
        %v5215 = vadd.f32 0.0, %v5214
        %v5216 = vpop.f32.mrb[0].mxu0
        %v5217 = vpop.f32.mrb[0].mxu0
        %v5218 = vadd.f32 0.0, %v5217
        %v5219 = vpop.f32.mrb[0].mxu0
        %5220 = vmatprep.mubr.bf16.mxu0 0
        %5221 = vmatmul.mubr.bf16.gmra.mrb[0].mxu0 %v5125
        %v5222 = vpop.f32.mrb[0].mxu0
        %v5223 = vadd.f32 0.0, %v5222
        %v5224 = vpop.f32.mrb[0].mxu0
        %v5225 = vpop.f32.mrb[0].mxu0
        %v5226 = vadd.f32 0.0, %v5225
        %v5227 = vpop.f32.mrb[0].mxu0
        %5228 = vmatprep.mubr.bf16.mxu0 0
        %5229 = vmatmul.mubr.bf16.gmra.mrb[0].mxu0 %v5126
        %v5230 = vpop.f32.mrb[0].mxu0
        %v5231 = vadd.f32 0.0, %v5230
        %v5232 = vpop.f32.mrb[0].mxu0
        %v5233 = vpop.f32.mrb[0].mxu0
        %v5234 = vadd.f32 0.0, %v5233
        %v5235 = vpop.f32.mrb[0].mxu0
        %5236 = vmatprep.mubr.bf16.mxu0 0
        %5237 = vmatmul.mubr.bf16.gmra.mrb[0].mxu0 %v5127
        %v5238 = vpop.f32.mrb[0].mxu0
        %v5239 = vadd.f32 0.0, %v5238
        %v5240 = vpop.f32.mrb[0].mxu0
        %v5241 = vpop.f32.mrb[0].mxu0
        %v5242 = vadd.f32 0.0, %v5241
        %v5243 = vpop.f32.mrb[0].mxu0
        %5244 = vdwg.mxu0
        %v5245 = vadd.f32 %v5075, %v5215
        %v5246 = vadd.f32 %v5076, %v5218
        %v5247 = vadd.f32 %v5077, %v5223
        %v5248 = vadd.f32 %v5078, %v5226
        %v5249 = vadd.f32 %v5079, %v5231
        %v5250 = vadd.f32 %v5080, %v5234
        %v5251 = vadd.f32 %v5081, %v5239
        %v5252 = vadd.f32 %v5082, %v5242
        %v5253 = vld [vmem:[%s3715] sm:$0xf]
        %v5254 = vld [vmem:[%s3715 + $0x8] sm:$0xf]
        %v5255 = vld [vmem:[%s3715 + $0x10] sm:$0xf]
        %v5256 = vld [vmem:[%s3715 + $0x18] sm:$0xf]
        %v5257 = vld [vmem:[%s3715 + $0x20] sm:$0xf]
        %v5258 = vld [vmem:[%s3715 + $0x28] sm:$0xf]
        %v5259 = vld [vmem:[%s3715 + $0x30] sm:$0xf]
        %v5260 = vld [vmem:[%s3715 + $0x38] sm:$0xf]
        %s5261 = scalar_lea.vmem %s1, 448
        %v5262 = vld [vmem:[%s5261] sm:$0xf]
        %v5263 = vld [vmem:[%s5261 + $0x4] sm:$0xf]
        %v5264 = vld [vmem:[%s5261 + $0x8] sm:$0xf]
        %v5265 = vld [vmem:[%s5261 + $0xc] sm:$0xf]
        %v5266 = vld [vmem:[%s5261 + $0x10] sm:$0xf]
        %v5267 = vld [vmem:[%s5261 + $0x14] sm:$0xf]
        %v5268 = vld [vmem:[%s5261 + $0x18] sm:$0xf]
        %v5269 = vld [vmem:[%s5261 + $0x1c] sm:$0xf]
        %v5270 = vld [vmem:[%s5261 + $0x20] sm:$0xf]
        %v5271 = vld [vmem:[%s5261 + $0x24] sm:$0xf]
        %v5272 = vld [vmem:[%s5261 + $0x28] sm:$0xf]
        %v5273 = vld [vmem:[%s5261 + $0x2c] sm:$0xf]
        %v5274 = vld [vmem:[%s5261 + $0x30] sm:$0xf]
        %v5275 = vld [vmem:[%s5261 + $0x34] sm:$0xf]
        %v5276 = vld [vmem:[%s5261 + $0x38] sm:$0xf]
        %v5277 = vld [vmem:[%s5261 + $0x3c] sm:$0xf]
        %v5286 = vunpack.c.l.b16 %v5253
        %v5287 = vunpack.c.l.b16 %v5254
        %v5288 = vunpack.c.l.b16 %v5255
        %v5289 = vunpack.c.l.b16 %v5256
        %v5290 = vunpack.c.l.b16 %v5257
        %v5291 = vunpack.c.l.b16 %v5258
        %v5292 = vunpack.c.l.b16 %v5259
        %v5293 = vunpack.c.l.b16 %v5260
        %v5294 = vpack.c.b16 %v5287, %v5286
        %v5295 = vpack.c.b16 %v5289, %v5288
        %v5296 = vpack.c.b16 %v5291, %v5290
        %v5297 = vpack.c.b16 %v5293, %v5292
        %v5318 = vunpack.c.l.b16 %v5262
        %v5319 = vunpack.c.l.b16 %v5263
        %v5320 = vunpack.c.l.b16 %v5264
        %v5321 = vunpack.c.l.b16 %v5265
        %v5322 = vunpack.c.l.b16 %v5266
        %v5323 = vunpack.c.l.b16 %v5267
        %v5324 = vunpack.c.l.b16 %v5268
        %v5325 = vunpack.c.l.b16 %v5269
        %v5326 = vunpack.c.l.b16 %v5270
        %v5327 = vunpack.c.l.b16 %v5271
        %v5328 = vunpack.c.l.b16 %v5272
        %v5329 = vunpack.c.l.b16 %v5273
        %v5330 = vunpack.c.l.b16 %v5274
        %v5331 = vunpack.c.l.b16 %v5275
        %v5332 = vunpack.c.l.b16 %v5276
        %v5333 = vunpack.c.l.b16 %v5277
        %v5334 = vpack.c.b16 %v5319, %v5318
        %v5335 = vpack.c.b16 %v5321, %v5320
        %v5336 = vpack.c.b16 %v5323, %v5322
        %v5337 = vpack.c.b16 %v5325, %v5324
        %v5338 = vpack.c.b16 %v5327, %v5326
        %v5339 = vpack.c.b16 %v5329, %v5328
        %v5340 = vpack.c.b16 %v5331, %v5330
        %v5341 = vpack.c.b16 %v5333, %v5332
        %5350 = vmatprep.subr.bf16.mxu0 0
        %5351 = vmatpush1.bf16.msra.mxu0 %v5334
        %5352 = vmatprep.subr.bf16.mxu0 0
        %5353 = vmatpush1.bf16.msra.mxu0 %v5335
        %5354 = vmatprep.subr.bf16.mxu0 0
        %5355 = vmatpush1.bf16.msra.mxu0 %v5336
        %5356 = vmatprep.subr.bf16.mxu0 0
        %5357 = vmatpush1.bf16.msra.mxu0 %v5337
        %5358 = vmatprep.subr.bf16.mxu0 0
        %5359 = vmatpush1.bf16.msra.mxu0 %v5338
        %5360 = vmatprep.subr.bf16.mxu0 0
        %5361 = vmatpush1.bf16.msra.mxu0 %v5339
        %5362 = vmatprep.subr.bf16.mxu0 0
        %5363 = vmatpush1.bf16.msra.mxu0 %v5340
        %5364 = vmatprep.subr.bf16.mxu0 0
        %5365 = vmatpush1.bf16.msra.mxu0 %v5341
        %5366 = vmatprep.subr.bf16.mxu0 0
        %5367 = vmatpush1.bf16.msra.mxu0 0
        %5368 = vmatprep.subr.bf16.mxu0 0
        %5369 = vmatpush1.bf16.msra.mxu0 0
        %5370 = vmatprep.subr.bf16.mxu0 0
        %5371 = vmatpush1.bf16.msra.mxu0 0
        %5372 = vmatprep.subr.bf16.mxu0 0
        %5373 = vmatpush1.bf16.msra.mxu0 0
        %5374 = vmatprep.subr.bf16.mxu0 0
        %5375 = vmatpush1.bf16.msra.mxu0 0
        %5376 = vmatprep.subr.bf16.mxu0 0
        %5377 = vmatpush1.bf16.msra.mxu0 0
        %5378 = vmatprep.subr.bf16.mxu0 0
        %5379 = vmatpush1.bf16.msra.mxu0 0
        %5380 = vmatprep.subr.bf16.mxu0 0
        %5381 = vmatpush1.bf16.msra.mxu0 0
        %5382 = vmatprep.mubr.bf16.mxu0 0
        %5383 = vmatmul.mubr.bf16.gmra.mrb[0].mxu0 %v5294
        %v5384 = vpop.f32.mrb[0].mxu0
        %v5385 = vadd.f32 0.0, %v5384
        %v5386 = vpop.f32.mrb[0].mxu0
        %v5387 = vpop.f32.mrb[0].mxu0
        %v5388 = vadd.f32 0.0, %v5387
        %v5389 = vpop.f32.mrb[0].mxu0
        %5390 = vmatprep.mubr.bf16.mxu0 0
        %5391 = vmatmul.mubr.bf16.gmra.mrb[0].mxu0 %v5295
        %v5392 = vpop.f32.mrb[0].mxu0
        %v5393 = vadd.f32 0.0, %v5392
        %v5394 = vpop.f32.mrb[0].mxu0
        %v5395 = vpop.f32.mrb[0].mxu0
        %v5396 = vadd.f32 0.0, %v5395
        %v5397 = vpop.f32.mrb[0].mxu0
        %5398 = vmatprep.mubr.bf16.mxu0 0
        %5399 = vmatmul.mubr.bf16.gmra.mrb[0].mxu0 %v5296
        %v5400 = vpop.f32.mrb[0].mxu0
        %v5401 = vadd.f32 0.0, %v5400
        %v5402 = vpop.f32.mrb[0].mxu0
        %v5403 = vpop.f32.mrb[0].mxu0
        %v5404 = vadd.f32 0.0, %v5403
        %v5405 = vpop.f32.mrb[0].mxu0
        %5406 = vmatprep.mubr.bf16.mxu0 0
        %5407 = vmatmul.mubr.bf16.gmra.mrb[0].mxu0 %v5297
        %v5408 = vpop.f32.mrb[0].mxu0
        %v5409 = vadd.f32 0.0, %v5408
        %v5410 = vpop.f32.mrb[0].mxu0
        %v5411 = vpop.f32.mrb[0].mxu0
        %v5412 = vadd.f32 0.0, %v5411
        %v5413 = vpop.f32.mrb[0].mxu0
        %5414 = vdwg.mxu0
        %v5415 = vadd.f32 %v5245, %v5385
        %v5416 = vadd.f32 %v5246, %v5388
        %v5417 = vadd.f32 %v5247, %v5393
        %v5418 = vadd.f32 %v5248, %v5396
        %v5419 = vadd.f32 %v5249, %v5401
        %v5420 = vadd.f32 %v5250, %v5404
        %v5421 = vadd.f32 %v5251, %v5409
        %v5422 = vadd.f32 %v5252, %v5412
        %v5423 = vld [vmem:[%s3804] sm:$0xf]
        %v5424 = vld [vmem:[%s3804 + $0x4] sm:$0x1]
        %v5425 = vld [vmem:[%s3804 + $0x8] sm:$0xf]
        %v5426 = vld [vmem:[%s3804 + $0xc] sm:$0x1]
        %v5427 = vld [vmem:[%s3804 + $0x10] sm:$0xf]
        %v5428 = vld [vmem:[%s3804 + $0x14] sm:$0x1]
        %v5429 = vld [vmem:[%s3804 + $0x18] sm:$0xf]
        %v5430 = vld [vmem:[%s3804 + $0x1c] sm:$0x1]
        %v5431 = vld [vmem:[%s3804 + $0x20] sm:$0xf]
        %v5432 = vld [vmem:[%s3804 + $0x24] sm:$0x1]
        %v5433 = vld [vmem:[%s3804 + $0x28] sm:$0xf]
        %v5434 = vld [vmem:[%s3804 + $0x2c] sm:$0x1]
        %v5435 = vld [vmem:[%s3804 + $0x30] sm:$0xf]
        %v5436 = vld [vmem:[%s3804 + $0x34] sm:$0x1]
        %v5437 = vld [vmem:[%s3804 + $0x38] sm:$0xf]
        %v5438 = vld [vmem:[%s3804 + $0x3c] sm:$0x1]
        %v5440 = vshrl.u32 %v5423, 16
        %v5442 = vrot.slane %v5440, 4
        %v5443 = vshll.u32 %v5423, 16
        %v5445 = vrot.slane %v5443, 5
        %v5446 = vor.u32 %v5442, %v5445
        %v5447 = vrot.slane %v5446, 4
        %v5449 = vshll.u32 %v5424, 16
        %v5451 = vrot.slane %v5449, 5
        %v5452 = vsel %vm4194, %v5447, %v5451
        %v5454 = vshrl.u32 %v5425, 16
        %v5456 = vrot.slane %v5454, 4
        %v5457 = vshll.u32 %v5425, 16
        %v5459 = vrot.slane %v5457, 5
        %v5460 = vor.u32 %v5456, %v5459
        %v5461 = vrot.slane %v5460, 4
        %v5463 = vshll.u32 %v5426, 16
        %v5465 = vrot.slane %v5463, 5
        %v5466 = vsel %vm4194, %v5461, %v5465
        %v5468 = vshrl.u32 %v5427, 16
        %v5470 = vrot.slane %v5468, 4
        %v5471 = vshll.u32 %v5427, 16
        %v5473 = vrot.slane %v5471, 5
        %v5474 = vor.u32 %v5470, %v5473
        %v5475 = vrot.slane %v5474, 4
        %v5477 = vshll.u32 %v5428, 16
        %v5479 = vrot.slane %v5477, 5
        %v5480 = vsel %vm4194, %v5475, %v5479
        %v5482 = vshrl.u32 %v5429, 16
        %v5484 = vrot.slane %v5482, 4
        %v5485 = vshll.u32 %v5429, 16
        %v5487 = vrot.slane %v5485, 5
        %v5488 = vor.u32 %v5484, %v5487
        %v5489 = vrot.slane %v5488, 4
        %v5491 = vshll.u32 %v5430, 16
        %v5493 = vrot.slane %v5491, 5
        %v5494 = vsel %vm4194, %v5489, %v5493
        %v5496 = vshrl.u32 %v5431, 16
        %v5498 = vrot.slane %v5496, 4
        %v5499 = vshll.u32 %v5431, 16
        %v5501 = vrot.slane %v5499, 5
        %v5502 = vor.u32 %v5498, %v5501
        %v5503 = vrot.slane %v5502, 4
        %v5505 = vshll.u32 %v5432, 16
        %v5507 = vrot.slane %v5505, 5
        %v5508 = vsel %vm4194, %v5503, %v5507
        %v5510 = vshrl.u32 %v5433, 16
        %v5512 = vrot.slane %v5510, 4
        %v5513 = vshll.u32 %v5433, 16
        %v5515 = vrot.slane %v5513, 5
        %v5516 = vor.u32 %v5512, %v5515
        %v5517 = vrot.slane %v5516, 4
        %v5519 = vshll.u32 %v5434, 16
        %v5521 = vrot.slane %v5519, 5
        %v5522 = vsel %vm4194, %v5517, %v5521
        %v5524 = vshrl.u32 %v5435, 16
        %v5526 = vrot.slane %v5524, 4
        %v5527 = vshll.u32 %v5435, 16
        %v5529 = vrot.slane %v5527, 5
        %v5530 = vor.u32 %v5526, %v5529
        %v5531 = vrot.slane %v5530, 4
        %v5533 = vshll.u32 %v5436, 16
        %v5535 = vrot.slane %v5533, 5
        %v5536 = vsel %vm4194, %v5531, %v5535
        %v5538 = vshrl.u32 %v5437, 16
        %v5540 = vrot.slane %v5538, 4
        %v5541 = vshll.u32 %v5437, 16
        %v5543 = vrot.slane %v5541, 5
        %v5544 = vor.u32 %v5540, %v5543
        %v5545 = vrot.slane %v5544, 4
        %v5547 = vshll.u32 %v5438, 16
        %v5549 = vrot.slane %v5547, 5
        %v5550 = vsel %vm4194, %v5545, %v5549
        %s5551 = scalar_lea.vmem %s1, 512
        %v5552 = vld [vmem:[%s5551] sm:$0xf]
        %v5553 = vld [vmem:[%s5551 + $0x4] sm:$0xf]
        %v5554 = vld [vmem:[%s5551 + $0x8] sm:$0xf]
        %v5555 = vld [vmem:[%s5551 + $0xc] sm:$0xf]
        %v5556 = vld [vmem:[%s5551 + $0x10] sm:$0xf]
        %v5557 = vld [vmem:[%s5551 + $0x14] sm:$0xf]
        %v5558 = vld [vmem:[%s5551 + $0x18] sm:$0xf]
        %v5559 = vld [vmem:[%s5551 + $0x1c] sm:$0xf]
        %v5560 = vld [vmem:[%s5551 + $0x20] sm:$0xf]
        %v5561 = vld [vmem:[%s5551 + $0x24] sm:$0xf]
        %v5562 = vld [vmem:[%s5551 + $0x28] sm:$0xf]
        %v5563 = vld [vmem:[%s5551 + $0x2c] sm:$0xf]
        %v5564 = vld [vmem:[%s5551 + $0x30] sm:$0xf]
        %v5565 = vld [vmem:[%s5551 + $0x34] sm:$0xf]
        %v5566 = vld [vmem:[%s5551 + $0x38] sm:$0xf]
        %v5567 = vld [vmem:[%s5551 + $0x3c] sm:$0xf]
        %v5568 = vunpack.c.l.b16 %v5452
        %v5569 = vunpack.c.l.b16 %v5466
        %v5570 = vunpack.c.l.b16 %v5480
        %v5571 = vunpack.c.l.b16 %v5494
        %v5572 = vunpack.c.l.b16 %v5508
        %v5573 = vunpack.c.l.b16 %v5522
        %v5574 = vunpack.c.l.b16 %v5536
        %v5575 = vunpack.c.l.b16 %v5550
        %v5576 = vpack.c.b16 %v5569, %v5568
        %v5577 = vpack.c.b16 %v5571, %v5570
        %v5578 = vpack.c.b16 %v5573, %v5572
        %v5579 = vpack.c.b16 %v5575, %v5574
        %v5600 = vunpack.c.l.b16 %v5552
        %v5601 = vunpack.c.l.b16 %v5553
        %v5602 = vunpack.c.l.b16 %v5554
        %v5603 = vunpack.c.l.b16 %v5555
        %v5604 = vunpack.c.l.b16 %v5556
        %v5605 = vunpack.c.l.b16 %v5557
        %v5606 = vunpack.c.l.b16 %v5558
        %v5607 = vunpack.c.l.b16 %v5559
        %v5608 = vunpack.c.l.b16 %v5560
        %v5609 = vunpack.c.l.b16 %v5561
        %v5610 = vunpack.c.l.b16 %v5562
        %v5611 = vunpack.c.l.b16 %v5563
        %v5612 = vunpack.c.l.b16 %v5564
        %v5613 = vunpack.c.l.b16 %v5565
        %v5614 = vunpack.c.l.b16 %v5566
        %v5615 = vunpack.c.l.b16 %v5567
        %v5616 = vpack.c.b16 %v5601, %v5600
        %v5617 = vpack.c.b16 %v5603, %v5602
        %v5618 = vpack.c.b16 %v5605, %v5604
        %v5619 = vpack.c.b16 %v5607, %v5606
        %v5620 = vpack.c.b16 %v5609, %v5608
        %v5621 = vpack.c.b16 %v5611, %v5610
        %v5622 = vpack.c.b16 %v5613, %v5612
        %v5623 = vpack.c.b16 %v5615, %v5614
        %5632 = vmatprep.subr.bf16.mxu0 0
        %5633 = vmatpush1.bf16.msra.mxu0 %v5616
        %5634 = vmatprep.subr.bf16.mxu0 0
        %5635 = vmatpush1.bf16.msra.mxu0 %v5617
        %5636 = vmatprep.subr.bf16.mxu0 0
        %5637 = vmatpush1.bf16.msra.mxu0 %v5618
        %5638 = vmatprep.subr.bf16.mxu0 0
        %5639 = vmatpush1.bf16.msra.mxu0 %v5619
        %5640 = vmatprep.subr.bf16.mxu0 0
        %5641 = vmatpush1.bf16.msra.mxu0 %v5620
        %5642 = vmatprep.subr.bf16.mxu0 0
        %5643 = vmatpush1.bf16.msra.mxu0 %v5621
        %5644 = vmatprep.subr.bf16.mxu0 0
        %5645 = vmatpush1.bf16.msra.mxu0 %v5622
        %5646 = vmatprep.subr.bf16.mxu0 0
        %5647 = vmatpush1.bf16.msra.mxu0 %v5623
        %5648 = vmatprep.subr.bf16.mxu0 0
        %5649 = vmatpush1.bf16.msra.mxu0 0
        %5650 = vmatprep.subr.bf16.mxu0 0
        %5651 = vmatpush1.bf16.msra.mxu0 0
        %5652 = vmatprep.subr.bf16.mxu0 0
        %5653 = vmatpush1.bf16.msra.mxu0 0
        %5654 = vmatprep.subr.bf16.mxu0 0
        %5655 = vmatpush1.bf16.msra.mxu0 0
        %5656 = vmatprep.subr.bf16.mxu0 0
        %5657 = vmatpush1.bf16.msra.mxu0 0
        %5658 = vmatprep.subr.bf16.mxu0 0
        %5659 = vmatpush1.bf16.msra.mxu0 0
        %5660 = vmatprep.subr.bf16.mxu0 0
        %5661 = vmatpush1.bf16.msra.mxu0 0
        %5662 = vmatprep.subr.bf16.mxu0 0
        %5663 = vmatpush1.bf16.msra.mxu0 0
        %5664 = vmatprep.mubr.bf16.mxu0 0
        %5665 = vmatmul.mubr.bf16.gmra.mrb[0].mxu0 %v5576
        %v5666 = vpop.f32.mrb[0].mxu0
        %v5667 = vadd.f32 0.0, %v5666
        %v5668 = vpop.f32.mrb[0].mxu0
        %v5669 = vpop.f32.mrb[0].mxu0
        %v5670 = vadd.f32 0.0, %v5669
        %v5671 = vpop.f32.mrb[0].mxu0
        %5672 = vmatprep.mubr.bf16.mxu0 0
        %5673 = vmatmul.mubr.bf16.gmra.mrb[0].mxu0 %v5577
        %v5674 = vpop.f32.mrb[0].mxu0
        %v5675 = vadd.f32 0.0, %v5674
        %v5676 = vpop.f32.mrb[0].mxu0
        %v5677 = vpop.f32.mrb[0].mxu0
        %v5678 = vadd.f32 0.0, %v5677
        %v5679 = vpop.f32.mrb[0].mxu0
        %5680 = vmatprep.mubr.bf16.mxu0 0
        %5681 = vmatmul.mubr.bf16.gmra.mrb[0].mxu0 %v5578
        %v5682 = vpop.f32.mrb[0].mxu0
        %v5683 = vadd.f32 0.0, %v5682
        %v5684 = vpop.f32.mrb[0].mxu0
        %v5685 = vpop.f32.mrb[0].mxu0
        %v5686 = vadd.f32 0.0, %v5685
        %v5687 = vpop.f32.mrb[0].mxu0
        %5688 = vmatprep.mubr.bf16.mxu0 0
        %5689 = vmatmul.mubr.bf16.gmra.mrb[0].mxu0 %v5579
        %v5690 = vpop.f32.mrb[0].mxu0
        %v5691 = vadd.f32 0.0, %v5690
        %v5692 = vpop.f32.mrb[0].mxu0
        %v5693 = vpop.f32.mrb[0].mxu0
        %v5694 = vadd.f32 0.0, %v5693
        %v5695 = vpop.f32.mrb[0].mxu0
        %5696 = vdwg.mxu0
        %v5697 = vadd.f32 %v5415, %v5667
        %v5698 = vadd.f32 %v5416, %v5670
        %v5699 = vadd.f32 %v5417, %v5675
        %v5700 = vadd.f32 %v5418, %v5678
        %v5701 = vadd.f32 %v5419, %v5683
        %v5702 = vadd.f32 %v5420, %v5686
        %v5703 = vadd.f32 %v5421, %v5691
        %v5704 = vadd.f32 %v5422, %v5694
        %v5705 = vld [vmem:[%s5] sm:$0x1]
        %v5707 = vlaneseq
        %v5708 = vshrl.u32 %v5707, 7
        %v5709 = vsub.s32 0, %v5708
        %v5710 = vrot.slane %v5705, %v5709
        %v5712 = vadd.f32 %v5697, %v5710
        %v5713 = vadd.f32 %v5698, %v5710
        %v5714 = vadd.f32 %v5699, %v5710
        %v5715 = vadd.f32 %v5700, %v5710
        %v5716 = vadd.f32 %v5701, %v5710
        %v5717 = vadd.f32 %v5702, %v5710
        %v5718 = vadd.f32 %v5703, %v5710
        %v5719 = vadd.f32 %v5704, %v5710
        %vm5720 = vcmp.ge.f32.partialorder %v5712, 0.0
        %vm5721 = vcmp.ge.f32.partialorder %v5713, 0.0
        %vm5722 = vcmp.ge.f32.partialorder %v5714, 0.0
        %vm5723 = vcmp.ge.f32.partialorder %v5715, 0.0
        %vm5724 = vcmp.ge.f32.partialorder %v5716, 0.0
        %vm5725 = vcmp.ge.f32.partialorder %v5717, 0.0
        %vm5726 = vcmp.ge.f32.partialorder %v5718, 0.0
        %vm5727 = vcmp.ge.f32.partialorder %v5719, 0.0
        %v5728 = vmul.f32 %v5712, 0.01
        %v5729 = vmul.f32 %v5713, 0.01
        %v5730 = vmul.f32 %v5714, 0.01
        %v5731 = vmul.f32 %v5715, 0.01
        %v5732 = vmul.f32 %v5716, 0.01
        %v5733 = vmul.f32 %v5717, 0.01
        %v5734 = vmul.f32 %v5718, 0.01
        %v5735 = vmul.f32 %v5719, 0.01
        %v5736 = vsel %vm5720, %v5712, %v5728
        %v5737 = vsel %vm5721, %v5713, %v5729
        %v5738 = vsel %vm5722, %v5714, %v5730
        %v5739 = vsel %vm5723, %v5715, %v5731
        %v5740 = vsel %vm5724, %v5716, %v5732
        %v5741 = vsel %vm5725, %v5717, %v5733
        %v5742 = vsel %vm5726, %v5718, %v5734
        %v5743 = vsel %vm5727, %v5719, %v5735
        %v5744 = vpack.c.bf16 %v5737, %v5736
        %v5745 = vpack.c.bf16 %v5739, %v5738
        %v5746 = vpack.c.bf16 %v5741, %v5740
        %v5747 = vpack.c.bf16 %v5743, %v5742
        %vm5748 = vcmask 1042432
        %vm5749 = vsmask.f32 2304
        %vm5750 = vmand %vm5748, %vm5749
        %v5751 = vld [vmem:[#allocation3] sm:$0x7]
        %v5752 = vsel %vm5750, 0, %v5751
        %5753 = vst [vmem:[#allocation3] sm:$0x7] %v5752
        %s5754 = scalar_lea.vmem [#allocation3], 56
        %v5755 = vld [vmem:[%s5754] sm:$0x7]
        %v5756 = vsel %vm5750, 0, %v5755
        %5757 = vst [vmem:[%s5754] sm:$0x7] %v5756
        %v5758 = vld [vmem:[#allocation3] sm:$0x1]
        %v5759 = vsel %vm432, 0, %v5758
        %5760 = vst [vmem:[#allocation3] sm:$0x1] %v5759
        %v5761 = vld [vmem:[#allocation3 + $0x4] sm:$0x1]
        %v5762 = vsel %vm432, 0, %v5761
        %5763 = vst [vmem:[#allocation3 + $0x4] sm:$0x1] %v5762
        %v5764 = vld [vmem:[#allocation3 + $0x8] sm:$0x1]
        %v5765 = vsel %vm432, 0, %v5764
        %5766 = vst [vmem:[#allocation3 + $0x8] sm:$0x1] %v5765
        %v5767 = vld [vmem:[#allocation3 + $0xc] sm:$0x1]
        %v5768 = vsel %vm432, 0, %v5767
        %5769 = vst [vmem:[#allocation3 + $0xc] sm:$0x1] %v5768
        %v5770 = vld [vmem:[#allocation3 + $0x10] sm:$0x1]
        %v5771 = vsel %vm432, 0, %v5770
        %5772 = vst [vmem:[#allocation3 + $0x10] sm:$0x1] %v5771
        %s5773 = scalar_lea.vmem [#allocation3], 20
        %vm5774 = vcmask 1042434
        %vm5775 = vmand %vm5774, %vm5749
        %v5776 = vld [vmem:[%s5773] sm:$0x4]
        %v5777 = vsel %vm5775, 0, %v5776
        %5778 = vst [vmem:[%s5773] sm:$0x4] %v5777
        %v5779 = vld [vmem:[%s5773 + $0x4] sm:$0x4]
        %v5780 = vsel %vm5775, 0, %v5779
        %5781 = vst [vmem:[%s5773 + $0x4] sm:$0x4] %v5780
        %v5782 = vld [vmem:[%s5773 + $0x8] sm:$0x4]
        %v5783 = vsel %vm5775, 0, %v5782
        %5784 = vst [vmem:[%s5773 + $0x8] sm:$0x4] %v5783
        %v5785 = vld [vmem:[%s5773 + $0xc] sm:$0x4]
        %v5786 = vsel %vm5775, 0, %v5785
        %5787 = vst [vmem:[%s5773 + $0xc] sm:$0x4] %v5786
        %v5788 = vld [vmem:[%s5773 + $0x10] sm:$0x4]
        %v5789 = vsel %vm5775, 0, %v5788
        %5790 = vst [vmem:[%s5773 + $0x10] sm:$0x4] %v5789
        %v5791 = vld [vmem:[%s5773] sm:$0x7]
        %v5792 = vsel %vm5750, 0, %v5791
        %5793 = vst [vmem:[%s5773] sm:$0x7] %v5792
        %s5794 = scalar_lea.vmem [#allocation3], 76
        %v5795 = vld [vmem:[%s5794] sm:$0x7]
        %v5796 = vsel %vm5750, 0, %v5795
        %5797 = vst [vmem:[%s5794] sm:$0x7] %v5796
        %s5798 = scalar_lea.vmem [#allocation3], 40
        %v5799 = vld [vmem:[%s5798] sm:$0x1]
        %v5800 = vsel %vm432, 0, %v5799
        %5801 = vst [vmem:[%s5798] sm:$0x1] %v5800
        %v5802 = vld [vmem:[%s5798 + $0x4] sm:$0x1]
        %v5803 = vsel %vm432, 0, %v5802
        %5804 = vst [vmem:[%s5798 + $0x4] sm:$0x1] %v5803
        %v5805 = vld [vmem:[%s5798 + $0x8] sm:$0x1]
        %v5806 = vsel %vm432, 0, %v5805
        %5807 = vst [vmem:[%s5798 + $0x8] sm:$0x1] %v5806
        %v5808 = vld [vmem:[%s5798 + $0xc] sm:$0x1]
        %v5809 = vsel %vm432, 0, %v5808
        %5810 = vst [vmem:[%s5798 + $0xc] sm:$0x1] %v5809
        %v5811 = vld [vmem:[%s5798 + $0x10] sm:$0x1]
        %v5812 = vsel %vm432, 0, %v5811
        %5813 = vst [vmem:[%s5798 + $0x10] sm:$0x1] %v5812
        %s5814 = scalar_lea.vmem [#allocation3], 60
        %v5815 = vld [vmem:[%s5814] sm:$0x4]
        %v5816 = vsel %vm5775, 0, %v5815
        %5817 = vst [vmem:[%s5814] sm:$0x4] %v5816
        %v5818 = vld [vmem:[%s5814 + $0x4] sm:$0x4]
        %v5819 = vsel %vm5775, 0, %v5818
        %5820 = vst [vmem:[%s5814 + $0x4] sm:$0x4] %v5819
        %v5821 = vld [vmem:[%s5814 + $0x8] sm:$0x4]
        %v5822 = vsel %vm5775, 0, %v5821
        %5823 = vst [vmem:[%s5814 + $0x8] sm:$0x4] %v5822
        %v5824 = vld [vmem:[%s5814 + $0xc] sm:$0x4]
        %v5825 = vsel %vm5775, 0, %v5824
        %5826 = vst [vmem:[%s5814 + $0xc] sm:$0x4] %v5825
        %v5827 = vld [vmem:[%s5814 + $0x10] sm:$0x4]
        %v5828 = vsel %vm5775, 0, %v5827
        %5829 = vst [vmem:[%s5814 + $0x10] sm:$0x4] %v5828
        %v5834 = vcombine.high %v5744, %v5744
        %v5836 = vunpack.c.l.s4 1966171168
        %v5837 = vunpack.c.0.s8 %v5836
        %v5838 = vlaneseq
        %v5839 = vshrl.u32 %v5838, 7
        %v5840 = vsub.s32 %v5837, %v5839
        %v5841 = vrot.slane %v5744, %v5840
        %v5843 = vunpack.c.l.s4 1966171168
        %v5844 = vunpack.c.0.s8 %v5843
        %v5845 = vlaneseq
        %v5846 = vshrl.u32 %v5845, 7
        %v5847 = vsub.s32 %v5844, %v5846
        %v5848 = vrot.slane %v5834, %v5847
        %v5849 = vcombine.high %v5841, %v5841
        %v5850 = vcombine.high %v5848, %v5848
        %v5852 = vunpack.c.l.s4 1966171168
        %v5853 = vunpack.c.0.s8 %v5852
        %v5854 = vlaneseq
        %v5855 = vshrl.u32 %v5854, 7
        %v5856 = vsub.s32 %v5853, %v5855
        %v5857 = vrot.slane %v5841, %v5856
        %v5859 = vunpack.c.l.s4 1966171168
        %v5860 = vunpack.c.0.s8 %v5859
        %v5861 = vlaneseq
        %v5862 = vshrl.u32 %v5861, 7
        %v5863 = vsub.s32 %v5860, %v5862
        %v5864 = vrot.slane %v5848, %v5863
        %v5866 = vunpack.c.l.s4 1966171168
        %v5867 = vunpack.c.0.s8 %v5866
        %v5868 = vlaneseq
        %v5869 = vshrl.u32 %v5868, 7
        %v5870 = vsub.s32 %v5867, %v5869
        %v5871 = vrot.slane %v5849, %v5870
        %v5873 = vunpack.c.l.s4 1966171168
        %v5874 = vunpack.c.0.s8 %v5873
        %v5875 = vlaneseq
        %v5876 = vshrl.u32 %v5875, 7
        %v5877 = vsub.s32 %v5874, %v5876
        %v5878 = vrot.slane %v5850, %v5877
        %v5879 = vcombine.high %v5857, %v5857
        %v5880 = vcombine.high %v5864, %v5864
        %v5881 = vcombine.high %v5871, %v5871
        %v5882 = vcombine.high %v5878, %v5878
        %v5883 = vcombine.high %v5745, %v5745
        %v5885 = vunpack.c.l.s4 1966171168
        %v5886 = vunpack.c.0.s8 %v5885
        %v5887 = vlaneseq
        %v5888 = vshrl.u32 %v5887, 7
        %v5889 = vsub.s32 %v5886, %v5888
        %v5890 = vrot.slane %v5745, %v5889
        %v5892 = vunpack.c.l.s4 1966171168
        %v5893 = vunpack.c.0.s8 %v5892
        %v5894 = vlaneseq
        %v5895 = vshrl.u32 %v5894, 7
        %v5896 = vsub.s32 %v5893, %v5895
        %v5897 = vrot.slane %v5883, %v5896
        %v5898 = vcombine.high %v5890, %v5890
        %v5899 = vcombine.high %v5897, %v5897
        %v5901 = vunpack.c.l.s4 1966171168
        %v5902 = vunpack.c.0.s8 %v5901
        %v5903 = vlaneseq
        %v5904 = vshrl.u32 %v5903, 7
        %v5905 = vsub.s32 %v5902, %v5904
        %v5906 = vrot.slane %v5890, %v5905
        %v5908 = vunpack.c.l.s4 1966171168
        %v5909 = vunpack.c.0.s8 %v5908
        %v5910 = vlaneseq
        %v5911 = vshrl.u32 %v5910, 7
        %v5912 = vsub.s32 %v5909, %v5911
        %v5913 = vrot.slane %v5897, %v5912
        %v5915 = vunpack.c.l.s4 1966171168
        %v5916 = vunpack.c.0.s8 %v5915
        %v5917 = vlaneseq
        %v5918 = vshrl.u32 %v5917, 7
        %v5919 = vsub.s32 %v5916, %v5918
        %v5920 = vrot.slane %v5898, %v5919
        %v5922 = vunpack.c.l.s4 1966171168
        %v5923 = vunpack.c.0.s8 %v5922
        %v5924 = vlaneseq
        %v5925 = vshrl.u32 %v5924, 7
        %v5926 = vsub.s32 %v5923, %v5925
        %v5927 = vrot.slane %v5899, %v5926
        %v5928 = vcombine.high %v5906, %v5906
        %v5929 = vcombine.high %v5913, %v5913
        %v5930 = vcombine.high %v5920, %v5920
        %v5931 = vcombine.high %v5927, %v5927
        %v5932 = vcombine.high %v5746, %v5746
        %v5934 = vunpack.c.l.s4 1966171168
        %v5935 = vunpack.c.0.s8 %v5934
        %v5936 = vlaneseq
        %v5937 = vshrl.u32 %v5936, 7
        %v5938 = vsub.s32 %v5935, %v5937
        %v5939 = vrot.slane %v5746, %v5938
        %v5941 = vunpack.c.l.s4 1966171168
        %v5942 = vunpack.c.0.s8 %v5941
        %v5943 = vlaneseq
        %v5944 = vshrl.u32 %v5943, 7
        %v5945 = vsub.s32 %v5942, %v5944
        %v5946 = vrot.slane %v5932, %v5945
        %v5947 = vcombine.high %v5939, %v5939
        %v5948 = vcombine.high %v5946, %v5946
        %v5950 = vunpack.c.l.s4 1966171168
        %v5951 = vunpack.c.0.s8 %v5950
        %v5952 = vlaneseq
        %v5953 = vshrl.u32 %v5952, 7
        %v5954 = vsub.s32 %v5951, %v5953
        %v5955 = vrot.slane %v5939, %v5954
        %v5957 = vunpack.c.l.s4 1966171168
        %v5958 = vunpack.c.0.s8 %v5957
        %v5959 = vlaneseq
        %v5960 = vshrl.u32 %v5959, 7
        %v5961 = vsub.s32 %v5958, %v5960
        %v5962 = vrot.slane %v5946, %v5961
        %v5964 = vunpack.c.l.s4 1966171168
        %v5965 = vunpack.c.0.s8 %v5964
        %v5966 = vlaneseq
        %v5967 = vshrl.u32 %v5966, 7
        %v5968 = vsub.s32 %v5965, %v5967
        %v5969 = vrot.slane %v5947, %v5968
        %v5971 = vunpack.c.l.s4 1966171168
        %v5972 = vunpack.c.0.s8 %v5971
        %v5973 = vlaneseq
        %v5974 = vshrl.u32 %v5973, 7
        %v5975 = vsub.s32 %v5972, %v5974
        %v5976 = vrot.slane %v5948, %v5975
        %v5977 = vcombine.high %v5955, %v5955
        %v5978 = vcombine.high %v5962, %v5962
        %v5979 = vcombine.high %v5969, %v5969
        %v5980 = vcombine.high %v5976, %v5976
        %v5981 = vcombine.high %v5747, %v5747
        %v5983 = vunpack.c.l.s4 1966171168
        %v5984 = vunpack.c.0.s8 %v5983
        %v5985 = vlaneseq
        %v5986 = vshrl.u32 %v5985, 7
        %v5987 = vsub.s32 %v5984, %v5986
        %v5988 = vrot.slane %v5747, %v5987
        %v5990 = vunpack.c.l.s4 1966171168
        %v5991 = vunpack.c.0.s8 %v5990
        %v5992 = vlaneseq
        %v5993 = vshrl.u32 %v5992, 7
        %v5994 = vsub.s32 %v5991, %v5993
        %v5995 = vrot.slane %v5981, %v5994
        %v5996 = vcombine.high %v5988, %v5988
        %v5997 = vcombine.high %v5995, %v5995
        %v5999 = vunpack.c.l.s4 1966171168
        %v6000 = vunpack.c.0.s8 %v5999
        %v6001 = vlaneseq
        %v6002 = vshrl.u32 %v6001, 7
        %v6003 = vsub.s32 %v6000, %v6002
        %v6004 = vrot.slane %v5988, %v6003
        %v6006 = vunpack.c.l.s4 1966171168
        %v6007 = vunpack.c.0.s8 %v6006
        %v6008 = vlaneseq
        %v6009 = vshrl.u32 %v6008, 7
        %v6010 = vsub.s32 %v6007, %v6009
        %v6011 = vrot.slane %v5995, %v6010
        %v6013 = vunpack.c.l.s4 1966171168
        %v6014 = vunpack.c.0.s8 %v6013
        %v6015 = vlaneseq
        %v6016 = vshrl.u32 %v6015, 7
        %v6017 = vsub.s32 %v6014, %v6016
        %v6018 = vrot.slane %v5996, %v6017
        %v6020 = vunpack.c.l.s4 1966171168
        %v6021 = vunpack.c.0.s8 %v6020
        %v6022 = vlaneseq
        %v6023 = vshrl.u32 %v6022, 7
        %v6024 = vsub.s32 %v6021, %v6023
        %v6025 = vrot.slane %v5997, %v6024
        %v6026 = vcombine.high %v6004, %v6004
        %v6027 = vcombine.high %v6011, %v6011
        %v6028 = vcombine.high %v6018, %v6018
        %v6029 = vcombine.high %v6025, %v6025
        %v6031 = vunpack.c.l.s4 1935823168
        %v6032 = vunpack.c.0.s8 %v6031
        %v6033 = vlaneseq
        %v6034 = vshrl.u32 %v6033, 7
        %v6035 = vsub.s32 %v6032, %v6034
        %v6036 = vrot.slane %v5857, %v6035
        %v6038 = vunpack.c.l.s4 1935823168
        %v6039 = vunpack.c.0.s8 %v6038
        %v6040 = vlaneseq
        %v6041 = vshrl.u32 %v6040, 7
        %v6042 = vsub.s32 %v6039, %v6041
        %v6043 = vrot.slane %v6036, %v6042
        %v6045 = vunpack.c.l.s4 1935823168
        %v6046 = vunpack.c.0.s8 %v6045
        %v6047 = vlaneseq
        %v6048 = vshrl.u32 %v6047, 7
        %v6049 = vsub.s32 %v6046, %v6048
        %v6050 = vrot.slane %v5871, %v6049
        %v6052 = vunpack.c.l.s4 1935823168
        %v6053 = vunpack.c.0.s8 %v6052
        %v6054 = vlaneseq
        %v6055 = vshrl.u32 %v6054, 7
        %v6056 = vsub.s32 %v6053, %v6055
        %v6057 = vrot.slane %v6050, %v6056
        %v6059 = vunpack.c.l.s4 1935823168
        %v6060 = vunpack.c.0.s8 %v6059
        %v6061 = vlaneseq
        %v6062 = vshrl.u32 %v6061, 7
        %v6063 = vsub.s32 %v6060, %v6062
        %v6064 = vrot.slane %v5879, %v6063
        %v6066 = vunpack.c.l.s4 1935823168
        %v6067 = vunpack.c.0.s8 %v6066
        %v6068 = vlaneseq
        %v6069 = vshrl.u32 %v6068, 7
        %v6070 = vsub.s32 %v6067, %v6069
        %v6071 = vrot.slane %v6064, %v6070
        %v6073 = vunpack.c.l.s4 1935823168
        %v6074 = vunpack.c.0.s8 %v6073
        %v6075 = vlaneseq
        %v6076 = vshrl.u32 %v6075, 7
        %v6077 = vsub.s32 %v6074, %v6076
        %v6078 = vrot.slane %v5881, %v6077
        %v6080 = vunpack.c.l.s4 1935823168
        %v6081 = vunpack.c.0.s8 %v6080
        %v6082 = vlaneseq
        %v6083 = vshrl.u32 %v6082, 7
        %v6084 = vsub.s32 %v6081, %v6083
        %v6085 = vrot.slane %v6078, %v6084
        %v6087 = vunpack.c.l.s4 1935823168
        %v6088 = vunpack.c.0.s8 %v6087
        %v6089 = vlaneseq
        %v6090 = vshrl.u32 %v6089, 7
        %v6091 = vsub.s32 %v6088, %v6090
        %v6092 = vrot.slane %v5906, %v6091
        %v6094 = vunpack.c.l.s4 1935823168
        %v6095 = vunpack.c.0.s8 %v6094
        %v6096 = vlaneseq
        %v6097 = vshrl.u32 %v6096, 7
        %v6098 = vsub.s32 %v6095, %v6097
        %v6099 = vrot.slane %v6092, %v6098
        %v6101 = vunpack.c.l.s4 1935823168
        %v6102 = vunpack.c.0.s8 %v6101
        %v6103 = vlaneseq
        %v6104 = vshrl.u32 %v6103, 7
        %v6105 = vsub.s32 %v6102, %v6104
        %v6106 = vrot.slane %v5920, %v6105
        %v6108 = vunpack.c.l.s4 1935823168
        %v6109 = vunpack.c.0.s8 %v6108
        %v6110 = vlaneseq
        %v6111 = vshrl.u32 %v6110, 7
        %v6112 = vsub.s32 %v6109, %v6111
        %v6113 = vrot.slane %v6106, %v6112
        %v6115 = vunpack.c.l.s4 1935823168
        %v6116 = vunpack.c.0.s8 %v6115
        %v6117 = vlaneseq
        %v6118 = vshrl.u32 %v6117, 7
        %v6119 = vsub.s32 %v6116, %v6118
        %v6120 = vrot.slane %v5928, %v6119
        %v6122 = vunpack.c.l.s4 1935823168
        %v6123 = vunpack.c.0.s8 %v6122
        %v6124 = vlaneseq
        %v6125 = vshrl.u32 %v6124, 7
        %v6126 = vsub.s32 %v6123, %v6125
        %v6127 = vrot.slane %v6120, %v6126
        %v6129 = vunpack.c.l.s4 1935823168
        %v6130 = vunpack.c.0.s8 %v6129
        %v6131 = vlaneseq
        %v6132 = vshrl.u32 %v6131, 7
        %v6133 = vsub.s32 %v6130, %v6132
        %v6134 = vrot.slane %v5930, %v6133
        %v6136 = vunpack.c.l.s4 1935823168
        %v6137 = vunpack.c.0.s8 %v6136
        %v6138 = vlaneseq
        %v6139 = vshrl.u32 %v6138, 7
        %v6140 = vsub.s32 %v6137, %v6139
        %v6141 = vrot.slane %v6134, %v6140
        %v6143 = vunpack.c.l.s4 1935823168
        %v6144 = vunpack.c.0.s8 %v6143
        %v6145 = vlaneseq
        %v6146 = vshrl.u32 %v6145, 7
        %v6147 = vsub.s32 %v6144, %v6146
        %v6148 = vrot.slane %v5955, %v6147
        %v6150 = vunpack.c.l.s4 1935823168
        %v6151 = vunpack.c.0.s8 %v6150
        %v6152 = vlaneseq
        %v6153 = vshrl.u32 %v6152, 7
        %v6154 = vsub.s32 %v6151, %v6153
        %v6155 = vrot.slane %v6148, %v6154
        %v6157 = vunpack.c.l.s4 1935823168
        %v6158 = vunpack.c.0.s8 %v6157
        %v6159 = vlaneseq
        %v6160 = vshrl.u32 %v6159, 7
        %v6161 = vsub.s32 %v6158, %v6160
        %v6162 = vrot.slane %v5969, %v6161
        %v6164 = vunpack.c.l.s4 1935823168
        %v6165 = vunpack.c.0.s8 %v6164
        %v6166 = vlaneseq
        %v6167 = vshrl.u32 %v6166, 7
        %v6168 = vsub.s32 %v6165, %v6167
        %v6169 = vrot.slane %v6162, %v6168
        %v6171 = vunpack.c.l.s4 1935823168
        %v6172 = vunpack.c.0.s8 %v6171
        %v6173 = vlaneseq
        %v6174 = vshrl.u32 %v6173, 7
        %v6175 = vsub.s32 %v6172, %v6174
        %v6176 = vrot.slane %v5977, %v6175
        %v6178 = vunpack.c.l.s4 1935823168
        %v6179 = vunpack.c.0.s8 %v6178
        %v6180 = vlaneseq
        %v6181 = vshrl.u32 %v6180, 7
        %v6182 = vsub.s32 %v6179, %v6181
        %v6183 = vrot.slane %v6176, %v6182
        %v6185 = vunpack.c.l.s4 1935823168
        %v6186 = vunpack.c.0.s8 %v6185
        %v6187 = vlaneseq
        %v6188 = vshrl.u32 %v6187, 7
        %v6189 = vsub.s32 %v6186, %v6188
        %v6190 = vrot.slane %v5979, %v6189
        %v6192 = vunpack.c.l.s4 1935823168
        %v6193 = vunpack.c.0.s8 %v6192
        %v6194 = vlaneseq
        %v6195 = vshrl.u32 %v6194, 7
        %v6196 = vsub.s32 %v6193, %v6195
        %v6197 = vrot.slane %v6190, %v6196
        %v6199 = vunpack.c.l.s4 1935823168
        %v6200 = vunpack.c.0.s8 %v6199
        %v6201 = vlaneseq
        %v6202 = vshrl.u32 %v6201, 7
        %v6203 = vsub.s32 %v6200, %v6202
        %v6204 = vrot.slane %v6004, %v6203
        %v6206 = vunpack.c.l.s4 1935823168
        %v6207 = vunpack.c.0.s8 %v6206
        %v6208 = vlaneseq
        %v6209 = vshrl.u32 %v6208, 7
        %v6210 = vsub.s32 %v6207, %v6209
        %v6211 = vrot.slane %v6204, %v6210
        %v6213 = vunpack.c.l.s4 1935823168
        %v6214 = vunpack.c.0.s8 %v6213
        %v6215 = vlaneseq
        %v6216 = vshrl.u32 %v6215, 7
        %v6217 = vsub.s32 %v6214, %v6216
        %v6218 = vrot.slane %v6018, %v6217
        %v6220 = vunpack.c.l.s4 1935823168
        %v6221 = vunpack.c.0.s8 %v6220
        %v6222 = vlaneseq
        %v6223 = vshrl.u32 %v6222, 7
        %v6224 = vsub.s32 %v6221, %v6223
        %v6225 = vrot.slane %v6218, %v6224
        %v6227 = vunpack.c.l.s4 1935823168
        %v6228 = vunpack.c.0.s8 %v6227
        %v6229 = vlaneseq
        %v6230 = vshrl.u32 %v6229, 7
        %v6231 = vsub.s32 %v6228, %v6230
        %v6232 = vrot.slane %v6026, %v6231
        %v6234 = vunpack.c.l.s4 1935823168
        %v6235 = vunpack.c.0.s8 %v6234
        %v6236 = vlaneseq
        %v6237 = vshrl.u32 %v6236, 7
        %v6238 = vsub.s32 %v6235, %v6237
        %v6239 = vrot.slane %v6232, %v6238
        %v6241 = vunpack.c.l.s4 1935823168
        %v6242 = vunpack.c.0.s8 %v6241
        %v6243 = vlaneseq
        %v6244 = vshrl.u32 %v6243, 7
        %v6245 = vsub.s32 %v6242, %v6244
        %v6246 = vrot.slane %v6028, %v6245
        %v6248 = vunpack.c.l.s4 1935823168
        %v6249 = vunpack.c.0.s8 %v6248
        %v6250 = vlaneseq
        %v6251 = vshrl.u32 %v6250, 7
        %v6252 = vsub.s32 %v6249, %v6251
        %v6253 = vrot.slane %v6246, %v6252
        %v6254 = vunpack.c.l.b16 %v6043
        %v6255 = vunpack.c.l.b16 %v6057
        %v6256 = vunpack.c.l.b16 %v6071
        %v6257 = vunpack.c.l.b16 %v6085
        %v6258 = vunpack.c.l.b16 %v6099
        %v6259 = vunpack.c.l.b16 %v6113
        %v6260 = vunpack.c.l.b16 %v6127
        %v6261 = vunpack.c.l.b16 %v6141
        %v6262 = vunpack.c.l.b16 %v6155
        %v6263 = vunpack.c.l.b16 %v6169
        %v6264 = vunpack.c.l.b16 %v6183
        %v6265 = vunpack.c.l.b16 %v6197
        %v6266 = vunpack.c.l.b16 %v6211
        %v6267 = vunpack.c.l.b16 %v6225
        %v6268 = vunpack.c.l.b16 %v6239
        %v6269 = vunpack.c.l.b16 %v6253
        %v6270 = vrot.slane %v6255, 7
        %v6271 = vsel %vm2354, %v6270, %v6254
        %v6272 = vrot.slane %v6256, 6
        %v6273 = vsel %vm2357, %v6272, %v6271
        %v6274 = vrot.slane %v6257, 5
        %v6275 = vsel %vm2360, %v6274, %v6273
        %v6276 = vrot.slane %v6259, 7
        %v6277 = vsel %vm2354, %v6276, %v6258
        %v6278 = vrot.slane %v6260, 6
        %v6279 = vsel %vm2357, %v6278, %v6277
        %v6280 = vrot.slane %v6261, 5
        %v6281 = vsel %vm2360, %v6280, %v6279
        %v6282 = vrot.slane %v6263, 7
        %v6283 = vsel %vm2354, %v6282, %v6262
        %v6284 = vrot.slane %v6264, 6
        %v6285 = vsel %vm2357, %v6284, %v6283
        %v6286 = vrot.slane %v6265, 5
        %v6287 = vsel %vm2360, %v6286, %v6285
        %v6288 = vrot.slane %v6267, 7
        %v6289 = vsel %vm2354, %v6288, %v6266
        %v6290 = vrot.slane %v6268, 6
        %v6291 = vsel %vm2357, %v6290, %v6289
        %v6292 = vrot.slane %v6269, 5
        %v6293 = vsel %vm2360, %v6292, %v6291
        %v6294 = vpack.c.b16 %v6275, %v6275
        %v6295 = vpack.c.b16 %v6281, %v6281
        %v6296 = vpack.c.b16 %v6287, %v6287
        %v6297 = vpack.c.b16 %v6293, %v6293
        %6302 = vst [vmem:[%s5814] sm:$0x3] %v6294
        %6303 = vst [vmem:[%s5814 + $0x4] sm:$0x3] %v6295
        %6304 = vst [vmem:[%s5814 + $0x8] sm:$0x3] %v6296
        %6305 = vst [vmem:[%s5814 + $0xc] sm:$0x3] %v6297
        %v6306 = vsel %vm2357, %v6270, %v6254
        %v6307 = vsel %vm2360, %v6272, %v6306
        %v6308 = vsel %vm2363, %v6274, %v6307
        %v6309 = vsel %vm2357, %v6276, %v6258
        %v6310 = vsel %vm2360, %v6278, %v6309
        %v6311 = vsel %vm2363, %v6280, %v6310
        %v6312 = vsel %vm2357, %v6282, %v6262
        %v6313 = vsel %vm2360, %v6284, %v6312
        %v6314 = vsel %vm2363, %v6286, %v6313
        %v6315 = vsel %vm2357, %v6288, %v6266
        %v6316 = vsel %vm2360, %v6290, %v6315
        %v6317 = vsel %vm2363, %v6292, %v6316
        %v6318 = vpack.c.b16 %v6308, %v6308
        %v6319 = vpack.c.b16 %v6311, %v6311
        %v6320 = vpack.c.b16 %v6314, %v6314
        %v6321 = vpack.c.b16 %v6317, %v6317
        %vm6326 = vsmask.f32 2306
        %vm6327 = vmand %vm5748, %vm6326
        %v6328 = vld [vmem:[%s5798] sm:$0x7]
        %v6329 = vsel %vm6327, %v6318, %v6328
        %6330 = vst [vmem:[%s5798] sm:$0x7] %v6329
        %v6331 = vld [vmem:[%s5798 + $0x4] sm:$0x7]
        %v6332 = vsel %vm6327, %v6319, %v6331
        %6333 = vst [vmem:[%s5798 + $0x4] sm:$0x7] %v6332
        %v6334 = vld [vmem:[%s5798 + $0x8] sm:$0x7]
        %v6335 = vsel %vm6327, %v6320, %v6334
        %6336 = vst [vmem:[%s5798 + $0x8] sm:$0x7] %v6335
        %v6337 = vld [vmem:[%s5798 + $0xc] sm:$0x7]
        %v6338 = vsel %vm6327, %v6321, %v6337
        %6339 = vst [vmem:[%s5798 + $0xc] sm:$0x7] %v6338
        %v6341 = vunpack.c.l.s4 1935823168
        %v6342 = vunpack.c.0.s8 %v6341
        %v6343 = vlaneseq
        %v6344 = vshrl.u32 %v6343, 7
        %v6345 = vsub.s32 %v6342, %v6344
        %v6346 = vrot.slane %v5864, %v6345
        %v6348 = vunpack.c.l.s4 1935823168
        %v6349 = vunpack.c.0.s8 %v6348
        %v6350 = vlaneseq
        %v6351 = vshrl.u32 %v6350, 7
        %v6352 = vsub.s32 %v6349, %v6351
        %v6353 = vrot.slane %v6346, %v6352
        %v6355 = vunpack.c.l.s4 1935823168
        %v6356 = vunpack.c.0.s8 %v6355
        %v6357 = vlaneseq
        %v6358 = vshrl.u32 %v6357, 7
        %v6359 = vsub.s32 %v6356, %v6358
        %v6360 = vrot.slane %v5878, %v6359
        %v6362 = vunpack.c.l.s4 1935823168
        %v6363 = vunpack.c.0.s8 %v6362
        %v6364 = vlaneseq
        %v6365 = vshrl.u32 %v6364, 7
        %v6366 = vsub.s32 %v6363, %v6365
        %v6367 = vrot.slane %v6360, %v6366
        %v6369 = vunpack.c.l.s4 1935823168
        %v6370 = vunpack.c.0.s8 %v6369
        %v6371 = vlaneseq
        %v6372 = vshrl.u32 %v6371, 7
        %v6373 = vsub.s32 %v6370, %v6372
        %v6374 = vrot.slane %v5880, %v6373
        %v6376 = vunpack.c.l.s4 1935823168
        %v6377 = vunpack.c.0.s8 %v6376
        %v6378 = vlaneseq
        %v6379 = vshrl.u32 %v6378, 7
        %v6380 = vsub.s32 %v6377, %v6379
        %v6381 = vrot.slane %v6374, %v6380
        %v6383 = vunpack.c.l.s4 1935823168
        %v6384 = vunpack.c.0.s8 %v6383
        %v6385 = vlaneseq
        %v6386 = vshrl.u32 %v6385, 7
        %v6387 = vsub.s32 %v6384, %v6386
        %v6388 = vrot.slane %v5882, %v6387
        %v6390 = vunpack.c.l.s4 1935823168
        %v6391 = vunpack.c.0.s8 %v6390
        %v6392 = vlaneseq
        %v6393 = vshrl.u32 %v6392, 7
        %v6394 = vsub.s32 %v6391, %v6393
        %v6395 = vrot.slane %v6388, %v6394
        %v6397 = vunpack.c.l.s4 1935823168
        %v6398 = vunpack.c.0.s8 %v6397
        %v6399 = vlaneseq
        %v6400 = vshrl.u32 %v6399, 7
        %v6401 = vsub.s32 %v6398, %v6400
        %v6402 = vrot.slane %v5913, %v6401
        %v6404 = vunpack.c.l.s4 1935823168
        %v6405 = vunpack.c.0.s8 %v6404
        %v6406 = vlaneseq
        %v6407 = vshrl.u32 %v6406, 7
        %v6408 = vsub.s32 %v6405, %v6407
        %v6409 = vrot.slane %v6402, %v6408
        %v6411 = vunpack.c.l.s4 1935823168
        %v6412 = vunpack.c.0.s8 %v6411
        %v6413 = vlaneseq
        %v6414 = vshrl.u32 %v6413, 7
        %v6415 = vsub.s32 %v6412, %v6414
        %v6416 = vrot.slane %v5927, %v6415
        %v6418 = vunpack.c.l.s4 1935823168
        %v6419 = vunpack.c.0.s8 %v6418
        %v6420 = vlaneseq
        %v6421 = vshrl.u32 %v6420, 7
        %v6422 = vsub.s32 %v6419, %v6421
        %v6423 = vrot.slane %v6416, %v6422
        %v6425 = vunpack.c.l.s4 1935823168
        %v6426 = vunpack.c.0.s8 %v6425
        %v6427 = vlaneseq
        %v6428 = vshrl.u32 %v6427, 7
        %v6429 = vsub.s32 %v6426, %v6428
        %v6430 = vrot.slane %v5929, %v6429
        %v6432 = vunpack.c.l.s4 1935823168
        %v6433 = vunpack.c.0.s8 %v6432
        %v6434 = vlaneseq
        %v6435 = vshrl.u32 %v6434, 7
        %v6436 = vsub.s32 %v6433, %v6435
        %v6437 = vrot.slane %v6430, %v6436
        %v6439 = vunpack.c.l.s4 1935823168
        %v6440 = vunpack.c.0.s8 %v6439
        %v6441 = vlaneseq
        %v6442 = vshrl.u32 %v6441, 7
        %v6443 = vsub.s32 %v6440, %v6442
        %v6444 = vrot.slane %v5931, %v6443
        %v6446 = vunpack.c.l.s4 1935823168
        %v6447 = vunpack.c.0.s8 %v6446
        %v6448 = vlaneseq
        %v6449 = vshrl.u32 %v6448, 7
        %v6450 = vsub.s32 %v6447, %v6449
        %v6451 = vrot.slane %v6444, %v6450
        %v6453 = vunpack.c.l.s4 1935823168
        %v6454 = vunpack.c.0.s8 %v6453
        %v6455 = vlaneseq
        %v6456 = vshrl.u32 %v6455, 7
        %v6457 = vsub.s32 %v6454, %v6456
        %v6458 = vrot.slane %v5962, %v6457
        %v6460 = vunpack.c.l.s4 1935823168
        %v6461 = vunpack.c.0.s8 %v6460
        %v6462 = vlaneseq
        %v6463 = vshrl.u32 %v6462, 7
        %v6464 = vsub.s32 %v6461, %v6463
        %v6465 = vrot.slane %v6458, %v6464
        %v6467 = vunpack.c.l.s4 1935823168
        %v6468 = vunpack.c.0.s8 %v6467
        %v6469 = vlaneseq
        %v6470 = vshrl.u32 %v6469, 7
        %v6471 = vsub.s32 %v6468, %v6470
        %v6472 = vrot.slane %v5976, %v6471
        %v6474 = vunpack.c.l.s4 1935823168
        %v6475 = vunpack.c.0.s8 %v6474
        %v6476 = vlaneseq
        %v6477 = vshrl.u32 %v6476, 7
        %v6478 = vsub.s32 %v6475, %v6477
        %v6479 = vrot.slane %v6472, %v6478
        %v6481 = vunpack.c.l.s4 1935823168
        %v6482 = vunpack.c.0.s8 %v6481
        %v6483 = vlaneseq
        %v6484 = vshrl.u32 %v6483, 7
        %v6485 = vsub.s32 %v6482, %v6484
        %v6486 = vrot.slane %v5978, %v6485
        %v6488 = vunpack.c.l.s4 1935823168
        %v6489 = vunpack.c.0.s8 %v6488
        %v6490 = vlaneseq
        %v6491 = vshrl.u32 %v6490, 7
        %v6492 = vsub.s32 %v6489, %v6491
        %v6493 = vrot.slane %v6486, %v6492
        %v6495 = vunpack.c.l.s4 1935823168
        %v6496 = vunpack.c.0.s8 %v6495
        %v6497 = vlaneseq
        %v6498 = vshrl.u32 %v6497, 7
        %v6499 = vsub.s32 %v6496, %v6498
        %v6500 = vrot.slane %v5980, %v6499
        %v6502 = vunpack.c.l.s4 1935823168
        %v6503 = vunpack.c.0.s8 %v6502
        %v6504 = vlaneseq
        %v6505 = vshrl.u32 %v6504, 7
        %v6506 = vsub.s32 %v6503, %v6505
        %v6507 = vrot.slane %v6500, %v6506
        %v6509 = vunpack.c.l.s4 1935823168
        %v6510 = vunpack.c.0.s8 %v6509
        %v6511 = vlaneseq
        %v6512 = vshrl.u32 %v6511, 7
        %v6513 = vsub.s32 %v6510, %v6512
        %v6514 = vrot.slane %v6011, %v6513
        %v6516 = vunpack.c.l.s4 1935823168
        %v6517 = vunpack.c.0.s8 %v6516
        %v6518 = vlaneseq
        %v6519 = vshrl.u32 %v6518, 7
        %v6520 = vsub.s32 %v6517, %v6519
        %v6521 = vrot.slane %v6514, %v6520
        %v6523 = vunpack.c.l.s4 1935823168
        %v6524 = vunpack.c.0.s8 %v6523
        %v6525 = vlaneseq
        %v6526 = vshrl.u32 %v6525, 7
        %v6527 = vsub.s32 %v6524, %v6526
        %v6528 = vrot.slane %v6025, %v6527
        %v6530 = vunpack.c.l.s4 1935823168
        %v6531 = vunpack.c.0.s8 %v6530
        %v6532 = vlaneseq
        %v6533 = vshrl.u32 %v6532, 7
        %v6534 = vsub.s32 %v6531, %v6533
        %v6535 = vrot.slane %v6528, %v6534
        %v6537 = vunpack.c.l.s4 1935823168
        %v6538 = vunpack.c.0.s8 %v6537
        %v6539 = vlaneseq
        %v6540 = vshrl.u32 %v6539, 7
        %v6541 = vsub.s32 %v6538, %v6540
        %v6542 = vrot.slane %v6027, %v6541
        %v6544 = vunpack.c.l.s4 1935823168
        %v6545 = vunpack.c.0.s8 %v6544
        %v6546 = vlaneseq
        %v6547 = vshrl.u32 %v6546, 7
        %v6548 = vsub.s32 %v6545, %v6547
        %v6549 = vrot.slane %v6542, %v6548
        %v6551 = vunpack.c.l.s4 1935823168
        %v6552 = vunpack.c.0.s8 %v6551
        %v6553 = vlaneseq
        %v6554 = vshrl.u32 %v6553, 7
        %v6555 = vsub.s32 %v6552, %v6554
        %v6556 = vrot.slane %v6029, %v6555
        %v6558 = vunpack.c.l.s4 1935823168
        %v6559 = vunpack.c.0.s8 %v6558
        %v6560 = vlaneseq
        %v6561 = vshrl.u32 %v6560, 7
        %v6562 = vsub.s32 %v6559, %v6561
        %v6563 = vrot.slane %v6556, %v6562
        %v6564 = vunpack.c.l.b16 %v6353
        %v6565 = vunpack.c.l.b16 %v6367
        %v6566 = vunpack.c.l.b16 %v6381
        %v6567 = vunpack.c.l.b16 %v6395
        %v6568 = vunpack.c.l.b16 %v6409
        %v6569 = vunpack.c.l.b16 %v6423
        %v6570 = vunpack.c.l.b16 %v6437
        %v6571 = vunpack.c.l.b16 %v6451
        %v6572 = vunpack.c.l.b16 %v6465
        %v6573 = vunpack.c.l.b16 %v6479
        %v6574 = vunpack.c.l.b16 %v6493
        %v6575 = vunpack.c.l.b16 %v6507
        %v6576 = vunpack.c.l.b16 %v6521
        %v6577 = vunpack.c.l.b16 %v6535
        %v6578 = vunpack.c.l.b16 %v6549
        %v6579 = vunpack.c.l.b16 %v6563
        %v6580 = vrot.slane %v6565, 7
        %v6581 = vsel %vm2354, %v6580, %v6564
        %v6582 = vrot.slane %v6566, 6
        %v6583 = vsel %vm2357, %v6582, %v6581
        %v6584 = vrot.slane %v6567, 5
        %v6585 = vsel %vm2360, %v6584, %v6583
        %v6586 = vrot.slane %v6569, 7
        %v6587 = vsel %vm2354, %v6586, %v6568
        %v6588 = vrot.slane %v6570, 6
        %v6589 = vsel %vm2357, %v6588, %v6587
        %v6590 = vrot.slane %v6571, 5
        %v6591 = vsel %vm2360, %v6590, %v6589
        %v6592 = vrot.slane %v6573, 7
        %v6593 = vsel %vm2354, %v6592, %v6572
        %v6594 = vrot.slane %v6574, 6
        %v6595 = vsel %vm2357, %v6594, %v6593
        %v6596 = vrot.slane %v6575, 5
        %v6597 = vsel %vm2360, %v6596, %v6595
        %v6598 = vrot.slane %v6577, 7
        %v6599 = vsel %vm2354, %v6598, %v6576
        %v6600 = vrot.slane %v6578, 6
        %v6601 = vsel %vm2357, %v6600, %v6599
        %v6602 = vrot.slane %v6579, 5
        %v6603 = vsel %vm2360, %v6602, %v6601
        %v6604 = vpack.c.b16 %v6585, %v6585
        %v6605 = vpack.c.b16 %v6591, %v6591
        %v6606 = vpack.c.b16 %v6597, %v6597
        %v6607 = vpack.c.b16 %v6603, %v6603
        %s6612 = scalar_lea.vmem [#allocation3], 24
        %6613 = vst [vmem:[%s6612] sm:$0x3] %v6604
        %6614 = vst [vmem:[%s6612 + $0x4] sm:$0x3] %v6605
        %6615 = vst [vmem:[%s6612 + $0x8] sm:$0x3] %v6606
        %6616 = vst [vmem:[%s6612 + $0xc] sm:$0x3] %v6607
        %v6617 = vsel %vm2357, %v6580, %v6564
        %v6618 = vsel %vm2360, %v6582, %v6617
        %v6619 = vsel %vm2363, %v6584, %v6618
        %v6620 = vsel %vm2357, %v6586, %v6568
        %v6621 = vsel %vm2360, %v6588, %v6620
        %v6622 = vsel %vm2363, %v6590, %v6621
        %v6623 = vsel %vm2357, %v6592, %v6572
        %v6624 = vsel %vm2360, %v6594, %v6623
        %v6625 = vsel %vm2363, %v6596, %v6624
        %v6626 = vsel %vm2357, %v6598, %v6576
        %v6627 = vsel %vm2360, %v6600, %v6626
        %v6628 = vsel %vm2363, %v6602, %v6627
        %v6629 = vpack.c.b16 %v6619, %v6619
        %v6630 = vpack.c.b16 %v6622, %v6622
        %v6631 = vpack.c.b16 %v6625, %v6625
        %v6632 = vpack.c.b16 %v6628, %v6628
        %s6637 = scalar_lea.vmem [#allocation3], 4
        %v6638 = vld [vmem:[%s6637] sm:$0x7]
        %v6639 = vsel %vm6327, %v6629, %v6638
        %6640 = vst [vmem:[%s6637] sm:$0x7] %v6639
        %v6641 = vld [vmem:[%s6637 + $0x4] sm:$0x7]
        %v6642 = vsel %vm6327, %v6630, %v6641
        %6643 = vst [vmem:[%s6637 + $0x4] sm:$0x7] %v6642
        %v6644 = vld [vmem:[%s6637 + $0x8] sm:$0x7]
        %v6645 = vsel %vm6327, %v6631, %v6644
        %6646 = vst [vmem:[%s6637 + $0x8] sm:$0x7] %v6645
        %v6647 = vld [vmem:[%s6637 + $0xc] sm:$0x7]
        %v6648 = vsel %vm6327, %v6632, %v6647
        %6649 = vst [vmem:[%s6637 + $0xc] sm:$0x7] %v6648
        %v6650 = vld [vmem:[#allocation3] sm:$0x3]
        %v6651 = vld [vmem:[#allocation3 + $0x4] sm:$0x3]
        %v6652 = vld [vmem:[#allocation3 + $0x8] sm:$0x3]
        %v6653 = vld [vmem:[#allocation3 + $0xc] sm:$0x3]
        %v6654 = vld [vmem:[#allocation6] sm:$0xf]
        %v6655 = vld [vmem:[#allocation6 + $0x4] sm:$0xf]
        %v6656 = vld [vmem:[#allocation6 + $0x8] sm:$0xf]
        %v6657 = vld [vmem:[#allocation6 + $0xc] sm:$0xf]
        %v6658 = vld [vmem:[#allocation6 + $0x10] sm:$0xf]
        %v6659 = vld [vmem:[#allocation6 + $0x14] sm:$0xf]
        %v6660 = vld [vmem:[#allocation6 + $0x18] sm:$0xf]
        %v6661 = vld [vmem:[#allocation6 + $0x1c] sm:$0xf]
        %v6662 = vld [vmem:[#allocation6 + $0x20] sm:$0xf]
        %v6663 = vld [vmem:[#allocation6 + $0x24] sm:$0xf]
        %v6664 = vld [vmem:[#allocation6 + $0x28] sm:$0xf]
        %v6665 = vld [vmem:[#allocation6 + $0x2c] sm:$0xf]
        %v6666 = vld [vmem:[#allocation6 + $0x30] sm:$0xf]
        %v6667 = vld [vmem:[#allocation6 + $0x34] sm:$0xf]
        %v6668 = vld [vmem:[#allocation6 + $0x38] sm:$0xf]
        %v6669 = vld [vmem:[#allocation6 + $0x3c] sm:$0xf]
        %v6670 = vld [vmem:[%s5773] sm:$0x3]
        %v6671 = vld [vmem:[%s5773 + $0x4] sm:$0x3]
        %v6672 = vld [vmem:[%s5773 + $0x8] sm:$0x3]
        %v6673 = vld [vmem:[%s5773 + $0xc] sm:$0x3]
        %s6674 = scalar_lea.vmem [#allocation6], 64
        %v6675 = vld [vmem:[%s6674] sm:$0xf]
        %v6676 = vld [vmem:[%s6674 + $0x4] sm:$0xf]
        %v6677 = vld [vmem:[%s6674 + $0x8] sm:$0xf]
        %v6678 = vld [vmem:[%s6674 + $0xc] sm:$0xf]
        %v6679 = vld [vmem:[%s6674 + $0x10] sm:$0xf]
        %v6680 = vld [vmem:[%s6674 + $0x14] sm:$0xf]
        %v6681 = vld [vmem:[%s6674 + $0x18] sm:$0xf]
        %v6682 = vld [vmem:[%s6674 + $0x1c] sm:$0xf]
        %v6683 = vld [vmem:[%s6674 + $0x20] sm:$0xf]
        %v6684 = vld [vmem:[%s6674 + $0x24] sm:$0xf]
        %v6685 = vld [vmem:[%s6674 + $0x28] sm:$0xf]
        %v6686 = vld [vmem:[%s6674 + $0x2c] sm:$0xf]
        %v6687 = vld [vmem:[%s6674 + $0x30] sm:$0xf]
        %v6688 = vld [vmem:[%s6674 + $0x34] sm:$0xf]
        %v6689 = vld [vmem:[%s6674 + $0x38] sm:$0xf]
        %v6690 = vld [vmem:[%s6674 + $0x3c] sm:$0xf]
        %v6695 = vcombine.low %v6670, %v6671
        %v6696 = vcombine.low %v6672, %v6673
        %v6698 = vunpack.c.l.s4 1983009808
        %v6699 = vunpack.c.0.s8 %v6698
        %v6700 = vlaneseq
        %v6701 = vshrl.u32 %v6700, 7
        %v6702 = vsub.s32 %v6699, %v6701
        %v6703 = vrot.slane %v6695, %v6702
        %v6705 = vunpack.c.l.s4 1983009808
        %v6706 = vunpack.c.0.s8 %v6705
        %v6707 = vlaneseq
        %v6708 = vshrl.u32 %v6707, 7
        %v6709 = vsub.s32 %v6706, %v6708
        %v6710 = vrot.slane %v6696, %v6709
        %v6711 = vcombine.low %v6703, %v6710
        %v6729 = vunpack.c.l.b16 %v6675
        %v6730 = vunpack.c.l.b16 %v6676
        %v6731 = vunpack.c.l.b16 %v6677
        %v6732 = vunpack.c.l.b16 %v6678
        %v6733 = vunpack.c.l.b16 %v6679
        %v6734 = vunpack.c.l.b16 %v6680
        %v6735 = vunpack.c.l.b16 %v6681
        %v6736 = vunpack.c.l.b16 %v6682
        %v6737 = vunpack.c.l.b16 %v6683
        %v6738 = vunpack.c.l.b16 %v6684
        %v6739 = vunpack.c.l.b16 %v6685
        %v6740 = vunpack.c.l.b16 %v6686
        %v6741 = vunpack.c.l.b16 %v6687
        %v6742 = vunpack.c.l.b16 %v6688
        %v6743 = vunpack.c.l.b16 %v6689
        %v6744 = vunpack.c.l.b16 %v6690
        %v6745 = vpack.c.b16 %v6730, %v6729
        %v6746 = vpack.c.b16 %v6732, %v6731
        %v6747 = vpack.c.b16 %v6734, %v6733
        %v6748 = vpack.c.b16 %v6736, %v6735
        %v6749 = vpack.c.b16 %v6738, %v6737
        %v6750 = vpack.c.b16 %v6740, %v6739
        %v6751 = vpack.c.b16 %v6742, %v6741
        %v6752 = vpack.c.b16 %v6744, %v6743
        %6761 = vmatprep.subr.bf16.mxu0 0
        %6762 = vmatpush1.bf16.msra.mxu0 %v6745
        %6763 = vmatprep.subr.bf16.mxu0 0
        %6764 = vmatpush1.bf16.msra.mxu0 %v6746
        %6765 = vmatprep.subr.bf16.mxu0 0
        %6766 = vmatpush1.bf16.msra.mxu0 %v6747
        %6767 = vmatprep.subr.bf16.mxu0 0
        %6768 = vmatpush1.bf16.msra.mxu0 %v6748
        %6769 = vmatprep.subr.bf16.mxu0 0
        %6770 = vmatpush1.bf16.msra.mxu0 %v6749
        %6771 = vmatprep.subr.bf16.mxu0 0
        %6772 = vmatpush1.bf16.msra.mxu0 %v6750
        %6773 = vmatprep.subr.bf16.mxu0 0
        %6774 = vmatpush1.bf16.msra.mxu0 %v6751
        %6775 = vmatprep.subr.bf16.mxu0 0
        %6776 = vmatpush1.bf16.msra.mxu0 %v6752
        %6777 = vmatprep.subr.bf16.mxu0 0
        %6778 = vmatpush1.bf16.msra.mxu0 0
        %6779 = vmatprep.subr.bf16.mxu0 0
        %6780 = vmatpush1.bf16.msra.mxu0 0
        %6781 = vmatprep.subr.bf16.mxu0 0
        %6782 = vmatpush1.bf16.msra.mxu0 0
        %6783 = vmatprep.subr.bf16.mxu0 0
        %6784 = vmatpush1.bf16.msra.mxu0 0
        %6785 = vmatprep.subr.bf16.mxu0 0
        %6786 = vmatpush1.bf16.msra.mxu0 0
        %6787 = vmatprep.subr.bf16.mxu0 0
        %6788 = vmatpush1.bf16.msra.mxu0 0
        %6789 = vmatprep.subr.bf16.mxu0 0
        %6790 = vmatpush1.bf16.msra.mxu0 0
        %6791 = vmatprep.subr.bf16.mxu0 0
        %6792 = vmatpush1.bf16.msra.mxu0 0
        %6793 = vmatprep.mubr.bf16.mxu0 0
        %6794 = vmatmul.mubr.bf16.gmra.mrb[0].mxu0 %v6711
        %v6795 = vpop.f32.mrb[0].mxu0
        %v6796 = vadd.f32 0.0, %v6795
        %v6797 = vpop.f32.mrb[0].mxu0
        %v6798 = vpop.f32.mrb[0].mxu0
        %v6799 = vadd.f32 0.0, %v6798
        %v6800 = vpop.f32.mrb[0].mxu0
        %6801 = vdwg.mxu0
        %v6806 = vcombine.low %v6650, %v6651
        %v6807 = vcombine.low %v6652, %v6653
        %v6809 = vunpack.c.l.s4 1983009808
        %v6810 = vunpack.c.0.s8 %v6809
        %v6811 = vlaneseq
        %v6812 = vshrl.u32 %v6811, 7
        %v6813 = vsub.s32 %v6810, %v6812
        %v6814 = vrot.slane %v6806, %v6813
        %v6816 = vunpack.c.l.s4 1983009808
        %v6817 = vunpack.c.0.s8 %v6816
        %v6818 = vlaneseq
        %v6819 = vshrl.u32 %v6818, 7
        %v6820 = vsub.s32 %v6817, %v6819
        %v6821 = vrot.slane %v6807, %v6820
        %v6822 = vcombine.low %v6814, %v6821
        %v6840 = vunpack.c.l.b16 %v6654
        %v6841 = vunpack.c.l.b16 %v6655
        %v6842 = vunpack.c.l.b16 %v6656
        %v6843 = vunpack.c.l.b16 %v6657
        %v6844 = vunpack.c.l.b16 %v6658
        %v6845 = vunpack.c.l.b16 %v6659
        %v6846 = vunpack.c.l.b16 %v6660
        %v6847 = vunpack.c.l.b16 %v6661
        %v6848 = vunpack.c.l.b16 %v6662
        %v6849 = vunpack.c.l.b16 %v6663
        %v6850 = vunpack.c.l.b16 %v6664
        %v6851 = vunpack.c.l.b16 %v6665
        %v6852 = vunpack.c.l.b16 %v6666
        %v6853 = vunpack.c.l.b16 %v6667
        %v6854 = vunpack.c.l.b16 %v6668
        %v6855 = vunpack.c.l.b16 %v6669
        %v6856 = vpack.c.b16 %v6841, %v6840
        %v6857 = vpack.c.b16 %v6843, %v6842
        %v6858 = vpack.c.b16 %v6845, %v6844
        %v6859 = vpack.c.b16 %v6847, %v6846
        %v6860 = vpack.c.b16 %v6849, %v6848
        %v6861 = vpack.c.b16 %v6851, %v6850
        %v6862 = vpack.c.b16 %v6853, %v6852
        %v6863 = vpack.c.b16 %v6855, %v6854
        %6872 = vmatprep.subr.bf16.mxu0 0
        %6873 = vmatpush1.bf16.msra.mxu0 %v6856
        %6874 = vmatprep.subr.bf16.mxu0 0
        %6875 = vmatpush1.bf16.msra.mxu0 %v6857
        %6876 = vmatprep.subr.bf16.mxu0 0
        %6877 = vmatpush1.bf16.msra.mxu0 %v6858
        %6878 = vmatprep.subr.bf16.mxu0 0
        %6879 = vmatpush1.bf16.msra.mxu0 %v6859
        %6880 = vmatprep.subr.bf16.mxu0 0
        %6881 = vmatpush1.bf16.msra.mxu0 %v6860
        %6882 = vmatprep.subr.bf16.mxu0 0
        %6883 = vmatpush1.bf16.msra.mxu0 %v6861
        %6884 = vmatprep.subr.bf16.mxu0 0
        %6885 = vmatpush1.bf16.msra.mxu0 %v6862
        %6886 = vmatprep.subr.bf16.mxu0 0
        %6887 = vmatpush1.bf16.msra.mxu0 %v6863
        %6888 = vmatprep.subr.bf16.mxu0 0
        %6889 = vmatpush1.bf16.msra.mxu0 0
        %6890 = vmatprep.subr.bf16.mxu0 0
        %6891 = vmatpush1.bf16.msra.mxu0 0
        %6892 = vmatprep.subr.bf16.mxu0 0
        %6893 = vmatpush1.bf16.msra.mxu0 0
        %6894 = vmatprep.subr.bf16.mxu0 0
        %6895 = vmatpush1.bf16.msra.mxu0 0
        %6896 = vmatprep.subr.bf16.mxu0 0
        %6897 = vmatpush1.bf16.msra.mxu0 0
        %6898 = vmatprep.subr.bf16.mxu0 0
        %6899 = vmatpush1.bf16.msra.mxu0 0
        %6900 = vmatprep.subr.bf16.mxu0 0
        %6901 = vmatpush1.bf16.msra.mxu0 0
        %6902 = vmatprep.subr.bf16.mxu0 0
        %6903 = vmatpush1.bf16.msra.mxu0 0
        %6904 = vmatprep.mubr.bf16.mxu0 0
        %6905 = vmatmul.mubr.bf16.gmra.mrb[0].mxu0 %v6822
        %v6906 = vpop.f32.mrb[0].mxu0
        %v6907 = vadd.f32 %v6796, %v6906
        %v6908 = vpop.f32.mrb[0].mxu0
        %v6909 = vpop.f32.mrb[0].mxu0
        %v6910 = vadd.f32 %v6799, %v6909
        %v6911 = vpop.f32.mrb[0].mxu0
        %6912 = vdwg.mxu0
        %v6913 = vld [vmem:[#allocation3] sm:$0x7]
        %v6914 = vld [vmem:[#allocation3 + $0x4] sm:$0x7]
        %v6915 = vld [vmem:[#allocation3 + $0x8] sm:$0x7]
        %v6916 = vld [vmem:[#allocation3 + $0xc] sm:$0x7]
        %v6922 = vunpack.c.l.s4 1983009808
        %v6923 = vunpack.c.0.s8 %v6922
        %v6924 = vlaneseq
        %v6925 = vshrl.u32 %v6924, 7
        %v6926 = vsub.s32 %v6923, %v6925
        %v6927 = vrot.slane %v6913, %v6926
        %v6928 = vcombine.high %v6927, %v6927
        %v6930 = vunpack.c.l.s4 1983009808
        %v6931 = vunpack.c.0.s8 %v6930
        %v6932 = vlaneseq
        %v6933 = vshrl.u32 %v6932, 7
        %v6934 = vsub.s32 %v6931, %v6933
        %v6935 = vrot.slane %v6914, %v6934
        %v6936 = vcombine.high %v6935, %v6935
        %v6938 = vunpack.c.l.s4 1983009808
        %v6939 = vunpack.c.0.s8 %v6938
        %v6940 = vlaneseq
        %v6941 = vshrl.u32 %v6940, 7
        %v6942 = vsub.s32 %v6939, %v6941
        %v6943 = vrot.slane %v6915, %v6942
        %v6944 = vcombine.high %v6943, %v6943
        %v6946 = vunpack.c.l.s4 1983009808
        %v6947 = vunpack.c.0.s8 %v6946
        %v6948 = vlaneseq
        %v6949 = vshrl.u32 %v6948, 7
        %v6950 = vsub.s32 %v6947, %v6949
        %v6951 = vrot.slane %v6916, %v6950
        %v6952 = vcombine.high %v6951, %v6951
        %vm6953 = vsmask.f32 1280
        %vm6954 = vsmask.f32 3336
        %vm6955 = vmor %vm6953, %vm6954
        %vm6956 = vsmask.f32 5392
        %vm6957 = vmor %vm6955, %vm6956
        %vm6958 = vsmask.f32 7448
        %vm6959 = vmor %vm6957, %vm6958
        %v6961 = vshrl.u32 %v6927, 16
        %v6963 = vrot.slane %v6961, 6
        %v6964 = vshll.u32 %v6927, 16
        %v6966 = vrot.slane %v6964, 7
        %v6967 = vor.u32 %v6963, %v6966
        %v6968 = vrot.slane %v6967, 2
        %v6970 = vshll.u32 %v6928, 16
        %v6972 = vrot.slane %v6970, 7
        %v6973 = vsel %vm6959, %v6968, %v6972
        %v6975 = vshrl.u32 %v6935, 16
        %v6977 = vrot.slane %v6975, 6
        %v6978 = vshll.u32 %v6935, 16
        %v6980 = vrot.slane %v6978, 7
        %v6981 = vor.u32 %v6977, %v6980
        %v6982 = vrot.slane %v6981, 2
        %v6984 = vshll.u32 %v6936, 16
        %v6986 = vrot.slane %v6984, 7
        %v6987 = vsel %vm6959, %v6982, %v6986
        %v6989 = vshrl.u32 %v6943, 16
        %v6991 = vrot.slane %v6989, 6
        %v6992 = vshll.u32 %v6943, 16
        %v6994 = vrot.slane %v6992, 7
        %v6995 = vor.u32 %v6991, %v6994
        %v6996 = vrot.slane %v6995, 2
        %v6998 = vshll.u32 %v6944, 16
        %v7000 = vrot.slane %v6998, 7
        %v7001 = vsel %vm6959, %v6996, %v7000
        %v7003 = vshrl.u32 %v6951, 16
        %v7005 = vrot.slane %v7003, 6
        %v7006 = vshll.u32 %v6951, 16
        %v7008 = vrot.slane %v7006, 7
        %v7009 = vor.u32 %v7005, %v7008
        %v7010 = vrot.slane %v7009, 2
        %v7012 = vshll.u32 %v6952, 16
        %v7014 = vrot.slane %v7012, 7
        %v7015 = vsel %vm6959, %v7010, %v7014
        %s7016 = scalar_lea.vmem [#allocation6], 128
        %v7017 = vld [vmem:[%s7016] sm:$0xf]
        %v7018 = vld [vmem:[%s7016 + $0x4] sm:$0xf]
        %v7019 = vld [vmem:[%s7016 + $0x8] sm:$0xf]
        %v7020 = vld [vmem:[%s7016 + $0xc] sm:$0xf]
        %v7021 = vld [vmem:[%s7016 + $0x10] sm:$0xf]
        %v7022 = vld [vmem:[%s7016 + $0x14] sm:$0xf]
        %v7023 = vld [vmem:[%s7016 + $0x18] sm:$0xf]
        %v7024 = vld [vmem:[%s7016 + $0x1c] sm:$0xf]
        %v7025 = vld [vmem:[%s7016 + $0x20] sm:$0xf]
        %v7026 = vld [vmem:[%s7016 + $0x24] sm:$0xf]
        %v7027 = vld [vmem:[%s7016 + $0x28] sm:$0xf]
        %v7028 = vld [vmem:[%s7016 + $0x2c] sm:$0xf]
        %v7029 = vld [vmem:[%s7016 + $0x30] sm:$0xf]
        %v7030 = vld [vmem:[%s7016 + $0x34] sm:$0xf]
        %v7031 = vld [vmem:[%s7016 + $0x38] sm:$0xf]
        %v7032 = vld [vmem:[%s7016 + $0x3c] sm:$0xf]
        %v7033 = vcombine.low %v6973, %v6987
        %v7034 = vcombine.low %v7001, %v7015
        %v7036 = vunpack.c.l.s4 1983009808
        %v7037 = vunpack.c.0.s8 %v7036
        %v7038 = vlaneseq
        %v7039 = vshrl.u32 %v7038, 7
        %v7040 = vsub.s32 %v7037, %v7039
        %v7041 = vrot.slane %v7033, %v7040
        %v7043 = vunpack.c.l.s4 1983009808
        %v7044 = vunpack.c.0.s8 %v7043
        %v7045 = vlaneseq
        %v7046 = vshrl.u32 %v7045, 7
        %v7047 = vsub.s32 %v7044, %v7046
        %v7048 = vrot.slane %v7034, %v7047
        %v7049 = vcombine.low %v7041, %v7048
        %v7067 = vunpack.c.l.b16 %v7017
        %v7068 = vunpack.c.l.b16 %v7018
        %v7069 = vunpack.c.l.b16 %v7019
        %v7070 = vunpack.c.l.b16 %v7020
        %v7071 = vunpack.c.l.b16 %v7021
        %v7072 = vunpack.c.l.b16 %v7022
        %v7073 = vunpack.c.l.b16 %v7023
        %v7074 = vunpack.c.l.b16 %v7024
        %v7075 = vunpack.c.l.b16 %v7025
        %v7076 = vunpack.c.l.b16 %v7026
        %v7077 = vunpack.c.l.b16 %v7027
        %v7078 = vunpack.c.l.b16 %v7028
        %v7079 = vunpack.c.l.b16 %v7029
        %v7080 = vunpack.c.l.b16 %v7030
        %v7081 = vunpack.c.l.b16 %v7031
        %v7082 = vunpack.c.l.b16 %v7032
        %v7083 = vpack.c.b16 %v7068, %v7067
        %v7084 = vpack.c.b16 %v7070, %v7069
        %v7085 = vpack.c.b16 %v7072, %v7071
        %v7086 = vpack.c.b16 %v7074, %v7073
        %v7087 = vpack.c.b16 %v7076, %v7075
        %v7088 = vpack.c.b16 %v7078, %v7077
        %v7089 = vpack.c.b16 %v7080, %v7079
        %v7090 = vpack.c.b16 %v7082, %v7081
        %7099 = vmatprep.subr.bf16.mxu0 0
        %7100 = vmatpush1.bf16.msra.mxu0 %v7083
        %7101 = vmatprep.subr.bf16.mxu0 0
        %7102 = vmatpush1.bf16.msra.mxu0 %v7084
        %7103 = vmatprep.subr.bf16.mxu0 0
        %7104 = vmatpush1.bf16.msra.mxu0 %v7085
        %7105 = vmatprep.subr.bf16.mxu0 0
        %7106 = vmatpush1.bf16.msra.mxu0 %v7086
        %7107 = vmatprep.subr.bf16.mxu0 0
        %7108 = vmatpush1.bf16.msra.mxu0 %v7087
        %7109 = vmatprep.subr.bf16.mxu0 0
        %7110 = vmatpush1.bf16.msra.mxu0 %v7088
        %7111 = vmatprep.subr.bf16.mxu0 0
        %7112 = vmatpush1.bf16.msra.mxu0 %v7089
        %7113 = vmatprep.subr.bf16.mxu0 0
        %7114 = vmatpush1.bf16.msra.mxu0 %v7090
        %7115 = vmatprep.subr.bf16.mxu0 0
        %7116 = vmatpush1.bf16.msra.mxu0 0
        %7117 = vmatprep.subr.bf16.mxu0 0
        %7118 = vmatpush1.bf16.msra.mxu0 0
        %7119 = vmatprep.subr.bf16.mxu0 0
        %7120 = vmatpush1.bf16.msra.mxu0 0
        %7121 = vmatprep.subr.bf16.mxu0 0
        %7122 = vmatpush1.bf16.msra.mxu0 0
        %7123 = vmatprep.subr.bf16.mxu0 0
        %7124 = vmatpush1.bf16.msra.mxu0 0
        %7125 = vmatprep.subr.bf16.mxu0 0
        %7126 = vmatpush1.bf16.msra.mxu0 0
        %7127 = vmatprep.subr.bf16.mxu0 0
        %7128 = vmatpush1.bf16.msra.mxu0 0
        %7129 = vmatprep.subr.bf16.mxu0 0
        %7130 = vmatpush1.bf16.msra.mxu0 0
        %7131 = vmatprep.mubr.bf16.mxu0 0
        %7132 = vmatmul.mubr.bf16.gmra.mrb[0].mxu0 %v7049
        %v7133 = vpop.f32.mrb[0].mxu0
        %v7134 = vadd.f32 0.0, %v7133
        %v7135 = vpop.f32.mrb[0].mxu0
        %v7136 = vpop.f32.mrb[0].mxu0
        %v7137 = vadd.f32 0.0, %v7136
        %v7138 = vpop.f32.mrb[0].mxu0
        %7139 = vdwg.mxu0
        %v7140 = vadd.f32 %v6907, %v7134
        %v7141 = vadd.f32 %v6910, %v7137
        %v7142 = vld [vmem:[%s5798] sm:$0x3]
        %v7143 = vld [vmem:[%s5798 + $0x4] sm:$0x3]
        %v7144 = vld [vmem:[%s5798 + $0x8] sm:$0x3]
        %v7145 = vld [vmem:[%s5798 + $0xc] sm:$0x3]
        %s7146 = scalar_lea.vmem [#allocation6], 192
        %v7147 = vld [vmem:[%s7146] sm:$0xf]
        %v7148 = vld [vmem:[%s7146 + $0x4] sm:$0xf]
        %v7149 = vld [vmem:[%s7146 + $0x8] sm:$0xf]
        %v7150 = vld [vmem:[%s7146 + $0xc] sm:$0xf]
        %v7151 = vld [vmem:[%s7146 + $0x10] sm:$0xf]
        %v7152 = vld [vmem:[%s7146 + $0x14] sm:$0xf]
        %v7153 = vld [vmem:[%s7146 + $0x18] sm:$0xf]
        %v7154 = vld [vmem:[%s7146 + $0x1c] sm:$0xf]
        %v7155 = vld [vmem:[%s7146 + $0x20] sm:$0xf]
        %v7156 = vld [vmem:[%s7146 + $0x24] sm:$0xf]
        %v7157 = vld [vmem:[%s7146 + $0x28] sm:$0xf]
        %v7158 = vld [vmem:[%s7146 + $0x2c] sm:$0xf]
        %v7159 = vld [vmem:[%s7146 + $0x30] sm:$0xf]
        %v7160 = vld [vmem:[%s7146 + $0x34] sm:$0xf]
        %v7161 = vld [vmem:[%s7146 + $0x38] sm:$0xf]
        %v7162 = vld [vmem:[%s7146 + $0x3c] sm:$0xf]
        %v7167 = vcombine.low %v7142, %v7143
        %v7168 = vcombine.low %v7144, %v7145
        %v7170 = vunpack.c.l.s4 1983009808
        %v7171 = vunpack.c.0.s8 %v7170
        %v7172 = vlaneseq
        %v7173 = vshrl.u32 %v7172, 7
        %v7174 = vsub.s32 %v7171, %v7173
        %v7175 = vrot.slane %v7167, %v7174
        %v7177 = vunpack.c.l.s4 1983009808
        %v7178 = vunpack.c.0.s8 %v7177
        %v7179 = vlaneseq
        %v7180 = vshrl.u32 %v7179, 7
        %v7181 = vsub.s32 %v7178, %v7180
        %v7182 = vrot.slane %v7168, %v7181
        %v7183 = vcombine.low %v7175, %v7182
        %v7201 = vunpack.c.l.b16 %v7147
        %v7202 = vunpack.c.l.b16 %v7148
        %v7203 = vunpack.c.l.b16 %v7149
        %v7204 = vunpack.c.l.b16 %v7150
        %v7205 = vunpack.c.l.b16 %v7151
        %v7206 = vunpack.c.l.b16 %v7152
        %v7207 = vunpack.c.l.b16 %v7153
        %v7208 = vunpack.c.l.b16 %v7154
        %v7209 = vunpack.c.l.b16 %v7155
        %v7210 = vunpack.c.l.b16 %v7156
        %v7211 = vunpack.c.l.b16 %v7157
        %v7212 = vunpack.c.l.b16 %v7158
        %v7213 = vunpack.c.l.b16 %v7159
        %v7214 = vunpack.c.l.b16 %v7160
        %v7215 = vunpack.c.l.b16 %v7161
        %v7216 = vunpack.c.l.b16 %v7162
        %v7217 = vpack.c.b16 %v7202, %v7201
        %v7218 = vpack.c.b16 %v7204, %v7203
        %v7219 = vpack.c.b16 %v7206, %v7205
        %v7220 = vpack.c.b16 %v7208, %v7207
        %v7221 = vpack.c.b16 %v7210, %v7209
        %v7222 = vpack.c.b16 %v7212, %v7211
        %v7223 = vpack.c.b16 %v7214, %v7213
        %v7224 = vpack.c.b16 %v7216, %v7215
        %7233 = vmatprep.subr.bf16.mxu0 0
        %7234 = vmatpush1.bf16.msra.mxu0 %v7217
        %7235 = vmatprep.subr.bf16.mxu0 0
        %7236 = vmatpush1.bf16.msra.mxu0 %v7218
        %7237 = vmatprep.subr.bf16.mxu0 0
        %7238 = vmatpush1.bf16.msra.mxu0 %v7219
        %7239 = vmatprep.subr.bf16.mxu0 0
        %7240 = vmatpush1.bf16.msra.mxu0 %v7220
        %7241 = vmatprep.subr.bf16.mxu0 0
        %7242 = vmatpush1.bf16.msra.mxu0 %v7221
        %7243 = vmatprep.subr.bf16.mxu0 0
        %7244 = vmatpush1.bf16.msra.mxu0 %v7222
        %7245 = vmatprep.subr.bf16.mxu0 0
        %7246 = vmatpush1.bf16.msra.mxu0 %v7223
        %7247 = vmatprep.subr.bf16.mxu0 0
        %7248 = vmatpush1.bf16.msra.mxu0 %v7224
        %7249 = vmatprep.subr.bf16.mxu0 0
        %7250 = vmatpush1.bf16.msra.mxu0 0
        %7251 = vmatprep.subr.bf16.mxu0 0
        %7252 = vmatpush1.bf16.msra.mxu0 0
        %7253 = vmatprep.subr.bf16.mxu0 0
        %7254 = vmatpush1.bf16.msra.mxu0 0
        %7255 = vmatprep.subr.bf16.mxu0 0
        %7256 = vmatpush1.bf16.msra.mxu0 0
        %7257 = vmatprep.subr.bf16.mxu0 0
        %7258 = vmatpush1.bf16.msra.mxu0 0
        %7259 = vmatprep.subr.bf16.mxu0 0
        %7260 = vmatpush1.bf16.msra.mxu0 0
        %7261 = vmatprep.subr.bf16.mxu0 0
        %7262 = vmatpush1.bf16.msra.mxu0 0
        %7263 = vmatprep.subr.bf16.mxu0 0
        %7264 = vmatpush1.bf16.msra.mxu0 0
        %7265 = vmatprep.mubr.bf16.mxu0 0
        %7266 = vmatmul.mubr.bf16.gmra.mrb[0].mxu0 %v7183
        %v7267 = vpop.f32.mrb[0].mxu0
        %v7268 = vadd.f32 0.0, %v7267
        %v7269 = vpop.f32.mrb[0].mxu0
        %v7270 = vpop.f32.mrb[0].mxu0
        %v7271 = vadd.f32 0.0, %v7270
        %v7272 = vpop.f32.mrb[0].mxu0
        %7273 = vdwg.mxu0
        %v7274 = vadd.f32 %v7140, %v7268
        %v7275 = vadd.f32 %v7141, %v7271
        %v7276 = vld [vmem:[%s5814] sm:$0x3]
        %v7277 = vld [vmem:[%s5814 + $0x4] sm:$0x3]
        %v7278 = vld [vmem:[%s5814 + $0x8] sm:$0x3]
        %v7279 = vld [vmem:[%s5814 + $0xc] sm:$0x3]
        %s7280 = scalar_lea.vmem [#allocation6], 256
        %v7281 = vld [vmem:[%s7280] sm:$0xf]
        %v7282 = vld [vmem:[%s7280 + $0x4] sm:$0xf]
        %v7283 = vld [vmem:[%s7280 + $0x8] sm:$0xf]
        %v7284 = vld [vmem:[%s7280 + $0xc] sm:$0xf]
        %v7285 = vld [vmem:[%s7280 + $0x10] sm:$0xf]
        %v7286 = vld [vmem:[%s7280 + $0x14] sm:$0xf]
        %v7287 = vld [vmem:[%s7280 + $0x18] sm:$0xf]
        %v7288 = vld [vmem:[%s7280 + $0x1c] sm:$0xf]
        %v7289 = vld [vmem:[%s7280 + $0x20] sm:$0xf]
        %v7290 = vld [vmem:[%s7280 + $0x24] sm:$0xf]
        %v7291 = vld [vmem:[%s7280 + $0x28] sm:$0xf]
        %v7292 = vld [vmem:[%s7280 + $0x2c] sm:$0xf]
        %v7293 = vld [vmem:[%s7280 + $0x30] sm:$0xf]
        %v7294 = vld [vmem:[%s7280 + $0x34] sm:$0xf]
        %v7295 = vld [vmem:[%s7280 + $0x38] sm:$0xf]
        %v7296 = vld [vmem:[%s7280 + $0x3c] sm:$0xf]
        %v7301 = vcombine.low %v7276, %v7277
        %v7302 = vcombine.low %v7278, %v7279
        %v7304 = vunpack.c.l.s4 1983009808
        %v7305 = vunpack.c.0.s8 %v7304
        %v7306 = vlaneseq
        %v7307 = vshrl.u32 %v7306, 7
        %v7308 = vsub.s32 %v7305, %v7307
        %v7309 = vrot.slane %v7301, %v7308
        %v7311 = vunpack.c.l.s4 1983009808
        %v7312 = vunpack.c.0.s8 %v7311
        %v7313 = vlaneseq
        %v7314 = vshrl.u32 %v7313, 7
        %v7315 = vsub.s32 %v7312, %v7314
        %v7316 = vrot.slane %v7302, %v7315
        %v7317 = vcombine.low %v7309, %v7316
        %v7335 = vunpack.c.l.b16 %v7281
        %v7336 = vunpack.c.l.b16 %v7282
        %v7337 = vunpack.c.l.b16 %v7283
        %v7338 = vunpack.c.l.b16 %v7284
        %v7339 = vunpack.c.l.b16 %v7285
        %v7340 = vunpack.c.l.b16 %v7286
        %v7341 = vunpack.c.l.b16 %v7287
        %v7342 = vunpack.c.l.b16 %v7288
        %v7343 = vunpack.c.l.b16 %v7289
        %v7344 = vunpack.c.l.b16 %v7290
        %v7345 = vunpack.c.l.b16 %v7291
        %v7346 = vunpack.c.l.b16 %v7292
        %v7347 = vunpack.c.l.b16 %v7293
        %v7348 = vunpack.c.l.b16 %v7294
        %v7349 = vunpack.c.l.b16 %v7295
        %v7350 = vunpack.c.l.b16 %v7296
        %v7351 = vpack.c.b16 %v7336, %v7335
        %v7352 = vpack.c.b16 %v7338, %v7337
        %v7353 = vpack.c.b16 %v7340, %v7339
        %v7354 = vpack.c.b16 %v7342, %v7341
        %v7355 = vpack.c.b16 %v7344, %v7343
        %v7356 = vpack.c.b16 %v7346, %v7345
        %v7357 = vpack.c.b16 %v7348, %v7347
        %v7358 = vpack.c.b16 %v7350, %v7349
        %7367 = vmatprep.subr.bf16.mxu0 0
        %7368 = vmatpush1.bf16.msra.mxu0 %v7351
        %7369 = vmatprep.subr.bf16.mxu0 0
        %7370 = vmatpush1.bf16.msra.mxu0 %v7352
        %7371 = vmatprep.subr.bf16.mxu0 0
        %7372 = vmatpush1.bf16.msra.mxu0 %v7353
        %7373 = vmatprep.subr.bf16.mxu0 0
        %7374 = vmatpush1.bf16.msra.mxu0 %v7354
        %7375 = vmatprep.subr.bf16.mxu0 0
        %7376 = vmatpush1.bf16.msra.mxu0 %v7355
        %7377 = vmatprep.subr.bf16.mxu0 0
        %7378 = vmatpush1.bf16.msra.mxu0 %v7356
        %7379 = vmatprep.subr.bf16.mxu0 0
        %7380 = vmatpush1.bf16.msra.mxu0 %v7357
        %7381 = vmatprep.subr.bf16.mxu0 0
        %7382 = vmatpush1.bf16.msra.mxu0 %v7358
        %7383 = vmatprep.subr.bf16.mxu0 0
        %7384 = vmatpush1.bf16.msra.mxu0 0
        %7385 = vmatprep.subr.bf16.mxu0 0
        %7386 = vmatpush1.bf16.msra.mxu0 0
        %7387 = vmatprep.subr.bf16.mxu0 0
        %7388 = vmatpush1.bf16.msra.mxu0 0
        %7389 = vmatprep.subr.bf16.mxu0 0
        %7390 = vmatpush1.bf16.msra.mxu0 0
        %7391 = vmatprep.subr.bf16.mxu0 0
        %7392 = vmatpush1.bf16.msra.mxu0 0
        %7393 = vmatprep.subr.bf16.mxu0 0
        %7394 = vmatpush1.bf16.msra.mxu0 0
        %7395 = vmatprep.subr.bf16.mxu0 0
        %7396 = vmatpush1.bf16.msra.mxu0 0
        %7397 = vmatprep.subr.bf16.mxu0 0
        %7398 = vmatpush1.bf16.msra.mxu0 0
        %7399 = vmatprep.mubr.bf16.mxu0 0
        %7400 = vmatmul.mubr.bf16.gmra.mrb[0].mxu0 %v7317
        %v7401 = vpop.f32.mrb[0].mxu0
        %v7402 = vadd.f32 0.0, %v7401
        %v7403 = vpop.f32.mrb[0].mxu0
        %v7404 = vpop.f32.mrb[0].mxu0
        %v7405 = vadd.f32 0.0, %v7404
        %v7406 = vpop.f32.mrb[0].mxu0
        %7407 = vdwg.mxu0
        %v7408 = vadd.f32 %v7274, %v7402
        %v7409 = vadd.f32 %v7275, %v7405
        %v7410 = vld [vmem:[%s5798] sm:$0x7]
        %v7411 = vld [vmem:[%s5798 + $0x4] sm:$0x7]
        %v7412 = vld [vmem:[%s5798 + $0x8] sm:$0x7]
        %v7413 = vld [vmem:[%s5798 + $0xc] sm:$0x7]
        %v7419 = vunpack.c.l.s4 1983009808
        %v7420 = vunpack.c.0.s8 %v7419
        %v7421 = vlaneseq
        %v7422 = vshrl.u32 %v7421, 7
        %v7423 = vsub.s32 %v7420, %v7422
        %v7424 = vrot.slane %v7410, %v7423
        %v7425 = vcombine.high %v7424, %v7424
        %v7427 = vunpack.c.l.s4 1983009808
        %v7428 = vunpack.c.0.s8 %v7427
        %v7429 = vlaneseq
        %v7430 = vshrl.u32 %v7429, 7
        %v7431 = vsub.s32 %v7428, %v7430
        %v7432 = vrot.slane %v7411, %v7431
        %v7433 = vcombine.high %v7432, %v7432
        %v7435 = vunpack.c.l.s4 1983009808
        %v7436 = vunpack.c.0.s8 %v7435
        %v7437 = vlaneseq
        %v7438 = vshrl.u32 %v7437, 7
        %v7439 = vsub.s32 %v7436, %v7438
        %v7440 = vrot.slane %v7412, %v7439
        %v7441 = vcombine.high %v7440, %v7440
        %v7443 = vunpack.c.l.s4 1983009808
        %v7444 = vunpack.c.0.s8 %v7443
        %v7445 = vlaneseq
        %v7446 = vshrl.u32 %v7445, 7
        %v7447 = vsub.s32 %v7444, %v7446
        %v7448 = vrot.slane %v7413, %v7447
        %v7449 = vcombine.high %v7448, %v7448
        %v7451 = vshrl.u32 %v7424, 16
        %v7453 = vrot.slane %v7451, 6
        %v7454 = vshll.u32 %v7424, 16
        %v7456 = vrot.slane %v7454, 7
        %v7457 = vor.u32 %v7453, %v7456
        %v7458 = vrot.slane %v7457, 2
        %v7460 = vshll.u32 %v7425, 16
        %v7462 = vrot.slane %v7460, 7
        %v7463 = vsel %vm6959, %v7458, %v7462
        %v7465 = vshrl.u32 %v7432, 16
        %v7467 = vrot.slane %v7465, 6
        %v7468 = vshll.u32 %v7432, 16
        %v7470 = vrot.slane %v7468, 7
        %v7471 = vor.u32 %v7467, %v7470
        %v7472 = vrot.slane %v7471, 2
        %v7474 = vshll.u32 %v7433, 16
        %v7476 = vrot.slane %v7474, 7
        %v7477 = vsel %vm6959, %v7472, %v7476
        %v7479 = vshrl.u32 %v7440, 16
        %v7481 = vrot.slane %v7479, 6
        %v7482 = vshll.u32 %v7440, 16
        %v7484 = vrot.slane %v7482, 7
        %v7485 = vor.u32 %v7481, %v7484
        %v7486 = vrot.slane %v7485, 2
        %v7488 = vshll.u32 %v7441, 16
        %v7490 = vrot.slane %v7488, 7
        %v7491 = vsel %vm6959, %v7486, %v7490
        %v7493 = vshrl.u32 %v7448, 16
        %v7495 = vrot.slane %v7493, 6
        %v7496 = vshll.u32 %v7448, 16
        %v7498 = vrot.slane %v7496, 7
        %v7499 = vor.u32 %v7495, %v7498
        %v7500 = vrot.slane %v7499, 2
        %v7502 = vshll.u32 %v7449, 16
        %v7504 = vrot.slane %v7502, 7
        %v7505 = vsel %vm6959, %v7500, %v7504
        %s7506 = scalar_lea.vmem [#allocation6], 320
        %v7507 = vld [vmem:[%s7506] sm:$0xf]
        %v7508 = vld [vmem:[%s7506 + $0x4] sm:$0xf]
        %v7509 = vld [vmem:[%s7506 + $0x8] sm:$0xf]
        %v7510 = vld [vmem:[%s7506 + $0xc] sm:$0xf]
        %v7511 = vld [vmem:[%s7506 + $0x10] sm:$0xf]
        %v7512 = vld [vmem:[%s7506 + $0x14] sm:$0xf]
        %v7513 = vld [vmem:[%s7506 + $0x18] sm:$0xf]
        %v7514 = vld [vmem:[%s7506 + $0x1c] sm:$0xf]
        %v7515 = vld [vmem:[%s7506 + $0x20] sm:$0xf]
        %v7516 = vld [vmem:[%s7506 + $0x24] sm:$0xf]
        %v7517 = vld [vmem:[%s7506 + $0x28] sm:$0xf]
        %v7518 = vld [vmem:[%s7506 + $0x2c] sm:$0xf]
        %v7519 = vld [vmem:[%s7506 + $0x30] sm:$0xf]
        %v7520 = vld [vmem:[%s7506 + $0x34] sm:$0xf]
        %v7521 = vld [vmem:[%s7506 + $0x38] sm:$0xf]
        %v7522 = vld [vmem:[%s7506 + $0x3c] sm:$0xf]
        %v7523 = vcombine.low %v7463, %v7477
        %v7524 = vcombine.low %v7491, %v7505
        %v7526 = vunpack.c.l.s4 1983009808
        %v7527 = vunpack.c.0.s8 %v7526
        %v7528 = vlaneseq
        %v7529 = vshrl.u32 %v7528, 7
        %v7530 = vsub.s32 %v7527, %v7529
        %v7531 = vrot.slane %v7523, %v7530
        %v7533 = vunpack.c.l.s4 1983009808
        %v7534 = vunpack.c.0.s8 %v7533
        %v7535 = vlaneseq
        %v7536 = vshrl.u32 %v7535, 7
        %v7537 = vsub.s32 %v7534, %v7536
        %v7538 = vrot.slane %v7524, %v7537
        %v7539 = vcombine.low %v7531, %v7538
        %v7557 = vunpack.c.l.b16 %v7507
        %v7558 = vunpack.c.l.b16 %v7508
        %v7559 = vunpack.c.l.b16 %v7509
        %v7560 = vunpack.c.l.b16 %v7510
        %v7561 = vunpack.c.l.b16 %v7511
        %v7562 = vunpack.c.l.b16 %v7512
        %v7563 = vunpack.c.l.b16 %v7513
        %v7564 = vunpack.c.l.b16 %v7514
        %v7565 = vunpack.c.l.b16 %v7515
        %v7566 = vunpack.c.l.b16 %v7516
        %v7567 = vunpack.c.l.b16 %v7517
        %v7568 = vunpack.c.l.b16 %v7518
        %v7569 = vunpack.c.l.b16 %v7519
        %v7570 = vunpack.c.l.b16 %v7520
        %v7571 = vunpack.c.l.b16 %v7521
        %v7572 = vunpack.c.l.b16 %v7522
        %v7573 = vpack.c.b16 %v7558, %v7557
        %v7574 = vpack.c.b16 %v7560, %v7559
        %v7575 = vpack.c.b16 %v7562, %v7561
        %v7576 = vpack.c.b16 %v7564, %v7563
        %v7577 = vpack.c.b16 %v7566, %v7565
        %v7578 = vpack.c.b16 %v7568, %v7567
        %v7579 = vpack.c.b16 %v7570, %v7569
        %v7580 = vpack.c.b16 %v7572, %v7571
        %7589 = vmatprep.subr.bf16.mxu0 0
        %7590 = vmatpush1.bf16.msra.mxu0 %v7573
        %7591 = vmatprep.subr.bf16.mxu0 0
        %7592 = vmatpush1.bf16.msra.mxu0 %v7574
        %7593 = vmatprep.subr.bf16.mxu0 0
        %7594 = vmatpush1.bf16.msra.mxu0 %v7575
        %7595 = vmatprep.subr.bf16.mxu0 0
        %7596 = vmatpush1.bf16.msra.mxu0 %v7576
        %7597 = vmatprep.subr.bf16.mxu0 0
        %7598 = vmatpush1.bf16.msra.mxu0 %v7577
        %7599 = vmatprep.subr.bf16.mxu0 0
        %7600 = vmatpush1.bf16.msra.mxu0 %v7578
        %7601 = vmatprep.subr.bf16.mxu0 0
        %7602 = vmatpush1.bf16.msra.mxu0 %v7579
        %7603 = vmatprep.subr.bf16.mxu0 0
        %7604 = vmatpush1.bf16.msra.mxu0 %v7580
        %7605 = vmatprep.subr.bf16.mxu0 0
        %7606 = vmatpush1.bf16.msra.mxu0 0
        %7607 = vmatprep.subr.bf16.mxu0 0
        %7608 = vmatpush1.bf16.msra.mxu0 0
        %7609 = vmatprep.subr.bf16.mxu0 0
        %7610 = vmatpush1.bf16.msra.mxu0 0
        %7611 = vmatprep.subr.bf16.mxu0 0
        %7612 = vmatpush1.bf16.msra.mxu0 0
        %7613 = vmatprep.subr.bf16.mxu0 0
        %7614 = vmatpush1.bf16.msra.mxu0 0
        %7615 = vmatprep.subr.bf16.mxu0 0
        %7616 = vmatpush1.bf16.msra.mxu0 0
        %7617 = vmatprep.subr.bf16.mxu0 0
        %7618 = vmatpush1.bf16.msra.mxu0 0
        %7619 = vmatprep.subr.bf16.mxu0 0
        %7620 = vmatpush1.bf16.msra.mxu0 0
        %7621 = vmatprep.mubr.bf16.mxu0 0
        %7622 = vmatmul.mubr.bf16.gmra.mrb[0].mxu0 %v7539
        %v7623 = vpop.f32.mrb[0].mxu0
        %v7624 = vadd.f32 0.0, %v7623
        %v7625 = vpop.f32.mrb[0].mxu0
        %v7626 = vpop.f32.mrb[0].mxu0
        %v7627 = vadd.f32 0.0, %v7626
        %v7628 = vpop.f32.mrb[0].mxu0
        %7629 = vdwg.mxu0
        %v7630 = vadd.f32 %v7408, %v7624
        %v7631 = vadd.f32 %v7409, %v7627
        %v7632 = vld [vmem:[%s6637] sm:$0x3]
        %v7633 = vld [vmem:[%s6637 + $0x4] sm:$0x3]
        %v7634 = vld [vmem:[%s6637 + $0x8] sm:$0x3]
        %v7635 = vld [vmem:[%s6637 + $0xc] sm:$0x3]
        %s7636 = scalar_lea.vmem [#allocation6], 384
        %v7637 = vld [vmem:[%s7636] sm:$0xf]
        %v7638 = vld [vmem:[%s7636 + $0x4] sm:$0xf]
        %v7639 = vld [vmem:[%s7636 + $0x8] sm:$0xf]
        %v7640 = vld [vmem:[%s7636 + $0xc] sm:$0xf]
        %v7641 = vld [vmem:[%s7636 + $0x10] sm:$0xf]
        %v7642 = vld [vmem:[%s7636 + $0x14] sm:$0xf]
        %v7643 = vld [vmem:[%s7636 + $0x18] sm:$0xf]
        %v7644 = vld [vmem:[%s7636 + $0x1c] sm:$0xf]
        %v7645 = vld [vmem:[%s7636 + $0x20] sm:$0xf]
        %v7646 = vld [vmem:[%s7636 + $0x24] sm:$0xf]
        %v7647 = vld [vmem:[%s7636 + $0x28] sm:$0xf]
        %v7648 = vld [vmem:[%s7636 + $0x2c] sm:$0xf]
        %v7649 = vld [vmem:[%s7636 + $0x30] sm:$0xf]
        %v7650 = vld [vmem:[%s7636 + $0x34] sm:$0xf]
        %v7651 = vld [vmem:[%s7636 + $0x38] sm:$0xf]
        %v7652 = vld [vmem:[%s7636 + $0x3c] sm:$0xf]
        %v7657 = vcombine.low %v7632, %v7633
        %v7658 = vcombine.low %v7634, %v7635
        %v7660 = vunpack.c.l.s4 1983009808
        %v7661 = vunpack.c.0.s8 %v7660
        %v7662 = vlaneseq
        %v7663 = vshrl.u32 %v7662, 7
        %v7664 = vsub.s32 %v7661, %v7663
        %v7665 = vrot.slane %v7657, %v7664
        %v7667 = vunpack.c.l.s4 1983009808
        %v7668 = vunpack.c.0.s8 %v7667
        %v7669 = vlaneseq
        %v7670 = vshrl.u32 %v7669, 7
        %v7671 = vsub.s32 %v7668, %v7670
        %v7672 = vrot.slane %v7658, %v7671
        %v7673 = vcombine.low %v7665, %v7672
        %v7691 = vunpack.c.l.b16 %v7637
        %v7692 = vunpack.c.l.b16 %v7638
        %v7693 = vunpack.c.l.b16 %v7639
        %v7694 = vunpack.c.l.b16 %v7640
        %v7695 = vunpack.c.l.b16 %v7641
        %v7696 = vunpack.c.l.b16 %v7642
        %v7697 = vunpack.c.l.b16 %v7643
        %v7698 = vunpack.c.l.b16 %v7644
        %v7699 = vunpack.c.l.b16 %v7645
        %v7700 = vunpack.c.l.b16 %v7646
        %v7701 = vunpack.c.l.b16 %v7647
        %v7702 = vunpack.c.l.b16 %v7648
        %v7703 = vunpack.c.l.b16 %v7649
        %v7704 = vunpack.c.l.b16 %v7650
        %v7705 = vunpack.c.l.b16 %v7651
        %v7706 = vunpack.c.l.b16 %v7652
        %v7707 = vpack.c.b16 %v7692, %v7691
        %v7708 = vpack.c.b16 %v7694, %v7693
        %v7709 = vpack.c.b16 %v7696, %v7695
        %v7710 = vpack.c.b16 %v7698, %v7697
        %v7711 = vpack.c.b16 %v7700, %v7699
        %v7712 = vpack.c.b16 %v7702, %v7701
        %v7713 = vpack.c.b16 %v7704, %v7703
        %v7714 = vpack.c.b16 %v7706, %v7705
        %7723 = vmatprep.subr.bf16.mxu0 0
        %7724 = vmatpush1.bf16.msra.mxu0 %v7707
        %7725 = vmatprep.subr.bf16.mxu0 0
        %7726 = vmatpush1.bf16.msra.mxu0 %v7708
        %7727 = vmatprep.subr.bf16.mxu0 0
        %7728 = vmatpush1.bf16.msra.mxu0 %v7709
        %7729 = vmatprep.subr.bf16.mxu0 0
        %7730 = vmatpush1.bf16.msra.mxu0 %v7710
        %7731 = vmatprep.subr.bf16.mxu0 0
        %7732 = vmatpush1.bf16.msra.mxu0 %v7711
        %7733 = vmatprep.subr.bf16.mxu0 0
        %7734 = vmatpush1.bf16.msra.mxu0 %v7712
        %7735 = vmatprep.subr.bf16.mxu0 0
        %7736 = vmatpush1.bf16.msra.mxu0 %v7713
        %7737 = vmatprep.subr.bf16.mxu0 0
        %7738 = vmatpush1.bf16.msra.mxu0 %v7714
        %7739 = vmatprep.subr.bf16.mxu0 0
        %7740 = vmatpush1.bf16.msra.mxu0 0
        %7741 = vmatprep.subr.bf16.mxu0 0
        %7742 = vmatpush1.bf16.msra.mxu0 0
        %7743 = vmatprep.subr.bf16.mxu0 0
        %7744 = vmatpush1.bf16.msra.mxu0 0
        %7745 = vmatprep.subr.bf16.mxu0 0
        %7746 = vmatpush1.bf16.msra.mxu0 0
        %7747 = vmatprep.subr.bf16.mxu0 0
        %7748 = vmatpush1.bf16.msra.mxu0 0
        %7749 = vmatprep.subr.bf16.mxu0 0
        %7750 = vmatpush1.bf16.msra.mxu0 0
        %7751 = vmatprep.subr.bf16.mxu0 0
        %7752 = vmatpush1.bf16.msra.mxu0 0
        %7753 = vmatprep.subr.bf16.mxu0 0
        %7754 = vmatpush1.bf16.msra.mxu0 0
        %7755 = vmatprep.mubr.bf16.mxu0 0
        %7756 = vmatmul.mubr.bf16.gmra.mrb[0].mxu0 %v7673
        %v7757 = vpop.f32.mrb[0].mxu0
        %v7758 = vadd.f32 0.0, %v7757
        %v7759 = vpop.f32.mrb[0].mxu0
        %v7760 = vpop.f32.mrb[0].mxu0
        %v7761 = vadd.f32 0.0, %v7760
        %v7762 = vpop.f32.mrb[0].mxu0
        %7763 = vdwg.mxu0
        %v7764 = vadd.f32 %v7630, %v7758
        %v7765 = vadd.f32 %v7631, %v7761
        %v7766 = vld [vmem:[%s6612] sm:$0x3]
        %v7767 = vld [vmem:[%s6612 + $0x4] sm:$0x3]
        %v7768 = vld [vmem:[%s6612 + $0x8] sm:$0x3]
        %v7769 = vld [vmem:[%s6612 + $0xc] sm:$0x3]
        %s7770 = scalar_lea.vmem [#allocation6], 448
        %v7771 = vld [vmem:[%s7770] sm:$0xf]
        %v7772 = vld [vmem:[%s7770 + $0x4] sm:$0xf]
        %v7773 = vld [vmem:[%s7770 + $0x8] sm:$0xf]
        %v7774 = vld [vmem:[%s7770 + $0xc] sm:$0xf]
        %v7775 = vld [vmem:[%s7770 + $0x10] sm:$0xf]
        %v7776 = vld [vmem:[%s7770 + $0x14] sm:$0xf]
        %v7777 = vld [vmem:[%s7770 + $0x18] sm:$0xf]
        %v7778 = vld [vmem:[%s7770 + $0x1c] sm:$0xf]
        %v7779 = vld [vmem:[%s7770 + $0x20] sm:$0xf]
        %v7780 = vld [vmem:[%s7770 + $0x24] sm:$0xf]
        %v7781 = vld [vmem:[%s7770 + $0x28] sm:$0xf]
        %v7782 = vld [vmem:[%s7770 + $0x2c] sm:$0xf]
        %v7783 = vld [vmem:[%s7770 + $0x30] sm:$0xf]
        %v7784 = vld [vmem:[%s7770 + $0x34] sm:$0xf]
        %v7785 = vld [vmem:[%s7770 + $0x38] sm:$0xf]
        %v7786 = vld [vmem:[%s7770 + $0x3c] sm:$0xf]
        %v7791 = vcombine.low %v7766, %v7767
        %v7792 = vcombine.low %v7768, %v7769
        %v7794 = vunpack.c.l.s4 1983009808
        %v7795 = vunpack.c.0.s8 %v7794
        %v7796 = vlaneseq
        %v7797 = vshrl.u32 %v7796, 7
        %v7798 = vsub.s32 %v7795, %v7797
        %v7799 = vrot.slane %v7791, %v7798
        %v7801 = vunpack.c.l.s4 1983009808
        %v7802 = vunpack.c.0.s8 %v7801
        %v7803 = vlaneseq
        %v7804 = vshrl.u32 %v7803, 7
        %v7805 = vsub.s32 %v7802, %v7804
        %v7806 = vrot.slane %v7792, %v7805
        %v7807 = vcombine.low %v7799, %v7806
        %v7825 = vunpack.c.l.b16 %v7771
        %v7826 = vunpack.c.l.b16 %v7772
        %v7827 = vunpack.c.l.b16 %v7773
        %v7828 = vunpack.c.l.b16 %v7774
        %v7829 = vunpack.c.l.b16 %v7775
        %v7830 = vunpack.c.l.b16 %v7776
        %v7831 = vunpack.c.l.b16 %v7777
        %v7832 = vunpack.c.l.b16 %v7778
        %v7833 = vunpack.c.l.b16 %v7779
        %v7834 = vunpack.c.l.b16 %v7780
        %v7835 = vunpack.c.l.b16 %v7781
        %v7836 = vunpack.c.l.b16 %v7782
        %v7837 = vunpack.c.l.b16 %v7783
        %v7838 = vunpack.c.l.b16 %v7784
        %v7839 = vunpack.c.l.b16 %v7785
        %v7840 = vunpack.c.l.b16 %v7786
        %v7841 = vpack.c.b16 %v7826, %v7825
        %v7842 = vpack.c.b16 %v7828, %v7827
        %v7843 = vpack.c.b16 %v7830, %v7829
        %v7844 = vpack.c.b16 %v7832, %v7831
        %v7845 = vpack.c.b16 %v7834, %v7833
        %v7846 = vpack.c.b16 %v7836, %v7835
        %v7847 = vpack.c.b16 %v7838, %v7837
        %v7848 = vpack.c.b16 %v7840, %v7839
        %7857 = vmatprep.subr.bf16.mxu0 0
        %7858 = vmatpush1.bf16.msra.mxu0 %v7841
        %7859 = vmatprep.subr.bf16.mxu0 0
        %7860 = vmatpush1.bf16.msra.mxu0 %v7842
        %7861 = vmatprep.subr.bf16.mxu0 0
        %7862 = vmatpush1.bf16.msra.mxu0 %v7843
        %7863 = vmatprep.subr.bf16.mxu0 0
        %7864 = vmatpush1.bf16.msra.mxu0 %v7844
        %7865 = vmatprep.subr.bf16.mxu0 0
        %7866 = vmatpush1.bf16.msra.mxu0 %v7845
        %7867 = vmatprep.subr.bf16.mxu0 0
        %7868 = vmatpush1.bf16.msra.mxu0 %v7846
        %7869 = vmatprep.subr.bf16.mxu0 0
        %7870 = vmatpush1.bf16.msra.mxu0 %v7847
        %7871 = vmatprep.subr.bf16.mxu0 0
        %7872 = vmatpush1.bf16.msra.mxu0 %v7848
        %7873 = vmatprep.subr.bf16.mxu0 0
        %7874 = vmatpush1.bf16.msra.mxu0 0
        %7875 = vmatprep.subr.bf16.mxu0 0
        %7876 = vmatpush1.bf16.msra.mxu0 0
        %7877 = vmatprep.subr.bf16.mxu0 0
        %7878 = vmatpush1.bf16.msra.mxu0 0
        %7879 = vmatprep.subr.bf16.mxu0 0
        %7880 = vmatpush1.bf16.msra.mxu0 0
        %7881 = vmatprep.subr.bf16.mxu0 0
        %7882 = vmatpush1.bf16.msra.mxu0 0
        %7883 = vmatprep.subr.bf16.mxu0 0
        %7884 = vmatpush1.bf16.msra.mxu0 0
        %7885 = vmatprep.subr.bf16.mxu0 0
        %7886 = vmatpush1.bf16.msra.mxu0 0
        %7887 = vmatprep.subr.bf16.mxu0 0
        %7888 = vmatpush1.bf16.msra.mxu0 0
        %7889 = vmatprep.mubr.bf16.mxu0 0
        %7890 = vmatmul.mubr.bf16.gmra.mrb[0].mxu0 %v7807
        %v7891 = vpop.f32.mrb[0].mxu0
        %v7892 = vadd.f32 0.0, %v7891
        %v7893 = vpop.f32.mrb[0].mxu0
        %v7894 = vpop.f32.mrb[0].mxu0
        %v7895 = vadd.f32 0.0, %v7894
        %v7896 = vpop.f32.mrb[0].mxu0
        %7897 = vdwg.mxu0
        %v7898 = vadd.f32 %v7764, %v7892
        %v7899 = vadd.f32 %v7765, %v7895
        %v7900 = vld [vmem:[%s6637] sm:$0x7]
        %v7901 = vld [vmem:[%s6637 + $0x4] sm:$0x7]
        %v7902 = vld [vmem:[%s6637 + $0x8] sm:$0x7]
        %v7903 = vld [vmem:[%s6637 + $0xc] sm:$0x7]
        %v7909 = vunpack.c.l.s4 1983009808
        %v7910 = vunpack.c.0.s8 %v7909
        %v7911 = vlaneseq
        %v7912 = vshrl.u32 %v7911, 7
        %v7913 = vsub.s32 %v7910, %v7912
        %v7914 = vrot.slane %v7900, %v7913
        %v7915 = vcombine.high %v7914, %v7914
        %v7917 = vunpack.c.l.s4 1983009808
        %v7918 = vunpack.c.0.s8 %v7917
        %v7919 = vlaneseq
        %v7920 = vshrl.u32 %v7919, 7
        %v7921 = vsub.s32 %v7918, %v7920
        %v7922 = vrot.slane %v7901, %v7921
        %v7923 = vcombine.high %v7922, %v7922
        %v7925 = vunpack.c.l.s4 1983009808
        %v7926 = vunpack.c.0.s8 %v7925
        %v7927 = vlaneseq
        %v7928 = vshrl.u32 %v7927, 7
        %v7929 = vsub.s32 %v7926, %v7928
        %v7930 = vrot.slane %v7902, %v7929
        %v7931 = vcombine.high %v7930, %v7930
        %v7933 = vunpack.c.l.s4 1983009808
        %v7934 = vunpack.c.0.s8 %v7933
        %v7935 = vlaneseq
        %v7936 = vshrl.u32 %v7935, 7
        %v7937 = vsub.s32 %v7934, %v7936
        %v7938 = vrot.slane %v7903, %v7937
        %v7939 = vcombine.high %v7938, %v7938
        %v7941 = vshrl.u32 %v7914, 16
        %v7943 = vrot.slane %v7941, 6
        %v7944 = vshll.u32 %v7914, 16
        %v7946 = vrot.slane %v7944, 7
        %v7947 = vor.u32 %v7943, %v7946
        %v7948 = vrot.slane %v7947, 2
        %v7950 = vshll.u32 %v7915, 16
        %v7952 = vrot.slane %v7950, 7
        %v7953 = vsel %vm6959, %v7948, %v7952
        %v7955 = vshrl.u32 %v7922, 16
        %v7957 = vrot.slane %v7955, 6
        %v7958 = vshll.u32 %v7922, 16
        %v7960 = vrot.slane %v7958, 7
        %v7961 = vor.u32 %v7957, %v7960
        %v7962 = vrot.slane %v7961, 2
        %v7964 = vshll.u32 %v7923, 16
        %v7966 = vrot.slane %v7964, 7
        %v7967 = vsel %vm6959, %v7962, %v7966
        %v7969 = vshrl.u32 %v7930, 16
        %v7971 = vrot.slane %v7969, 6
        %v7972 = vshll.u32 %v7930, 16
        %v7974 = vrot.slane %v7972, 7
        %v7975 = vor.u32 %v7971, %v7974
        %v7976 = vrot.slane %v7975, 2
        %v7978 = vshll.u32 %v7931, 16
        %v7980 = vrot.slane %v7978, 7
        %v7981 = vsel %vm6959, %v7976, %v7980
        %v7983 = vshrl.u32 %v7938, 16
        %v7985 = vrot.slane %v7983, 6
        %v7986 = vshll.u32 %v7938, 16
        %v7988 = vrot.slane %v7986, 7
        %v7989 = vor.u32 %v7985, %v7988
        %v7990 = vrot.slane %v7989, 2
        %v7992 = vshll.u32 %v7939, 16
        %v7994 = vrot.slane %v7992, 7
        %v7995 = vsel %vm6959, %v7990, %v7994
        %s7996 = scalar_lea.vmem [#allocation6], 512
        %v7997 = vld [vmem:[%s7996] sm:$0xf]
        %v7998 = vld [vmem:[%s7996 + $0x4] sm:$0xf]
        %v7999 = vld [vmem:[%s7996 + $0x8] sm:$0xf]
        %v8000 = vld [vmem:[%s7996 + $0xc] sm:$0xf]
        %v8001 = vld [vmem:[%s7996 + $0x10] sm:$0xf]
        %v8002 = vld [vmem:[%s7996 + $0x14] sm:$0xf]
        %v8003 = vld [vmem:[%s7996 + $0x18] sm:$0xf]
        %v8004 = vld [vmem:[%s7996 + $0x1c] sm:$0xf]
        %v8005 = vld [vmem:[%s7996 + $0x20] sm:$0xf]
        %v8006 = vld [vmem:[%s7996 + $0x24] sm:$0xf]
        %v8007 = vld [vmem:[%s7996 + $0x28] sm:$0xf]
        %v8008 = vld [vmem:[%s7996 + $0x2c] sm:$0xf]
        %v8009 = vld [vmem:[%s7996 + $0x30] sm:$0xf]
        %v8010 = vld [vmem:[%s7996 + $0x34] sm:$0xf]
        %v8011 = vld [vmem:[%s7996 + $0x38] sm:$0xf]
        %v8012 = vld [vmem:[%s7996 + $0x3c] sm:$0xf]
        %v8013 = vcombine.low %v7953, %v7967
        %v8014 = vcombine.low %v7981, %v7995
        %v8016 = vunpack.c.l.s4 1983009808
        %v8017 = vunpack.c.0.s8 %v8016
        %v8018 = vlaneseq
        %v8019 = vshrl.u32 %v8018, 7
        %v8020 = vsub.s32 %v8017, %v8019
        %v8021 = vrot.slane %v8013, %v8020
        %v8023 = vunpack.c.l.s4 1983009808
        %v8024 = vunpack.c.0.s8 %v8023
        %v8025 = vlaneseq
        %v8026 = vshrl.u32 %v8025, 7
        %v8027 = vsub.s32 %v8024, %v8026
        %v8028 = vrot.slane %v8014, %v8027
        %v8029 = vcombine.low %v8021, %v8028
        %v8047 = vunpack.c.l.b16 %v7997
        %v8048 = vunpack.c.l.b16 %v7998
        %v8049 = vunpack.c.l.b16 %v7999
        %v8050 = vunpack.c.l.b16 %v8000
        %v8051 = vunpack.c.l.b16 %v8001
        %v8052 = vunpack.c.l.b16 %v8002
        %v8053 = vunpack.c.l.b16 %v8003
        %v8054 = vunpack.c.l.b16 %v8004
        %v8055 = vunpack.c.l.b16 %v8005
        %v8056 = vunpack.c.l.b16 %v8006
        %v8057 = vunpack.c.l.b16 %v8007
        %v8058 = vunpack.c.l.b16 %v8008
        %v8059 = vunpack.c.l.b16 %v8009
        %v8060 = vunpack.c.l.b16 %v8010
        %v8061 = vunpack.c.l.b16 %v8011
        %v8062 = vunpack.c.l.b16 %v8012
        %v8063 = vpack.c.b16 %v8048, %v8047
        %v8064 = vpack.c.b16 %v8050, %v8049
        %v8065 = vpack.c.b16 %v8052, %v8051
        %v8066 = vpack.c.b16 %v8054, %v8053
        %v8067 = vpack.c.b16 %v8056, %v8055
        %v8068 = vpack.c.b16 %v8058, %v8057
        %v8069 = vpack.c.b16 %v8060, %v8059
        %v8070 = vpack.c.b16 %v8062, %v8061
        %8079 = vmatprep.subr.bf16.mxu0 0
        %8080 = vmatpush1.bf16.msra.mxu0 %v8063
        %8081 = vmatprep.subr.bf16.mxu0 0
        %8082 = vmatpush1.bf16.msra.mxu0 %v8064
        %8083 = vmatprep.subr.bf16.mxu0 0
        %8084 = vmatpush1.bf16.msra.mxu0 %v8065
        %8085 = vmatprep.subr.bf16.mxu0 0
        %8086 = vmatpush1.bf16.msra.mxu0 %v8066
        %8087 = vmatprep.subr.bf16.mxu0 0
        %8088 = vmatpush1.bf16.msra.mxu0 %v8067
        %8089 = vmatprep.subr.bf16.mxu0 0
        %8090 = vmatpush1.bf16.msra.mxu0 %v8068
        %8091 = vmatprep.subr.bf16.mxu0 0
        %8092 = vmatpush1.bf16.msra.mxu0 %v8069
        %8093 = vmatprep.subr.bf16.mxu0 0
        %8094 = vmatpush1.bf16.msra.mxu0 %v8070
        %8095 = vmatprep.subr.bf16.mxu0 0
        %8096 = vmatpush1.bf16.msra.mxu0 0
        %8097 = vmatprep.subr.bf16.mxu0 0
        %8098 = vmatpush1.bf16.msra.mxu0 0
        %8099 = vmatprep.subr.bf16.mxu0 0
        %8100 = vmatpush1.bf16.msra.mxu0 0
        %8101 = vmatprep.subr.bf16.mxu0 0
        %8102 = vmatpush1.bf16.msra.mxu0 0
        %8103 = vmatprep.subr.bf16.mxu0 0
        %8104 = vmatpush1.bf16.msra.mxu0 0
        %8105 = vmatprep.subr.bf16.mxu0 0
        %8106 = vmatpush1.bf16.msra.mxu0 0
        %8107 = vmatprep.subr.bf16.mxu0 0
        %8108 = vmatpush1.bf16.msra.mxu0 0
        %8109 = vmatprep.subr.bf16.mxu0 0
        %8110 = vmatpush1.bf16.msra.mxu0 0
        %8111 = vmatprep.mubr.bf16.mxu0 0
        %8112 = vmatmul.mubr.bf16.gmra.mrb[0].mxu0 %v8029
        %v8113 = vpop.f32.mrb[0].mxu0
        %v8114 = vadd.f32 0.0, %v8113
        %v8115 = vpop.f32.mrb[0].mxu0
        %v8116 = vpop.f32.mrb[0].mxu0
        %v8117 = vadd.f32 0.0, %v8116
        %v8118 = vpop.f32.mrb[0].mxu0
        %8119 = vdwg.mxu0
        %v8120 = vadd.f32 %v7898, %v8114
        %v8121 = vadd.f32 %v7899, %v8117
        %v8122 = vld [vmem:[%s6] sm:$0x1]
        %v8124 = vlaneseq
        %v8125 = vshrl.u32 %v8124, 7
        %v8126 = vsub.s32 0, %v8125
        %v8127 = vrot.slane %v8122, %v8126
        %v8129 = vadd.f32 %v8120, %v8127
        %v8130 = vadd.f32 %v8121, %v8127
        %vm8131 = vcmp.ge.f32.partialorder %v8129, 0.0
        %vm8132 = vcmp.ge.f32.partialorder %v8130, 0.0
        %v8133 = vmul.f32 %v8129, 0.01
        %v8134 = vmul.f32 %v8130, 0.01
        %v8135 = vsel %vm8131, %v8129, %v8133
        %v8136 = vsel %vm8132, %v8130, %v8134
        %v8137 = vpack.c.bf16 %v8136, %v8135
        %vm8138 = vcmask 1041408
        %vm8139 = vmand %vm8138, %vm6953
        %v8140 = vld [vmem:[#allocation4] sm:$0x3]
        %v8141 = vsel %vm8139, 0, %v8140
        %8142 = vst [vmem:[#allocation4] sm:$0x3] %v8141
        %s8143 = scalar_lea.vmem [#allocation4], 16
        %v8144 = vld [vmem:[%s8143] sm:$0x3]
        %v8145 = vsel %vm8139, 0, %v8144
        %8146 = vst [vmem:[%s8143] sm:$0x3] %v8145
        %v8147 = vld [vmem:[#allocation4] sm:$0x1]
        %v8148 = vsel %vm432, 0, %v8147
        %8149 = vst [vmem:[#allocation4] sm:$0x1] %v8148
        %v8150 = vld [vmem:[#allocation4 + $0x2] sm:$0x1]
        %v8151 = vsel %vm432, 0, %v8150
        %8152 = vst [vmem:[#allocation4 + $0x2] sm:$0x1] %v8151
        %v8153 = vld [vmem:[#allocation4 + $0x4] sm:$0x1]
        %v8154 = vsel %vm432, 0, %v8153
        %8155 = vst [vmem:[#allocation4 + $0x4] sm:$0x1] %v8154
        %s8156 = scalar_lea.vmem [#allocation4], 6
        %vm8157 = vcmask 1041409
        %vm8158 = vmand %vm8157, %vm6953
        %v8159 = vld [vmem:[%s8156] sm:$0x2]
        %v8160 = vsel %vm8158, 0, %v8159
        %8161 = vst [vmem:[%s8156] sm:$0x2] %v8160
        %v8162 = vld [vmem:[%s8156 + $0x2] sm:$0x2]
        %v8163 = vsel %vm8158, 0, %v8162
        %8164 = vst [vmem:[%s8156 + $0x2] sm:$0x2] %v8163
        %v8165 = vld [vmem:[%s8156 + $0x4] sm:$0x2]
        %v8166 = vsel %vm8158, 0, %v8165
        %8167 = vst [vmem:[%s8156 + $0x4] sm:$0x2] %v8166
        %v8168 = vld [vmem:[%s8156] sm:$0x3]
        %v8169 = vsel %vm8139, 0, %v8168
        %8170 = vst [vmem:[%s8156] sm:$0x3] %v8169
        %s8171 = scalar_lea.vmem [#allocation4], 22
        %v8172 = vld [vmem:[%s8171] sm:$0x3]
        %v8173 = vsel %vm8139, 0, %v8172
        %8174 = vst [vmem:[%s8171] sm:$0x3] %v8173
        %s8175 = scalar_lea.vmem [#allocation4], 12
        %v8176 = vld [vmem:[%s8175] sm:$0x1]
        %v8177 = vsel %vm432, 0, %v8176
        %8178 = vst [vmem:[%s8175] sm:$0x1] %v8177
        %v8179 = vld [vmem:[%s8175 + $0x2] sm:$0x1]
        %v8180 = vsel %vm432, 0, %v8179
        %8181 = vst [vmem:[%s8175 + $0x2] sm:$0x1] %v8180
        %v8182 = vld [vmem:[%s8175 + $0x4] sm:$0x1]
        %v8183 = vsel %vm432, 0, %v8182
        %8184 = vst [vmem:[%s8175 + $0x4] sm:$0x1] %v8183
        %s8185 = scalar_lea.vmem [#allocation4], 18
        %v8186 = vld [vmem:[%s8185] sm:$0x2]
        %v8187 = vsel %vm8158, 0, %v8186
        %8188 = vst [vmem:[%s8185] sm:$0x2] %v8187
        %v8189 = vld [vmem:[%s8185 + $0x2] sm:$0x2]
        %v8190 = vsel %vm8158, 0, %v8189
        %8191 = vst [vmem:[%s8185 + $0x2] sm:$0x2] %v8190
        %v8192 = vld [vmem:[%s8185 + $0x4] sm:$0x2]
        %v8193 = vsel %vm8158, 0, %v8192
        %8194 = vst [vmem:[%s8185 + $0x4] sm:$0x2] %v8193
        %v8196 = vcombine.high %v8137, %v8137
        %v8198 = vunpack.c.l.s4 1966171168
        %v8199 = vunpack.c.0.s8 %v8198
        %v8200 = vlaneseq
        %v8201 = vshrl.u32 %v8200, 7
        %v8202 = vsub.s32 %v8199, %v8201
        %v8203 = vrot.slane %v8137, %v8202
        %v8205 = vunpack.c.l.s4 1966171168
        %v8206 = vunpack.c.0.s8 %v8205
        %v8207 = vlaneseq
        %v8208 = vshrl.u32 %v8207, 7
        %v8209 = vsub.s32 %v8206, %v8208
        %v8210 = vrot.slane %v8196, %v8209
        %v8211 = vcombine.high %v8203, %v8203
        %v8212 = vcombine.high %v8210, %v8210
        %v8214 = vunpack.c.l.s4 1966171168
        %v8215 = vunpack.c.0.s8 %v8214
        %v8216 = vlaneseq
        %v8217 = vshrl.u32 %v8216, 7
        %v8218 = vsub.s32 %v8215, %v8217
        %v8219 = vrot.slane %v8203, %v8218
        %v8221 = vunpack.c.l.s4 1966171168
        %v8222 = vunpack.c.0.s8 %v8221
        %v8223 = vlaneseq
        %v8224 = vshrl.u32 %v8223, 7
        %v8225 = vsub.s32 %v8222, %v8224
        %v8226 = vrot.slane %v8210, %v8225
        %v8228 = vunpack.c.l.s4 1966171168
        %v8229 = vunpack.c.0.s8 %v8228
        %v8230 = vlaneseq
        %v8231 = vshrl.u32 %v8230, 7
        %v8232 = vsub.s32 %v8229, %v8231
        %v8233 = vrot.slane %v8211, %v8232
        %v8235 = vunpack.c.l.s4 1966171168
        %v8236 = vunpack.c.0.s8 %v8235
        %v8237 = vlaneseq
        %v8238 = vshrl.u32 %v8237, 7
        %v8239 = vsub.s32 %v8236, %v8238
        %v8240 = vrot.slane %v8212, %v8239
        %v8241 = vcombine.high %v8219, %v8219
        %v8242 = vcombine.high %v8226, %v8226
        %v8243 = vcombine.high %v8233, %v8233
        %v8244 = vcombine.high %v8240, %v8240
        %v8246 = vunpack.c.l.s4 1935823168
        %v8247 = vunpack.c.0.s8 %v8246
        %v8248 = vlaneseq
        %v8249 = vshrl.u32 %v8248, 7
        %v8250 = vsub.s32 %v8247, %v8249
        %v8251 = vrot.slane %v8219, %v8250
        %v8253 = vunpack.c.l.s4 1935823168
        %v8254 = vunpack.c.0.s8 %v8253
        %v8255 = vlaneseq
        %v8256 = vshrl.u32 %v8255, 7
        %v8257 = vsub.s32 %v8254, %v8256
        %v8258 = vrot.slane %v8233, %v8257
        %v8260 = vunpack.c.l.s4 1935823168
        %v8261 = vunpack.c.0.s8 %v8260
        %v8262 = vlaneseq
        %v8263 = vshrl.u32 %v8262, 7
        %v8264 = vsub.s32 %v8261, %v8263
        %v8265 = vrot.slane %v8226, %v8264
        %v8267 = vunpack.c.l.s4 1935823168
        %v8268 = vunpack.c.0.s8 %v8267
        %v8269 = vlaneseq
        %v8270 = vshrl.u32 %v8269, 7
        %v8271 = vsub.s32 %v8268, %v8270
        %v8272 = vrot.slane %v8240, %v8271
        %v8274 = vunpack.c.l.s4 1983009808
        %v8275 = vunpack.c.0.s8 %v8274
        %v8276 = vlaneseq
        %v8277 = vshrl.u32 %v8276, 7
        %v8278 = vsub.s32 %v8275, %v8277
        %v8279 = vrot.slane %v8251, %v8278
        %v8281 = vunpack.c.l.s4 1983009808
        %v8282 = vunpack.c.0.s8 %v8281
        %v8283 = vlaneseq
        %v8284 = vshrl.u32 %v8283, 7
        %v8285 = vsub.s32 %v8282, %v8284
        %v8286 = vrot.slane %v8258, %v8285
        %v8288 = vunpack.c.l.s4 1983009808
        %v8289 = vunpack.c.0.s8 %v8288
        %v8290 = vlaneseq
        %v8291 = vshrl.u32 %v8290, 7
        %v8292 = vsub.s32 %v8289, %v8291
        %v8293 = vrot.slane %v8265, %v8292
        %v8295 = vunpack.c.l.s4 1983009808
        %v8296 = vunpack.c.0.s8 %v8295
        %v8297 = vlaneseq
        %v8298 = vshrl.u32 %v8297, 7
        %v8299 = vsub.s32 %v8296, %v8298
        %v8300 = vrot.slane %v8272, %v8299
        %v8301 = vunpack.c.l.b16 %v8279
        %v8302 = vunpack.c.l.b16 %v8286
        %v8303 = vunpack.c.l.b16 %v8293
        %v8304 = vunpack.c.l.b16 %v8300
        %v8305 = vrot.slane %v8302, 7
        %v8306 = vsel %vm2354, %v8305, %v8301
        %v8307 = vrot.slane %v8304, 7
        %v8308 = vsel %vm2354, %v8307, %v8303
        %v8309 = vpack.c.b16 %v8306, %v8306
        %v8310 = vpack.c.b16 %v8308, %v8308
        %v8312 = vunpack.c.l.s4 1983009808
        %v8313 = vunpack.c.0.s8 %v8312
        %v8314 = vlaneseq
        %v8315 = vshrl.u32 %v8314, 7
        %v8316 = vsub.s32 %v8313, %v8315
        %v8317 = vrot.slane %v8309, %v8316
        %v8319 = vunpack.c.l.s4 1983009808
        %v8320 = vunpack.c.0.s8 %v8319
        %v8321 = vlaneseq
        %v8322 = vshrl.u32 %v8321, 7
        %v8323 = vsub.s32 %v8320, %v8322
        %v8324 = vrot.slane %v8310, %v8323
        %8327 = vst [vmem:[%s8185] sm:$0x1] %v8317
        %8328 = vst [vmem:[%s8185 + $0x2] sm:$0x1] %v8324
        %v8329 = vsel %vm2357, %v8305, %v8301
        %v8330 = vsel %vm2357, %v8307, %v8303
        %v8331 = vpack.c.b16 %v8329, %v8329
        %v8332 = vpack.c.b16 %v8330, %v8330
        %v8334 = vunpack.c.l.s4 1983009808
        %v8335 = vunpack.c.0.s8 %v8334
        %v8336 = vlaneseq
        %v8337 = vshrl.u32 %v8336, 7
        %v8338 = vsub.s32 %v8335, %v8337
        %v8339 = vrot.slane %v8331, %v8338
        %v8341 = vunpack.c.l.s4 1983009808
        %v8342 = vunpack.c.0.s8 %v8341
        %v8343 = vlaneseq
        %v8344 = vshrl.u32 %v8343, 7
        %v8345 = vsub.s32 %v8342, %v8344
        %v8346 = vrot.slane %v8332, %v8345
        %vm8349 = vsmask.f32 1282
        %vm8350 = vmand %vm8138, %vm8349
        %v8351 = vld [vmem:[%s8175] sm:$0x3]
        %v8352 = vsel %vm8350, %v8339, %v8351
        %8353 = vst [vmem:[%s8175] sm:$0x3] %v8352
        %v8354 = vld [vmem:[%s8175 + $0x2] sm:$0x3]
        %v8355 = vsel %vm8350, %v8346, %v8354
        %8356 = vst [vmem:[%s8175 + $0x2] sm:$0x3] %v8355
        %v8358 = vunpack.c.l.s4 1935823168
        %v8359 = vunpack.c.0.s8 %v8358
        %v8360 = vlaneseq
        %v8361 = vshrl.u32 %v8360, 7
        %v8362 = vsub.s32 %v8359, %v8361
        %v8363 = vrot.slane %v8241, %v8362
        %v8365 = vunpack.c.l.s4 1935823168
        %v8366 = vunpack.c.0.s8 %v8365
        %v8367 = vlaneseq
        %v8368 = vshrl.u32 %v8367, 7
        %v8369 = vsub.s32 %v8366, %v8368
        %v8370 = vrot.slane %v8243, %v8369
        %v8372 = vunpack.c.l.s4 1935823168
        %v8373 = vunpack.c.0.s8 %v8372
        %v8374 = vlaneseq
        %v8375 = vshrl.u32 %v8374, 7
        %v8376 = vsub.s32 %v8373, %v8375
        %v8377 = vrot.slane %v8242, %v8376
        %v8379 = vunpack.c.l.s4 1935823168
        %v8380 = vunpack.c.0.s8 %v8379
        %v8381 = vlaneseq
        %v8382 = vshrl.u32 %v8381, 7
        %v8383 = vsub.s32 %v8380, %v8382
        %v8384 = vrot.slane %v8244, %v8383
        %v8386 = vunpack.c.l.s4 1983009808
        %v8387 = vunpack.c.0.s8 %v8386
        %v8388 = vlaneseq
        %v8389 = vshrl.u32 %v8388, 7
        %v8390 = vsub.s32 %v8387, %v8389
        %v8391 = vrot.slane %v8363, %v8390
        %v8393 = vunpack.c.l.s4 1983009808
        %v8394 = vunpack.c.0.s8 %v8393
        %v8395 = vlaneseq
        %v8396 = vshrl.u32 %v8395, 7
        %v8397 = vsub.s32 %v8394, %v8396
        %v8398 = vrot.slane %v8370, %v8397
        %v8400 = vunpack.c.l.s4 1983009808
        %v8401 = vunpack.c.0.s8 %v8400
        %v8402 = vlaneseq
        %v8403 = vshrl.u32 %v8402, 7
        %v8404 = vsub.s32 %v8401, %v8403
        %v8405 = vrot.slane %v8377, %v8404
        %v8407 = vunpack.c.l.s4 1983009808
        %v8408 = vunpack.c.0.s8 %v8407
        %v8409 = vlaneseq
        %v8410 = vshrl.u32 %v8409, 7
        %v8411 = vsub.s32 %v8408, %v8410
        %v8412 = vrot.slane %v8384, %v8411
        %v8413 = vunpack.c.l.b16 %v8391
        %v8414 = vunpack.c.l.b16 %v8398
        %v8415 = vunpack.c.l.b16 %v8405
        %v8416 = vunpack.c.l.b16 %v8412
        %v8417 = vrot.slane %v8414, 7
        %v8418 = vsel %vm2354, %v8417, %v8413
        %v8419 = vrot.slane %v8416, 7
        %v8420 = vsel %vm2354, %v8419, %v8415
        %v8421 = vpack.c.b16 %v8418, %v8418
        %v8422 = vpack.c.b16 %v8420, %v8420
        %v8424 = vunpack.c.l.s4 1983009808
        %v8425 = vunpack.c.0.s8 %v8424
        %v8426 = vlaneseq
        %v8427 = vshrl.u32 %v8426, 7
        %v8428 = vsub.s32 %v8425, %v8427
        %v8429 = vrot.slane %v8421, %v8428
        %v8431 = vunpack.c.l.s4 1983009808
        %v8432 = vunpack.c.0.s8 %v8431
        %v8433 = vlaneseq
        %v8434 = vshrl.u32 %v8433, 7
        %v8435 = vsub.s32 %v8432, %v8434
        %v8436 = vrot.slane %v8422, %v8435
        %s8439 = scalar_lea.vmem [#allocation4], 8
        %8440 = vst [vmem:[%s8439] sm:$0x1] %v8429
        %8441 = vst [vmem:[%s8439 + $0x2] sm:$0x1] %v8436
        %v8442 = vsel %vm2357, %v8417, %v8413
        %v8443 = vsel %vm2357, %v8419, %v8415
        %v8444 = vpack.c.b16 %v8442, %v8442
        %v8445 = vpack.c.b16 %v8443, %v8443
        %v8447 = vunpack.c.l.s4 1983009808
        %v8448 = vunpack.c.0.s8 %v8447
        %v8449 = vlaneseq
        %v8450 = vshrl.u32 %v8449, 7
        %v8451 = vsub.s32 %v8448, %v8450
        %v8452 = vrot.slane %v8444, %v8451
        %v8454 = vunpack.c.l.s4 1983009808
        %v8455 = vunpack.c.0.s8 %v8454
        %v8456 = vlaneseq
        %v8457 = vshrl.u32 %v8456, 7
        %v8458 = vsub.s32 %v8455, %v8457
        %v8459 = vrot.slane %v8445, %v8458
        %s8462 = scalar_lea.vmem [#allocation4], 2
        %v8463 = vld [vmem:[%s8462] sm:$0x3]
        %v8464 = vsel %vm8350, %v8452, %v8463
        %8465 = vst [vmem:[%s8462] sm:$0x3] %v8464
        %v8466 = vld [vmem:[%s8462 + $0x2] sm:$0x3]
        %v8467 = vsel %vm8350, %v8459, %v8466
        %8468 = vst [vmem:[%s8462 + $0x2] sm:$0x3] %v8467
        %v8469 = vld [vmem:[#allocation4] sm:$0x1]
        %v8470 = vld [vmem:[#allocation4 + $0x2] sm:$0x1]
        %v8471 = vld [vmem:[#allocation9] sm:$0xf]
        %v8472 = vld [vmem:[#allocation9 + $0x4] sm:$0xf]
        %v8473 = vld [vmem:[#allocation9 + $0x8] sm:$0xf]
        %v8474 = vld [vmem:[#allocation9 + $0xc] sm:$0xf]
        %v8475 = vld [vmem:[#allocation9 + $0x10] sm:$0xf]
        %v8476 = vld [vmem:[#allocation9 + $0x14] sm:$0xf]
        %v8477 = vld [vmem:[#allocation9 + $0x18] sm:$0xf]
        %v8478 = vld [vmem:[#allocation9 + $0x1c] sm:$0xf]
        %v8479 = vld [vmem:[#allocation9 + $0x20] sm:$0xf]
        %v8480 = vld [vmem:[#allocation9 + $0x24] sm:$0xf]
        %v8481 = vld [vmem:[#allocation9 + $0x28] sm:$0xf]
        %v8482 = vld [vmem:[#allocation9 + $0x2c] sm:$0xf]
        %v8483 = vld [vmem:[#allocation9 + $0x30] sm:$0xf]
        %v8484 = vld [vmem:[#allocation9 + $0x34] sm:$0xf]
        %v8485 = vld [vmem:[#allocation9 + $0x38] sm:$0xf]
        %v8486 = vld [vmem:[#allocation9 + $0x3c] sm:$0xf]
        %v8487 = vld [vmem:[%s8156] sm:$0x1]
        %v8488 = vld [vmem:[%s8156 + $0x2] sm:$0x1]
        %s8489 = scalar_lea.vmem [#allocation9], 64
        %v8490 = vld [vmem:[%s8489] sm:$0xf]
        %v8491 = vld [vmem:[%s8489 + $0x4] sm:$0xf]
        %v8492 = vld [vmem:[%s8489 + $0x8] sm:$0xf]
        %v8493 = vld [vmem:[%s8489 + $0xc] sm:$0xf]
        %v8494 = vld [vmem:[%s8489 + $0x10] sm:$0xf]
        %v8495 = vld [vmem:[%s8489 + $0x14] sm:$0xf]
        %v8496 = vld [vmem:[%s8489 + $0x18] sm:$0xf]
        %v8497 = vld [vmem:[%s8489 + $0x1c] sm:$0xf]
        %v8498 = vld [vmem:[%s8489 + $0x20] sm:$0xf]
        %v8499 = vld [vmem:[%s8489 + $0x24] sm:$0xf]
        %v8500 = vld [vmem:[%s8489 + $0x28] sm:$0xf]
        %v8501 = vld [vmem:[%s8489 + $0x2c] sm:$0xf]
        %v8502 = vld [vmem:[%s8489 + $0x30] sm:$0xf]
        %v8503 = vld [vmem:[%s8489 + $0x34] sm:$0xf]
        %v8504 = vld [vmem:[%s8489 + $0x38] sm:$0xf]
        %v8505 = vld [vmem:[%s8489 + $0x3c] sm:$0xf]
        %v8508 = vcombine.low %v8487, %v8488
        %v8510 = vunpack.c.l.s4 1966171168
        %v8511 = vunpack.c.0.s8 %v8510
        %v8512 = vlaneseq
        %v8513 = vshrl.u32 %v8512, 7
        %v8514 = vsub.s32 %v8511, %v8513
        %v8515 = vrot.slane %v8508, %v8514
        %v8517 = vunpack.c.l.s4 1966171168
        %v8518 = vunpack.c.0.s8 %v8517
        %v8519 = vlaneseq
        %v8520 = vshrl.u32 %v8519, 7
        %v8521 = vsub.s32 %v8518, %v8520
        %v8522 = vrot.slane %v8515, %v8521
        %v8540 = vunpack.c.l.b16 %v8490
        %v8541 = vunpack.c.l.b16 %v8491
        %v8542 = vunpack.c.l.b16 %v8492
        %v8543 = vunpack.c.l.b16 %v8493
        %v8544 = vunpack.c.l.b16 %v8494
        %v8545 = vunpack.c.l.b16 %v8495
        %v8546 = vunpack.c.l.b16 %v8496
        %v8547 = vunpack.c.l.b16 %v8497
        %v8548 = vunpack.c.l.b16 %v8498
        %v8549 = vunpack.c.l.b16 %v8499
        %v8550 = vunpack.c.l.b16 %v8500
        %v8551 = vunpack.c.l.b16 %v8501
        %v8552 = vunpack.c.l.b16 %v8502
        %v8553 = vunpack.c.l.b16 %v8503
        %v8554 = vunpack.c.l.b16 %v8504
        %v8555 = vunpack.c.l.b16 %v8505
        %v8556 = vpack.c.b16 %v8541, %v8540
        %v8557 = vpack.c.b16 %v8543, %v8542
        %v8558 = vpack.c.b16 %v8545, %v8544
        %v8559 = vpack.c.b16 %v8547, %v8546
        %v8560 = vpack.c.b16 %v8549, %v8548
        %v8561 = vpack.c.b16 %v8551, %v8550
        %v8562 = vpack.c.b16 %v8553, %v8552
        %v8563 = vpack.c.b16 %v8555, %v8554
        %8572 = vmatprep.subr.bf16.mxu0 0
        %8573 = vmatpush1.bf16.msra.mxu0 %v8556
        %8574 = vmatprep.subr.bf16.mxu0 0
        %8575 = vmatpush1.bf16.msra.mxu0 %v8557
        %8576 = vmatprep.subr.bf16.mxu0 0
        %8577 = vmatpush1.bf16.msra.mxu0 %v8558
        %8578 = vmatprep.subr.bf16.mxu0 0
        %8579 = vmatpush1.bf16.msra.mxu0 %v8559
        %8580 = vmatprep.subr.bf16.mxu0 0
        %8581 = vmatpush1.bf16.msra.mxu0 %v8560
        %8582 = vmatprep.subr.bf16.mxu0 0
        %8583 = vmatpush1.bf16.msra.mxu0 %v8561
        %8584 = vmatprep.subr.bf16.mxu0 0
        %8585 = vmatpush1.bf16.msra.mxu0 %v8562
        %8586 = vmatprep.subr.bf16.mxu0 0
        %8587 = vmatpush1.bf16.msra.mxu0 %v8563
        %8588 = vmatprep.subr.bf16.mxu0 0
        %8589 = vmatpush1.bf16.msra.mxu0 0
        %8590 = vmatprep.subr.bf16.mxu0 0
        %8591 = vmatpush1.bf16.msra.mxu0 0
        %8592 = vmatprep.subr.bf16.mxu0 0
        %8593 = vmatpush1.bf16.msra.mxu0 0
        %8594 = vmatprep.subr.bf16.mxu0 0
        %8595 = vmatpush1.bf16.msra.mxu0 0
        %8596 = vmatprep.subr.bf16.mxu0 0
        %8597 = vmatpush1.bf16.msra.mxu0 0
        %8598 = vmatprep.subr.bf16.mxu0 0
        %8599 = vmatpush1.bf16.msra.mxu0 0
        %8600 = vmatprep.subr.bf16.mxu0 0
        %8601 = vmatpush1.bf16.msra.mxu0 0
        %8602 = vmatprep.subr.bf16.mxu0 0
        %8603 = vmatpush1.bf16.msra.mxu0 0
        %8604 = vmatprep.mubr.bf16.mxu0 0
        %8605 = vmatmul.mubr.bf16.gmra.mrb[0].mxu0 %v8522
        %v8606 = vpop.f32.mrb[0].mxu0
        %v8607 = vadd.f32 0.0, %v8606
        %v8608 = vpop.f32.mrb[0].mxu0
        %v8609 = vpop.f32.mrb[0].mxu0
        %v8610 = vpop.f32.mrb[0].mxu0
        %8611 = vdwg.mxu0
        %v8614 = vcombine.low %v8469, %v8470
        %v8616 = vunpack.c.l.s4 1966171168
        %v8617 = vunpack.c.0.s8 %v8616
        %v8618 = vlaneseq
        %v8619 = vshrl.u32 %v8618, 7
        %v8620 = vsub.s32 %v8617, %v8619
        %v8621 = vrot.slane %v8614, %v8620
        %v8623 = vunpack.c.l.s4 1966171168
        %v8624 = vunpack.c.0.s8 %v8623
        %v8625 = vlaneseq
        %v8626 = vshrl.u32 %v8625, 7
        %v8627 = vsub.s32 %v8624, %v8626
        %v8628 = vrot.slane %v8621, %v8627
        %v8646 = vunpack.c.l.b16 %v8471
        %v8647 = vunpack.c.l.b16 %v8472
        %v8648 = vunpack.c.l.b16 %v8473
        %v8649 = vunpack.c.l.b16 %v8474
        %v8650 = vunpack.c.l.b16 %v8475
        %v8651 = vunpack.c.l.b16 %v8476
        %v8652 = vunpack.c.l.b16 %v8477
        %v8653 = vunpack.c.l.b16 %v8478
        %v8654 = vunpack.c.l.b16 %v8479
        %v8655 = vunpack.c.l.b16 %v8480
        %v8656 = vunpack.c.l.b16 %v8481
        %v8657 = vunpack.c.l.b16 %v8482
        %v8658 = vunpack.c.l.b16 %v8483
        %v8659 = vunpack.c.l.b16 %v8484
        %v8660 = vunpack.c.l.b16 %v8485
        %v8661 = vunpack.c.l.b16 %v8486
        %v8662 = vpack.c.b16 %v8647, %v8646
        %v8663 = vpack.c.b16 %v8649, %v8648
        %v8664 = vpack.c.b16 %v8651, %v8650
        %v8665 = vpack.c.b16 %v8653, %v8652
        %v8666 = vpack.c.b16 %v8655, %v8654
        %v8667 = vpack.c.b16 %v8657, %v8656
        %v8668 = vpack.c.b16 %v8659, %v8658
        %v8669 = vpack.c.b16 %v8661, %v8660
        %8678 = vmatprep.subr.bf16.mxu0 0
        %8679 = vmatpush1.bf16.msra.mxu0 %v8662
        %8680 = vmatprep.subr.bf16.mxu0 0
        %8681 = vmatpush1.bf16.msra.mxu0 %v8663
        %8682 = vmatprep.subr.bf16.mxu0 0
        %8683 = vmatpush1.bf16.msra.mxu0 %v8664
        %8684 = vmatprep.subr.bf16.mxu0 0
        %8685 = vmatpush1.bf16.msra.mxu0 %v8665
        %8686 = vmatprep.subr.bf16.mxu0 0
        %8687 = vmatpush1.bf16.msra.mxu0 %v8666
        %8688 = vmatprep.subr.bf16.mxu0 0
        %8689 = vmatpush1.bf16.msra.mxu0 %v8667
        %8690 = vmatprep.subr.bf16.mxu0 0
        %8691 = vmatpush1.bf16.msra.mxu0 %v8668
        %8692 = vmatprep.subr.bf16.mxu0 0
        %8693 = vmatpush1.bf16.msra.mxu0 %v8669
        %8694 = vmatprep.subr.bf16.mxu0 0
        %8695 = vmatpush1.bf16.msra.mxu0 0
        %8696 = vmatprep.subr.bf16.mxu0 0
        %8697 = vmatpush1.bf16.msra.mxu0 0
        %8698 = vmatprep.subr.bf16.mxu0 0
        %8699 = vmatpush1.bf16.msra.mxu0 0
        %8700 = vmatprep.subr.bf16.mxu0 0
        %8701 = vmatpush1.bf16.msra.mxu0 0
        %8702 = vmatprep.subr.bf16.mxu0 0
        %8703 = vmatpush1.bf16.msra.mxu0 0
        %8704 = vmatprep.subr.bf16.mxu0 0
        %8705 = vmatpush1.bf16.msra.mxu0 0
        %8706 = vmatprep.subr.bf16.mxu0 0
        %8707 = vmatpush1.bf16.msra.mxu0 0
        %8708 = vmatprep.subr.bf16.mxu0 0
        %8709 = vmatpush1.bf16.msra.mxu0 0
        %8710 = vmatprep.mubr.bf16.mxu0 0
        %8711 = vmatmul.mubr.bf16.gmra.mrb[0].mxu0 %v8628
        %v8712 = vpop.f32.mrb[0].mxu0
        %v8713 = vadd.f32 %v8607, %v8712
        %v8714 = vpop.f32.mrb[0].mxu0
        %v8715 = vpop.f32.mrb[0].mxu0
        %v8716 = vpop.f32.mrb[0].mxu0
        %8717 = vdwg.mxu0
        %v8718 = vld [vmem:[#allocation4] sm:$0x3]
        %v8719 = vld [vmem:[#allocation4 + $0x2] sm:$0x3]
        %v8723 = vunpack.c.l.s4 1966171168
        %v8724 = vunpack.c.0.s8 %v8723
        %v8725 = vlaneseq
        %v8726 = vshrl.u32 %v8725, 7
        %v8727 = vsub.s32 %v8724, %v8726
        %v8728 = vrot.slane %v8718, %v8727
        %v8729 = vcombine.high %v8728, %v8728
        %v8731 = vunpack.c.l.s4 1966171168
        %v8732 = vunpack.c.0.s8 %v8731
        %v8733 = vlaneseq
        %v8734 = vshrl.u32 %v8733, 7
        %v8735 = vsub.s32 %v8732, %v8734
        %v8736 = vrot.slane %v8719, %v8735
        %v8737 = vcombine.high %v8736, %v8736
        %vm8738 = vsmask.f32 1284
        %vm8739 = vmor %vm431, %vm8738
        %vm8740 = vsmask.f32 2312
        %vm8741 = vmor %vm8739, %vm8740
        %vm8742 = vsmask.f32 3340
        %vm8743 = vmor %vm8741, %vm8742
        %vm8744 = vsmask.f32 4368
        %vm8745 = vmor %vm8743, %vm8744
        %vm8746 = vsmask.f32 5396
        %vm8747 = vmor %vm8745, %vm8746
        %vm8748 = vsmask.f32 6424
        %vm8749 = vmor %vm8747, %vm8748
        %vm8750 = vsmask.f32 7452
        %vm8751 = vmor %vm8749, %vm8750
        %v8753 = vshrl.u32 %v8728, 16
        %v8755 = vrot.slane %v8753, 7
        %v8756 = vrot.slane %v8755, 1
        %v8758 = vshll.u32 %v8729, 16
        %v8760 = vsel %vm8751, %v8756, %v8758
        %v8762 = vshrl.u32 %v8736, 16
        %v8764 = vrot.slane %v8762, 7
        %v8765 = vrot.slane %v8764, 1
        %v8767 = vshll.u32 %v8737, 16
        %v8769 = vsel %vm8751, %v8765, %v8767
        %s8770 = scalar_lea.vmem [#allocation9], 128
        %v8771 = vld [vmem:[%s8770] sm:$0xf]
        %v8772 = vld [vmem:[%s8770 + $0x4] sm:$0xf]
        %v8773 = vld [vmem:[%s8770 + $0x8] sm:$0xf]
        %v8774 = vld [vmem:[%s8770 + $0xc] sm:$0xf]
        %v8775 = vld [vmem:[%s8770 + $0x10] sm:$0xf]
        %v8776 = vld [vmem:[%s8770 + $0x14] sm:$0xf]
        %v8777 = vld [vmem:[%s8770 + $0x18] sm:$0xf]
        %v8778 = vld [vmem:[%s8770 + $0x1c] sm:$0xf]
        %v8779 = vld [vmem:[%s8770 + $0x20] sm:$0xf]
        %v8780 = vld [vmem:[%s8770 + $0x24] sm:$0xf]
        %v8781 = vld [vmem:[%s8770 + $0x28] sm:$0xf]
        %v8782 = vld [vmem:[%s8770 + $0x2c] sm:$0xf]
        %v8783 = vld [vmem:[%s8770 + $0x30] sm:$0xf]
        %v8784 = vld [vmem:[%s8770 + $0x34] sm:$0xf]
        %v8785 = vld [vmem:[%s8770 + $0x38] sm:$0xf]
        %v8786 = vld [vmem:[%s8770 + $0x3c] sm:$0xf]
        %v8787 = vcombine.low %v8760, %v8769
        %v8789 = vunpack.c.l.s4 1966171168
        %v8790 = vunpack.c.0.s8 %v8789
        %v8791 = vlaneseq
        %v8792 = vshrl.u32 %v8791, 7
        %v8793 = vsub.s32 %v8790, %v8792
        %v8794 = vrot.slane %v8787, %v8793
        %v8796 = vunpack.c.l.s4 1966171168
        %v8797 = vunpack.c.0.s8 %v8796
        %v8798 = vlaneseq
        %v8799 = vshrl.u32 %v8798, 7
        %v8800 = vsub.s32 %v8797, %v8799
        %v8801 = vrot.slane %v8794, %v8800
        %v8819 = vunpack.c.l.b16 %v8771
        %v8820 = vunpack.c.l.b16 %v8772
        %v8821 = vunpack.c.l.b16 %v8773
        %v8822 = vunpack.c.l.b16 %v8774
        %v8823 = vunpack.c.l.b16 %v8775
        %v8824 = vunpack.c.l.b16 %v8776
        %v8825 = vunpack.c.l.b16 %v8777
        %v8826 = vunpack.c.l.b16 %v8778
        %v8827 = vunpack.c.l.b16 %v8779
        %v8828 = vunpack.c.l.b16 %v8780
        %v8829 = vunpack.c.l.b16 %v8781
        %v8830 = vunpack.c.l.b16 %v8782
        %v8831 = vunpack.c.l.b16 %v8783
        %v8832 = vunpack.c.l.b16 %v8784
        %v8833 = vunpack.c.l.b16 %v8785
        %v8834 = vunpack.c.l.b16 %v8786
        %v8835 = vpack.c.b16 %v8820, %v8819
        %v8836 = vpack.c.b16 %v8822, %v8821
        %v8837 = vpack.c.b16 %v8824, %v8823
        %v8838 = vpack.c.b16 %v8826, %v8825
        %v8839 = vpack.c.b16 %v8828, %v8827
        %v8840 = vpack.c.b16 %v8830, %v8829
        %v8841 = vpack.c.b16 %v8832, %v8831
        %v8842 = vpack.c.b16 %v8834, %v8833
        %8851 = vmatprep.subr.bf16.mxu0 0
        %8852 = vmatpush1.bf16.msra.mxu0 %v8835
        %8853 = vmatprep.subr.bf16.mxu0 0
        %8854 = vmatpush1.bf16.msra.mxu0 %v8836
        %8855 = vmatprep.subr.bf16.mxu0 0
        %8856 = vmatpush1.bf16.msra.mxu0 %v8837
        %8857 = vmatprep.subr.bf16.mxu0 0
        %8858 = vmatpush1.bf16.msra.mxu0 %v8838
        %8859 = vmatprep.subr.bf16.mxu0 0
        %8860 = vmatpush1.bf16.msra.mxu0 %v8839
        %8861 = vmatprep.subr.bf16.mxu0 0
        %8862 = vmatpush1.bf16.msra.mxu0 %v8840
        %8863 = vmatprep.subr.bf16.mxu0 0
        %8864 = vmatpush1.bf16.msra.mxu0 %v8841
        %8865 = vmatprep.subr.bf16.mxu0 0
        %8866 = vmatpush1.bf16.msra.mxu0 %v8842
        %8867 = vmatprep.subr.bf16.mxu0 0
        %8868 = vmatpush1.bf16.msra.mxu0 0
        %8869 = vmatprep.subr.bf16.mxu0 0
        %8870 = vmatpush1.bf16.msra.mxu0 0
        %8871 = vmatprep.subr.bf16.mxu0 0
        %8872 = vmatpush1.bf16.msra.mxu0 0
        %8873 = vmatprep.subr.bf16.mxu0 0
        %8874 = vmatpush1.bf16.msra.mxu0 0
        %8875 = vmatprep.subr.bf16.mxu0 0
        %8876 = vmatpush1.bf16.msra.mxu0 0
        %8877 = vmatprep.subr.bf16.mxu0 0
        %8878 = vmatpush1.bf16.msra.mxu0 0
        %8879 = vmatprep.subr.bf16.mxu0 0
        %8880 = vmatpush1.bf16.msra.mxu0 0
        %8881 = vmatprep.subr.bf16.mxu0 0
        %8882 = vmatpush1.bf16.msra.mxu0 0
        %8883 = vmatprep.mubr.bf16.mxu0 0
        %8884 = vmatmul.mubr.bf16.gmra.mrb[0].mxu0 %v8801
        %v8885 = vpop.f32.mrb[0].mxu0
        %v8886 = vadd.f32 0.0, %v8885
        %v8887 = vpop.f32.mrb[0].mxu0
        %v8888 = vpop.f32.mrb[0].mxu0
        %v8889 = vpop.f32.mrb[0].mxu0
        %8890 = vdwg.mxu0
        %v8891 = vadd.f32 %v8713, %v8886
        %v8892 = vld [vmem:[%s8175] sm:$0x1]
        %v8893 = vld [vmem:[%s8175 + $0x2] sm:$0x1]
        %s8894 = scalar_lea.vmem [#allocation9], 192
        %v8895 = vld [vmem:[%s8894] sm:$0xf]
        %v8896 = vld [vmem:[%s8894 + $0x4] sm:$0xf]
        %v8897 = vld [vmem:[%s8894 + $0x8] sm:$0xf]
        %v8898 = vld [vmem:[%s8894 + $0xc] sm:$0xf]
        %v8899 = vld [vmem:[%s8894 + $0x10] sm:$0xf]
        %v8900 = vld [vmem:[%s8894 + $0x14] sm:$0xf]
        %v8901 = vld [vmem:[%s8894 + $0x18] sm:$0xf]
        %v8902 = vld [vmem:[%s8894 + $0x1c] sm:$0xf]
        %v8903 = vld [vmem:[%s8894 + $0x20] sm:$0xf]
        %v8904 = vld [vmem:[%s8894 + $0x24] sm:$0xf]
        %v8905 = vld [vmem:[%s8894 + $0x28] sm:$0xf]
        %v8906 = vld [vmem:[%s8894 + $0x2c] sm:$0xf]
        %v8907 = vld [vmem:[%s8894 + $0x30] sm:$0xf]
        %v8908 = vld [vmem:[%s8894 + $0x34] sm:$0xf]
        %v8909 = vld [vmem:[%s8894 + $0x38] sm:$0xf]
        %v8910 = vld [vmem:[%s8894 + $0x3c] sm:$0xf]
        %v8913 = vcombine.low %v8892, %v8893
        %v8915 = vunpack.c.l.s4 1966171168
        %v8916 = vunpack.c.0.s8 %v8915
        %v8917 = vlaneseq
        %v8918 = vshrl.u32 %v8917, 7
        %v8919 = vsub.s32 %v8916, %v8918
        %v8920 = vrot.slane %v8913, %v8919
        %v8922 = vunpack.c.l.s4 1966171168
        %v8923 = vunpack.c.0.s8 %v8922
        %v8924 = vlaneseq
        %v8925 = vshrl.u32 %v8924, 7
        %v8926 = vsub.s32 %v8923, %v8925
        %v8927 = vrot.slane %v8920, %v8926
        %v8945 = vunpack.c.l.b16 %v8895
        %v8946 = vunpack.c.l.b16 %v8896
        %v8947 = vunpack.c.l.b16 %v8897
        %v8948 = vunpack.c.l.b16 %v8898
        %v8949 = vunpack.c.l.b16 %v8899
        %v8950 = vunpack.c.l.b16 %v8900
        %v8951 = vunpack.c.l.b16 %v8901
        %v8952 = vunpack.c.l.b16 %v8902
        %v8953 = vunpack.c.l.b16 %v8903
        %v8954 = vunpack.c.l.b16 %v8904
        %v8955 = vunpack.c.l.b16 %v8905
        %v8956 = vunpack.c.l.b16 %v8906
        %v8957 = vunpack.c.l.b16 %v8907
        %v8958 = vunpack.c.l.b16 %v8908
        %v8959 = vunpack.c.l.b16 %v8909
        %v8960 = vunpack.c.l.b16 %v8910
        %v8961 = vpack.c.b16 %v8946, %v8945
        %v8962 = vpack.c.b16 %v8948, %v8947
        %v8963 = vpack.c.b16 %v8950, %v8949
        %v8964 = vpack.c.b16 %v8952, %v8951
        %v8965 = vpack.c.b16 %v8954, %v8953
        %v8966 = vpack.c.b16 %v8956, %v8955
        %v8967 = vpack.c.b16 %v8958, %v8957
        %v8968 = vpack.c.b16 %v8960, %v8959
        %8977 = vmatprep.subr.bf16.mxu0 0
        %8978 = vmatpush1.bf16.msra.mxu0 %v8961
        %8979 = vmatprep.subr.bf16.mxu0 0
        %8980 = vmatpush1.bf16.msra.mxu0 %v8962
        %8981 = vmatprep.subr.bf16.mxu0 0
        %8982 = vmatpush1.bf16.msra.mxu0 %v8963
        %8983 = vmatprep.subr.bf16.mxu0 0
        %8984 = vmatpush1.bf16.msra.mxu0 %v8964
        %8985 = vmatprep.subr.bf16.mxu0 0
        %8986 = vmatpush1.bf16.msra.mxu0 %v8965
        %8987 = vmatprep.subr.bf16.mxu0 0
        %8988 = vmatpush1.bf16.msra.mxu0 %v8966
        %8989 = vmatprep.subr.bf16.mxu0 0
        %8990 = vmatpush1.bf16.msra.mxu0 %v8967
        %8991 = vmatprep.subr.bf16.mxu0 0
        %8992 = vmatpush1.bf16.msra.mxu0 %v8968
        %8993 = vmatprep.subr.bf16.mxu0 0
        %8994 = vmatpush1.bf16.msra.mxu0 0
        %8995 = vmatprep.subr.bf16.mxu0 0
        %8996 = vmatpush1.bf16.msra.mxu0 0
        %8997 = vmatprep.subr.bf16.mxu0 0
        %8998 = vmatpush1.bf16.msra.mxu0 0
        %8999 = vmatprep.subr.bf16.mxu0 0
        %9000 = vmatpush1.bf16.msra.mxu0 0
        %9001 = vmatprep.subr.bf16.mxu0 0
        %9002 = vmatpush1.bf16.msra.mxu0 0
        %9003 = vmatprep.subr.bf16.mxu0 0
        %9004 = vmatpush1.bf16.msra.mxu0 0
        %9005 = vmatprep.subr.bf16.mxu0 0
        %9006 = vmatpush1.bf16.msra.mxu0 0
        %9007 = vmatprep.subr.bf16.mxu0 0
        %9008 = vmatpush1.bf16.msra.mxu0 0
        %9009 = vmatprep.mubr.bf16.mxu0 0
        %9010 = vmatmul.mubr.bf16.gmra.mrb[0].mxu0 %v8927
        %v9011 = vpop.f32.mrb[0].mxu0
        %v9012 = vadd.f32 0.0, %v9011
        %v9013 = vpop.f32.mrb[0].mxu0
        %v9014 = vpop.f32.mrb[0].mxu0
        %v9015 = vpop.f32.mrb[0].mxu0
        %9016 = vdwg.mxu0
        %v9017 = vadd.f32 %v8891, %v9012
        %v9018 = vld [vmem:[%s8185] sm:$0x1]
        %v9019 = vld [vmem:[%s8185 + $0x2] sm:$0x1]
        %s9020 = scalar_lea.vmem [#allocation9], 256
        %v9021 = vld [vmem:[%s9020] sm:$0xf]
        %v9022 = vld [vmem:[%s9020 + $0x4] sm:$0xf]
        %v9023 = vld [vmem:[%s9020 + $0x8] sm:$0xf]
        %v9024 = vld [vmem:[%s9020 + $0xc] sm:$0xf]
        %v9025 = vld [vmem:[%s9020 + $0x10] sm:$0xf]
        %v9026 = vld [vmem:[%s9020 + $0x14] sm:$0xf]
        %v9027 = vld [vmem:[%s9020 + $0x18] sm:$0xf]
        %v9028 = vld [vmem:[%s9020 + $0x1c] sm:$0xf]
        %v9029 = vld [vmem:[%s9020 + $0x20] sm:$0xf]
        %v9030 = vld [vmem:[%s9020 + $0x24] sm:$0xf]
        %v9031 = vld [vmem:[%s9020 + $0x28] sm:$0xf]
        %v9032 = vld [vmem:[%s9020 + $0x2c] sm:$0xf]
        %v9033 = vld [vmem:[%s9020 + $0x30] sm:$0xf]
        %v9034 = vld [vmem:[%s9020 + $0x34] sm:$0xf]
        %v9035 = vld [vmem:[%s9020 + $0x38] sm:$0xf]
        %v9036 = vld [vmem:[%s9020 + $0x3c] sm:$0xf]
        %v9039 = vcombine.low %v9018, %v9019
        %v9041 = vunpack.c.l.s4 1966171168
        %v9042 = vunpack.c.0.s8 %v9041
        %v9043 = vlaneseq
        %v9044 = vshrl.u32 %v9043, 7
        %v9045 = vsub.s32 %v9042, %v9044
        %v9046 = vrot.slane %v9039, %v9045
        %v9048 = vunpack.c.l.s4 1966171168
        %v9049 = vunpack.c.0.s8 %v9048
        %v9050 = vlaneseq
        %v9051 = vshrl.u32 %v9050, 7
        %v9052 = vsub.s32 %v9049, %v9051
        %v9053 = vrot.slane %v9046, %v9052
        %v9071 = vunpack.c.l.b16 %v9021
        %v9072 = vunpack.c.l.b16 %v9022
        %v9073 = vunpack.c.l.b16 %v9023
        %v9074 = vunpack.c.l.b16 %v9024
        %v9075 = vunpack.c.l.b16 %v9025
        %v9076 = vunpack.c.l.b16 %v9026
        %v9077 = vunpack.c.l.b16 %v9027
        %v9078 = vunpack.c.l.b16 %v9028
        %v9079 = vunpack.c.l.b16 %v9029
        %v9080 = vunpack.c.l.b16 %v9030
        %v9081 = vunpack.c.l.b16 %v9031
        %v9082 = vunpack.c.l.b16 %v9032
        %v9083 = vunpack.c.l.b16 %v9033
        %v9084 = vunpack.c.l.b16 %v9034
        %v9085 = vunpack.c.l.b16 %v9035
        %v9086 = vunpack.c.l.b16 %v9036
        %v9087 = vpack.c.b16 %v9072, %v9071
        %v9088 = vpack.c.b16 %v9074, %v9073
        %v9089 = vpack.c.b16 %v9076, %v9075
        %v9090 = vpack.c.b16 %v9078, %v9077
        %v9091 = vpack.c.b16 %v9080, %v9079
        %v9092 = vpack.c.b16 %v9082, %v9081
        %v9093 = vpack.c.b16 %v9084, %v9083
        %v9094 = vpack.c.b16 %v9086, %v9085
        %9103 = vmatprep.subr.bf16.mxu0 0
        %9104 = vmatpush1.bf16.msra.mxu0 %v9087
        %9105 = vmatprep.subr.bf16.mxu0 0
        %9106 = vmatpush1.bf16.msra.mxu0 %v9088
        %9107 = vmatprep.subr.bf16.mxu0 0
        %9108 = vmatpush1.bf16.msra.mxu0 %v9089
        %9109 = vmatprep.subr.bf16.mxu0 0
        %9110 = vmatpush1.bf16.msra.mxu0 %v9090
        %9111 = vmatprep.subr.bf16.mxu0 0
        %9112 = vmatpush1.bf16.msra.mxu0 %v9091
        %9113 = vmatprep.subr.bf16.mxu0 0
        %9114 = vmatpush1.bf16.msra.mxu0 %v9092
        %9115 = vmatprep.subr.bf16.mxu0 0
        %9116 = vmatpush1.bf16.msra.mxu0 %v9093
        %9117 = vmatprep.subr.bf16.mxu0 0
        %9118 = vmatpush1.bf16.msra.mxu0 %v9094
        %9119 = vmatprep.subr.bf16.mxu0 0
        %9120 = vmatpush1.bf16.msra.mxu0 0
        %9121 = vmatprep.subr.bf16.mxu0 0
        %9122 = vmatpush1.bf16.msra.mxu0 0
        %9123 = vmatprep.subr.bf16.mxu0 0
        %9124 = vmatpush1.bf16.msra.mxu0 0
        %9125 = vmatprep.subr.bf16.mxu0 0
        %9126 = vmatpush1.bf16.msra.mxu0 0
        %9127 = vmatprep.subr.bf16.mxu0 0
        %9128 = vmatpush1.bf16.msra.mxu0 0
        %9129 = vmatprep.subr.bf16.mxu0 0
        %9130 = vmatpush1.bf16.msra.mxu0 0
        %9131 = vmatprep.subr.bf16.mxu0 0
        %9132 = vmatpush1.bf16.msra.mxu0 0
        %9133 = vmatprep.subr.bf16.mxu0 0
        %9134 = vmatpush1.bf16.msra.mxu0 0
        %9135 = vmatprep.mubr.bf16.mxu0 0
        %9136 = vmatmul.mubr.bf16.gmra.mrb[0].mxu0 %v9053
        %v9137 = vpop.f32.mrb[0].mxu0
        %v9138 = vadd.f32 0.0, %v9137
        %v9139 = vpop.f32.mrb[0].mxu0
        %v9140 = vpop.f32.mrb[0].mxu0
        %v9141 = vpop.f32.mrb[0].mxu0
        %9142 = vdwg.mxu0
        %v9143 = vadd.f32 %v9017, %v9138
        %v9144 = vld [vmem:[%s8175] sm:$0x3]
        %v9145 = vld [vmem:[%s8175 + $0x2] sm:$0x3]
        %v9149 = vunpack.c.l.s4 1966171168
        %v9150 = vunpack.c.0.s8 %v9149
        %v9151 = vlaneseq
        %v9152 = vshrl.u32 %v9151, 7
        %v9153 = vsub.s32 %v9150, %v9152
        %v9154 = vrot.slane %v9144, %v9153
        %v9155 = vcombine.high %v9154, %v9154
        %v9157 = vunpack.c.l.s4 1966171168
        %v9158 = vunpack.c.0.s8 %v9157
        %v9159 = vlaneseq
        %v9160 = vshrl.u32 %v9159, 7
        %v9161 = vsub.s32 %v9158, %v9160
        %v9162 = vrot.slane %v9145, %v9161
        %v9163 = vcombine.high %v9162, %v9162
        %v9165 = vshrl.u32 %v9154, 16
        %v9167 = vrot.slane %v9165, 7
        %v9168 = vrot.slane %v9167, 1
        %v9170 = vshll.u32 %v9155, 16
        %v9172 = vsel %vm8751, %v9168, %v9170
        %v9174 = vshrl.u32 %v9162, 16
        %v9176 = vrot.slane %v9174, 7
        %v9177 = vrot.slane %v9176, 1
        %v9179 = vshll.u32 %v9163, 16
        %v9181 = vsel %vm8751, %v9177, %v9179
        %s9182 = scalar_lea.vmem [#allocation9], 320
        %v9183 = vld [vmem:[%s9182] sm:$0xf]
        %v9184 = vld [vmem:[%s9182 + $0x4] sm:$0xf]
        %v9185 = vld [vmem:[%s9182 + $0x8] sm:$0xf]
        %v9186 = vld [vmem:[%s9182 + $0xc] sm:$0xf]
        %v9187 = vld [vmem:[%s9182 + $0x10] sm:$0xf]
        %v9188 = vld [vmem:[%s9182 + $0x14] sm:$0xf]
        %v9189 = vld [vmem:[%s9182 + $0x18] sm:$0xf]
        %v9190 = vld [vmem:[%s9182 + $0x1c] sm:$0xf]
        %v9191 = vld [vmem:[%s9182 + $0x20] sm:$0xf]
        %v9192 = vld [vmem:[%s9182 + $0x24] sm:$0xf]
        %v9193 = vld [vmem:[%s9182 + $0x28] sm:$0xf]
        %v9194 = vld [vmem:[%s9182 + $0x2c] sm:$0xf]
        %v9195 = vld [vmem:[%s9182 + $0x30] sm:$0xf]
        %v9196 = vld [vmem:[%s9182 + $0x34] sm:$0xf]
        %v9197 = vld [vmem:[%s9182 + $0x38] sm:$0xf]
        %v9198 = vld [vmem:[%s9182 + $0x3c] sm:$0xf]
        %v9199 = vcombine.low %v9172, %v9181
        %v9201 = vunpack.c.l.s4 1966171168
        %v9202 = vunpack.c.0.s8 %v9201
        %v9203 = vlaneseq
        %v9204 = vshrl.u32 %v9203, 7
        %v9205 = vsub.s32 %v9202, %v9204
        %v9206 = vrot.slane %v9199, %v9205
        %v9208 = vunpack.c.l.s4 1966171168
        %v9209 = vunpack.c.0.s8 %v9208
        %v9210 = vlaneseq
        %v9211 = vshrl.u32 %v9210, 7
        %v9212 = vsub.s32 %v9209, %v9211
        %v9213 = vrot.slane %v9206, %v9212
        %v9231 = vunpack.c.l.b16 %v9183
        %v9232 = vunpack.c.l.b16 %v9184
        %v9233 = vunpack.c.l.b16 %v9185
        %v9234 = vunpack.c.l.b16 %v9186
        %v9235 = vunpack.c.l.b16 %v9187
        %v9236 = vunpack.c.l.b16 %v9188
        %v9237 = vunpack.c.l.b16 %v9189
        %v9238 = vunpack.c.l.b16 %v9190
        %v9239 = vunpack.c.l.b16 %v9191
        %v9240 = vunpack.c.l.b16 %v9192
        %v9241 = vunpack.c.l.b16 %v9193
        %v9242 = vunpack.c.l.b16 %v9194
        %v9243 = vunpack.c.l.b16 %v9195
        %v9244 = vunpack.c.l.b16 %v9196
        %v9245 = vunpack.c.l.b16 %v9197
        %v9246 = vunpack.c.l.b16 %v9198
        %v9247 = vpack.c.b16 %v9232, %v9231
        %v9248 = vpack.c.b16 %v9234, %v9233
        %v9249 = vpack.c.b16 %v9236, %v9235
        %v9250 = vpack.c.b16 %v9238, %v9237
        %v9251 = vpack.c.b16 %v9240, %v9239
        %v9252 = vpack.c.b16 %v9242, %v9241
        %v9253 = vpack.c.b16 %v9244, %v9243
        %v9254 = vpack.c.b16 %v9246, %v9245
        %9263 = vmatprep.subr.bf16.mxu0 0
        %9264 = vmatpush1.bf16.msra.mxu0 %v9247
        %9265 = vmatprep.subr.bf16.mxu0 0
        %9266 = vmatpush1.bf16.msra.mxu0 %v9248
        %9267 = vmatprep.subr.bf16.mxu0 0
        %9268 = vmatpush1.bf16.msra.mxu0 %v9249
        %9269 = vmatprep.subr.bf16.mxu0 0
        %9270 = vmatpush1.bf16.msra.mxu0 %v9250
        %9271 = vmatprep.subr.bf16.mxu0 0
        %9272 = vmatpush1.bf16.msra.mxu0 %v9251
        %9273 = vmatprep.subr.bf16.mxu0 0
        %9274 = vmatpush1.bf16.msra.mxu0 %v9252
        %9275 = vmatprep.subr.bf16.mxu0 0
        %9276 = vmatpush1.bf16.msra.mxu0 %v9253
        %9277 = vmatprep.subr.bf16.mxu0 0
        %9278 = vmatpush1.bf16.msra.mxu0 %v9254
        %9279 = vmatprep.subr.bf16.mxu0 0
        %9280 = vmatpush1.bf16.msra.mxu0 0
        %9281 = vmatprep.subr.bf16.mxu0 0
        %9282 = vmatpush1.bf16.msra.mxu0 0
        %9283 = vmatprep.subr.bf16.mxu0 0
        %9284 = vmatpush1.bf16.msra.mxu0 0
        %9285 = vmatprep.subr.bf16.mxu0 0
        %9286 = vmatpush1.bf16.msra.mxu0 0
        %9287 = vmatprep.subr.bf16.mxu0 0
        %9288 = vmatpush1.bf16.msra.mxu0 0
        %9289 = vmatprep.subr.bf16.mxu0 0
        %9290 = vmatpush1.bf16.msra.mxu0 0
        %9291 = vmatprep.subr.bf16.mxu0 0
        %9292 = vmatpush1.bf16.msra.mxu0 0
        %9293 = vmatprep.subr.bf16.mxu0 0
        %9294 = vmatpush1.bf16.msra.mxu0 0
        %9295 = vmatprep.mubr.bf16.mxu0 0
        %9296 = vmatmul.mubr.bf16.gmra.mrb[0].mxu0 %v9213
        %v9297 = vpop.f32.mrb[0].mxu0
        %v9298 = vadd.f32 0.0, %v9297
        %v9299 = vpop.f32.mrb[0].mxu0
        %v9300 = vpop.f32.mrb[0].mxu0
        %v9301 = vpop.f32.mrb[0].mxu0
        %9302 = vdwg.mxu0
        %v9303 = vadd.f32 %v9143, %v9298
        %v9304 = vld [vmem:[%s8462] sm:$0x1]
        %v9305 = vld [vmem:[%s8462 + $0x2] sm:$0x1]
        %s9306 = scalar_lea.vmem [#allocation9], 384
        %v9307 = vld [vmem:[%s9306] sm:$0xf]
        %v9308 = vld [vmem:[%s9306 + $0x4] sm:$0xf]
        %v9309 = vld [vmem:[%s9306 + $0x8] sm:$0xf]
        %v9310 = vld [vmem:[%s9306 + $0xc] sm:$0xf]
        %v9311 = vld [vmem:[%s9306 + $0x10] sm:$0xf]
        %v9312 = vld [vmem:[%s9306 + $0x14] sm:$0xf]
        %v9313 = vld [vmem:[%s9306 + $0x18] sm:$0xf]
        %v9314 = vld [vmem:[%s9306 + $0x1c] sm:$0xf]
        %v9315 = vld [vmem:[%s9306 + $0x20] sm:$0xf]
        %v9316 = vld [vmem:[%s9306 + $0x24] sm:$0xf]
        %v9317 = vld [vmem:[%s9306 + $0x28] sm:$0xf]
        %v9318 = vld [vmem:[%s9306 + $0x2c] sm:$0xf]
        %v9319 = vld [vmem:[%s9306 + $0x30] sm:$0xf]
        %v9320 = vld [vmem:[%s9306 + $0x34] sm:$0xf]
        %v9321 = vld [vmem:[%s9306 + $0x38] sm:$0xf]
        %v9322 = vld [vmem:[%s9306 + $0x3c] sm:$0xf]
        %v9325 = vcombine.low %v9304, %v9305
        %v9327 = vunpack.c.l.s4 1966171168
        %v9328 = vunpack.c.0.s8 %v9327
        %v9329 = vlaneseq
        %v9330 = vshrl.u32 %v9329, 7
        %v9331 = vsub.s32 %v9328, %v9330
        %v9332 = vrot.slane %v9325, %v9331
        %v9334 = vunpack.c.l.s4 1966171168
        %v9335 = vunpack.c.0.s8 %v9334
        %v9336 = vlaneseq
        %v9337 = vshrl.u32 %v9336, 7
        %v9338 = vsub.s32 %v9335, %v9337
        %v9339 = vrot.slane %v9332, %v9338
        %v9357 = vunpack.c.l.b16 %v9307
        %v9358 = vunpack.c.l.b16 %v9308
        %v9359 = vunpack.c.l.b16 %v9309
        %v9360 = vunpack.c.l.b16 %v9310
        %v9361 = vunpack.c.l.b16 %v9311
        %v9362 = vunpack.c.l.b16 %v9312
        %v9363 = vunpack.c.l.b16 %v9313
        %v9364 = vunpack.c.l.b16 %v9314
        %v9365 = vunpack.c.l.b16 %v9315
        %v9366 = vunpack.c.l.b16 %v9316
        %v9367 = vunpack.c.l.b16 %v9317
        %v9368 = vunpack.c.l.b16 %v9318
        %v9369 = vunpack.c.l.b16 %v9319
        %v9370 = vunpack.c.l.b16 %v9320
        %v9371 = vunpack.c.l.b16 %v9321
        %v9372 = vunpack.c.l.b16 %v9322
        %v9373 = vpack.c.b16 %v9358, %v9357
        %v9374 = vpack.c.b16 %v9360, %v9359
        %v9375 = vpack.c.b16 %v9362, %v9361
        %v9376 = vpack.c.b16 %v9364, %v9363
        %v9377 = vpack.c.b16 %v9366, %v9365
        %v9378 = vpack.c.b16 %v9368, %v9367
        %v9379 = vpack.c.b16 %v9370, %v9369
        %v9380 = vpack.c.b16 %v9372, %v9371
        %9389 = vmatprep.subr.bf16.mxu0 0
        %9390 = vmatpush1.bf16.msra.mxu0 %v9373
        %9391 = vmatprep.subr.bf16.mxu0 0
        %9392 = vmatpush1.bf16.msra.mxu0 %v9374
        %9393 = vmatprep.subr.bf16.mxu0 0
        %9394 = vmatpush1.bf16.msra.mxu0 %v9375
        %9395 = vmatprep.subr.bf16.mxu0 0
        %9396 = vmatpush1.bf16.msra.mxu0 %v9376
        %9397 = vmatprep.subr.bf16.mxu0 0
        %9398 = vmatpush1.bf16.msra.mxu0 %v9377
        %9399 = vmatprep.subr.bf16.mxu0 0
        %9400 = vmatpush1.bf16.msra.mxu0 %v9378
        %9401 = vmatprep.subr.bf16.mxu0 0
        %9402 = vmatpush1.bf16.msra.mxu0 %v9379
        %9403 = vmatprep.subr.bf16.mxu0 0
        %9404 = vmatpush1.bf16.msra.mxu0 %v9380
        %9405 = vmatprep.subr.bf16.mxu0 0
        %9406 = vmatpush1.bf16.msra.mxu0 0
        %9407 = vmatprep.subr.bf16.mxu0 0
        %9408 = vmatpush1.bf16.msra.mxu0 0
        %9409 = vmatprep.subr.bf16.mxu0 0
        %9410 = vmatpush1.bf16.msra.mxu0 0
        %9411 = vmatprep.subr.bf16.mxu0 0
        %9412 = vmatpush1.bf16.msra.mxu0 0
        %9413 = vmatprep.subr.bf16.mxu0 0
        %9414 = vmatpush1.bf16.msra.mxu0 0
        %9415 = vmatprep.subr.bf16.mxu0 0
        %9416 = vmatpush1.bf16.msra.mxu0 0
        %9417 = vmatprep.subr.bf16.mxu0 0
        %9418 = vmatpush1.bf16.msra.mxu0 0
        %9419 = vmatprep.subr.bf16.mxu0 0
        %9420 = vmatpush1.bf16.msra.mxu0 0
        %9421 = vmatprep.mubr.bf16.mxu0 0
        %9422 = vmatmul.mubr.bf16.gmra.mrb[0].mxu0 %v9339
        %v9423 = vpop.f32.mrb[0].mxu0
        %v9424 = vadd.f32 0.0, %v9423
        %v9425 = vpop.f32.mrb[0].mxu0
        %v9426 = vpop.f32.mrb[0].mxu0
        %v9427 = vpop.f32.mrb[0].mxu0
        %9428 = vdwg.mxu0
        %v9429 = vadd.f32 %v9303, %v9424
        %v9430 = vld [vmem:[%s8439] sm:$0x1]
        %v9431 = vld [vmem:[%s8439 + $0x2] sm:$0x1]
        %s9432 = scalar_lea.vmem [#allocation9], 448
        %v9433 = vld [vmem:[%s9432] sm:$0xf]
        %v9434 = vld [vmem:[%s9432 + $0x4] sm:$0xf]
        %v9435 = vld [vmem:[%s9432 + $0x8] sm:$0xf]
        %v9436 = vld [vmem:[%s9432 + $0xc] sm:$0xf]
        %v9437 = vld [vmem:[%s9432 + $0x10] sm:$0xf]
        %v9438 = vld [vmem:[%s9432 + $0x14] sm:$0xf]
        %v9439 = vld [vmem:[%s9432 + $0x18] sm:$0xf]
        %v9440 = vld [vmem:[%s9432 + $0x1c] sm:$0xf]
        %v9441 = vld [vmem:[%s9432 + $0x20] sm:$0xf]
        %v9442 = vld [vmem:[%s9432 + $0x24] sm:$0xf]
        %v9443 = vld [vmem:[%s9432 + $0x28] sm:$0xf]
        %v9444 = vld [vmem:[%s9432 + $0x2c] sm:$0xf]
        %v9445 = vld [vmem:[%s9432 + $0x30] sm:$0xf]
        %v9446 = vld [vmem:[%s9432 + $0x34] sm:$0xf]
        %v9447 = vld [vmem:[%s9432 + $0x38] sm:$0xf]
        %v9448 = vld [vmem:[%s9432 + $0x3c] sm:$0xf]
        %v9451 = vcombine.low %v9430, %v9431
        %v9453 = vunpack.c.l.s4 1966171168
        %v9454 = vunpack.c.0.s8 %v9453
        %v9455 = vlaneseq
        %v9456 = vshrl.u32 %v9455, 7
        %v9457 = vsub.s32 %v9454, %v9456
        %v9458 = vrot.slane %v9451, %v9457
        %v9460 = vunpack.c.l.s4 1966171168
        %v9461 = vunpack.c.0.s8 %v9460
        %v9462 = vlaneseq
        %v9463 = vshrl.u32 %v9462, 7
        %v9464 = vsub.s32 %v9461, %v9463
        %v9465 = vrot.slane %v9458, %v9464
        %v9483 = vunpack.c.l.b16 %v9433
        %v9484 = vunpack.c.l.b16 %v9434
        %v9485 = vunpack.c.l.b16 %v9435
        %v9486 = vunpack.c.l.b16 %v9436
        %v9487 = vunpack.c.l.b16 %v9437
        %v9488 = vunpack.c.l.b16 %v9438
        %v9489 = vunpack.c.l.b16 %v9439
        %v9490 = vunpack.c.l.b16 %v9440
        %v9491 = vunpack.c.l.b16 %v9441
        %v9492 = vunpack.c.l.b16 %v9442
        %v9493 = vunpack.c.l.b16 %v9443
        %v9494 = vunpack.c.l.b16 %v9444
        %v9495 = vunpack.c.l.b16 %v9445
        %v9496 = vunpack.c.l.b16 %v9446
        %v9497 = vunpack.c.l.b16 %v9447
        %v9498 = vunpack.c.l.b16 %v9448
        %v9499 = vpack.c.b16 %v9484, %v9483
        %v9500 = vpack.c.b16 %v9486, %v9485
        %v9501 = vpack.c.b16 %v9488, %v9487
        %v9502 = vpack.c.b16 %v9490, %v9489
        %v9503 = vpack.c.b16 %v9492, %v9491
        %v9504 = vpack.c.b16 %v9494, %v9493
        %v9505 = vpack.c.b16 %v9496, %v9495
        %v9506 = vpack.c.b16 %v9498, %v9497
        %9515 = vmatprep.subr.bf16.mxu0 0
        %9516 = vmatpush1.bf16.msra.mxu0 %v9499
        %9517 = vmatprep.subr.bf16.mxu0 0
        %9518 = vmatpush1.bf16.msra.mxu0 %v9500
        %9519 = vmatprep.subr.bf16.mxu0 0
        %9520 = vmatpush1.bf16.msra.mxu0 %v9501
        %9521 = vmatprep.subr.bf16.mxu0 0
        %9522 = vmatpush1.bf16.msra.mxu0 %v9502
        %9523 = vmatprep.subr.bf16.mxu0 0
        %9524 = vmatpush1.bf16.msra.mxu0 %v9503
        %9525 = vmatprep.subr.bf16.mxu0 0
        %9526 = vmatpush1.bf16.msra.mxu0 %v9504
        %9527 = vmatprep.subr.bf16.mxu0 0
        %9528 = vmatpush1.bf16.msra.mxu0 %v9505
        %9529 = vmatprep.subr.bf16.mxu0 0
        %9530 = vmatpush1.bf16.msra.mxu0 %v9506
        %9531 = vmatprep.subr.bf16.mxu0 0
        %9532 = vmatpush1.bf16.msra.mxu0 0
        %9533 = vmatprep.subr.bf16.mxu0 0
        %9534 = vmatpush1.bf16.msra.mxu0 0
        %9535 = vmatprep.subr.bf16.mxu0 0
        %9536 = vmatpush1.bf16.msra.mxu0 0
        %9537 = vmatprep.subr.bf16.mxu0 0
        %9538 = vmatpush1.bf16.msra.mxu0 0
        %9539 = vmatprep.subr.bf16.mxu0 0
        %9540 = vmatpush1.bf16.msra.mxu0 0
        %9541 = vmatprep.subr.bf16.mxu0 0
        %9542 = vmatpush1.bf16.msra.mxu0 0
        %9543 = vmatprep.subr.bf16.mxu0 0
        %9544 = vmatpush1.bf16.msra.mxu0 0
        %9545 = vmatprep.subr.bf16.mxu0 0
        %9546 = vmatpush1.bf16.msra.mxu0 0
        %9547 = vmatprep.mubr.bf16.mxu0 0
        %9548 = vmatmul.mubr.bf16.gmra.mrb[0].mxu0 %v9465
        %v9549 = vpop.f32.mrb[0].mxu0
        %v9550 = vadd.f32 0.0, %v9549
        %v9551 = vpop.f32.mrb[0].mxu0
        %v9552 = vpop.f32.mrb[0].mxu0
        %v9553 = vpop.f32.mrb[0].mxu0
        %9554 = vdwg.mxu0
        %v9555 = vadd.f32 %v9429, %v9550
        %v9556 = vld [vmem:[%s8462] sm:$0x3]
        %v9557 = vld [vmem:[%s8462 + $0x2] sm:$0x3]
        %v9561 = vunpack.c.l.s4 1966171168
        %v9562 = vunpack.c.0.s8 %v9561
        %v9563 = vlaneseq
        %v9564 = vshrl.u32 %v9563, 7
        %v9565 = vsub.s32 %v9562, %v9564
        %v9566 = vrot.slane %v9556, %v9565
        %v9567 = vcombine.high %v9566, %v9566
        %v9569 = vunpack.c.l.s4 1966171168
        %v9570 = vunpack.c.0.s8 %v9569
        %v9571 = vlaneseq
        %v9572 = vshrl.u32 %v9571, 7
        %v9573 = vsub.s32 %v9570, %v9572
        %v9574 = vrot.slane %v9557, %v9573
        %v9575 = vcombine.high %v9574, %v9574
        %v9577 = vshrl.u32 %v9566, 16
        %v9579 = vrot.slane %v9577, 7
        %v9580 = vrot.slane %v9579, 1
        %v9582 = vshll.u32 %v9567, 16
        %v9584 = vsel %vm8751, %v9580, %v9582
        %v9586 = vshrl.u32 %v9574, 16
        %v9588 = vrot.slane %v9586, 7
        %v9589 = vrot.slane %v9588, 1
        %v9591 = vshll.u32 %v9575, 16
        %v9593 = vsel %vm8751, %v9589, %v9591
        %s9594 = scalar_lea.vmem [#allocation9], 512
        %v9595 = vld [vmem:[%s9594] sm:$0xf]
        %v9596 = vld [vmem:[%s9594 + $0x4] sm:$0xf]
        %v9597 = vld [vmem:[%s9594 + $0x8] sm:$0xf]
        %v9598 = vld [vmem:[%s9594 + $0xc] sm:$0xf]
        %v9599 = vld [vmem:[%s9594 + $0x10] sm:$0xf]
        %v9600 = vld [vmem:[%s9594 + $0x14] sm:$0xf]
        %v9601 = vld [vmem:[%s9594 + $0x18] sm:$0xf]
        %v9602 = vld [vmem:[%s9594 + $0x1c] sm:$0xf]
        %v9603 = vld [vmem:[%s9594 + $0x20] sm:$0xf]
        %v9604 = vld [vmem:[%s9594 + $0x24] sm:$0xf]
        %v9605 = vld [vmem:[%s9594 + $0x28] sm:$0xf]
        %v9606 = vld [vmem:[%s9594 + $0x2c] sm:$0xf]
        %v9607 = vld [vmem:[%s9594 + $0x30] sm:$0xf]
        %v9608 = vld [vmem:[%s9594 + $0x34] sm:$0xf]
        %v9609 = vld [vmem:[%s9594 + $0x38] sm:$0xf]
        %v9610 = vld [vmem:[%s9594 + $0x3c] sm:$0xf]
        %v9611 = vcombine.low %v9584, %v9593
        %v9613 = vunpack.c.l.s4 1966171168
        %v9614 = vunpack.c.0.s8 %v9613
        %v9615 = vlaneseq
        %v9616 = vshrl.u32 %v9615, 7
        %v9617 = vsub.s32 %v9614, %v9616
        %v9618 = vrot.slane %v9611, %v9617
        %v9620 = vunpack.c.l.s4 1966171168
        %v9621 = vunpack.c.0.s8 %v9620
        %v9622 = vlaneseq
        %v9623 = vshrl.u32 %v9622, 7
        %v9624 = vsub.s32 %v9621, %v9623
        %v9625 = vrot.slane %v9618, %v9624
        %v9643 = vunpack.c.l.b16 %v9595
        %v9644 = vunpack.c.l.b16 %v9596
        %v9645 = vunpack.c.l.b16 %v9597
        %v9646 = vunpack.c.l.b16 %v9598
        %v9647 = vunpack.c.l.b16 %v9599
        %v9648 = vunpack.c.l.b16 %v9600
        %v9649 = vunpack.c.l.b16 %v9601
        %v9650 = vunpack.c.l.b16 %v9602
        %v9651 = vunpack.c.l.b16 %v9603
        %v9652 = vunpack.c.l.b16 %v9604
        %v9653 = vunpack.c.l.b16 %v9605
        %v9654 = vunpack.c.l.b16 %v9606
        %v9655 = vunpack.c.l.b16 %v9607
        %v9656 = vunpack.c.l.b16 %v9608
        %v9657 = vunpack.c.l.b16 %v9609
        %v9658 = vunpack.c.l.b16 %v9610
        %v9659 = vpack.c.b16 %v9644, %v9643
        %v9660 = vpack.c.b16 %v9646, %v9645
        %v9661 = vpack.c.b16 %v9648, %v9647
        %v9662 = vpack.c.b16 %v9650, %v9649
        %v9663 = vpack.c.b16 %v9652, %v9651
        %v9664 = vpack.c.b16 %v9654, %v9653
        %v9665 = vpack.c.b16 %v9656, %v9655
        %v9666 = vpack.c.b16 %v9658, %v9657
        %9675 = vmatprep.subr.bf16.mxu0 0
        %9676 = vmatpush1.bf16.msra.mxu0 %v9659
        %9677 = vmatprep.subr.bf16.mxu0 0
        %9678 = vmatpush1.bf16.msra.mxu0 %v9660
        %9679 = vmatprep.subr.bf16.mxu0 0
        %9680 = vmatpush1.bf16.msra.mxu0 %v9661
        %9681 = vmatprep.subr.bf16.mxu0 0
        %9682 = vmatpush1.bf16.msra.mxu0 %v9662
        %9683 = vmatprep.subr.bf16.mxu0 0
        %9684 = vmatpush1.bf16.msra.mxu0 %v9663
        %9685 = vmatprep.subr.bf16.mxu0 0
        %9686 = vmatpush1.bf16.msra.mxu0 %v9664
        %9687 = vmatprep.subr.bf16.mxu0 0
        %9688 = vmatpush1.bf16.msra.mxu0 %v9665
        %9689 = vmatprep.subr.bf16.mxu0 0
        %9690 = vmatpush1.bf16.msra.mxu0 %v9666
        %9691 = vmatprep.subr.bf16.mxu0 0
        %9692 = vmatpush1.bf16.msra.mxu0 0
        %9693 = vmatprep.subr.bf16.mxu0 0
        %9694 = vmatpush1.bf16.msra.mxu0 0
        %9695 = vmatprep.subr.bf16.mxu0 0
        %9696 = vmatpush1.bf16.msra.mxu0 0
        %9697 = vmatprep.subr.bf16.mxu0 0
        %9698 = vmatpush1.bf16.msra.mxu0 0
        %9699 = vmatprep.subr.bf16.mxu0 0
        %9700 = vmatpush1.bf16.msra.mxu0 0
        %9701 = vmatprep.subr.bf16.mxu0 0
        %9702 = vmatpush1.bf16.msra.mxu0 0
        %9703 = vmatprep.subr.bf16.mxu0 0
        %9704 = vmatpush1.bf16.msra.mxu0 0
        %9705 = vmatprep.subr.bf16.mxu0 0
        %9706 = vmatpush1.bf16.msra.mxu0 0
        %9707 = vmatprep.mubr.bf16.mxu0 0
        %9708 = vmatmul.mubr.bf16.gmra.mrb[0].mxu0 %v9625
        %v9709 = vpop.f32.mrb[0].mxu0
        %v9710 = vadd.f32 0.0, %v9709
        %v9711 = vpop.f32.mrb[0].mxu0
        %v9712 = vpop.f32.mrb[0].mxu0
        %v9713 = vpop.f32.mrb[0].mxu0
        %9714 = vdwg.mxu0
        %v9715 = vadd.f32 %v9555, %v9710
        %v9716 = vld [vmem:[%s7] sm:$0x1]
        %v9718 = vlaneseq
        %v9719 = vshrl.u32 %v9718, 7
        %v9720 = vsub.s32 0, %v9719
        %v9721 = vrot.slane %v9716, %v9720
        %v9723 = vadd.f32 %v9715, %v9721
        %vm9724 = vcmp.ge.f32.partialorder %v9723, 0.0
        %v9725 = vmul.f32 %v9723, 0.01
        %v9726 = vsel %vm9724, %v9723, %v9725
        %v9727 = vpack.c.bf16 %v9726, %v9726
        %9728 = vst [vmem:[#allocation5] sm:$0x1] 0
        %s9729 = scalar_lea.vmem [#allocation5], 5
        %9730 = vst [vmem:[%s9729] sm:$0x1] 0
        %v9731 = vld [vmem:[#allocation5] sm:$0x1]
        %v9732 = vsel %vm432, 0, %v9731
        %9733 = vst [vmem:[#allocation5] sm:$0x1] %v9732
        %v9734 = vld [vmem:[#allocation5 + $0x1] sm:$0x1]
        %v9735 = vsel %vm432, 0, %v9734
        %9736 = vst [vmem:[#allocation5 + $0x1] sm:$0x1] %v9735
        %s9737 = scalar_lea.vmem [#allocation5], 2
        %vm9738 = vmand %vm430, %vm2577
        %v9739 = vld [vmem:[%s9737] sm:$0x1]
        %v9740 = vsel %vm9738, 0, %v9739
        %9741 = vst [vmem:[%s9737] sm:$0x1] %v9740
        %v9742 = vld [vmem:[%s9737 + $0x1] sm:$0x1]
        %v9743 = vsel %vm9738, 0, %v9742
        %9744 = vst [vmem:[%s9737 + $0x1] sm:$0x1] %v9743
        %9745 = vst [vmem:[%s9737] sm:$0x1] 0
        %s9746 = scalar_lea.vmem [#allocation5], 7
        %9747 = vst [vmem:[%s9746] sm:$0x1] 0
        %s9748 = scalar_lea.vmem [#allocation5], 4
        %v9749 = vld [vmem:[%s9748] sm:$0x1]
        %v9750 = vsel %vm432, 0, %v9749
        %9751 = vst [vmem:[%s9748] sm:$0x1] %v9750
        %v9752 = vld [vmem:[%s9748 + $0x1] sm:$0x1]
        %v9753 = vsel %vm432, 0, %v9752
        %9754 = vst [vmem:[%s9748 + $0x1] sm:$0x1] %v9753
        %s9755 = scalar_lea.vmem [#allocation5], 6
        %v9756 = vld [vmem:[%s9755] sm:$0x1]
        %v9757 = vsel %vm9738, 0, %v9756
        %9758 = vst [vmem:[%s9755] sm:$0x1] %v9757
        %v9759 = vld [vmem:[%s9755 + $0x1] sm:$0x1]
        %v9760 = vsel %vm9738, 0, %v9759
        %9761 = vst [vmem:[%s9755 + $0x1] sm:$0x1] %v9760
        %v9762 = vld [vmem:[%s9755] sm:$0x1]
        %v9763 = vsel %vm432, %v9727, %v9762
        %9764 = vst [vmem:[%s9755] sm:$0x1] %v9763
        %v9765 = vld [vmem:[%s9748] sm:$0x1]
        %v9766 = vsel %vm9738, %v9727, %v9765
        %9767 = vst [vmem:[%s9748] sm:$0x1] %v9766
        %v9770 = vunpack.c.l.s4 1966171168
        %v9771 = vunpack.c.0.s8 %v9770
        %v9772 = vlaneseq
        %v9773 = vshrl.u32 %v9772, 7
        %v9774 = vsub.s32 %v9771, %v9773
        %v9775 = vrot.slane %v9727, %v9774
        %v9776 = vcombine.high %v9775, %v9775
        %v9778 = vunpack.c.l.s4 1966171168
        %v9779 = vunpack.c.0.s8 %v9778
        %v9780 = vlaneseq
        %v9781 = vshrl.u32 %v9780, 7
        %v9782 = vsub.s32 %v9779, %v9781
        %v9783 = vrot.slane %v9776, %v9782
        %s9785 = scalar_lea.vmem [#allocation5], 3
        %v9786 = vld [vmem:[%s9785] sm:$0x1]
        %v9787 = vsel %vm432, %v9783, %v9786
        %9788 = vst [vmem:[%s9785] sm:$0x1] %v9787
        %s9789 = scalar_lea.vmem [#allocation5], 1
        %v9790 = vld [vmem:[%s9789] sm:$0x1]
        %v9791 = vsel %vm9738, %v9783, %v9790
        %9792 = vst [vmem:[%s9789] sm:$0x1] %v9791
        %v9793 = vld [vmem:[#allocation5] sm:$0x1]
        %v9794 = vld [vmem:[#allocation11] sm:$0xf]
        %v9795 = vld [vmem:[#allocation11 + $0x4] sm:$0xf]
        %v9796 = vld [vmem:[#allocation11 + $0x8] sm:$0xf]
        %v9797 = vld [vmem:[#allocation11 + $0xc] sm:$0xf]
        %v9798 = vld [vmem:[#allocation11 + $0x10] sm:$0xf]
        %v9799 = vld [vmem:[#allocation11 + $0x14] sm:$0xf]
        %v9800 = vld [vmem:[#allocation11 + $0x18] sm:$0xf]
        %v9801 = vld [vmem:[#allocation11 + $0x1c] sm:$0xf]
        %v9802 = vld [vmem:[#allocation11 + $0x20] sm:$0xf]
        %v9803 = vld [vmem:[#allocation11 + $0x24] sm:$0xf]
        %v9804 = vld [vmem:[#allocation11 + $0x28] sm:$0xf]
        %v9805 = vld [vmem:[#allocation11 + $0x2c] sm:$0xf]
        %v9806 = vld [vmem:[#allocation11 + $0x30] sm:$0xf]
        %v9807 = vld [vmem:[#allocation11 + $0x34] sm:$0xf]
        %v9808 = vld [vmem:[#allocation11 + $0x38] sm:$0xf]
        %v9809 = vld [vmem:[#allocation11 + $0x3c] sm:$0xf]
        %v9810 = vld [vmem:[%s9737] sm:$0x1]
        %s9811 = scalar_lea.vmem [#allocation11], 64
        %v9812 = vld [vmem:[%s9811] sm:$0xf]
        %v9813 = vld [vmem:[%s9811 + $0x4] sm:$0xf]
        %v9814 = vld [vmem:[%s9811 + $0x8] sm:$0xf]
        %v9815 = vld [vmem:[%s9811 + $0xc] sm:$0xf]
        %v9816 = vld [vmem:[%s9811 + $0x10] sm:$0xf]
        %v9817 = vld [vmem:[%s9811 + $0x14] sm:$0xf]
        %v9818 = vld [vmem:[%s9811 + $0x18] sm:$0xf]
        %v9819 = vld [vmem:[%s9811 + $0x1c] sm:$0xf]
        %v9820 = vld [vmem:[%s9811 + $0x20] sm:$0xf]
        %v9821 = vld [vmem:[%s9811 + $0x24] sm:$0xf]
        %v9822 = vld [vmem:[%s9811 + $0x28] sm:$0xf]
        %v9823 = vld [vmem:[%s9811 + $0x2c] sm:$0xf]
        %v9824 = vld [vmem:[%s9811 + $0x30] sm:$0xf]
        %v9825 = vld [vmem:[%s9811 + $0x34] sm:$0xf]
        %v9826 = vld [vmem:[%s9811 + $0x38] sm:$0xf]
        %v9827 = vld [vmem:[%s9811 + $0x3c] sm:$0xf]
        %v9844 = vunpack.c.l.b16 %v9812
        %v9845 = vunpack.c.l.b16 %v9813
        %v9846 = vunpack.c.l.b16 %v9814
        %v9847 = vunpack.c.l.b16 %v9815
        %v9848 = vunpack.c.l.b16 %v9816
        %v9849 = vunpack.c.l.b16 %v9817
        %v9850 = vunpack.c.l.b16 %v9818
        %v9851 = vunpack.c.l.b16 %v9819
        %v9852 = vunpack.c.l.b16 %v9820
        %v9853 = vunpack.c.l.b16 %v9821
        %v9854 = vunpack.c.l.b16 %v9822
        %v9855 = vunpack.c.l.b16 %v9823
        %v9856 = vunpack.c.l.b16 %v9824
        %v9857 = vunpack.c.l.b16 %v9825
        %v9858 = vunpack.c.l.b16 %v9826
        %v9859 = vunpack.c.l.b16 %v9827
        %v9860 = vpack.c.b16 %v9845, %v9844
        %v9861 = vpack.c.b16 %v9847, %v9846
        %v9862 = vpack.c.b16 %v9849, %v9848
        %v9863 = vpack.c.b16 %v9851, %v9850
        %v9864 = vpack.c.b16 %v9853, %v9852
        %v9865 = vpack.c.b16 %v9855, %v9854
        %v9866 = vpack.c.b16 %v9857, %v9856
        %v9867 = vpack.c.b16 %v9859, %v9858
        %9876 = vmatprep.subr.bf16.mxu0 0
        %9877 = vmatpush1.bf16.msra.mxu0 %v9860
        %9878 = vmatprep.subr.bf16.mxu0 0
        %9879 = vmatpush1.bf16.msra.mxu0 %v9861
        %9880 = vmatprep.subr.bf16.mxu0 0
        %9881 = vmatpush1.bf16.msra.mxu0 %v9862
        %9882 = vmatprep.subr.bf16.mxu0 0
        %9883 = vmatpush1.bf16.msra.mxu0 %v9863
        %9884 = vmatprep.subr.bf16.mxu0 0
        %9885 = vmatpush1.bf16.msra.mxu0 %v9864
        %9886 = vmatprep.subr.bf16.mxu0 0
        %9887 = vmatpush1.bf16.msra.mxu0 %v9865
        %9888 = vmatprep.subr.bf16.mxu0 0
        %9889 = vmatpush1.bf16.msra.mxu0 %v9866
        %9890 = vmatprep.subr.bf16.mxu0 0
        %9891 = vmatpush1.bf16.msra.mxu0 %v9867
        %9892 = vmatprep.subr.bf16.mxu0 0
        %9893 = vmatpush1.bf16.msra.mxu0 0
        %9894 = vmatprep.subr.bf16.mxu0 0
        %9895 = vmatpush1.bf16.msra.mxu0 0
        %9896 = vmatprep.subr.bf16.mxu0 0
        %9897 = vmatpush1.bf16.msra.mxu0 0
        %9898 = vmatprep.subr.bf16.mxu0 0
        %9899 = vmatpush1.bf16.msra.mxu0 0
        %9900 = vmatprep.subr.bf16.mxu0 0
        %9901 = vmatpush1.bf16.msra.mxu0 0
        %9902 = vmatprep.subr.bf16.mxu0 0
        %9903 = vmatpush1.bf16.msra.mxu0 0
        %9904 = vmatprep.subr.bf16.mxu0 0
        %9905 = vmatpush1.bf16.msra.mxu0 0
        %9906 = vmatprep.subr.bf16.mxu0 0
        %9907 = vmatpush1.bf16.msra.mxu0 0
        %9908 = vmatprep.mubr.bf16.mxu0 0
        %9909 = vmatmul.mubr.bf16.gmra.mrb[0].mxu0 %v9810
        %v9910 = vpop.f32.mrb[0].mxu0
        %v9911 = vadd.f32 0.0, %v9910
        %v9912 = vpop.f32.mrb[0].mxu0
        %v9913 = vpop.f32.mrb[0].mxu0
        %v9914 = vpop.f32.mrb[0].mxu0
        %9915 = vdwg.mxu0
        %v9932 = vunpack.c.l.b16 %v9794
        %v9933 = vunpack.c.l.b16 %v9795
        %v9934 = vunpack.c.l.b16 %v9796
        %v9935 = vunpack.c.l.b16 %v9797
        %v9936 = vunpack.c.l.b16 %v9798
        %v9937 = vunpack.c.l.b16 %v9799
        %v9938 = vunpack.c.l.b16 %v9800
        %v9939 = vunpack.c.l.b16 %v9801
        %v9940 = vunpack.c.l.b16 %v9802
        %v9941 = vunpack.c.l.b16 %v9803
        %v9942 = vunpack.c.l.b16 %v9804
        %v9943 = vunpack.c.l.b16 %v9805
        %v9944 = vunpack.c.l.b16 %v9806
        %v9945 = vunpack.c.l.b16 %v9807
        %v9946 = vunpack.c.l.b16 %v9808
        %v9947 = vunpack.c.l.b16 %v9809
        %v9948 = vpack.c.b16 %v9933, %v9932
        %v9949 = vpack.c.b16 %v9935, %v9934
        %v9950 = vpack.c.b16 %v9937, %v9936
        %v9951 = vpack.c.b16 %v9939, %v9938
        %v9952 = vpack.c.b16 %v9941, %v9940
        %v9953 = vpack.c.b16 %v9943, %v9942
        %v9954 = vpack.c.b16 %v9945, %v9944
        %v9955 = vpack.c.b16 %v9947, %v9946
        %9964 = vmatprep.subr.bf16.mxu0 0
        %9965 = vmatpush1.bf16.msra.mxu0 %v9948
        %9966 = vmatprep.subr.bf16.mxu0 0
        %9967 = vmatpush1.bf16.msra.mxu0 %v9949
        %9968 = vmatprep.subr.bf16.mxu0 0
        %9969 = vmatpush1.bf16.msra.mxu0 %v9950
        %9970 = vmatprep.subr.bf16.mxu0 0
        %9971 = vmatpush1.bf16.msra.mxu0 %v9951
        %9972 = vmatprep.subr.bf16.mxu0 0
        %9973 = vmatpush1.bf16.msra.mxu0 %v9952
        %9974 = vmatprep.subr.bf16.mxu0 0
        %9975 = vmatpush1.bf16.msra.mxu0 %v9953
        %9976 = vmatprep.subr.bf16.mxu0 0
        %9977 = vmatpush1.bf16.msra.mxu0 %v9954
        %9978 = vmatprep.subr.bf16.mxu0 0
        %9979 = vmatpush1.bf16.msra.mxu0 %v9955
        %9980 = vmatprep.subr.bf16.mxu0 0
        %9981 = vmatpush1.bf16.msra.mxu0 0
        %9982 = vmatprep.subr.bf16.mxu0 0
        %9983 = vmatpush1.bf16.msra.mxu0 0
        %9984 = vmatprep.subr.bf16.mxu0 0
        %9985 = vmatpush1.bf16.msra.mxu0 0
        %9986 = vmatprep.subr.bf16.mxu0 0
        %9987 = vmatpush1.bf16.msra.mxu0 0
        %9988 = vmatprep.subr.bf16.mxu0 0
        %9989 = vmatpush1.bf16.msra.mxu0 0
        %9990 = vmatprep.subr.bf16.mxu0 0
        %9991 = vmatpush1.bf16.msra.mxu0 0
        %9992 = vmatprep.subr.bf16.mxu0 0
        %9993 = vmatpush1.bf16.msra.mxu0 0
        %9994 = vmatprep.subr.bf16.mxu0 0
        %9995 = vmatpush1.bf16.msra.mxu0 0
        %9996 = vmatprep.mubr.bf16.mxu0 0
        %9997 = vmatmul.mubr.bf16.gmra.mrb[0].mxu0 %v9793
        %v9998 = vpop.f32.mrb[0].mxu0
        %v9999 = vadd.f32 %v9911, %v9998
        %v10000 = vpop.f32.mrb[0].mxu0
        %v10001 = vpop.f32.mrb[0].mxu0
        %v10002 = vpop.f32.mrb[0].mxu0
        %10003 = vdwg.mxu0
        %s10004 = scalar_lea.vmem [#allocation11], 128
        %v10005 = vld [vmem:[%s10004] sm:$0xf]
        %v10006 = vld [vmem:[%s10004 + $0x4] sm:$0xf]
        %v10007 = vld [vmem:[%s10004 + $0x8] sm:$0xf]
        %v10008 = vld [vmem:[%s10004 + $0xc] sm:$0xf]
        %v10009 = vld [vmem:[%s10004 + $0x10] sm:$0xf]
        %v10010 = vld [vmem:[%s10004 + $0x14] sm:$0xf]
        %v10011 = vld [vmem:[%s10004 + $0x18] sm:$0xf]
        %v10012 = vld [vmem:[%s10004 + $0x1c] sm:$0xf]
        %v10013 = vld [vmem:[%s10004 + $0x20] sm:$0xf]
        %v10014 = vld [vmem:[%s10004 + $0x24] sm:$0xf]
        %v10015 = vld [vmem:[%s10004 + $0x28] sm:$0xf]
        %v10016 = vld [vmem:[%s10004 + $0x2c] sm:$0xf]
        %v10017 = vld [vmem:[%s10004 + $0x30] sm:$0xf]
        %v10018 = vld [vmem:[%s10004 + $0x34] sm:$0xf]
        %v10019 = vld [vmem:[%s10004 + $0x38] sm:$0xf]
        %v10020 = vld [vmem:[%s10004 + $0x3c] sm:$0xf]
        %v10023 = vunpack.c.l.s4 1966171168
        %v10024 = vunpack.c.0.s8 %v10023
        %v10025 = vlaneseq
        %v10026 = vshrl.u32 %v10025, 7
        %v10027 = vsub.s32 %v10024, %v10026
        %v10028 = vrot.slane %v9793, %v10027
        %v10030 = vunpack.c.l.s4 1966171168
        %v10031 = vunpack.c.0.s8 %v10030
        %v10032 = vlaneseq
        %v10033 = vshrl.u32 %v10032, 7
        %v10034 = vsub.s32 %v10031, %v10033
        %v10035 = vrot.slane %v10028, %v10034
        %v10037 = vshrl.u32 %v10035, 16
        %v10056 = vunpack.c.l.b16 %v10005
        %v10057 = vunpack.c.l.b16 %v10006
        %v10058 = vunpack.c.l.b16 %v10007
        %v10059 = vunpack.c.l.b16 %v10008
        %v10060 = vunpack.c.l.b16 %v10009
        %v10061 = vunpack.c.l.b16 %v10010
        %v10062 = vunpack.c.l.b16 %v10011
        %v10063 = vunpack.c.l.b16 %v10012
        %v10064 = vunpack.c.l.b16 %v10013
        %v10065 = vunpack.c.l.b16 %v10014
        %v10066 = vunpack.c.l.b16 %v10015
        %v10067 = vunpack.c.l.b16 %v10016
        %v10068 = vunpack.c.l.b16 %v10017
        %v10069 = vunpack.c.l.b16 %v10018
        %v10070 = vunpack.c.l.b16 %v10019
        %v10071 = vunpack.c.l.b16 %v10020
        %v10072 = vpack.c.b16 %v10057, %v10056
        %v10073 = vpack.c.b16 %v10059, %v10058
        %v10074 = vpack.c.b16 %v10061, %v10060
        %v10075 = vpack.c.b16 %v10063, %v10062
        %v10076 = vpack.c.b16 %v10065, %v10064
        %v10077 = vpack.c.b16 %v10067, %v10066
        %v10078 = vpack.c.b16 %v10069, %v10068
        %v10079 = vpack.c.b16 %v10071, %v10070
        %10088 = vmatprep.subr.bf16.mxu0 0
        %10089 = vmatpush1.bf16.msra.mxu0 %v10072
        %10090 = vmatprep.subr.bf16.mxu0 0
        %10091 = vmatpush1.bf16.msra.mxu0 %v10073
        %10092 = vmatprep.subr.bf16.mxu0 0
        %10093 = vmatpush1.bf16.msra.mxu0 %v10074
        %10094 = vmatprep.subr.bf16.mxu0 0
        %10095 = vmatpush1.bf16.msra.mxu0 %v10075
        %10096 = vmatprep.subr.bf16.mxu0 0
        %10097 = vmatpush1.bf16.msra.mxu0 %v10076
        %10098 = vmatprep.subr.bf16.mxu0 0
        %10099 = vmatpush1.bf16.msra.mxu0 %v10077
        %10100 = vmatprep.subr.bf16.mxu0 0
        %10101 = vmatpush1.bf16.msra.mxu0 %v10078
        %10102 = vmatprep.subr.bf16.mxu0 0
        %10103 = vmatpush1.bf16.msra.mxu0 %v10079
        %10104 = vmatprep.subr.bf16.mxu0 0
        %10105 = vmatpush1.bf16.msra.mxu0 0
        %10106 = vmatprep.subr.bf16.mxu0 0
        %10107 = vmatpush1.bf16.msra.mxu0 0
        %10108 = vmatprep.subr.bf16.mxu0 0
        %10109 = vmatpush1.bf16.msra.mxu0 0
        %10110 = vmatprep.subr.bf16.mxu0 0
        %10111 = vmatpush1.bf16.msra.mxu0 0
        %10112 = vmatprep.subr.bf16.mxu0 0
        %10113 = vmatpush1.bf16.msra.mxu0 0
        %10114 = vmatprep.subr.bf16.mxu0 0
        %10115 = vmatpush1.bf16.msra.mxu0 0
        %10116 = vmatprep.subr.bf16.mxu0 0
        %10117 = vmatpush1.bf16.msra.mxu0 0
        %10118 = vmatprep.subr.bf16.mxu0 0
        %10119 = vmatpush1.bf16.msra.mxu0 0
        %10120 = vmatprep.mubr.bf16.mxu0 0
        %10121 = vmatmul.mubr.bf16.gmra.mrb[0].mxu0 %v10037
        %v10122 = vpop.f32.mrb[0].mxu0
        %v10123 = vadd.f32 0.0, %v10122
        %v10124 = vpop.f32.mrb[0].mxu0
        %v10125 = vpop.f32.mrb[0].mxu0
        %v10126 = vpop.f32.mrb[0].mxu0
        %10127 = vdwg.mxu0
        %v10128 = vadd.f32 %v9999, %v10123
        %v10129 = vld [vmem:[%s9748] sm:$0x1]
        %s10130 = scalar_lea.vmem [#allocation11], 192
        %v10131 = vld [vmem:[%s10130] sm:$0xf]
        %v10132 = vld [vmem:[%s10130 + $0x4] sm:$0xf]
        %v10133 = vld [vmem:[%s10130 + $0x8] sm:$0xf]
        %v10134 = vld [vmem:[%s10130 + $0xc] sm:$0xf]
        %v10135 = vld [vmem:[%s10130 + $0x10] sm:$0xf]
        %v10136 = vld [vmem:[%s10130 + $0x14] sm:$0xf]
        %v10137 = vld [vmem:[%s10130 + $0x18] sm:$0xf]
        %v10138 = vld [vmem:[%s10130 + $0x1c] sm:$0xf]
        %v10139 = vld [vmem:[%s10130 + $0x20] sm:$0xf]
        %v10140 = vld [vmem:[%s10130 + $0x24] sm:$0xf]
        %v10141 = vld [vmem:[%s10130 + $0x28] sm:$0xf]
        %v10142 = vld [vmem:[%s10130 + $0x2c] sm:$0xf]
        %v10143 = vld [vmem:[%s10130 + $0x30] sm:$0xf]
        %v10144 = vld [vmem:[%s10130 + $0x34] sm:$0xf]
        %v10145 = vld [vmem:[%s10130 + $0x38] sm:$0xf]
        %v10146 = vld [vmem:[%s10130 + $0x3c] sm:$0xf]
        %v10163 = vunpack.c.l.b16 %v10131
        %v10164 = vunpack.c.l.b16 %v10132
        %v10165 = vunpack.c.l.b16 %v10133
        %v10166 = vunpack.c.l.b16 %v10134
        %v10167 = vunpack.c.l.b16 %v10135
        %v10168 = vunpack.c.l.b16 %v10136
        %v10169 = vunpack.c.l.b16 %v10137
        %v10170 = vunpack.c.l.b16 %v10138
        %v10171 = vunpack.c.l.b16 %v10139
        %v10172 = vunpack.c.l.b16 %v10140
        %v10173 = vunpack.c.l.b16 %v10141
        %v10174 = vunpack.c.l.b16 %v10142
        %v10175 = vunpack.c.l.b16 %v10143
        %v10176 = vunpack.c.l.b16 %v10144
        %v10177 = vunpack.c.l.b16 %v10145
        %v10178 = vunpack.c.l.b16 %v10146
        %v10179 = vpack.c.b16 %v10164, %v10163
        %v10180 = vpack.c.b16 %v10166, %v10165
        %v10181 = vpack.c.b16 %v10168, %v10167
        %v10182 = vpack.c.b16 %v10170, %v10169
        %v10183 = vpack.c.b16 %v10172, %v10171
        %v10184 = vpack.c.b16 %v10174, %v10173
        %v10185 = vpack.c.b16 %v10176, %v10175
        %v10186 = vpack.c.b16 %v10178, %v10177
        %10195 = vmatprep.subr.bf16.mxu0 0
        %10196 = vmatpush1.bf16.msra.mxu0 %v10179
        %10197 = vmatprep.subr.bf16.mxu0 0
        %10198 = vmatpush1.bf16.msra.mxu0 %v10180
        %10199 = vmatprep.subr.bf16.mxu0 0
        %10200 = vmatpush1.bf16.msra.mxu0 %v10181
        %10201 = vmatprep.subr.bf16.mxu0 0
        %10202 = vmatpush1.bf16.msra.mxu0 %v10182
        %10203 = vmatprep.subr.bf16.mxu0 0
        %10204 = vmatpush1.bf16.msra.mxu0 %v10183
        %10205 = vmatprep.subr.bf16.mxu0 0
        %10206 = vmatpush1.bf16.msra.mxu0 %v10184
        %10207 = vmatprep.subr.bf16.mxu0 0
        %10208 = vmatpush1.bf16.msra.mxu0 %v10185
        %10209 = vmatprep.subr.bf16.mxu0 0
        %10210 = vmatpush1.bf16.msra.mxu0 %v10186
        %10211 = vmatprep.subr.bf16.mxu0 0
        %10212 = vmatpush1.bf16.msra.mxu0 0
        %10213 = vmatprep.subr.bf16.mxu0 0
        %10214 = vmatpush1.bf16.msra.mxu0 0
        %10215 = vmatprep.subr.bf16.mxu0 0
        %10216 = vmatpush1.bf16.msra.mxu0 0
        %10217 = vmatprep.subr.bf16.mxu0 0
        %10218 = vmatpush1.bf16.msra.mxu0 0
        %10219 = vmatprep.subr.bf16.mxu0 0
        %10220 = vmatpush1.bf16.msra.mxu0 0
        %10221 = vmatprep.subr.bf16.mxu0 0
        %10222 = vmatpush1.bf16.msra.mxu0 0
        %10223 = vmatprep.subr.bf16.mxu0 0
        %10224 = vmatpush1.bf16.msra.mxu0 0
        %10225 = vmatprep.subr.bf16.mxu0 0
        %10226 = vmatpush1.bf16.msra.mxu0 0
        %10227 = vmatprep.mubr.bf16.mxu0 0
        %10228 = vmatmul.mubr.bf16.gmra.mrb[0].mxu0 %v10129
        %v10229 = vpop.f32.mrb[0].mxu0
        %v10230 = vadd.f32 0.0, %v10229
        %v10231 = vpop.f32.mrb[0].mxu0
        %v10232 = vpop.f32.mrb[0].mxu0
        %v10233 = vpop.f32.mrb[0].mxu0
        %10234 = vdwg.mxu0
        %v10235 = vadd.f32 %v10128, %v10230
        %v10236 = vld [vmem:[%s9755] sm:$0x1]
        %s10237 = scalar_lea.vmem [#allocation11], 256
        %v10238 = vld [vmem:[%s10237] sm:$0xf]
        %v10239 = vld [vmem:[%s10237 + $0x4] sm:$0xf]
        %v10240 = vld [vmem:[%s10237 + $0x8] sm:$0xf]
        %v10241 = vld [vmem:[%s10237 + $0xc] sm:$0xf]
        %v10242 = vld [vmem:[%s10237 + $0x10] sm:$0xf]
        %v10243 = vld [vmem:[%s10237 + $0x14] sm:$0xf]
        %v10244 = vld [vmem:[%s10237 + $0x18] sm:$0xf]
        %v10245 = vld [vmem:[%s10237 + $0x1c] sm:$0xf]
        %v10246 = vld [vmem:[%s10237 + $0x20] sm:$0xf]
        %v10247 = vld [vmem:[%s10237 + $0x24] sm:$0xf]
        %v10248 = vld [vmem:[%s10237 + $0x28] sm:$0xf]
        %v10249 = vld [vmem:[%s10237 + $0x2c] sm:$0xf]
        %v10250 = vld [vmem:[%s10237 + $0x30] sm:$0xf]
        %v10251 = vld [vmem:[%s10237 + $0x34] sm:$0xf]
        %v10252 = vld [vmem:[%s10237 + $0x38] sm:$0xf]
        %v10253 = vld [vmem:[%s10237 + $0x3c] sm:$0xf]
        %v10270 = vunpack.c.l.b16 %v10238
        %v10271 = vunpack.c.l.b16 %v10239
        %v10272 = vunpack.c.l.b16 %v10240
        %v10273 = vunpack.c.l.b16 %v10241
        %v10274 = vunpack.c.l.b16 %v10242
        %v10275 = vunpack.c.l.b16 %v10243
        %v10276 = vunpack.c.l.b16 %v10244
        %v10277 = vunpack.c.l.b16 %v10245
        %v10278 = vunpack.c.l.b16 %v10246
        %v10279 = vunpack.c.l.b16 %v10247
        %v10280 = vunpack.c.l.b16 %v10248
        %v10281 = vunpack.c.l.b16 %v10249
        %v10282 = vunpack.c.l.b16 %v10250
        %v10283 = vunpack.c.l.b16 %v10251
        %v10284 = vunpack.c.l.b16 %v10252
        %v10285 = vunpack.c.l.b16 %v10253
        %v10286 = vpack.c.b16 %v10271, %v10270
        %v10287 = vpack.c.b16 %v10273, %v10272
        %v10288 = vpack.c.b16 %v10275, %v10274
        %v10289 = vpack.c.b16 %v10277, %v10276
        %v10290 = vpack.c.b16 %v10279, %v10278
        %v10291 = vpack.c.b16 %v10281, %v10280
        %v10292 = vpack.c.b16 %v10283, %v10282
        %v10293 = vpack.c.b16 %v10285, %v10284
        %10302 = vmatprep.subr.bf16.mxu0 0
        %10303 = vmatpush1.bf16.msra.mxu0 %v10286
        %10304 = vmatprep.subr.bf16.mxu0 0
        %10305 = vmatpush1.bf16.msra.mxu0 %v10287
        %10306 = vmatprep.subr.bf16.mxu0 0
        %10307 = vmatpush1.bf16.msra.mxu0 %v10288
        %10308 = vmatprep.subr.bf16.mxu0 0
        %10309 = vmatpush1.bf16.msra.mxu0 %v10289
        %10310 = vmatprep.subr.bf16.mxu0 0
        %10311 = vmatpush1.bf16.msra.mxu0 %v10290
        %10312 = vmatprep.subr.bf16.mxu0 0
        %10313 = vmatpush1.bf16.msra.mxu0 %v10291
        %10314 = vmatprep.subr.bf16.mxu0 0
        %10315 = vmatpush1.bf16.msra.mxu0 %v10292
        %10316 = vmatprep.subr.bf16.mxu0 0
        %10317 = vmatpush1.bf16.msra.mxu0 %v10293
        %10318 = vmatprep.subr.bf16.mxu0 0
        %10319 = vmatpush1.bf16.msra.mxu0 0
        %10320 = vmatprep.subr.bf16.mxu0 0
        %10321 = vmatpush1.bf16.msra.mxu0 0
        %10322 = vmatprep.subr.bf16.mxu0 0
        %10323 = vmatpush1.bf16.msra.mxu0 0
        %10324 = vmatprep.subr.bf16.mxu0 0
        %10325 = vmatpush1.bf16.msra.mxu0 0
        %10326 = vmatprep.subr.bf16.mxu0 0
        %10327 = vmatpush1.bf16.msra.mxu0 0
        %10328 = vmatprep.subr.bf16.mxu0 0
        %10329 = vmatpush1.bf16.msra.mxu0 0
        %10330 = vmatprep.subr.bf16.mxu0 0
        %10331 = vmatpush1.bf16.msra.mxu0 0
        %10332 = vmatprep.subr.bf16.mxu0 0
        %10333 = vmatpush1.bf16.msra.mxu0 0
        %10334 = vmatprep.mubr.bf16.mxu0 0
        %10335 = vmatmul.mubr.bf16.gmra.mrb[0].mxu0 %v10236
        %v10336 = vpop.f32.mrb[0].mxu0
        %v10337 = vadd.f32 0.0, %v10336
        %v10338 = vpop.f32.mrb[0].mxu0
        %v10339 = vpop.f32.mrb[0].mxu0
        %v10340 = vpop.f32.mrb[0].mxu0
        %10341 = vdwg.mxu0
        %v10342 = vadd.f32 %v10235, %v10337
        %s10343 = scalar_lea.vmem [#allocation11], 320
        %v10344 = vld [vmem:[%s10343] sm:$0xf]
        %v10345 = vld [vmem:[%s10343 + $0x4] sm:$0xf]
        %v10346 = vld [vmem:[%s10343 + $0x8] sm:$0xf]
        %v10347 = vld [vmem:[%s10343 + $0xc] sm:$0xf]
        %v10348 = vld [vmem:[%s10343 + $0x10] sm:$0xf]
        %v10349 = vld [vmem:[%s10343 + $0x14] sm:$0xf]
        %v10350 = vld [vmem:[%s10343 + $0x18] sm:$0xf]
        %v10351 = vld [vmem:[%s10343 + $0x1c] sm:$0xf]
        %v10352 = vld [vmem:[%s10343 + $0x20] sm:$0xf]
        %v10353 = vld [vmem:[%s10343 + $0x24] sm:$0xf]
        %v10354 = vld [vmem:[%s10343 + $0x28] sm:$0xf]
        %v10355 = vld [vmem:[%s10343 + $0x2c] sm:$0xf]
        %v10356 = vld [vmem:[%s10343 + $0x30] sm:$0xf]
        %v10357 = vld [vmem:[%s10343 + $0x34] sm:$0xf]
        %v10358 = vld [vmem:[%s10343 + $0x38] sm:$0xf]
        %v10359 = vld [vmem:[%s10343 + $0x3c] sm:$0xf]
        %v10362 = vunpack.c.l.s4 1966171168
        %v10363 = vunpack.c.0.s8 %v10362
        %v10364 = vlaneseq
        %v10365 = vshrl.u32 %v10364, 7
        %v10366 = vsub.s32 %v10363, %v10365
        %v10367 = vrot.slane %v10129, %v10366
        %v10369 = vunpack.c.l.s4 1966171168
        %v10370 = vunpack.c.0.s8 %v10369
        %v10371 = vlaneseq
        %v10372 = vshrl.u32 %v10371, 7
        %v10373 = vsub.s32 %v10370, %v10372
        %v10374 = vrot.slane %v10367, %v10373
        %v10376 = vshrl.u32 %v10374, 16
        %v10395 = vunpack.c.l.b16 %v10344
        %v10396 = vunpack.c.l.b16 %v10345
        %v10397 = vunpack.c.l.b16 %v10346
        %v10398 = vunpack.c.l.b16 %v10347
        %v10399 = vunpack.c.l.b16 %v10348
        %v10400 = vunpack.c.l.b16 %v10349
        %v10401 = vunpack.c.l.b16 %v10350
        %v10402 = vunpack.c.l.b16 %v10351
        %v10403 = vunpack.c.l.b16 %v10352
        %v10404 = vunpack.c.l.b16 %v10353
        %v10405 = vunpack.c.l.b16 %v10354
        %v10406 = vunpack.c.l.b16 %v10355
        %v10407 = vunpack.c.l.b16 %v10356
        %v10408 = vunpack.c.l.b16 %v10357
        %v10409 = vunpack.c.l.b16 %v10358
        %v10410 = vunpack.c.l.b16 %v10359
        %v10411 = vpack.c.b16 %v10396, %v10395
        %v10412 = vpack.c.b16 %v10398, %v10397
        %v10413 = vpack.c.b16 %v10400, %v10399
        %v10414 = vpack.c.b16 %v10402, %v10401
        %v10415 = vpack.c.b16 %v10404, %v10403
        %v10416 = vpack.c.b16 %v10406, %v10405
        %v10417 = vpack.c.b16 %v10408, %v10407
        %v10418 = vpack.c.b16 %v10410, %v10409
        %10427 = vmatprep.subr.bf16.mxu0 0
        %10428 = vmatpush1.bf16.msra.mxu0 %v10411
        %10429 = vmatprep.subr.bf16.mxu0 0
        %10430 = vmatpush1.bf16.msra.mxu0 %v10412
        %10431 = vmatprep.subr.bf16.mxu0 0
        %10432 = vmatpush1.bf16.msra.mxu0 %v10413
        %10433 = vmatprep.subr.bf16.mxu0 0
        %10434 = vmatpush1.bf16.msra.mxu0 %v10414
        %10435 = vmatprep.subr.bf16.mxu0 0
        %10436 = vmatpush1.bf16.msra.mxu0 %v10415
        %10437 = vmatprep.subr.bf16.mxu0 0
        %10438 = vmatpush1.bf16.msra.mxu0 %v10416
        %10439 = vmatprep.subr.bf16.mxu0 0
        %10440 = vmatpush1.bf16.msra.mxu0 %v10417
        %10441 = vmatprep.subr.bf16.mxu0 0
        %10442 = vmatpush1.bf16.msra.mxu0 %v10418
        %10443 = vmatprep.subr.bf16.mxu0 0
        %10444 = vmatpush1.bf16.msra.mxu0 0
        %10445 = vmatprep.subr.bf16.mxu0 0
        %10446 = vmatpush1.bf16.msra.mxu0 0
        %10447 = vmatprep.subr.bf16.mxu0 0
        %10448 = vmatpush1.bf16.msra.mxu0 0
        %10449 = vmatprep.subr.bf16.mxu0 0
        %10450 = vmatpush1.bf16.msra.mxu0 0
        %10451 = vmatprep.subr.bf16.mxu0 0
        %10452 = vmatpush1.bf16.msra.mxu0 0
        %10453 = vmatprep.subr.bf16.mxu0 0
        %10454 = vmatpush1.bf16.msra.mxu0 0
        %10455 = vmatprep.subr.bf16.mxu0 0
        %10456 = vmatpush1.bf16.msra.mxu0 0
        %10457 = vmatprep.subr.bf16.mxu0 0
        %10458 = vmatpush1.bf16.msra.mxu0 0
        %10459 = vmatprep.mubr.bf16.mxu0 0
        %10460 = vmatmul.mubr.bf16.gmra.mrb[0].mxu0 %v10376
        %v10461 = vpop.f32.mrb[0].mxu0
        %v10462 = vadd.f32 0.0, %v10461
        %v10463 = vpop.f32.mrb[0].mxu0
        %v10464 = vpop.f32.mrb[0].mxu0
        %v10465 = vpop.f32.mrb[0].mxu0
        %10466 = vdwg.mxu0
        %v10467 = vadd.f32 %v10342, %v10462
        %v10468 = vld [vmem:[%s9789] sm:$0x1]
        %s10469 = scalar_lea.vmem [#allocation11], 384
        %v10470 = vld [vmem:[%s10469] sm:$0xf]
        %v10471 = vld [vmem:[%s10469 + $0x4] sm:$0xf]
        %v10472 = vld [vmem:[%s10469 + $0x8] sm:$0xf]
        %v10473 = vld [vmem:[%s10469 + $0xc] sm:$0xf]
        %v10474 = vld [vmem:[%s10469 + $0x10] sm:$0xf]
        %v10475 = vld [vmem:[%s10469 + $0x14] sm:$0xf]
        %v10476 = vld [vmem:[%s10469 + $0x18] sm:$0xf]
        %v10477 = vld [vmem:[%s10469 + $0x1c] sm:$0xf]
        %v10478 = vld [vmem:[%s10469 + $0x20] sm:$0xf]
        %v10479 = vld [vmem:[%s10469 + $0x24] sm:$0xf]
        %v10480 = vld [vmem:[%s10469 + $0x28] sm:$0xf]
        %v10481 = vld [vmem:[%s10469 + $0x2c] sm:$0xf]
        %v10482 = vld [vmem:[%s10469 + $0x30] sm:$0xf]
        %v10483 = vld [vmem:[%s10469 + $0x34] sm:$0xf]
        %v10484 = vld [vmem:[%s10469 + $0x38] sm:$0xf]
        %v10485 = vld [vmem:[%s10469 + $0x3c] sm:$0xf]
        %v10502 = vunpack.c.l.b16 %v10470
        %v10503 = vunpack.c.l.b16 %v10471
        %v10504 = vunpack.c.l.b16 %v10472
        %v10505 = vunpack.c.l.b16 %v10473
        %v10506 = vunpack.c.l.b16 %v10474
        %v10507 = vunpack.c.l.b16 %v10475
        %v10508 = vunpack.c.l.b16 %v10476
        %v10509 = vunpack.c.l.b16 %v10477
        %v10510 = vunpack.c.l.b16 %v10478
        %v10511 = vunpack.c.l.b16 %v10479
        %v10512 = vunpack.c.l.b16 %v10480
        %v10513 = vunpack.c.l.b16 %v10481
        %v10514 = vunpack.c.l.b16 %v10482
        %v10515 = vunpack.c.l.b16 %v10483
        %v10516 = vunpack.c.l.b16 %v10484
        %v10517 = vunpack.c.l.b16 %v10485
        %v10518 = vpack.c.b16 %v10503, %v10502
        %v10519 = vpack.c.b16 %v10505, %v10504
        %v10520 = vpack.c.b16 %v10507, %v10506
        %v10521 = vpack.c.b16 %v10509, %v10508
        %v10522 = vpack.c.b16 %v10511, %v10510
        %v10523 = vpack.c.b16 %v10513, %v10512
        %v10524 = vpack.c.b16 %v10515, %v10514
        %v10525 = vpack.c.b16 %v10517, %v10516
        %10534 = vmatprep.subr.bf16.mxu0 0
        %10535 = vmatpush1.bf16.msra.mxu0 %v10518
        %10536 = vmatprep.subr.bf16.mxu0 0
        %10537 = vmatpush1.bf16.msra.mxu0 %v10519
        %10538 = vmatprep.subr.bf16.mxu0 0
        %10539 = vmatpush1.bf16.msra.mxu0 %v10520
        %10540 = vmatprep.subr.bf16.mxu0 0
        %10541 = vmatpush1.bf16.msra.mxu0 %v10521
        %10542 = vmatprep.subr.bf16.mxu0 0
        %10543 = vmatpush1.bf16.msra.mxu0 %v10522
        %10544 = vmatprep.subr.bf16.mxu0 0
        %10545 = vmatpush1.bf16.msra.mxu0 %v10523
        %10546 = vmatprep.subr.bf16.mxu0 0
        %10547 = vmatpush1.bf16.msra.mxu0 %v10524
        %10548 = vmatprep.subr.bf16.mxu0 0
        %10549 = vmatpush1.bf16.msra.mxu0 %v10525
        %10550 = vmatprep.subr.bf16.mxu0 0
        %10551 = vmatpush1.bf16.msra.mxu0 0
        %10552 = vmatprep.subr.bf16.mxu0 0
        %10553 = vmatpush1.bf16.msra.mxu0 0
        %10554 = vmatprep.subr.bf16.mxu0 0
        %10555 = vmatpush1.bf16.msra.mxu0 0
        %10556 = vmatprep.subr.bf16.mxu0 0
        %10557 = vmatpush1.bf16.msra.mxu0 0
        %10558 = vmatprep.subr.bf16.mxu0 0
        %10559 = vmatpush1.bf16.msra.mxu0 0
        %10560 = vmatprep.subr.bf16.mxu0 0
        %10561 = vmatpush1.bf16.msra.mxu0 0
        %10562 = vmatprep.subr.bf16.mxu0 0
        %10563 = vmatpush1.bf16.msra.mxu0 0
        %10564 = vmatprep.subr.bf16.mxu0 0
        %10565 = vmatpush1.bf16.msra.mxu0 0
        %10566 = vmatprep.mubr.bf16.mxu0 0
        %10567 = vmatmul.mubr.bf16.gmra.mrb[0].mxu0 %v10468
        %v10568 = vpop.f32.mrb[0].mxu0
        %v10569 = vadd.f32 0.0, %v10568
        %v10570 = vpop.f32.mrb[0].mxu0
        %v10571 = vpop.f32.mrb[0].mxu0
        %v10572 = vpop.f32.mrb[0].mxu0
        %10573 = vdwg.mxu0
        %v10574 = vadd.f32 %v10467, %v10569
        %v10575 = vld [vmem:[%s9785] sm:$0x1]
        %s10576 = scalar_lea.vmem [#allocation11], 448
        %v10577 = vld [vmem:[%s10576] sm:$0xf]
        %v10578 = vld [vmem:[%s10576 + $0x4] sm:$0xf]
        %v10579 = vld [vmem:[%s10576 + $0x8] sm:$0xf]
        %v10580 = vld [vmem:[%s10576 + $0xc] sm:$0xf]
        %v10581 = vld [vmem:[%s10576 + $0x10] sm:$0xf]
        %v10582 = vld [vmem:[%s10576 + $0x14] sm:$0xf]
        %v10583 = vld [vmem:[%s10576 + $0x18] sm:$0xf]
        %v10584 = vld [vmem:[%s10576 + $0x1c] sm:$0xf]
        %v10585 = vld [vmem:[%s10576 + $0x20] sm:$0xf]
        %v10586 = vld [vmem:[%s10576 + $0x24] sm:$0xf]
        %v10587 = vld [vmem:[%s10576 + $0x28] sm:$0xf]
        %v10588 = vld [vmem:[%s10576 + $0x2c] sm:$0xf]
        %v10589 = vld [vmem:[%s10576 + $0x30] sm:$0xf]
        %v10590 = vld [vmem:[%s10576 + $0x34] sm:$0xf]
        %v10591 = vld [vmem:[%s10576 + $0x38] sm:$0xf]
        %v10592 = vld [vmem:[%s10576 + $0x3c] sm:$0xf]
        %v10609 = vunpack.c.l.b16 %v10577
        %v10610 = vunpack.c.l.b16 %v10578
        %v10611 = vunpack.c.l.b16 %v10579
        %v10612 = vunpack.c.l.b16 %v10580
        %v10613 = vunpack.c.l.b16 %v10581
        %v10614 = vunpack.c.l.b16 %v10582
        %v10615 = vunpack.c.l.b16 %v10583
        %v10616 = vunpack.c.l.b16 %v10584
        %v10617 = vunpack.c.l.b16 %v10585
        %v10618 = vunpack.c.l.b16 %v10586
        %v10619 = vunpack.c.l.b16 %v10587
        %v10620 = vunpack.c.l.b16 %v10588
        %v10621 = vunpack.c.l.b16 %v10589
        %v10622 = vunpack.c.l.b16 %v10590
        %v10623 = vunpack.c.l.b16 %v10591
        %v10624 = vunpack.c.l.b16 %v10592
        %v10625 = vpack.c.b16 %v10610, %v10609
        %v10626 = vpack.c.b16 %v10612, %v10611
        %v10627 = vpack.c.b16 %v10614, %v10613
        %v10628 = vpack.c.b16 %v10616, %v10615
        %v10629 = vpack.c.b16 %v10618, %v10617
        %v10630 = vpack.c.b16 %v10620, %v10619
        %v10631 = vpack.c.b16 %v10622, %v10621
        %v10632 = vpack.c.b16 %v10624, %v10623
        %10641 = vmatprep.subr.bf16.mxu0 0
        %10642 = vmatpush1.bf16.msra.mxu0 %v10625
        %10643 = vmatprep.subr.bf16.mxu0 0
        %10644 = vmatpush1.bf16.msra.mxu0 %v10626
        %10645 = vmatprep.subr.bf16.mxu0 0
        %10646 = vmatpush1.bf16.msra.mxu0 %v10627
        %10647 = vmatprep.subr.bf16.mxu0 0
        %10648 = vmatpush1.bf16.msra.mxu0 %v10628
        %10649 = vmatprep.subr.bf16.mxu0 0
        %10650 = vmatpush1.bf16.msra.mxu0 %v10629
        %10651 = vmatprep.subr.bf16.mxu0 0
        %10652 = vmatpush1.bf16.msra.mxu0 %v10630
        %10653 = vmatprep.subr.bf16.mxu0 0
        %10654 = vmatpush1.bf16.msra.mxu0 %v10631
        %10655 = vmatprep.subr.bf16.mxu0 0
        %10656 = vmatpush1.bf16.msra.mxu0 %v10632
        %10657 = vmatprep.subr.bf16.mxu0 0
        %10658 = vmatpush1.bf16.msra.mxu0 0
        %10659 = vmatprep.subr.bf16.mxu0 0
        %10660 = vmatpush1.bf16.msra.mxu0 0
        %10661 = vmatprep.subr.bf16.mxu0 0
        %10662 = vmatpush1.bf16.msra.mxu0 0
        %10663 = vmatprep.subr.bf16.mxu0 0
        %10664 = vmatpush1.bf16.msra.mxu0 0
        %10665 = vmatprep.subr.bf16.mxu0 0
        %10666 = vmatpush1.bf16.msra.mxu0 0
        %10667 = vmatprep.subr.bf16.mxu0 0
        %10668 = vmatpush1.bf16.msra.mxu0 0
        %10669 = vmatprep.subr.bf16.mxu0 0
        %10670 = vmatpush1.bf16.msra.mxu0 0
        %10671 = vmatprep.subr.bf16.mxu0 0
        %10672 = vmatpush1.bf16.msra.mxu0 0
        %10673 = vmatprep.mubr.bf16.mxu0 0
        %10674 = vmatmul.mubr.bf16.gmra.mrb[0].mxu0 %v10575
        %v10675 = vpop.f32.mrb[0].mxu0
        %v10676 = vadd.f32 0.0, %v10675
        %v10677 = vpop.f32.mrb[0].mxu0
        %v10678 = vpop.f32.mrb[0].mxu0
        %v10679 = vpop.f32.mrb[0].mxu0
        %10680 = vdwg.mxu0
        %v10681 = vadd.f32 %v10574, %v10676
        %s10682 = scalar_lea.vmem [#allocation11], 512
        %v10683 = vld [vmem:[%s10682] sm:$0xf]
        %v10684 = vld [vmem:[%s10682 + $0x4] sm:$0xf]
        %v10685 = vld [vmem:[%s10682 + $0x8] sm:$0xf]
        %v10686 = vld [vmem:[%s10682 + $0xc] sm:$0xf]
        %v10687 = vld [vmem:[%s10682 + $0x10] sm:$0xf]
        %v10688 = vld [vmem:[%s10682 + $0x14] sm:$0xf]
        %v10689 = vld [vmem:[%s10682 + $0x18] sm:$0xf]
        %v10690 = vld [vmem:[%s10682 + $0x1c] sm:$0xf]
        %v10691 = vld [vmem:[%s10682 + $0x20] sm:$0xf]
        %v10692 = vld [vmem:[%s10682 + $0x24] sm:$0xf]
        %v10693 = vld [vmem:[%s10682 + $0x28] sm:$0xf]
        %v10694 = vld [vmem:[%s10682 + $0x2c] sm:$0xf]
        %v10695 = vld [vmem:[%s10682 + $0x30] sm:$0xf]
        %v10696 = vld [vmem:[%s10682 + $0x34] sm:$0xf]
        %v10697 = vld [vmem:[%s10682 + $0x38] sm:$0xf]
        %v10698 = vld [vmem:[%s10682 + $0x3c] sm:$0xf]
        %v10701 = vunpack.c.l.s4 1966171168
        %v10702 = vunpack.c.0.s8 %v10701
        %v10703 = vlaneseq
        %v10704 = vshrl.u32 %v10703, 7
        %v10705 = vsub.s32 %v10702, %v10704
        %v10706 = vrot.slane %v10468, %v10705
        %v10708 = vunpack.c.l.s4 1966171168
        %v10709 = vunpack.c.0.s8 %v10708
        %v10710 = vlaneseq
        %v10711 = vshrl.u32 %v10710, 7
        %v10712 = vsub.s32 %v10709, %v10711
        %v10713 = vrot.slane %v10706, %v10712
        %v10715 = vshrl.u32 %v10713, 16
        %v10734 = vunpack.c.l.b16 %v10683
        %v10735 = vunpack.c.l.b16 %v10684
        %v10736 = vunpack.c.l.b16 %v10685
        %v10737 = vunpack.c.l.b16 %v10686
        %v10738 = vunpack.c.l.b16 %v10687
        %v10739 = vunpack.c.l.b16 %v10688
        %v10740 = vunpack.c.l.b16 %v10689
        %v10741 = vunpack.c.l.b16 %v10690
        %v10742 = vunpack.c.l.b16 %v10691
        %v10743 = vunpack.c.l.b16 %v10692
        %v10744 = vunpack.c.l.b16 %v10693
        %v10745 = vunpack.c.l.b16 %v10694
        %v10746 = vunpack.c.l.b16 %v10695
        %v10747 = vunpack.c.l.b16 %v10696
        %v10748 = vunpack.c.l.b16 %v10697
        %v10749 = vunpack.c.l.b16 %v10698
        %v10750 = vpack.c.b16 %v10735, %v10734
        %v10751 = vpack.c.b16 %v10737, %v10736
        %v10752 = vpack.c.b16 %v10739, %v10738
        %v10753 = vpack.c.b16 %v10741, %v10740
        %v10754 = vpack.c.b16 %v10743, %v10742
        %v10755 = vpack.c.b16 %v10745, %v10744
        %v10756 = vpack.c.b16 %v10747, %v10746
        %v10757 = vpack.c.b16 %v10749, %v10748
        %10766 = vmatprep.subr.bf16.mxu0 0
        %10767 = vmatpush1.bf16.msra.mxu0 %v10750
        %10768 = vmatprep.subr.bf16.mxu0 0
        %10769 = vmatpush1.bf16.msra.mxu0 %v10751
        %10770 = vmatprep.subr.bf16.mxu0 0
        %10771 = vmatpush1.bf16.msra.mxu0 %v10752
        %10772 = vmatprep.subr.bf16.mxu0 0
        %10773 = vmatpush1.bf16.msra.mxu0 %v10753
        %10774 = vmatprep.subr.bf16.mxu0 0
        %10775 = vmatpush1.bf16.msra.mxu0 %v10754
        %10776 = vmatprep.subr.bf16.mxu0 0
        %10777 = vmatpush1.bf16.msra.mxu0 %v10755
        %10778 = vmatprep.subr.bf16.mxu0 0
        %10779 = vmatpush1.bf16.msra.mxu0 %v10756
        %10780 = vmatprep.subr.bf16.mxu0 0
        %10781 = vmatpush1.bf16.msra.mxu0 %v10757
        %10782 = vmatprep.subr.bf16.mxu0 0
        %10783 = vmatpush1.bf16.msra.mxu0 0
        %10784 = vmatprep.subr.bf16.mxu0 0
        %10785 = vmatpush1.bf16.msra.mxu0 0
        %10786 = vmatprep.subr.bf16.mxu0 0
        %10787 = vmatpush1.bf16.msra.mxu0 0
        %10788 = vmatprep.subr.bf16.mxu0 0
        %10789 = vmatpush1.bf16.msra.mxu0 0
        %10790 = vmatprep.subr.bf16.mxu0 0
        %10791 = vmatpush1.bf16.msra.mxu0 0
        %10792 = vmatprep.subr.bf16.mxu0 0
        %10793 = vmatpush1.bf16.msra.mxu0 0
        %10794 = vmatprep.subr.bf16.mxu0 0
        %10795 = vmatpush1.bf16.msra.mxu0 0
        %10796 = vmatprep.subr.bf16.mxu0 0
        %10797 = vmatpush1.bf16.msra.mxu0 0
        %10798 = vmatprep.mubr.bf16.mxu0 0
        %10799 = vmatmul.mubr.bf16.gmra.mrb[0].mxu0 %v10715
        %v10800 = vpop.f32.mrb[0].mxu0
        %v10801 = vadd.f32 0.0, %v10800
        %v10802 = vpop.f32.mrb[0].mxu0
        %v10803 = vpop.f32.mrb[0].mxu0
        %v10804 = vpop.f32.mrb[0].mxu0
        %10805 = vdwg.mxu0
        %v10806 = vadd.f32 %v10681, %v10801
        %v10807 = vld [vmem:[%s8] sm:$0x1]
        %v10808 = vadd.f32 %v10806, %v10807
        %vm10809 = vcmp.ge.f32.partialorder %v10808, 0.0
        %v10810 = vmul.f32 %v10808, 0.01
        %v10811 = vsel %vm10809, %v10808, %v10810
        %v10812 = vpack.c.bf16 %v10811, %v10811
        %v10813 = vld [vmem:[%s9] sm:$0xf]
        %v10814 = vld [vmem:[%s9 + $0x4] sm:$0xf]
        %v10815 = vld [vmem:[%s9 + $0x8] sm:$0xf]
        %v10816 = vld [vmem:[%s9 + $0xc] sm:$0xf]
        %v10817 = vld [vmem:[%s9 + $0x10] sm:$0xf]
        %v10818 = vld [vmem:[%s9 + $0x14] sm:$0xf]
        %v10819 = vld [vmem:[%s9 + $0x18] sm:$0xf]
        %v10820 = vld [vmem:[%s9 + $0x1c] sm:$0xf]
        %v10821 = vld [vmem:[%s9 + $0x20] sm:$0xf]
        %v10822 = vld [vmem:[%s9 + $0x24] sm:$0xf]
        %v10823 = vld [vmem:[%s9 + $0x28] sm:$0xf]
        %v10824 = vld [vmem:[%s9 + $0x2c] sm:$0xf]
        %v10825 = vld [vmem:[%s9 + $0x30] sm:$0xf]
        %v10826 = vld [vmem:[%s9 + $0x34] sm:$0xf]
        %v10827 = vld [vmem:[%s9 + $0x38] sm:$0xf]
        %v10828 = vld [vmem:[%s9 + $0x3c] sm:$0xf]
        %v10829 = vld [vmem:[%s10] sm:$0x1]
        %v10846 = vunpack.c.l.b16 %v10813
        %v10847 = vunpack.c.l.b16 %v10814
        %v10848 = vunpack.c.l.b16 %v10815
        %v10849 = vunpack.c.l.b16 %v10816
        %v10850 = vunpack.c.l.b16 %v10817
        %v10851 = vunpack.c.l.b16 %v10818
        %v10852 = vunpack.c.l.b16 %v10819
        %v10853 = vunpack.c.l.b16 %v10820
        %v10854 = vunpack.c.l.b16 %v10821
        %v10855 = vunpack.c.l.b16 %v10822
        %v10856 = vunpack.c.l.b16 %v10823
        %v10857 = vunpack.c.l.b16 %v10824
        %v10858 = vunpack.c.l.b16 %v10825
        %v10859 = vunpack.c.l.b16 %v10826
        %v10860 = vunpack.c.l.b16 %v10827
        %v10861 = vunpack.c.l.b16 %v10828
        %v10862 = vpack.c.b16 %v10847, %v10846
        %v10863 = vpack.c.b16 %v10849, %v10848
        %v10864 = vpack.c.b16 %v10851, %v10850
        %v10865 = vpack.c.b16 %v10853, %v10852
        %v10866 = vpack.c.b16 %v10855, %v10854
        %v10867 = vpack.c.b16 %v10857, %v10856
        %v10868 = vpack.c.b16 %v10859, %v10858
        %v10869 = vpack.c.b16 %v10861, %v10860
        %10878 = vmatprep.subr.bf16.mxu0 0
        %10879 = vmatpush1.bf16.msra.mxu0 %v10862
        %10880 = vmatprep.subr.bf16.mxu0 0
        %10881 = vmatpush1.bf16.msra.mxu0 %v10863
        %10882 = vmatprep.subr.bf16.mxu0 0
        %10883 = vmatpush1.bf16.msra.mxu0 %v10864
        %10884 = vmatprep.subr.bf16.mxu0 0
        %10885 = vmatpush1.bf16.msra.mxu0 %v10865
        %10886 = vmatprep.subr.bf16.mxu0 0
        %10887 = vmatpush1.bf16.msra.mxu0 %v10866
        %10888 = vmatprep.subr.bf16.mxu0 0
        %10889 = vmatpush1.bf16.msra.mxu0 %v10867
        %10890 = vmatprep.subr.bf16.mxu0 0
        %10891 = vmatpush1.bf16.msra.mxu0 %v10868
        %10892 = vmatprep.subr.bf16.mxu0 0
        %10893 = vmatpush1.bf16.msra.mxu0 %v10869
        %10894 = vmatprep.subr.bf16.mxu0 0
        %10895 = vmatpush1.bf16.msra.mxu0 0
        %10896 = vmatprep.subr.bf16.mxu0 0
        %10897 = vmatpush1.bf16.msra.mxu0 0
        %10898 = vmatprep.subr.bf16.mxu0 0
        %10899 = vmatpush1.bf16.msra.mxu0 0
        %10900 = vmatprep.subr.bf16.mxu0 0
        %10901 = vmatpush1.bf16.msra.mxu0 0
        %10902 = vmatprep.subr.bf16.mxu0 0
        %10903 = vmatpush1.bf16.msra.mxu0 0
        %10904 = vmatprep.subr.bf16.mxu0 0
        %10905 = vmatpush1.bf16.msra.mxu0 0
        %10906 = vmatprep.subr.bf16.mxu0 0
        %10907 = vmatpush1.bf16.msra.mxu0 0
        %10908 = vmatprep.subr.bf16.mxu0 0
        %10909 = vmatpush1.bf16.msra.mxu0 0
        %10910 = vmatprep.mubr.bf16.mxu0 0
        %10911 = vmatmul.mubr.bf16.gmra.mrb[0].mxu0 %v10812
        %v10912 = vpop.f32.mrb[0].mxu0
        %v10913 = vadd.f32 %v10829, %v10912
        %v10914 = vpop.f32.mrb[0].mxu0
        %v10915 = vpop.f32.mrb[0].mxu0
        %v10916 = vpop.f32.mrb[0].mxu0
        %10917 = vdwg.mxu0
        %10918 = vst [vmem:[%s422] sm:$0x1] %v10913
        %s10919 = sand.u32 %s271, 1
        %s10920 = scalar_lea.sflag [#allocation8], %s10919
        %s10921 = sand.u32 %s271, 1
        %s10922 = scalar_lea.vmem [#allocation12], %s10921
        // Predicated region
        $region77: #{branch2_forward.1} parent=63 // pred_check
          %p10923 = pneg %p281
        $region78: #{branch2_forward.1} parent=63 // pred_check_branch
          %10925 = sbr.rel (%p10923) target = $region80
        $region79: #{branch2_forward.1} parent=63 // pred_region
          %s10927 = ssub.s32 16, 16
          %10928 = vsyncadd %s10920, %s10927
          %s10929 = smul.addr %s27, 16
          %s10930 = scalar_lea.hbm %s11, %s10929
          %s10932 = sshll.u32 %s10922, 4
          %s10933 = int_to_ptr.vmem [resolvable:$true] %s10932
          %10935 = dma.vmem_to_hbm [thread:$0]  %s10933, 16, %s10930, %s10920
        $region80: #{branch2_forward.1} parent=63 // pred_fallthru
          _
      $region64: #{branch2_forward.1} parent=5 // pred_fallthru
        _
      %p10936 = scmp.le.s32.totalorder 2, %s22
      // Predicated region
      $region81: #{branch2_forward.1} parent=5 // pred_check
        %p10937 = pneg %p10936
      $region82: #{branch2_forward.1} parent=5 // pred_check_branch
        %10939 = sbr.rel (%p10937) target = $region84
      $region83: #{branch2_forward.1} parent=5 // pred_region
        %s10940 = ssub.s32 %s22, 2
        // Predicated region
        $region85: #{branch2_forward.1} parent=83 // pred_check
          %p10941 = pneg %p287
        $region86: #{branch2_forward.1} parent=83 // pred_check_branch
          %10943 = sbr.rel (%p10941) target = $region88
        $region87: #{branch2_forward.1} parent=83 // pred_region
          %s10944 = sand.u32 %s272, 1
          %s10945 = scalar_lea.sflag [#allocation8], %s10944
          %s10946 = sand.u32 %s272, 1
          %s10947 = scalar_lea.vmem [#allocation12], %s10946
          %10948 = dma.done %s10945, 16
        $region88: #{branch2_forward.1} parent=83 // pred_fallthru
          _
      $region84: #{branch2_forward.1} parent=5 // pred_fallthru
        _
    $region6: #{branch2_forward.1} parent=1 // loop_footer
      %s26 = sadd.s32 1, %s22
    $region7: #{branch2_forward.1} parent=1 // loop_footer_branch
      %21 = sbr.rel target = $region3
    $region8: #{branch2_forward.1} parent=1 // loop_exit
      _
    %10949 = vsyncpa [#allocation7], 1
    %s10950 = scalar_lea.sflag [#allocation7], 1
    %10951 = vsyncpa %s10950, 1
    %10952 = vsyncpa [#allocation10], 1
    %10953 = vsyncpa [#allocation8], 1
    %s10954 = scalar_lea.sflag [#allocation8], 1
    %10955 = vsyncpa %s10954, 1

</llo_original>
